<compile_context>
chip_gen: v7x
topology: tpu7x:2x2x1
jax: 0.10.0
libtpu: 0.0.40
codegen_flags: <defaults>
</compile_context>

<pallas_src>
import jax
import jax.numpy as jnp
from jax.experimental import pallas as pl
from jax.experimental.pallas import tpu as pltpu


# ----------------------------------------------------------------------------
# Model configuration (small-shape version of the PyTorch defaults).
# ----------------------------------------------------------------------------
N_CLASSES = 4
POOL_SIZE = 3
N_CHARS = 70
CHANNEL = 128                  # small-shape version of channel_size=256
KERNELS = (7, 7, 3, 3, 3, 3)
MAX_LEN = 204                  # small-shape version of max_len=1014
HIDDEN = 1024                  # hardcoded in the PyTorch module
FINAL_LEN = (MAX_LEN - 96) // 27   # = 4
LANE = 128                     # lane-dense padding for logits / slab widths
LAYER_POOLS = (POOL_SIZE, POOL_SIZE, 1, 1, 1, POOL_SIZE)
L_CONV0 = MAX_LEN - KERNELS[0] + 1                               # 198
SLAB0_W = ((KERNELS[0] * N_CHARS + LANE - 1) // LANE) * LANE     # 490 -> 512


# ----------------------------------------------------------------------------
# Conv stack kernel: one batch sample per grid step.
#   x_ref    : (L_CONV0, SLAB0_W) bf16 -- conv0 im2col slab, built in wrapper
#   wN / bN  : conv weights (K*C_in, C_out) bf16 (rows k*C_in + c), bias (1, C_out) f32
#   o_ref    : (FINAL_LEN, CHANNEL) bf16 pooled features
#   pool_scr : (L_CONV0, CHANNEL) f32 VMEM scratch for strided max-pool reads
# ----------------------------------------------------------------------------
def _conv_stack_kernel(x_ref,
                       w0, b0, w1, b1, w2, b2, w3, b3, w4, b4, w5, b5,
                       o_ref, pool_scr):
    conv_layers = ((w0, b0), (w1, b1), (w2, b2), (w3, b3), (w4, b4), (w5, b5))

    a = None                                          # bf16 channels-last activation
    for i, ((w_ref, b_ref), pool) in enumerate(zip(conv_layers, LAYER_POOLS)):
        if i == 0:
            slab = x_ref[...]                         # (198, 512) bf16, pre-im2col'd
            l_conv = slab.shape[0]
        else:
            c_in = a.shape[1]
            ksize = w_ref.shape[0] // c_in
            l_conv = a.shape[0] - ksize + 1
            # im2col in bf16: one wide-contraction MXU matmul per conv layer.
            slab = jnp.concatenate(
                [a[k:k + l_conv, :] for k in range(ksize)], axis=-1)

        acc = jnp.dot(slab, w_ref[...], preferred_element_type=jnp.float32)
        acc = jnp.maximum(acc + b_ref[...], 0.0)      # bias + ReLU in f32 (v5e-safe)

        if pool == 1:
            a = acc.astype(jnp.bfloat16)
        else:
            # MaxPool1d(pool): scratch store + `pool` strided sublane reads
            # (proven lowering); math kept in f32, cast once afterwards.
            l_out = l_conv // pool
            pool_scr[pl.ds(0, l_conv), :] = acc
            m = pool_scr[pl.ds(0, l_out, stride=pool), :]
            for p in range(1, pool):
                m = jnp.maximum(m, pool_scr[pl.ds(p, l_out, stride=pool), :])
            a = m.astype(jnp.bfloat16)

    o_ref[...] = a                                    # (4, 128) bf16 pooled features


# ----------------------------------------------------------------------------
# FC stack kernel: runs ONCE for the whole batch (M = n rows).
#   f_ref   : (n, FINAL_LEN*CHANNEL) bf16 flattened features (l*C + c order)
#   wfN/bfN : fc weights (D_in, D_out) bf16, bias (1, D_out) f32
#   o_ref   : (n, 128) f32 lane-dense padded logits
# ----------------------------------------------------------------------------
def _fc_stack_kernel(f_ref, wf0, bf0, wf1, bf1, wf2, bf2, o_ref):
    h = jnp.dot(f_ref[...], wf0[...], preferred_element_type=jnp.float32)
    h = jnp.maximum(h + bf0[...], 0.0)
    # TODO(synk): Dropout(p=0.5) is identity in eval mode; training-mode dropout not implemented.
    h = jnp.dot(h.astype(jnp.bfloat16), wf1[...], preferred_element_type=jnp.float32)
    h = jnp.maximum(h + bf1[...], 0.0)
    logits = jnp.dot(h.astype(jnp.bfloat16), wf2[...],
                     preferred_element_type=jnp.float32) + bf2[...]
    o_ref[...] = logits.astype(o_ref.dtype)


# ----------------------------------------------------------------------------
# Parameter init (bf16 weights, f32 biases), layouts matched to the kernels.
# ----------------------------------------------------------------------------
def init_params(key):
    params = {}
    c_ins = [N_CHARS] + [CHANNEL] * 5
    for i, (k, c_in) in enumerate(zip(KERNELS, c_ins)):
        key, kw, kb = jax.random.split(key, 3)
        # PyTorch init: conv weight ~ N(0, 0.05); layout (K, C_in, C_out).
        w = 0.05 * jax.random.normal(kw, (k, c_in, CHANNEL), jnp.float32)
        # Pre-flatten taps to (K*C_in, C_out), row order k*C_in + c (= im2col order).
        w = w.reshape(k * c_in, CHANNEL)
        if i == 0:
            # conv0 consumes the wrapper-built slab padded 490 -> 512 columns.
            w = jnp.pad(w, ((0, SLAB0_W - k * c_in), (0, 0)))
        params[f"conv{i}_w"] = w.astype(jnp.bfloat16)
        bound = 1.0 / jnp.sqrt(jnp.float32(c_in * k))
        params[f"conv{i}_b"] = jax.random.uniform(
            kb, (1, CHANNEL), jnp.float32, -bound, bound)

    fc_dims = [(FINAL_LEN * CHANNEL, HIDDEN), (HIDDEN, HIDDEN), (HIDDEN, N_CLASSES)]
    for i, (d_in, d_out) in enumerate(fc_dims):
        key, kw, kb = jax.random.split(key, 3)
        bound = 1.0 / jnp.sqrt(jnp.float32(d_in))
        w = jax.random.uniform(kw, (d_in, d_out), jnp.float32, -bound, bound)
        b = jax.random.uniform(kb, (1, d_out), jnp.float32, -bound, bound)
        if d_out < LANE:     # pad fc2 logits to a lane-dense 128-wide output
            w = jnp.pad(w, ((0, 0), (0, LANE - d_out)))
            b = jnp.pad(b, ((0, 0), (0, LANE - d_out)))
        params[f"fc{i}_w"] = w.astype(jnp.bfloat16)     # stored transposed vs PyTorch
        params[f"fc{i}_b"] = b
    return params


# ----------------------------------------------------------------------------
# Forward pass: per-sample conv kernel (grid over batch), then one batched
# FC kernel over all samples.
# ----------------------------------------------------------------------------
@jax.jit
def model_forward(params, x_ncl):
    n = x_ncl.shape[0]
    # PyTorch NCL -> NLC (channels-last) and build conv0's im2col slab in the
    # wrapper on the 70 real channels only; pad columns 490 -> 512, cast bf16.
    x = jnp.transpose(x_ncl, (0, 2, 1))                           # (n, L, 70)
    slab0 = jnp.concatenate(
        [x[:, k:k + L_CONV0, :] for k in range(KERNELS[0])], axis=-1)
    slab0 = jnp.pad(
        slab0, ((0, 0), (0, 0), (0, SLAB0_W - KERNELS[0] * N_CHARS)))
    slab0 = slab0.astype(jnp.bfloat16)                            # (n, 198, 512)

    conv_args = [slab0]
    for i in range(6):
        conv_args += [params[f"conv{i}_w"], params[f"conv{i}_b"]]

    in_specs = [pl.BlockSpec((None, L_CONV0, SLAB0_W), lambda b: (b, 0, 0))]
    # Weights / biases: constant index maps (fetched once across the grid).
    in_specs += [pl.BlockSpec(a.shape, lambda b: (0, 0)) for a in conv_args[1:]]

    feats = pl.pallas_call(
        _conv_stack_kernel,
        out_shape=jax.ShapeDtypeStruct((n, FINAL_LEN, CHANNEL), jnp.bfloat16),
        grid=(n,),
        in_specs=in_specs,
        out_specs=pl.BlockSpec((None, FINAL_LEN, CHANNEL), lambda b: (b, 0, 0)),
        scratch_shapes=[pltpu.VMEM((L_CONV0, CHANNEL), jnp.float32)],
        compiler_params=pltpu.CompilerParams(
            dimension_semantics=("parallel",),
            vmem_limit_bytes=32 * 1024 * 1024),
    )(*conv_args)

    # Flatten (L_final, C) -> L_final*C in (l*C + c) order; fc0's weight rows
    # are stored in the same order (permutation of PyTorch's c*L + l).
    feats_flat = feats.reshape(n, FINAL_LEN * CHANNEL)

    # FC stage once at M=batch (no grid -> whole arrays resident in VMEM).
    logits = pl.pallas_call(
        _fc_stack_kernel,
        out_shape=jax.ShapeDtypeStruct((n, LANE), jnp.float32),
    )(feats_flat,
      params["fc0_w"], params["fc0_b"],
      params["fc1_w"], params["fc1_b"],
      params["fc2_w"], params["fc2_b"])

    return logits[:, :N_CLASSES]


if __name__ == "__main__":
    key = jax.random.PRNGKey(0)
    key, k_param, k_x = jax.random.split(key, 3)
    params = init_params(k_param)
    # PyTorch input convention: (batch, n_chars, max_len)
    x = jax.random.normal(k_x, (2, N_CHARS, MAX_LEN), jnp.float32)

    out = model_forward(params, x)
    out = jax.block_until_ready(out)
    assert out.shape == (2, N_CLASSES), out.shape
    assert bool(jnp.all(jnp.isfinite(out))), "non-finite output"
    print("KERNEL_OK")
</pallas_src>

<mosaic_0001>
module attributes {stable_mosaic.version = 11 : i64} {
  func.func @_conv_stack_kernel(%arg0: i32, %arg1: memref<1x198x512xbf16, #tpu.memory_space<vmem>>, %arg2: memref<512x128xbf16, #tpu.memory_space<vmem>>, %arg3: memref<1x128xf32, #tpu.memory_space<vmem>>, %arg4: memref<896x128xbf16, #tpu.memory_space<vmem>>, %arg5: memref<1x128xf32, #tpu.memory_space<vmem>>, %arg6: memref<384x128xbf16, #tpu.memory_space<vmem>>, %arg7: memref<1x128xf32, #tpu.memory_space<vmem>>, %arg8: memref<384x128xbf16, #tpu.memory_space<vmem>>, %arg9: memref<1x128xf32, #tpu.memory_space<vmem>>, %arg10: memref<384x128xbf16, #tpu.memory_space<vmem>>, %arg11: memref<1x128xf32, #tpu.memory_space<vmem>>, %arg12: memref<384x128xbf16, #tpu.memory_space<vmem>>, %arg13: memref<1x128xf32, #tpu.memory_space<vmem>>, %arg14: memref<1x4x128xbf16, #tpu.memory_space<vmem>>, %arg15: memref<198x128xf32, #tpu.memory_space<vmem>>) attributes {dimension_semantics = [#tpu.dimension_semantics<parallel>], iteration_bounds = array<i64: 2>, scalar_prefetch = 0 : i64, scratch_operands = 1 : i64, tpu.core_type = #tpu.core_type<tc>, window_params = [{transform_indices = @transform_0, window_bounds = array<i64: 1, 198, 512>}, {pipeline_mode = #tpu.pipeline_mode<synchronous>, transform_indices = @transform_1, window_bounds = array<i64: 512, 128>}, {pipeline_mode = #tpu.pipeline_mode<synchronous>, transform_indices = @transform_2, window_bounds = array<i64: 1, 128>}, {pipeline_mode = #tpu.pipeline_mode<synchronous>, transform_indices = @transform_3, window_bounds = array<i64: 896, 128>}, {pipeline_mode = #tpu.pipeline_mode<synchronous>, transform_indices = @transform_4, window_bounds = array<i64: 1, 128>}, {pipeline_mode = #tpu.pipeline_mode<synchronous>, transform_indices = @transform_5, window_bounds = array<i64: 384, 128>}, {pipeline_mode = #tpu.pipeline_mode<synchronous>, transform_indices = @transform_6, window_bounds = array<i64: 1, 128>}, {pipeline_mode = #tpu.pipeline_mode<synchronous>, transform_indices = @transform_7, window_bounds = array<i64: 384, 128>}, {pipeline_mode = #tpu.pipeline_mode<synchronous>, transform_indices = @transform_8, window_bounds = array<i64: 1, 128>}, {pipeline_mode = #tpu.pipeline_mode<synchronous>, transform_indices = @transform_9, window_bounds = array<i64: 384, 128>}, {pipeline_mode = #tpu.pipeline_mode<synchronous>, transform_indices = @transform_10, window_bounds = array<i64: 1, 128>}, {pipeline_mode = #tpu.pipeline_mode<synchronous>, transform_indices = @transform_11, window_bounds = array<i64: 384, 128>}, {pipeline_mode = #tpu.pipeline_mode<synchronous>, transform_indices = @transform_12, window_bounds = array<i64: 1, 128>}, {transform_indices = @transform_13, window_bounds = array<i64: 1, 4, 128>}]} {
    %c0 = arith.constant 0 : index
    %c0_0 = arith.constant 0 : index
    %c0_1 = arith.constant 0 : index
    %0 = vector.load %arg1[%c0, %c0_0, %c0_1] : memref<1x198x512xbf16, #tpu.memory_space<vmem>>, vector<1x198x512xbf16>
    %1 = vector.shape_cast %0 : vector<1x198x512xbf16> to vector<198x512xbf16>
    %c0_2 = arith.constant 0 : index
    %c0_3 = arith.constant 0 : index
    %2 = vector.load %arg2[%c0_2, %c0_3] : memref<512x128xbf16, #tpu.memory_space<vmem>>, vector<512x128xbf16>
    %cst = arith.constant dense<0.000000e+00> : vector<198x128xf32>
    %3 = tpu.matmul %1, %2, %cst {dimension_numbers = #tpu.dot_dimension_numbers<[1], [0], [0], [1], [0, 0, 1, 1], [], []>} : vector<198x512xbf16>, vector<512x128xbf16>, vector<198x128xf32> -> vector<198x128xf32>
    %c0_4 = arith.constant 0 : index
    %c0_5 = arith.constant 0 : index
    %4 = vector.load %arg3[%c0_4, %c0_5] : memref<1x128xf32, #tpu.memory_space<vmem>>, vector<1x128xf32>
    %5 = vector.broadcast %4 : vector<1x128xf32> to vector<198x128xf32>
    %6 = arith.addf %3, %5 : vector<198x128xf32>
    %cst_6 = arith.constant 0.000000e+00 : f32
    %7 = vector.broadcast %cst_6 : f32 to vector<198x128xf32>
    %8 = arith.maximumf %6, %7 : vector<198x128xf32>
    %c0_7 = arith.constant 0 : index
    %c0_8 = arith.constant 0 : index
    %9 = vector.load %arg15[%c0_7, %c0_8] : memref<198x128xf32, #tpu.memory_space<vmem>>, vector<198x128xf32>
    tpu.vector_store %arg15[%c0_7, %c0_8], %8 {strides = array<i32>} : memref<198x128xf32, #tpu.memory_space<vmem>>, vector<198x128xf32>,
    %c0_9 = arith.constant 0 : index
    %c0_10 = arith.constant 0 : index
    %10 = tpu.strided_load %arg15[%c0_9, %c0_10] {strides = array<i32: 3, 1>} : memref<198x128xf32, #tpu.memory_space<vmem>>, vector<66x128xf32>
    %c1 = arith.constant 1 : index
    %c0_11 = arith.constant 0 : index
    %11 = tpu.strided_load %arg15[%c1, %c0_11] {strides = array<i32: 3, 1>} : memref<198x128xf32, #tpu.memory_space<vmem>>, vector<66x128xf32>
    %12 = arith.maximumf %10, %11 : vector<66x128xf32>
    %c2 = arith.constant 2 : index
    %c0_12 = arith.constant 0 : index
    %13 = tpu.strided_load %arg15[%c2, %c0_12] {strides = array<i32: 3, 1>} : memref<198x128xf32, #tpu.memory_space<vmem>>, vector<66x128xf32>
    %14 = arith.maximumf %12, %13 : vector<66x128xf32>
    %15 = arith.truncf %14 : vector<66x128xf32> to vector<66x128xbf16>
    %16 = vector.extract_strided_slice %15 {offsets = [0, 0], sizes = [60, 128], strides = [1, 1]} : vector<66x128xbf16> to vector<60x128xbf16>
    %17 = vector.extract_strided_slice %15 {offsets = [1, 0], sizes = [60, 128], strides = [1, 1]} : vector<66x128xbf16> to vector<60x128xbf16>
    %18 = vector.extract_strided_slice %15 {offsets = [2, 0], sizes = [60, 128], strides = [1, 1]} : vector<66x128xbf16> to vector<60x128xbf16>
    %19 = vector.extract_strided_slice %15 {offsets = [3, 0], sizes = [60, 128], strides = [1, 1]} : vector<66x128xbf16> to vector<60x128xbf16>
    %20 = vector.extract_strided_slice %15 {offsets = [4, 0], sizes = [60, 128], strides = [1, 1]} : vector<66x128xbf16> to vector<60x128xbf16>
    %21 = vector.extract_strided_slice %15 {offsets = [5, 0], sizes = [60, 128], strides = [1, 1]} : vector<66x128xbf16> to vector<60x128xbf16>
    %22 = vector.extract_strided_slice %15 {offsets = [6, 0], sizes = [60, 128], strides = [1, 1]} : vector<66x128xbf16> to vector<60x128xbf16>
    %23 = tpu.concatenate %16, %17, %18, %19, %20, %21, %22 in 1 : vector<60x128xbf16>, vector<60x128xbf16>, vector<60x128xbf16>, vector<60x128xbf16>, vector<60x128xbf16>, vector<60x128xbf16>, vector<60x128xbf16> -> vector<60x896xbf16>
    %c0_13 = arith.constant 0 : index
    %c0_14 = arith.constant 0 : index
    %24 = vector.load %arg4[%c0_13, %c0_14] : memref<896x128xbf16, #tpu.memory_space<vmem>>, vector<896x128xbf16>
    %cst_15 = arith.constant dense<0.000000e+00> : vector<60x128xf32>
    %25 = tpu.matmul %23, %24, %cst_15 {dimension_numbers = #tpu.dot_dimension_numbers<[1], [0], [0], [1], [0, 0, 1, 1], [], []>} : vector<60x896xbf16>, vector<896x128xbf16>, vector<60x128xf32> -> vector<60x128xf32>
    %c0_16 = arith.constant 0 : index
    %c0_17 = arith.constant 0 : index
    %26 = vector.load %arg5[%c0_16, %c0_17] : memref<1x128xf32, #tpu.memory_space<vmem>>, vector<1x128xf32>
    %27 = vector.broadcast %26 : vector<1x128xf32> to vector<60x128xf32>
    %28 = arith.addf %25, %27 : vector<60x128xf32>
    %cst_18 = arith.constant 0.000000e+00 : f32
    %29 = vector.broadcast %cst_18 : f32 to vector<60x128xf32>
    %30 = arith.maximumf %28, %29 : vector<60x128xf32>
    %c0_19 = arith.constant 0 : index
    %c0_20 = arith.constant 0 : index
    %31 = vector.load %arg15[%c0_19, %c0_20] : memref<198x128xf32, #tpu.memory_space<vmem>>, vector<60x128xf32>
    tpu.vector_store %arg15[%c0_19, %c0_20], %30 {strides = array<i32>} : memref<198x128xf32, #tpu.memory_space<vmem>>, vector<60x128xf32>,
    %c0_21 = arith.constant 0 : index
    %c0_22 = arith.constant 0 : index
    %32 = tpu.strided_load %arg15[%c0_21, %c0_22] {strides = array<i32: 3, 1>} : memref<198x128xf32, #tpu.memory_space<vmem>>, vector<20x128xf32>
    %c1_23 = arith.constant 1 : index
    %c0_24 = arith.constant 0 : index
    %33 = tpu.strided_load %arg15[%c1_23, %c0_24] {strides = array<i32: 3, 1>} : memref<198x128xf32, #tpu.memory_space<vmem>>, vector<20x128xf32>
    %34 = arith.maximumf %32, %33 : vector<20x128xf32>
    %c2_25 = arith.constant 2 : index
    %c0_26 = arith.constant 0 : index
    %35 = tpu.strided_load %arg15[%c2_25, %c0_26] {strides = array<i32: 3, 1>} : memref<198x128xf32, #tpu.memory_space<vmem>>, vector<20x128xf32>
    %36 = arith.maximumf %34, %35 : vector<20x128xf32>
    %37 = arith.truncf %36 : vector<20x128xf32> to vector<20x128xbf16>
    %38 = vector.extract_strided_slice %37 {offsets = [0, 0], sizes = [18, 128], strides = [1, 1]} : vector<20x128xbf16> to vector<18x128xbf16>
    %39 = vector.extract_strided_slice %37 {offsets = [1, 0], sizes = [18, 128], strides = [1, 1]} : vector<20x128xbf16> to vector<18x128xbf16>
    %40 = vector.extract_strided_slice %37 {offsets = [2, 0], sizes = [18, 128], strides = [1, 1]} : vector<20x128xbf16> to vector<18x128xbf16>
    %41 = tpu.concatenate %38, %39, %40 in 1 : vector<18x128xbf16>, vector<18x128xbf16>, vector<18x128xbf16> -> vector<18x384xbf16>
    %c0_27 = arith.constant 0 : index
    %c0_28 = arith.constant 0 : index
    %42 = vector.load %arg6[%c0_27, %c0_28] : memref<384x128xbf16, #tpu.memory_space<vmem>>, vector<384x128xbf16>
    %cst_29 = arith.constant dense<0.000000e+00> : vector<18x128xf32>
    %43 = tpu.matmul %41, %42, %cst_29 {dimension_numbers = #tpu.dot_dimension_numbers<[1], [0], [0], [1], [0, 0, 1, 1], [], []>} : vector<18x384xbf16>, vector<384x128xbf16>, vector<18x128xf32> -> vector<18x128xf32>
    %c0_30 = arith.constant 0 : index
    %c0_31 = arith.constant 0 : index
    %44 = vector.load %arg7[%c0_30, %c0_31] : memref<1x128xf32, #tpu.memory_space<vmem>>, vector<1x128xf32>
    %45 = vector.broadcast %44 : vector<1x128xf32> to vector<18x128xf32>
    %46 = arith.addf %43, %45 : vector<18x128xf32>
    %cst_32 = arith.constant 0.000000e+00 : f32
    %47 = vector.broadcast %cst_32 : f32 to vector<18x128xf32>
    %48 = arith.maximumf %46, %47 : vector<18x128xf32>
    %49 = arith.truncf %48 : vector<18x128xf32> to vector<18x128xbf16>
    %50 = vector.extract_strided_slice %49 {offsets = [0, 0], sizes = [16, 128], strides = [1, 1]} : vector<18x128xbf16> to vector<16x128xbf16>
    %51 = vector.extract_strided_slice %49 {offsets = [1, 0], sizes = [16, 128], strides = [1, 1]} : vector<18x128xbf16> to vector<16x128xbf16>
    %52 = vector.extract_strided_slice %49 {offsets = [2, 0], sizes = [16, 128], strides = [1, 1]} : vector<18x128xbf16> to vector<16x128xbf16>
    %53 = tpu.concatenate %50, %51, %52 in 1 : vector<16x128xbf16>, vector<16x128xbf16>, vector<16x128xbf16> -> vector<16x384xbf16>
    %c0_33 = arith.constant 0 : index
    %c0_34 = arith.constant 0 : index
    %54 = vector.load %arg8[%c0_33, %c0_34] : memref<384x128xbf16, #tpu.memory_space<vmem>>, vector<384x128xbf16>
    %cst_35 = arith.constant dense<0.000000e+00> : vector<16x128xf32>
    %55 = tpu.matmul %53, %54, %cst_35 {dimension_numbers = #tpu.dot_dimension_numbers<[1], [0], [0], [1], [0, 0, 1, 1], [], []>} : vector<16x384xbf16>, vector<384x128xbf16>, vector<16x128xf32> -> vector<16x128xf32>
    %c0_36 = arith.constant 0 : index
    %c0_37 = arith.constant 0 : index
    %56 = vector.load %arg9[%c0_36, %c0_37] : memref<1x128xf32, #tpu.memory_space<vmem>>, vector<1x128xf32>
    %57 = vector.broadcast %56 : vector<1x128xf32> to vector<16x128xf32>
    %58 = arith.addf %55, %57 : vector<16x128xf32>
    %cst_38 = arith.constant 0.000000e+00 : f32
    %59 = vector.broadcast %cst_38 : f32 to vector<16x128xf32>
    %60 = arith.maximumf %58, %59 : vector<16x128xf32>
    %61 = arith.truncf %60 : vector<16x128xf32> to vector<16x128xbf16>
    %62 = vector.extract_strided_slice %61 {offsets = [0, 0], sizes = [14, 128], strides = [1, 1]} : vector<16x128xbf16> to vector<14x128xbf16>
    %63 = vector.extract_strided_slice %61 {offsets = [1, 0], sizes = [14, 128], strides = [1, 1]} : vector<16x128xbf16> to vector<14x128xbf16>
    %64 = vector.extract_strided_slice %61 {offsets = [2, 0], sizes = [14, 128], strides = [1, 1]} : vector<16x128xbf16> to vector<14x128xbf16>
    %65 = tpu.concatenate %62, %63, %64 in 1 : vector<14x128xbf16>, vector<14x128xbf16>, vector<14x128xbf16> -> vector<14x384xbf16>
    %c0_39 = arith.constant 0 : index
    %c0_40 = arith.constant 0 : index
    %66 = vector.load %arg10[%c0_39, %c0_40] : memref<384x128xbf16, #tpu.memory_space<vmem>>, vector<384x128xbf16>
    %cst_41 = arith.constant dense<0.000000e+00> : vector<14x128xf32>
    %67 = tpu.matmul %65, %66, %cst_41 {dimension_numbers = #tpu.dot_dimension_numbers<[1], [0], [0], [1], [0, 0, 1, 1], [], []>} : vector<14x384xbf16>, vector<384x128xbf16>, vector<14x128xf32> -> vector<14x128xf32>
    %c0_42 = arith.constant 0 : index
    %c0_43 = arith.constant 0 : index
    %68 = vector.load %arg11[%c0_42, %c0_43] : memref<1x128xf32, #tpu.memory_space<vmem>>, vector<1x128xf32>
    %69 = vector.broadcast %68 : vector<1x128xf32> to vector<14x128xf32>
    %70 = arith.addf %67, %69 : vector<14x128xf32>
    %cst_44 = arith.constant 0.000000e+00 : f32
    %71 = vector.broadcast %cst_44 : f32 to vector<14x128xf32>
    %72 = arith.maximumf %70, %71 : vector<14x128xf32>
    %73 = arith.truncf %72 : vector<14x128xf32> to vector<14x128xbf16>
    %74 = vector.extract_strided_slice %73 {offsets = [0, 0], sizes = [12, 128], strides = [1, 1]} : vector<14x128xbf16> to vector<12x128xbf16>
    %75 = vector.extract_strided_slice %73 {offsets = [1, 0], sizes = [12, 128], strides = [1, 1]} : vector<14x128xbf16> to vector<12x128xbf16>
    %76 = vector.extract_strided_slice %73 {offsets = [2, 0], sizes = [12, 128], strides = [1, 1]} : vector<14x128xbf16> to vector<12x128xbf16>
    %77 = tpu.concatenate %74, %75, %76 in 1 : vector<12x128xbf16>, vector<12x128xbf16>, vector<12x128xbf16> -> vector<12x384xbf16>
    %c0_45 = arith.constant 0 : index
    %c0_46 = arith.constant 0 : index
    %78 = vector.load %arg12[%c0_45, %c0_46] : memref<384x128xbf16, #tpu.memory_space<vmem>>, vector<384x128xbf16>
    %cst_47 = arith.constant dense<0.000000e+00> : vector<12x128xf32>
    %79 = tpu.matmul %77, %78, %cst_47 {dimension_numbers = #tpu.dot_dimension_numbers<[1], [0], [0], [1], [0, 0, 1, 1], [], []>} : vector<12x384xbf16>, vector<384x128xbf16>, vector<12x128xf32> -> vector<12x128xf32>
    %c0_48 = arith.constant 0 : index
    %c0_49 = arith.constant 0 : index
    %80 = vector.load %arg13[%c0_48, %c0_49] : memref<1x128xf32, #tpu.memory_space<vmem>>, vector<1x128xf32>
    %81 = vector.broadcast %80 : vector<1x128xf32> to vector<12x128xf32>
    %82 = arith.addf %79, %81 : vector<12x128xf32>
    %cst_50 = arith.constant 0.000000e+00 : f32
    %83 = vector.broadcast %cst_50 : f32 to vector<12x128xf32>
    %84 = arith.maximumf %82, %83 : vector<12x128xf32>
    %c0_51 = arith.constant 0 : index
    %c0_52 = arith.constant 0 : index
    %85 = vector.load %arg15[%c0_51, %c0_52] : memref<198x128xf32, #tpu.memory_space<vmem>>, vector<12x128xf32>
    tpu.vector_store %arg15[%c0_51, %c0_52], %84 {strides = array<i32>} : memref<198x128xf32, #tpu.memory_space<vmem>>, vector<12x128xf32>,
    %c0_53 = arith.constant 0 : index
    %c0_54 = arith.constant 0 : index
    %86 = tpu.strided_load %arg15[%c0_53, %c0_54] {strides = array<i32: 3, 1>} : memref<198x128xf32, #tpu.memory_space<vmem>>, vector<4x128xf32>
    %c1_55 = arith.constant 1 : index
    %c0_56 = arith.constant 0 : index
    %87 = tpu.strided_load %arg15[%c1_55, %c0_56] {strides = array<i32: 3, 1>} : memref<198x128xf32, #tpu.memory_space<vmem>>, vector<4x128xf32>
    %88 = arith.maximumf %86, %87 : vector<4x128xf32>
    %c2_57 = arith.constant 2 : index
    %c0_58 = arith.constant 0 : index
    %89 = tpu.strided_load %arg15[%c2_57, %c0_58] {strides = array<i32: 3, 1>} : memref<198x128xf32, #tpu.memory_space<vmem>>, vector<4x128xf32>
    %90 = arith.maximumf %88, %89 : vector<4x128xf32>
    %91 = arith.truncf %90 : vector<4x128xf32> to vector<4x128xbf16>
    %c0_59 = arith.constant 0 : index
    %c0_60 = arith.constant 0 : index
    %c0_61 = arith.constant 0 : index
    %92 = vector.load %arg14[%c0_59, %c0_60, %c0_61] : memref<1x4x128xbf16, #tpu.memory_space<vmem>>, vector<1x4x128xbf16>
    %93 = vector.shape_cast %92 : vector<1x4x128xbf16> to vector<4x128xbf16>
    %94 = vector.shape_cast %91 : vector<4x128xbf16> to vector<1x4x128xbf16>
    tpu.vector_store %arg14[%c0_59, %c0_60, %c0_61], %94 {strides = array<i32>} : memref<1x4x128xbf16, #tpu.memory_space<vmem>>, vector<1x4x128xbf16>,
    return
  }
  func.func @transform_0(%arg0: i32) -> (i32, i32, i32) {
    %c0_i32 = arith.constant 0 : i32
    %c0_i32_0 = arith.constant 0 : i32
    %c0_i32_1 = arith.constant 0 : i32
    return %arg0, %c0_i32, %c0_i32_0 : i32, i32, i32
  }
  func.func @transform_1(%arg0: i32) -> (i32, i32) {
    %c0_i32 = arith.constant 0 : i32
    %c0_i32_0 = arith.constant 0 : i32
    %c0_i32_1 = arith.constant 0 : i32
    return %c0_i32, %c0_i32_0 : i32, i32
  }
  func.func @transform_2(%arg0: i32) -> (i32, i32) {
    %c0_i32 = arith.constant 0 : i32
    %c0_i32_0 = arith.constant 0 : i32
    %c0_i32_1 = arith.constant 0 : i32
    return %c0_i32, %c0_i32_0 : i32, i32
  }
  func.func @transform_3(%arg0: i32) -> (i32, i32) {
    %c0_i32 = arith.constant 0 : i32
    %c0_i32_0 = arith.constant 0 : i32
    %c0_i32_1 = arith.constant 0 : i32
    return %c0_i32, %c0_i32_0 : i32, i32
  }
  func.func @transform_4(%arg0: i32) -> (i32, i32) {
    %c0_i32 = arith.constant 0 : i32
    %c0_i32_0 = arith.constant 0 : i32
    %c0_i32_1 = arith.constant 0 : i32
    return %c0_i32, %c0_i32_0 : i32, i32
  }
  func.func @transform_5(%arg0: i32) -> (i32, i32) {
    %c0_i32 = arith.constant 0 : i32
    %c0_i32_0 = arith.constant 0 : i32
    %c0_i32_1 = arith.constant 0 : i32
    return %c0_i32, %c0_i32_0 : i32, i32
  }
  func.func @transform_6(%arg0: i32) -> (i32, i32) {
    %c0_i32 = arith.constant 0 : i32
    %c0_i32_0 = arith.constant 0 : i32
    %c0_i32_1 = arith.constant 0 : i32
    return %c0_i32, %c0_i32_0 : i32, i32
  }
  func.func @transform_7(%arg0: i32) -> (i32, i32) {
    %c0_i32 = arith.constant 0 : i32
    %c0_i32_0 = arith.constant 0 : i32
    %c0_i32_1 = arith.constant 0 : i32
    return %c0_i32, %c0_i32_0 : i32, i32
  }
  func.func @transform_8(%arg0: i32) -> (i32, i32) {
    %c0_i32 = arith.constant 0 : i32
    %c0_i32_0 = arith.constant 0 : i32
    %c0_i32_1 = arith.constant 0 : i32
    return %c0_i32, %c0_i32_0 : i32, i32
  }
  func.func @transform_9(%arg0: i32) -> (i32, i32) {
    %c0_i32 = arith.constant 0 : i32
    %c0_i32_0 = arith.constant 0 : i32
    %c0_i32_1 = arith.constant 0 : i32
    return %c0_i32, %c0_i32_0 : i32, i32
  }
  func.func @transform_10(%arg0: i32) -> (i32, i32) {
    %c0_i32 = arith.constant 0 : i32
    %c0_i32_0 = arith.constant 0 : i32
    %c0_i32_1 = arith.constant 0 : i32
    return %c0_i32, %c0_i32_0 : i32, i32
  }
  func.func @transform_11(%arg0: i32) -> (i32, i32) {
    %c0_i32 = arith.constant 0 : i32
    %c0_i32_0 = arith.constant 0 : i32
    %c0_i32_1 = arith.constant 0 : i32
    return %c0_i32, %c0_i32_0 : i32, i32
  }
  func.func @transform_12(%arg0: i32) -> (i32, i32) {
    %c0_i32 = arith.constant 0 : i32
    %c0_i32_0 = arith.constant 0 : i32
    %c0_i32_1 = arith.constant 0 : i32
    return %c0_i32, %c0_i32_0 : i32, i32
  }
  func.func @transform_13(%arg0: i32) -> (i32, i32, i32) {
    %c0_i32 = arith.constant 0 : i32
    %c0_i32_0 = arith.constant 0 : i32
    %c0_i32_1 = arith.constant 0 : i32
    return %arg0, %c0_i32, %c0_i32_0 : i32, i32, i32
  }
}

module attributes {stable_mosaic.version = 11 : i64} {
  func.func @_fc_stack_kernel(%arg0: memref<2x512xbf16, #tpu.memory_space<vmem>>, %arg1: memref<512x1024xbf16, #tpu.memory_space<vmem>>, %arg2: memref<1x1024xf32, #tpu.memory_space<vmem>>, %arg3: memref<1024x1024xbf16, #tpu.memory_space<vmem>>, %arg4: memref<1x1024xf32, #tpu.memory_space<vmem>>, %arg5: memref<1024x128xbf16, #tpu.memory_space<vmem>>, %arg6: memref<1x128xf32, #tpu.memory_space<vmem>>, %arg7: memref<2x128xf32, #tpu.memory_space<vmem>>) attributes {dimension_semantics = [], scalar_prefetch = 0 : i64, scratch_operands = 0 : i64, tpu.core_type = #tpu.core_type<tc>} {
    %c0 = arith.constant 0 : index
    %c0_0 = arith.constant 0 : index
    %0 = vector.load %arg0[%c0, %c0_0] : memref<2x512xbf16, #tpu.memory_space<vmem>>, vector<2x512xbf16>
    %c0_1 = arith.constant 0 : index
    %c0_2 = arith.constant 0 : index
    %1 = vector.load %arg1[%c0_1, %c0_2] : memref<512x1024xbf16, #tpu.memory_space<vmem>>, vector<512x1024xbf16>
    %cst = arith.constant dense<0.000000e+00> : vector<2x1024xf32>
    %2 = tpu.matmul %0, %1, %cst {dimension_numbers = #tpu.dot_dimension_numbers<[1], [0], [0], [1], [0, 0, 1, 1], [], []>} : vector<2x512xbf16>, vector<512x1024xbf16>, vector<2x1024xf32> -> vector<2x1024xf32>
    %c0_3 = arith.constant 0 : index
    %c0_4 = arith.constant 0 : index
    %3 = vector.load %arg2[%c0_3, %c0_4] : memref<1x1024xf32, #tpu.memory_space<vmem>>, vector<1x1024xf32>
    %4 = vector.broadcast %3 : vector<1x1024xf32> to vector<2x1024xf32>
    %5 = arith.addf %2, %4 : vector<2x1024xf32>
    %cst_5 = arith.constant 0.000000e+00 : f32
    %6 = vector.broadcast %cst_5 : f32 to vector<2x1024xf32>
    %7 = arith.maximumf %5, %6 : vector<2x1024xf32>
    %8 = arith.truncf %7 : vector<2x1024xf32> to vector<2x1024xbf16>
    %c0_6 = arith.constant 0 : index
    %c0_7 = arith.constant 0 : index
    %9 = vector.load %arg3[%c0_6, %c0_7] : memref<1024x1024xbf16, #tpu.memory_space<vmem>>, vector<1024x1024xbf16>
    %cst_8 = arith.constant dense<0.000000e+00> : vector<2x1024xf32>
    %10 = tpu.matmul %8, %9, %cst_8 {dimension_numbers = #tpu.dot_dimension_numbers<[1], [0], [0], [1], [0, 0, 1, 1], [], []>} : vector<2x1024xbf16>, vector<1024x1024xbf16>, vector<2x1024xf32> -> vector<2x1024xf32>
    %c0_9 = arith.constant 0 : index
    %c0_10 = arith.constant 0 : index
    %11 = vector.load %arg4[%c0_9, %c0_10] : memref<1x1024xf32, #tpu.memory_space<vmem>>, vector<1x1024xf32>
    %12 = vector.broadcast %11 : vector<1x1024xf32> to vector<2x1024xf32>
    %13 = arith.addf %10, %12 : vector<2x1024xf32>
    %cst_11 = arith.constant 0.000000e+00 : f32
    %14 = vector.broadcast %cst_11 : f32 to vector<2x1024xf32>
    %15 = arith.maximumf %13, %14 : vector<2x1024xf32>
    %16 = arith.truncf %15 : vector<2x1024xf32> to vector<2x1024xbf16>
    %c0_12 = arith.constant 0 : index
    %c0_13 = arith.constant 0 : index
    %17 = vector.load %arg5[%c0_12, %c0_13] : memref<1024x128xbf16, #tpu.memory_space<vmem>>, vector<1024x128xbf16>
    %cst_14 = arith.constant dense<0.000000e+00> : vector<2x128xf32>
    %18 = tpu.matmul %16, %17, %cst_14 {dimension_numbers = #tpu.dot_dimension_numbers<[1], [0], [0], [1], [0, 0, 1, 1], [], []>} : vector<2x1024xbf16>, vector<1024x128xbf16>, vector<2x128xf32> -> vector<2x128xf32>
    %c0_15 = arith.constant 0 : index
    %c0_16 = arith.constant 0 : index
    %19 = vector.load %arg6[%c0_15, %c0_16] : memref<1x128xf32, #tpu.memory_space<vmem>>, vector<1x128xf32>
    %20 = vector.broadcast %19 : vector<1x128xf32> to vector<2x128xf32>
    %21 = arith.addf %18, %20 : vector<2x128xf32>
    %c0_17 = arith.constant 0 : index
    %c0_18 = arith.constant 0 : index
    %22 = vector.load %arg7[%c0_17, %c0_18] : memref<2x128xf32, #tpu.memory_space<vmem>>, vector<2x128xf32>
    tpu.vector_store %arg7[%c0_17, %c0_18], %21 {strides = array<i32>} : memref<2x128xf32, #tpu.memory_space<vmem>>, vector<2x128xf32>,
    return
  }
}

</mosaic_0001>

<llo_original>
// kernel: model_forward.2
$region0: #{model_forward.2}
  #allocation0 [shape = 'u32[]', space=smem, size = 0x4, offset = 0x4, fixed_abs, tag = 'smem constant byte address 0x4 - core index']
  #allocation1 [shape = 'u32[144,128]{1,0:T(1,128)}', space=vmem, size = 0x12000, scoped, tag = 'internal scratch']
  #allocation2 [shape = 'f32[198,128]{1,0:T(8,128)}', space=vmem, size = 0x19000, scoped, tag = 'scratch operand']
  %s0 = inlined_call_operand.vmem [shape: bf16[2,198,512], index: 0, kind: input, shape index: {}]
  %s1 = inlined_call_operand.vmem [shape: bf16[512,128], index: 1, kind: input, shape index: {}]
  %s2 = inlined_call_operand.vmem [shape: f32[1,128], index: 2, kind: input, shape index: {}]
  %s3 = inlined_call_operand.vmem [shape: bf16[896,128], index: 3, kind: input, shape index: {}]
  %s4 = inlined_call_operand.vmem [shape: f32[1,128], index: 4, kind: input, shape index: {}]
  %s5 = inlined_call_operand.vmem [shape: bf16[384,128], index: 5, kind: input, shape index: {}]
  %s6 = inlined_call_operand.vmem [shape: f32[1,128], index: 6, kind: input, shape index: {}]
  %s7 = inlined_call_operand.vmem [shape: bf16[384,128], index: 7, kind: input, shape index: {}]
  %s8 = inlined_call_operand.vmem [shape: f32[1,128], index: 8, kind: input, shape index: {}]
  %s9 = inlined_call_operand.vmem [shape: bf16[384,128], index: 9, kind: input, shape index: {}]
  %s10 = inlined_call_operand.vmem [shape: f32[1,128], index: 10, kind: input, shape index: {}]
  %s11 = inlined_call_operand.vmem [shape: bf16[384,128], index: 11, kind: input, shape index: {}]
  %s12 = inlined_call_operand.vmem [shape: f32[1,128], index: 12, kind: input, shape index: {}]
  %s13 = inlined_call_operand.vmem [shape: bf16[2,4,128], index: 13, kind: output, shape index: {}]
  %s14 = sld [smem:[#allocation0]]
  $region85: #{model_forward.2} parent=0
    _
  %s16 = ssub.s32 1, %s14
  %s17 = scalar_select 0, %s16, %s14
  loop: start=0, step=1, limit=4
  $region2: #{model_forward.2} parent=0 // loop_pre_header
    _
  $region3: #{model_forward.2} parent=0 // loop_header
    %s19 = sphi 0, %s23
    %p20 = scmp.ge.s32.totalorder %s19, 4
    %s29 = sphi 0, %s31
    %s32 = sphi 0, %s29
    %s33 = sphi 0, %s32
    %s49 = sphi 0, %s33
    %s53 = sphi 0, %s53
    %s55 = sphi 0, %s53
    %s56 = sphi 0, %s55
    %s70 = sphi 0, %s56
    %s74 = sphi 0, %s74
    %s76 = sphi 0, %s74
    %s77 = sphi 0, %s76
    %s91 = sphi 0, %s77
    %s95 = sphi 0, %s95
    %s97 = sphi 0, %s95
    %s98 = sphi 0, %s97
    %s112 = sphi 0, %s98
    %s116 = sphi 0, %s116
    %s118 = sphi 0, %s116
    %s119 = sphi 0, %s118
    %s133 = sphi 0, %s119
    %s137 = sphi 0, %s137
    %s139 = sphi 0, %s137
    %s140 = sphi 0, %s139
    %s154 = sphi 0, %s140
    %s158 = sphi 0, %s158
    %s160 = sphi 0, %s158
    %s161 = sphi 0, %s160
    %s175 = sphi 0, %s161
    %s179 = sphi 0, %s179
    %s181 = sphi 0, %s179
    %s182 = sphi 0, %s181
    %s196 = sphi 0, %s182
    %s200 = sphi 0, %s200
    %s202 = sphi 0, %s200
    %s203 = sphi 0, %s202
    %s217 = sphi 0, %s203
    %s221 = sphi 0, %s221
    %s223 = sphi 0, %s221
    %s224 = sphi 0, %s223
    %s238 = sphi 0, %s224
    %s242 = sphi 0, %s242
    %s244 = sphi 0, %s242
    %s245 = sphi 0, %s244
    %s259 = sphi 0, %s245
    %s263 = sphi 0, %s263
    %s265 = sphi 0, %s263
    %s266 = sphi 0, %s265
    %s280 = sphi 0, %s266
    %s284 = sphi 0, %s284
    %s286 = sphi 0, %s284
    %s287 = sphi 0, %s286
    %s301 = sphi 0, %s287
    %s307 = sphi 0, %s309
    %s310 = sphi 0, %s307
    %s311 = sphi 0, %s310
    %s327 = sphi 0, %s311
  $region4: #{model_forward.2} parent=0 // loop_header_branch
    %22 = sbr.rel (%p20) target = $region8
  $region5: #{model_forward.2} parent=0 // loop_body
    %s24 = ssub.s32 %s19, 1
    %s25 = ssub.s32 %s19, 2
    %s26 = sadd.s32 %s19, 1
    %s27 = ssub.s32 %s19, %s26
    %p28 = scmp.eq.s32.totalorder %s27, 0
    %s30 = sadd.s32 %s29, 1
    %s31 = scalar_select %p28, %s29, %s30
    %p34 = pneg %p28
    %p35 = scmp.eq.s32.totalorder %s19, 1
    %p36 = por %p34, %p35
    %p37 = scmp.ne.s32.totalorder %s29, %s32
    %p38 = scmp.eq.s32.totalorder %s19, 0
    %p39 = por %p37, %p38
    %p40 = scmp.ne.s32.totalorder %s29, %s32
    %p41 = scmp.eq.s32.totalorder %s24, 1
    %p42 = por %p40, %p41
    %p43 = scmp.ne.s32.totalorder %s32, %s33
    %p44 = scmp.eq.s32.totalorder %s24, 0
    %p45 = por %p43, %p44
    %p46 = scmp.ne.s32.totalorder %s32, %s33
    %p47 = scmp.eq.s32.totalorder %s25, 1
    %p48 = por %p46, %p47
    %p50 = scmp.ne.s32.totalorder %s33, %s49
    %p51 = scmp.eq.s32.totalorder %s25, 0
    %p52 = por %p50, %p51
    %s54 = sadd.s32 %s53, 1
    %p57 = scmp.eq.s32.totalorder %s19, 1
    %p58 = scmp.ne.s32.totalorder %s53, %s55
    %p59 = scmp.eq.s32.totalorder %s19, 0
    %p60 = por %p58, %p59
    %p61 = scmp.ne.s32.totalorder %s53, %s55
    %p62 = scmp.eq.s32.totalorder %s24, 1
    %p63 = por %p61, %p62
    %p64 = scmp.ne.s32.totalorder %s55, %s56
    %p65 = scmp.eq.s32.totalorder %s24, 0
    %p66 = por %p64, %p65
    %p67 = scmp.ne.s32.totalorder %s55, %s56
    %p68 = scmp.eq.s32.totalorder %s25, 1
    %p69 = por %p67, %p68
    %p71 = scmp.ne.s32.totalorder %s56, %s70
    %p72 = scmp.eq.s32.totalorder %s25, 0
    %p73 = por %p71, %p72
    %s75 = sadd.s32 %s74, 1
    %p78 = scmp.eq.s32.totalorder %s19, 1
    %p79 = scmp.ne.s32.totalorder %s74, %s76
    %p80 = scmp.eq.s32.totalorder %s19, 0
    %p81 = por %p79, %p80
    %p82 = scmp.ne.s32.totalorder %s74, %s76
    %p83 = scmp.eq.s32.totalorder %s24, 1
    %p84 = por %p82, %p83
    %p85 = scmp.ne.s32.totalorder %s76, %s77
    %p86 = scmp.eq.s32.totalorder %s24, 0
    %p87 = por %p85, %p86
    %p88 = scmp.ne.s32.totalorder %s76, %s77
    %p89 = scmp.eq.s32.totalorder %s25, 1
    %p90 = por %p88, %p89
    %p92 = scmp.ne.s32.totalorder %s77, %s91
    %p93 = scmp.eq.s32.totalorder %s25, 0
    %p94 = por %p92, %p93
    %s96 = sadd.s32 %s95, 1
    %p99 = scmp.eq.s32.totalorder %s19, 1
    %p100 = scmp.ne.s32.totalorder %s95, %s97
    %p101 = scmp.eq.s32.totalorder %s19, 0
    %p102 = por %p100, %p101
    %p103 = scmp.ne.s32.totalorder %s95, %s97
    %p104 = scmp.eq.s32.totalorder %s24, 1
    %p105 = por %p103, %p104
    %p106 = scmp.ne.s32.totalorder %s97, %s98
    %p107 = scmp.eq.s32.totalorder %s24, 0
    %p108 = por %p106, %p107
    %p109 = scmp.ne.s32.totalorder %s97, %s98
    %p110 = scmp.eq.s32.totalorder %s25, 1
    %p111 = por %p109, %p110
    %p113 = scmp.ne.s32.totalorder %s98, %s112
    %p114 = scmp.eq.s32.totalorder %s25, 0
    %p115 = por %p113, %p114
    %s117 = sadd.s32 %s116, 1
    %p120 = scmp.eq.s32.totalorder %s19, 1
    %p121 = scmp.ne.s32.totalorder %s116, %s118
    %p122 = scmp.eq.s32.totalorder %s19, 0
    %p123 = por %p121, %p122
    %p124 = scmp.ne.s32.totalorder %s116, %s118
    %p125 = scmp.eq.s32.totalorder %s24, 1
    %p126 = por %p124, %p125
    %p127 = scmp.ne.s32.totalorder %s118, %s119
    %p128 = scmp.eq.s32.totalorder %s24, 0
    %p129 = por %p127, %p128
    %p130 = scmp.ne.s32.totalorder %s118, %s119
    %p131 = scmp.eq.s32.totalorder %s25, 1
    %p132 = por %p130, %p131
    %p134 = scmp.ne.s32.totalorder %s119, %s133
    %p135 = scmp.eq.s32.totalorder %s25, 0
    %p136 = por %p134, %p135
    %s138 = sadd.s32 %s137, 1
    %p141 = scmp.eq.s32.totalorder %s19, 1
    %p142 = scmp.ne.s32.totalorder %s137, %s139
    %p143 = scmp.eq.s32.totalorder %s19, 0
    %p144 = por %p142, %p143
    %p145 = scmp.ne.s32.totalorder %s137, %s139
    %p146 = scmp.eq.s32.totalorder %s24, 1
    %p147 = por %p145, %p146
    %p148 = scmp.ne.s32.totalorder %s139, %s140
    %p149 = scmp.eq.s32.totalorder %s24, 0
    %p150 = por %p148, %p149
    %p151 = scmp.ne.s32.totalorder %s139, %s140
    %p152 = scmp.eq.s32.totalorder %s25, 1
    %p153 = por %p151, %p152
    %p155 = scmp.ne.s32.totalorder %s140, %s154
    %p156 = scmp.eq.s32.totalorder %s25, 0
    %p157 = por %p155, %p156
    %s159 = sadd.s32 %s158, 1
    %p162 = scmp.eq.s32.totalorder %s19, 1
    %p163 = scmp.ne.s32.totalorder %s158, %s160
    %p164 = scmp.eq.s32.totalorder %s19, 0
    %p165 = por %p163, %p164
    %p166 = scmp.ne.s32.totalorder %s158, %s160
    %p167 = scmp.eq.s32.totalorder %s24, 1
    %p168 = por %p166, %p167
    %p169 = scmp.ne.s32.totalorder %s160, %s161
    %p170 = scmp.eq.s32.totalorder %s24, 0
    %p171 = por %p169, %p170
    %p172 = scmp.ne.s32.totalorder %s160, %s161
    %p173 = scmp.eq.s32.totalorder %s25, 1
    %p174 = por %p172, %p173
    %p176 = scmp.ne.s32.totalorder %s161, %s175
    %p177 = scmp.eq.s32.totalorder %s25, 0
    %p178 = por %p176, %p177
    %s180 = sadd.s32 %s179, 1
    %p183 = scmp.eq.s32.totalorder %s19, 1
    %p184 = scmp.ne.s32.totalorder %s179, %s181
    %p185 = scmp.eq.s32.totalorder %s19, 0
    %p186 = por %p184, %p185
    %p187 = scmp.ne.s32.totalorder %s179, %s181
    %p188 = scmp.eq.s32.totalorder %s24, 1
    %p189 = por %p187, %p188
    %p190 = scmp.ne.s32.totalorder %s181, %s182
    %p191 = scmp.eq.s32.totalorder %s24, 0
    %p192 = por %p190, %p191
    %p193 = scmp.ne.s32.totalorder %s181, %s182
    %p194 = scmp.eq.s32.totalorder %s25, 1
    %p195 = por %p193, %p194
    %p197 = scmp.ne.s32.totalorder %s182, %s196
    %p198 = scmp.eq.s32.totalorder %s25, 0
    %p199 = por %p197, %p198
    %s201 = sadd.s32 %s200, 1
    %p204 = scmp.eq.s32.totalorder %s19, 1
    %p205 = scmp.ne.s32.totalorder %s200, %s202
    %p206 = scmp.eq.s32.totalorder %s19, 0
    %p207 = por %p205, %p206
    %p208 = scmp.ne.s32.totalorder %s200, %s202
    %p209 = scmp.eq.s32.totalorder %s24, 1
    %p210 = por %p208, %p209
    %p211 = scmp.ne.s32.totalorder %s202, %s203
    %p212 = scmp.eq.s32.totalorder %s24, 0
    %p213 = por %p211, %p212
    %p214 = scmp.ne.s32.totalorder %s202, %s203
    %p215 = scmp.eq.s32.totalorder %s25, 1
    %p216 = por %p214, %p215
    %p218 = scmp.ne.s32.totalorder %s203, %s217
    %p219 = scmp.eq.s32.totalorder %s25, 0
    %p220 = por %p218, %p219
    %s222 = sadd.s32 %s221, 1
    %p225 = scmp.eq.s32.totalorder %s19, 1
    %p226 = scmp.ne.s32.totalorder %s221, %s223
    %p227 = scmp.eq.s32.totalorder %s19, 0
    %p228 = por %p226, %p227
    %p229 = scmp.ne.s32.totalorder %s221, %s223
    %p230 = scmp.eq.s32.totalorder %s24, 1
    %p231 = por %p229, %p230
    %p232 = scmp.ne.s32.totalorder %s223, %s224
    %p233 = scmp.eq.s32.totalorder %s24, 0
    %p234 = por %p232, %p233
    %p235 = scmp.ne.s32.totalorder %s223, %s224
    %p236 = scmp.eq.s32.totalorder %s25, 1
    %p237 = por %p235, %p236
    %p239 = scmp.ne.s32.totalorder %s224, %s238
    %p240 = scmp.eq.s32.totalorder %s25, 0
    %p241 = por %p239, %p240
    %s243 = sadd.s32 %s242, 1
    %p246 = scmp.eq.s32.totalorder %s19, 1
    %p247 = scmp.ne.s32.totalorder %s242, %s244
    %p248 = scmp.eq.s32.totalorder %s19, 0
    %p249 = por %p247, %p248
    %p250 = scmp.ne.s32.totalorder %s242, %s244
    %p251 = scmp.eq.s32.totalorder %s24, 1
    %p252 = por %p250, %p251
    %p253 = scmp.ne.s32.totalorder %s244, %s245
    %p254 = scmp.eq.s32.totalorder %s24, 0
    %p255 = por %p253, %p254
    %p256 = scmp.ne.s32.totalorder %s244, %s245
    %p257 = scmp.eq.s32.totalorder %s25, 1
    %p258 = por %p256, %p257
    %p260 = scmp.ne.s32.totalorder %s245, %s259
    %p261 = scmp.eq.s32.totalorder %s25, 0
    %p262 = por %p260, %p261
    %s264 = sadd.s32 %s263, 1
    %p267 = scmp.eq.s32.totalorder %s19, 1
    %p268 = scmp.ne.s32.totalorder %s263, %s265
    %p269 = scmp.eq.s32.totalorder %s19, 0
    %p270 = por %p268, %p269
    %p271 = scmp.ne.s32.totalorder %s263, %s265
    %p272 = scmp.eq.s32.totalorder %s24, 1
    %p273 = por %p271, %p272
    %p274 = scmp.ne.s32.totalorder %s265, %s266
    %p275 = scmp.eq.s32.totalorder %s24, 0
    %p276 = por %p274, %p275
    %p277 = scmp.ne.s32.totalorder %s265, %s266
    %p278 = scmp.eq.s32.totalorder %s25, 1
    %p279 = por %p277, %p278
    %p281 = scmp.ne.s32.totalorder %s266, %s280
    %p282 = scmp.eq.s32.totalorder %s25, 0
    %p283 = por %p281, %p282
    %s285 = sadd.s32 %s284, 1
    %p288 = scmp.eq.s32.totalorder %s19, 1
    %p289 = scmp.ne.s32.totalorder %s284, %s286
    %p290 = scmp.eq.s32.totalorder %s19, 0
    %p291 = por %p289, %p290
    %p292 = scmp.ne.s32.totalorder %s284, %s286
    %p293 = scmp.eq.s32.totalorder %s24, 1
    %p294 = por %p292, %p293
    %p295 = scmp.ne.s32.totalorder %s286, %s287
    %p296 = scmp.eq.s32.totalorder %s24, 0
    %p297 = por %p295, %p296
    %p298 = scmp.ne.s32.totalorder %s286, %s287
    %p299 = scmp.eq.s32.totalorder %s25, 1
    %p300 = por %p298, %p299
    %p302 = scmp.ne.s32.totalorder %s287, %s301
    %p303 = scmp.eq.s32.totalorder %s25, 0
    %p304 = por %p302, %p303
    %s305 = ssub.s32 %s19, %s26
    %p306 = scmp.eq.s32.totalorder %s305, 0
    %s308 = sadd.s32 %s307, 1
    %s309 = scalar_select %p306, %s307, %s308
    %p312 = pneg %p306
    %p313 = scmp.eq.s32.totalorder %s19, 1
    %p314 = por %p312, %p313
    %p315 = scmp.ne.s32.totalorder %s307, %s310
    %p316 = scmp.eq.s32.totalorder %s19, 0
    %p317 = por %p315, %p316
    %p318 = scmp.ne.s32.totalorder %s307, %s310
    %p319 = scmp.eq.s32.totalorder %s24, 1
    %p320 = por %p318, %p319
    %p321 = scmp.ne.s32.totalorder %s310, %s311
    %p322 = scmp.eq.s32.totalorder %s24, 0
    %p323 = por %p321, %p322
    %p324 = scmp.ne.s32.totalorder %s310, %s311
    %p325 = scmp.eq.s32.totalorder %s25, 1
    %p326 = por %p324, %p325
    %p328 = scmp.ne.s32.totalorder %s311, %s327
    %p329 = scmp.eq.s32.totalorder %s25, 0
    %p330 = por %p328, %p329
    %p331 = scmp.le.s32.totalorder 1, %s19
    %p332 = scmp.lt.s32.totalorder %s19, 3
    %p333 = pnand %p331, %p332
    %p334 = pneg %p333
    // Predicated region
    $region9: #{model_forward.2} parent=5 // pred_check
      _
    $region10: #{model_forward.2} parent=5 // pred_check_branch
      %336 = sbr.rel (%p333) target = $region12
    $region11: #{model_forward.2} parent=5 // pred_region
      %s337 = ssub.s32 %s19, 1
      // Predicated region
      $region13: #{model_forward.2} parent=11 // pred_check
        %p338 = pneg %p66
      $region14: #{model_forward.2} parent=11 // pred_check_branch
        %340 = sbr.rel (%p338) target = $region16
      $region15: #{model_forward.2} parent=11 // pred_region
        _
      $region16: #{model_forward.2} parent=11 // pred_fallthru
        _
      // Predicated region
      $region17: #{model_forward.2} parent=11 // pred_check
        %p341 = pneg %p87
      $region18: #{model_forward.2} parent=11 // pred_check_branch
        %343 = sbr.rel (%p341) target = $region20
      $region19: #{model_forward.2} parent=11 // pred_region
        _
      $region20: #{model_forward.2} parent=11 // pred_fallthru
        _
      // Predicated region
      $region21: #{model_forward.2} parent=11 // pred_check
        %p344 = pneg %p108
      $region22: #{model_forward.2} parent=11 // pred_check_branch
        %346 = sbr.rel (%p344) target = $region24
      $region23: #{model_forward.2} parent=11 // pred_region
        _
      $region24: #{model_forward.2} parent=11 // pred_fallthru
        _
      // Predicated region
      $region25: #{model_forward.2} parent=11 // pred_check
        %p347 = pneg %p129
      $region26: #{model_forward.2} parent=11 // pred_check_branch
        %349 = sbr.rel (%p347) target = $region28
      $region27: #{model_forward.2} parent=11 // pred_region
        _
      $region28: #{model_forward.2} parent=11 // pred_fallthru
        _
      // Predicated region
      $region29: #{model_forward.2} parent=11 // pred_check
        %p350 = pneg %p150
      $region30: #{model_forward.2} parent=11 // pred_check_branch
        %352 = sbr.rel (%p350) target = $region32
      $region31: #{model_forward.2} parent=11 // pred_region
        _
      $region32: #{model_forward.2} parent=11 // pred_fallthru
        _
      // Predicated region
      $region33: #{model_forward.2} parent=11 // pred_check
        %p353 = pneg %p171
      $region34: #{model_forward.2} parent=11 // pred_check_branch
        %355 = sbr.rel (%p353) target = $region36
      $region35: #{model_forward.2} parent=11 // pred_region
        _
      $region36: #{model_forward.2} parent=11 // pred_fallthru
        _
      // Predicated region
      $region37: #{model_forward.2} parent=11 // pred_check
        %p356 = pneg %p192
      $region38: #{model_forward.2} parent=11 // pred_check_branch
        %358 = sbr.rel (%p356) target = $region40
      $region39: #{model_forward.2} parent=11 // pred_region
        _
      $region40: #{model_forward.2} parent=11 // pred_fallthru
        _
      // Predicated region
      $region41: #{model_forward.2} parent=11 // pred_check
        %p359 = pneg %p213
      $region42: #{model_forward.2} parent=11 // pred_check_branch
        %361 = sbr.rel (%p359) target = $region44
      $region43: #{model_forward.2} parent=11 // pred_region
        _
      $region44: #{model_forward.2} parent=11 // pred_fallthru
        _
      // Predicated region
      $region45: #{model_forward.2} parent=11 // pred_check
        %p362 = pneg %p234
      $region46: #{model_forward.2} parent=11 // pred_check_branch
        %364 = sbr.rel (%p362) target = $region48
      $region47: #{model_forward.2} parent=11 // pred_region
        _
      $region48: #{model_forward.2} parent=11 // pred_fallthru
        _
      // Predicated region
      $region49: #{model_forward.2} parent=11 // pred_check
        %p365 = pneg %p255
      $region50: #{model_forward.2} parent=11 // pred_check_branch
        %367 = sbr.rel (%p365) target = $region52
      $region51: #{model_forward.2} parent=11 // pred_region
        _
      $region52: #{model_forward.2} parent=11 // pred_fallthru
        _
      // Predicated region
      $region53: #{model_forward.2} parent=11 // pred_check
        %p368 = pneg %p276
      $region54: #{model_forward.2} parent=11 // pred_check_branch
        %370 = sbr.rel (%p368) target = $region56
      $region55: #{model_forward.2} parent=11 // pred_region
        _
      $region56: #{model_forward.2} parent=11 // pred_fallthru
        _
      // Predicated region
      $region57: #{model_forward.2} parent=11 // pred_check
        %p371 = pneg %p297
      $region58: #{model_forward.2} parent=11 // pred_check_branch
        %373 = sbr.rel (%p371) target = $region60
      $region59: #{model_forward.2} parent=11 // pred_region
        _
      $region60: #{model_forward.2} parent=11 // pred_fallthru
        _
    $region12: #{model_forward.2} parent=5 // pred_fallthru
      _
    %p374 = scmp.lt.s32.totalorder %s19, 2
    // Predicated region
    $region61: #{model_forward.2} parent=5 // pred_check
      %p375 = pneg %p374
    $region62: #{model_forward.2} parent=5 // pred_check_branch
      %377 = sbr.rel (%p375) target = $region64
    $region63: #{model_forward.2} parent=5 // pred_region
      // Predicated region
      $region65: #{model_forward.2} parent=63 // pred_check
        %p378 = pneg %p39
      $region66: #{model_forward.2} parent=63 // pred_check_branch
        %380 = sbr.rel (%p378) target = $region68
      $region67: #{model_forward.2} parent=63 // pred_region
        %p381 = scmp.lt.s32.totalorder %s19, 1
        %s382 = scalar_select %p381, %s19, 1
        %s383 = smul.addr %s382, 100
        %s384 = smul.addr %s383, 4
        %s385 = scalar_lea.vmem %s0, %s384
      $region68: #{model_forward.2} parent=63 // pred_fallthru
        _
    $region64: #{model_forward.2} parent=5 // pred_fallthru
      _
    %p386 = scmp.le.s32.totalorder 1, %s19
    %p387 = scmp.lt.s32.totalorder %s19, 3
    %p388 = pnand %p386, %p387
    %p389 = pneg %p388
    // Predicated region
    $region69: #{model_forward.2} parent=5 // pred_check
      _
    $region70: #{model_forward.2} parent=5 // pred_check_branch
      %391 = sbr.rel (%p388) target = $region72
    $region71: #{model_forward.2} parent=5 // pred_region
      %s392 = ssub.s32 %s19, 1
      %p393 = scmp.lt.s32.totalorder %s24, 1
      %s394 = scalar_select %p393, %s24, 1
      %s395 = smul.addr %s394, 100
      %s396 = smul.addr %s395, 4
      %s397 = scalar_lea.vmem %s0, %s396
      %p398 = pneg %p45
      %p399 = pneg %p42
      %p400 = pneg %p66
      %p401 = pneg %p63
      %p402 = pneg %p87
      %p403 = pneg %p84
      %p404 = pneg %p108
      %p405 = pneg %p105
      %p406 = pneg %p129
      %p407 = pneg %p126
      %p408 = pneg %p150
      %p409 = pneg %p147
      %p410 = pneg %p171
      %p411 = pneg %p168
      %p412 = pneg %p192
      %p413 = pneg %p189
      %p414 = pneg %p213
      %p415 = pneg %p210
      %p416 = pneg %p234
      %p417 = pneg %p231
      %p418 = pneg %p255
      %p419 = pneg %p252
      %p420 = pneg %p276
      %p421 = pneg %p273
      %p422 = pneg %p297
      %p423 = pneg %p294
      %p424 = pneg %p323
      %p425 = pneg %p320
      %p426 = scmp.lt.s32.totalorder %s24, 1
      %s427 = scalar_select %p426, %s24, 1
      %s428 = smul.addr %s427, 2
      %s429 = scalar_lea.vmem %s13, %s428
      %p430 = scmp.lt.s32.totalorder %s24, 1
      %s431 = scalar_select %p430, %s24, 1
      %s432 = smul.addr %s431, 100
      %s433 = smul.addr %s432, 4
      %s434 = scalar_lea.vmem %s0, %s433
      %p435 = scmp.lt.s32.totalorder %s24, 1
      %s436 = scalar_select %p435, %s24, 1
      %s437 = smul.addr %s436, 2
      %s438 = scalar_lea.vmem %s13, %s437
      %v440 = vld [vmem:[%s434] sm:$0xff]
      %v441 = vld [vmem:[%s434 + $0x8] sm:$0xff]
      %v442 = vld [vmem:[%s434 + $0x10] sm:$0xff]
      %v443 = vld [vmem:[%s434 + $0x18] sm:$0xff]
      %v444 = vld [vmem:[%s434 + $0x20] sm:$0xff]
      %v445 = vld [vmem:[%s434 + $0x28] sm:$0xff]
      %v446 = vld [vmem:[%s434 + $0x30] sm:$0xff]
      %v447 = vld [vmem:[%s434 + $0x38] sm:$0xff]
      %v448 = vld [vmem:[%s434 + $0x40] sm:$0xff]
      %v449 = vld [vmem:[%s434 + $0x48] sm:$0xff]
      %v450 = vld [vmem:[%s434 + $0x50] sm:$0xff]
      %v451 = vld [vmem:[%s434 + $0x58] sm:$0xff]
      %v452 = vld [vmem:[%s434 + $0x60] sm:$0xff]
      %v453 = vld [vmem:[%s434 + $0x68] sm:$0xff]
      %v454 = vld [vmem:[%s434 + $0x70] sm:$0xff]
      %v455 = vld [vmem:[%s434 + $0x78] sm:$0xff]
      %v456 = vld [vmem:[%s434 + $0x80] sm:$0xff]
      %v457 = vld [vmem:[%s434 + $0x88] sm:$0xff]
      %v458 = vld [vmem:[%s434 + $0x90] sm:$0xff]
      %v459 = vld [vmem:[%s434 + $0x98] sm:$0xff]
      %v460 = vld [vmem:[%s434 + $0xa0] sm:$0xff]
      %v461 = vld [vmem:[%s434 + $0xa8] sm:$0xff]
      %v462 = vld [vmem:[%s434 + $0xb0] sm:$0xff]
      %v463 = vld [vmem:[%s434 + $0xb8] sm:$0xff]
      %v464 = vld [vmem:[%s434 + $0xc0] sm:$0xff]
      %v465 = vld [vmem:[%s434 + $0xc8] sm:$0xff]
      %v466 = vld [vmem:[%s434 + $0xd0] sm:$0xff]
      %v467 = vld [vmem:[%s434 + $0xd8] sm:$0xff]
      %v468 = vld [vmem:[%s434 + $0xe0] sm:$0xff]
      %v469 = vld [vmem:[%s434 + $0xe8] sm:$0xff]
      %v470 = vld [vmem:[%s434 + $0xf0] sm:$0xff]
      %v471 = vld [vmem:[%s434 + $0xf8] sm:$0xff]
      %v472 = vld [vmem:[%s434 + $0x100] sm:$0xff]
      %v473 = vld [vmem:[%s434 + $0x108] sm:$0xff]
      %v474 = vld [vmem:[%s434 + $0x110] sm:$0xff]
      %v475 = vld [vmem:[%s434 + $0x118] sm:$0xff]
      %v476 = vld [vmem:[%s434 + $0x120] sm:$0xff]
      %v477 = vld [vmem:[%s434 + $0x128] sm:$0xff]
      %v478 = vld [vmem:[%s434 + $0x130] sm:$0xff]
      %v479 = vld [vmem:[%s434 + $0x138] sm:$0xff]
      %v480 = vld [vmem:[%s434 + $0x140] sm:$0xff]
      %v481 = vld [vmem:[%s434 + $0x148] sm:$0xff]
      %v482 = vld [vmem:[%s434 + $0x150] sm:$0xff]
      %v483 = vld [vmem:[%s434 + $0x158] sm:$0xff]
      %v484 = vld [vmem:[%s434 + $0x160] sm:$0xff]
      %v485 = vld [vmem:[%s434 + $0x168] sm:$0xff]
      %v486 = vld [vmem:[%s434 + $0x170] sm:$0xff]
      %v487 = vld [vmem:[%s434 + $0x178] sm:$0xff]
      %v488 = vld [vmem:[%s434 + $0x180] sm:$0x77]
      %v489 = vld [vmem:[%s434 + $0x188] sm:$0x77]
      %v490 = vld [vmem:[%s1] sm:$0xf]
      %v491 = vld [vmem:[%s1 + $0x4] sm:$0xf]
      %v492 = vld [vmem:[%s1 + $0x8] sm:$0xf]
      %v493 = vld [vmem:[%s1 + $0xc] sm:$0xf]
      %v494 = vld [vmem:[%s1 + $0x10] sm:$0xf]
      %v495 = vld [vmem:[%s1 + $0x14] sm:$0xf]
      %v496 = vld [vmem:[%s1 + $0x18] sm:$0xf]
      %v497 = vld [vmem:[%s1 + $0x1c] sm:$0xf]
      %v498 = vld [vmem:[%s1 + $0x20] sm:$0xf]
      %v499 = vld [vmem:[%s1 + $0x24] sm:$0xf]
      %v500 = vld [vmem:[%s1 + $0x28] sm:$0xf]
      %v501 = vld [vmem:[%s1 + $0x2c] sm:$0xf]
      %v502 = vld [vmem:[%s1 + $0x30] sm:$0xf]
      %v503 = vld [vmem:[%s1 + $0x34] sm:$0xf]
      %v504 = vld [vmem:[%s1 + $0x38] sm:$0xf]
      %v505 = vld [vmem:[%s1 + $0x3c] sm:$0xf]
      %v506 = vld [vmem:[%s1 + $0x40] sm:$0xf]
      %v507 = vld [vmem:[%s1 + $0x44] sm:$0xf]
      %v508 = vld [vmem:[%s1 + $0x48] sm:$0xf]
      %v509 = vld [vmem:[%s1 + $0x4c] sm:$0xf]
      %v510 = vld [vmem:[%s1 + $0x50] sm:$0xf]
      %v511 = vld [vmem:[%s1 + $0x54] sm:$0xf]
      %v512 = vld [vmem:[%s1 + $0x58] sm:$0xf]
      %v513 = vld [vmem:[%s1 + $0x5c] sm:$0xf]
      %v514 = vld [vmem:[%s1 + $0x60] sm:$0xf]
      %v515 = vld [vmem:[%s1 + $0x64] sm:$0xf]
      %v516 = vld [vmem:[%s1 + $0x68] sm:$0xf]
      %v517 = vld [vmem:[%s1 + $0x6c] sm:$0xf]
      %v518 = vld [vmem:[%s1 + $0x70] sm:$0xf]
      %v519 = vld [vmem:[%s1 + $0x74] sm:$0xf]
      %v520 = vld [vmem:[%s1 + $0x78] sm:$0xf]
      %v521 = vld [vmem:[%s1 + $0x7c] sm:$0xf]
      %v522 = vld [vmem:[%s1 + $0x80] sm:$0xf]
      %v523 = vld [vmem:[%s1 + $0x84] sm:$0xf]
      %v524 = vld [vmem:[%s1 + $0x88] sm:$0xf]
      %v525 = vld [vmem:[%s1 + $0x8c] sm:$0xf]
      %v526 = vld [vmem:[%s1 + $0x90] sm:$0xf]
      %v527 = vld [vmem:[%s1 + $0x94] sm:$0xf]
      %v528 = vld [vmem:[%s1 + $0x98] sm:$0xf]
      %v529 = vld [vmem:[%s1 + $0x9c] sm:$0xf]
      %v530 = vld [vmem:[%s1 + $0xa0] sm:$0xf]
      %v531 = vld [vmem:[%s1 + $0xa4] sm:$0xf]
      %v532 = vld [vmem:[%s1 + $0xa8] sm:$0xf]
      %v533 = vld [vmem:[%s1 + $0xac] sm:$0xf]
      %v534 = vld [vmem:[%s1 + $0xb0] sm:$0xf]
      %v535 = vld [vmem:[%s1 + $0xb4] sm:$0xf]
      %v536 = vld [vmem:[%s1 + $0xb8] sm:$0xf]
      %v537 = vld [vmem:[%s1 + $0xbc] sm:$0xf]
      %v538 = vld [vmem:[%s1 + $0xc0] sm:$0xf]
      %v539 = vld [vmem:[%s1 + $0xc4] sm:$0xf]
      %v540 = vld [vmem:[%s1 + $0xc8] sm:$0xf]
      %v541 = vld [vmem:[%s1 + $0xcc] sm:$0xf]
      %v542 = vld [vmem:[%s1 + $0xd0] sm:$0xf]
      %v543 = vld [vmem:[%s1 + $0xd4] sm:$0xf]
      %v544 = vld [vmem:[%s1 + $0xd8] sm:$0xf]
      %v545 = vld [vmem:[%s1 + $0xdc] sm:$0xf]
      %v546 = vld [vmem:[%s1 + $0xe0] sm:$0xf]
      %v547 = vld [vmem:[%s1 + $0xe4] sm:$0xf]
      %v548 = vld [vmem:[%s1 + $0xe8] sm:$0xf]
      %v549 = vld [vmem:[%s1 + $0xec] sm:$0xf]
      %v550 = vld [vmem:[%s1 + $0xf0] sm:$0xf]
      %v551 = vld [vmem:[%s1 + $0xf4] sm:$0xf]
      %v552 = vld [vmem:[%s1 + $0xf8] sm:$0xf]
      %v553 = vld [vmem:[%s1 + $0xfc] sm:$0xf]
      %v554 = vld [vmem:[%s2] sm:$0x1]
      %v556 = vlaneseq
      %v557 = vshrl.u32 %v556, 7
      %v558 = vsub.s32 0, %v557
      %v559 = vrot.slane %v554, %v558
      %v611 = vunpack.c.l.b16 %v440
      %v612 = vunpack.c.h.b16 %v440
      %v613 = vunpack.c.l.b16 %v441
      %v614 = vunpack.c.h.b16 %v441
      %v615 = vunpack.c.l.b16 %v442
      %v616 = vunpack.c.h.b16 %v442
      %v617 = vunpack.c.l.b16 %v443
      %v618 = vunpack.c.h.b16 %v443
      %v619 = vunpack.c.l.b16 %v444
      %v620 = vunpack.c.h.b16 %v444
      %v621 = vunpack.c.l.b16 %v445
      %v622 = vunpack.c.h.b16 %v445
      %v623 = vunpack.c.l.b16 %v446
      %v624 = vunpack.c.h.b16 %v446
      %v625 = vunpack.c.l.b16 %v447
      %v626 = vunpack.c.h.b16 %v447
      %v627 = vunpack.c.l.b16 %v448
      %v628 = vunpack.c.h.b16 %v448
      %v629 = vunpack.c.l.b16 %v449
      %v630 = vunpack.c.h.b16 %v449
      %v631 = vunpack.c.l.b16 %v450
      %v632 = vunpack.c.h.b16 %v450
      %v633 = vunpack.c.l.b16 %v451
      %v634 = vunpack.c.h.b16 %v451
      %v635 = vunpack.c.l.b16 %v452
      %v636 = vunpack.c.h.b16 %v452
      %v637 = vunpack.c.l.b16 %v453
      %v638 = vunpack.c.h.b16 %v453
      %v639 = vunpack.c.l.b16 %v454
      %v640 = vunpack.c.h.b16 %v454
      %v641 = vunpack.c.l.b16 %v455
      %v642 = vunpack.c.h.b16 %v455
      %v643 = vunpack.c.l.b16 %v456
      %v644 = vunpack.c.h.b16 %v456
      %v645 = vunpack.c.l.b16 %v457
      %v646 = vunpack.c.h.b16 %v457
      %v647 = vunpack.c.l.b16 %v458
      %v648 = vunpack.c.h.b16 %v458
      %v649 = vunpack.c.l.b16 %v459
      %v650 = vunpack.c.h.b16 %v459
      %v651 = vunpack.c.l.b16 %v460
      %v652 = vunpack.c.h.b16 %v460
      %v653 = vunpack.c.l.b16 %v461
      %v654 = vunpack.c.h.b16 %v461
      %v655 = vunpack.c.l.b16 %v462
      %v656 = vunpack.c.h.b16 %v462
      %v657 = vunpack.c.l.b16 %v463
      %v658 = vunpack.c.h.b16 %v463
      %v659 = vunpack.c.l.b16 %v464
      %v660 = vunpack.c.h.b16 %v464
      %v661 = vunpack.c.l.b16 %v465
      %v662 = vunpack.c.h.b16 %v465
      %v663 = vunpack.c.l.b16 %v466
      %v664 = vunpack.c.h.b16 %v466
      %v665 = vunpack.c.l.b16 %v467
      %v666 = vunpack.c.h.b16 %v467
      %v667 = vunpack.c.l.b16 %v468
      %v668 = vunpack.c.h.b16 %v468
      %v669 = vunpack.c.l.b16 %v469
      %v670 = vunpack.c.h.b16 %v469
      %v671 = vunpack.c.l.b16 %v470
      %v672 = vunpack.c.h.b16 %v470
      %v673 = vunpack.c.l.b16 %v471
      %v674 = vunpack.c.h.b16 %v471
      %v675 = vunpack.c.l.b16 %v472
      %v676 = vunpack.c.h.b16 %v472
      %v677 = vunpack.c.l.b16 %v473
      %v678 = vunpack.c.h.b16 %v473
      %v679 = vunpack.c.l.b16 %v474
      %v680 = vunpack.c.h.b16 %v474
      %v681 = vunpack.c.l.b16 %v475
      %v682 = vunpack.c.h.b16 %v475
      %v683 = vunpack.c.l.b16 %v476
      %v684 = vunpack.c.h.b16 %v476
      %v685 = vunpack.c.l.b16 %v477
      %v686 = vunpack.c.h.b16 %v477
      %v687 = vunpack.c.l.b16 %v478
      %v688 = vunpack.c.h.b16 %v478
      %v689 = vunpack.c.l.b16 %v479
      %v690 = vunpack.c.h.b16 %v479
      %v691 = vunpack.c.l.b16 %v480
      %v692 = vunpack.c.h.b16 %v480
      %v693 = vunpack.c.l.b16 %v481
      %v694 = vunpack.c.h.b16 %v481
      %v695 = vunpack.c.l.b16 %v482
      %v696 = vunpack.c.h.b16 %v482
      %v697 = vunpack.c.l.b16 %v483
      %v698 = vunpack.c.h.b16 %v483
      %v699 = vunpack.c.l.b16 %v484
      %v700 = vunpack.c.h.b16 %v484
      %v701 = vunpack.c.l.b16 %v485
      %v702 = vunpack.c.h.b16 %v485
      %v703 = vunpack.c.l.b16 %v486
      %v704 = vunpack.c.h.b16 %v486
      %v705 = vunpack.c.l.b16 %v487
      %v706 = vunpack.c.h.b16 %v487
      %v707 = vunpack.c.l.b16 %v488
      %v708 = vunpack.c.h.b16 %v488
      %v709 = vunpack.c.l.b16 %v489
      %v710 = vunpack.c.h.b16 %v489
      %v711 = vpack.c.b16 %v615, %v611
      %v712 = vpack.c.b16 %v616, %v612
      %v713 = vpack.c.b16 %v617, %v613
      %v714 = vpack.c.b16 %v618, %v614
      %v715 = vpack.c.b16 %v623, %v619
      %v716 = vpack.c.b16 %v624, %v620
      %v717 = vpack.c.b16 %v625, %v621
      %v718 = vpack.c.b16 %v626, %v622
      %v719 = vpack.c.b16 %v631, %v627
      %v720 = vpack.c.b16 %v632, %v628
      %v721 = vpack.c.b16 %v633, %v629
      %v722 = vpack.c.b16 %v634, %v630
      %v723 = vpack.c.b16 %v639, %v635
      %v724 = vpack.c.b16 %v640, %v636
      %v725 = vpack.c.b16 %v641, %v637
      %v726 = vpack.c.b16 %v642, %v638
      %v727 = vpack.c.b16 %v647, %v643
      %v728 = vpack.c.b16 %v648, %v644
      %v729 = vpack.c.b16 %v649, %v645
      %v730 = vpack.c.b16 %v650, %v646
      %v731 = vpack.c.b16 %v655, %v651
      %v732 = vpack.c.b16 %v656, %v652
      %v733 = vpack.c.b16 %v657, %v653
      %v734 = vpack.c.b16 %v658, %v654
      %v735 = vpack.c.b16 %v663, %v659
      %v736 = vpack.c.b16 %v664, %v660
      %v737 = vpack.c.b16 %v665, %v661
      %v738 = vpack.c.b16 %v666, %v662
      %v739 = vpack.c.b16 %v671, %v667
      %v740 = vpack.c.b16 %v672, %v668
      %v741 = vpack.c.b16 %v673, %v669
      %v742 = vpack.c.b16 %v674, %v670
      %v743 = vpack.c.b16 %v679, %v675
      %v744 = vpack.c.b16 %v680, %v676
      %v745 = vpack.c.b16 %v681, %v677
      %v746 = vpack.c.b16 %v682, %v678
      %v747 = vpack.c.b16 %v687, %v683
      %v748 = vpack.c.b16 %v688, %v684
      %v749 = vpack.c.b16 %v689, %v685
      %v750 = vpack.c.b16 %v690, %v686
      %v751 = vpack.c.b16 %v695, %v691
      %v752 = vpack.c.b16 %v696, %v692
      %v753 = vpack.c.b16 %v697, %v693
      %v754 = vpack.c.b16 %v698, %v694
      %v755 = vpack.c.b16 %v703, %v699
      %v756 = vpack.c.b16 %v704, %v700
      %v757 = vpack.c.b16 %v705, %v701
      %v758 = vpack.c.b16 %v706, %v702
      %v759 = vpack.c.b16 %v707, %v707
      %v760 = vpack.c.b16 %v708, %v708
      %v761 = vpack.c.b16 %v709, %v709
      %v762 = vpack.c.b16 %v710, %v710
      %v879 = vunpack.c.l.b16 %v490
      %v880 = vunpack.c.l.b16 %v491
      %v881 = vunpack.c.l.b16 %v492
      %v882 = vunpack.c.l.b16 %v493
      %v883 = vunpack.c.l.b16 %v494
      %v884 = vunpack.c.l.b16 %v495
      %v885 = vunpack.c.l.b16 %v496
      %v886 = vunpack.c.l.b16 %v497
      %v887 = vunpack.c.l.b16 %v498
      %v888 = vunpack.c.l.b16 %v499
      %v889 = vunpack.c.l.b16 %v500
      %v890 = vunpack.c.l.b16 %v501
      %v891 = vunpack.c.l.b16 %v502
      %v892 = vunpack.c.l.b16 %v503
      %v893 = vunpack.c.l.b16 %v504
      %v894 = vunpack.c.l.b16 %v505
      %v895 = vunpack.c.l.b16 %v506
      %v896 = vunpack.c.l.b16 %v507
      %v897 = vunpack.c.l.b16 %v508
      %v898 = vunpack.c.l.b16 %v509
      %v899 = vunpack.c.l.b16 %v510
      %v900 = vunpack.c.l.b16 %v511
      %v901 = vunpack.c.l.b16 %v512
      %v902 = vunpack.c.l.b16 %v513
      %v903 = vunpack.c.l.b16 %v514
      %v904 = vunpack.c.l.b16 %v515
      %v905 = vunpack.c.l.b16 %v516
      %v906 = vunpack.c.l.b16 %v517
      %v907 = vunpack.c.l.b16 %v518
      %v908 = vunpack.c.l.b16 %v519
      %v909 = vunpack.c.l.b16 %v520
      %v910 = vunpack.c.l.b16 %v521
      %v911 = vunpack.c.l.b16 %v522
      %v912 = vunpack.c.l.b16 %v523
      %v913 = vunpack.c.l.b16 %v524
      %v914 = vunpack.c.l.b16 %v525
      %v915 = vunpack.c.l.b16 %v526
      %v916 = vunpack.c.l.b16 %v527
      %v917 = vunpack.c.l.b16 %v528
      %v918 = vunpack.c.l.b16 %v529
      %v919 = vunpack.c.l.b16 %v530
      %v920 = vunpack.c.l.b16 %v531
      %v921 = vunpack.c.l.b16 %v532
      %v922 = vunpack.c.l.b16 %v533
      %v923 = vunpack.c.l.b16 %v534
      %v924 = vunpack.c.l.b16 %v535
      %v925 = vunpack.c.l.b16 %v536
      %v926 = vunpack.c.l.b16 %v537
      %v927 = vunpack.c.l.b16 %v538
      %v928 = vunpack.c.l.b16 %v539
      %v929 = vunpack.c.l.b16 %v540
      %v930 = vunpack.c.l.b16 %v541
      %v931 = vunpack.c.l.b16 %v542
      %v932 = vunpack.c.l.b16 %v543
      %v933 = vunpack.c.l.b16 %v544
      %v934 = vunpack.c.l.b16 %v545
      %v935 = vunpack.c.l.b16 %v546
      %v936 = vunpack.c.l.b16 %v547
      %v937 = vunpack.c.l.b16 %v548
      %v938 = vunpack.c.l.b16 %v549
      %v939 = vunpack.c.l.b16 %v550
      %v940 = vunpack.c.l.b16 %v551
      %v941 = vunpack.c.l.b16 %v552
      %v942 = vunpack.c.l.b16 %v553
      %v943 = vpack.c.b16 %v880, %v879
      %v944 = vpack.c.b16 %v882, %v881
      %v945 = vpack.c.b16 %v884, %v883
      %v946 = vpack.c.b16 %v886, %v885
      %v947 = vpack.c.b16 %v888, %v887
      %v948 = vpack.c.b16 %v890, %v889
      %v949 = vpack.c.b16 %v892, %v891
      %v950 = vpack.c.b16 %v894, %v893
      %v951 = vpack.c.b16 %v896, %v895
      %v952 = vpack.c.b16 %v898, %v897
      %v953 = vpack.c.b16 %v900, %v899
      %v954 = vpack.c.b16 %v902, %v901
      %v955 = vpack.c.b16 %v904, %v903
      %v956 = vpack.c.b16 %v906, %v905
      %v957 = vpack.c.b16 %v908, %v907
      %v958 = vpack.c.b16 %v910, %v909
      %v959 = vpack.c.b16 %v912, %v911
      %v960 = vpack.c.b16 %v914, %v913
      %v961 = vpack.c.b16 %v916, %v915
      %v962 = vpack.c.b16 %v918, %v917
      %v963 = vpack.c.b16 %v920, %v919
      %v964 = vpack.c.b16 %v922, %v921
      %v965 = vpack.c.b16 %v924, %v923
      %v966 = vpack.c.b16 %v926, %v925
      %v967 = vpack.c.b16 %v928, %v927
      %v968 = vpack.c.b16 %v930, %v929
      %v969 = vpack.c.b16 %v932, %v931
      %v970 = vpack.c.b16 %v934, %v933
      %v971 = vpack.c.b16 %v936, %v935
      %v972 = vpack.c.b16 %v938, %v937
      %v973 = vpack.c.b16 %v940, %v939
      %v974 = vpack.c.b16 %v942, %v941
      %1007 = vmatprep.subr.bf16.mxu0 0
      %1008 = vmatpush1.bf16.msra.mxu0 %v943
      %1009 = vmatprep.subr.bf16.mxu0 0
      %1010 = vmatpush1.bf16.msra.mxu0 %v944
      %1011 = vmatprep.subr.bf16.mxu0 0
      %1012 = vmatpush1.bf16.msra.mxu0 %v945
      %1013 = vmatprep.subr.bf16.mxu0 0
      %1014 = vmatpush1.bf16.msra.mxu0 %v946
      %1015 = vmatprep.subr.bf16.mxu0 0
      %1016 = vmatpush1.bf16.msra.mxu0 %v947
      %1017 = vmatprep.subr.bf16.mxu0 0
      %1018 = vmatpush1.bf16.msra.mxu0 %v948
      %1019 = vmatprep.subr.bf16.mxu0 0
      %1020 = vmatpush1.bf16.msra.mxu0 %v949
      %1021 = vmatprep.subr.bf16.mxu0 0
      %1022 = vmatpush1.bf16.msra.mxu0 %v950
      %1023 = vmatprep.subr.bf16.mxu0 0
      %1024 = vmatpush1.bf16.msra.mxu0 %v951
      %1025 = vmatprep.subr.bf16.mxu0 0
      %1026 = vmatpush1.bf16.msra.mxu0 %v952
      %1027 = vmatprep.subr.bf16.mxu0 0
      %1028 = vmatpush1.bf16.msra.mxu0 %v953
      %1029 = vmatprep.subr.bf16.mxu0 0
      %1030 = vmatpush1.bf16.msra.mxu0 %v954
      %1031 = vmatprep.subr.bf16.mxu0 0
      %1032 = vmatpush1.bf16.msra.mxu0 %v955
      %1033 = vmatprep.subr.bf16.mxu0 0
      %1034 = vmatpush1.bf16.msra.mxu0 %v956
      %1035 = vmatprep.subr.bf16.mxu0 0
      %1036 = vmatpush1.bf16.msra.mxu0 %v957
      %1037 = vmatprep.subr.bf16.mxu0 0
      %1038 = vmatpush1.bf16.msra.mxu0 %v958
      %1039 = vmatprep.mubr.bf16.mxu0 %v712
      %1040 = vmatmul.mubr.bf16.gmra.mrb[0].mxu0 %v711
      %v1041 = vpop.f32.mrb[0].mxu0
      %v1042 = vadd.f32 %v559, %v1041
      %v1043 = vpop.f32.mrb[0].mxu0
      %v1044 = vpop.f32.mrb[0].mxu0
      %v1045 = vadd.f32 %v559, %v1044
      %v1046 = vpop.f32.mrb[0].mxu0
      %1047 = vmatprep.mubr.bf16.mxu0 %v716
      %1048 = vmatmul.mubr.bf16.gmra.mrb[0].mxu0 %v715
      %v1049 = vpop.f32.mrb[0].mxu0
      %v1050 = vadd.f32 %v559, %v1049
      %v1051 = vpop.f32.mrb[0].mxu0
      %v1052 = vpop.f32.mrb[0].mxu0
      %v1053 = vadd.f32 %v559, %v1052
      %v1054 = vpop.f32.mrb[0].mxu0
      %1055 = vmatprep.mubr.bf16.mxu0 %v720
      %1056 = vmatmul.mubr.bf16.gmra.mrb[0].mxu0 %v719
      %v1057 = vpop.f32.mrb[0].mxu0
      %v1058 = vadd.f32 %v559, %v1057
      %v1059 = vpop.f32.mrb[0].mxu0
      %v1060 = vpop.f32.mrb[0].mxu0
      %v1061 = vadd.f32 %v559, %v1060
      %v1062 = vpop.f32.mrb[0].mxu0
      %1063 = vmatprep.mubr.bf16.mxu0 %v724
      %1064 = vmatmul.mubr.bf16.gmra.mrb[0].mxu0 %v723
      %v1065 = vpop.f32.mrb[0].mxu0
      %v1066 = vadd.f32 %v559, %v1065
      %v1067 = vpop.f32.mrb[0].mxu0
      %v1068 = vpop.f32.mrb[0].mxu0
      %v1069 = vadd.f32 %v559, %v1068
      %v1070 = vpop.f32.mrb[0].mxu0
      %1071 = vmatprep.mubr.bf16.mxu0 %v728
      %1072 = vmatmul.mubr.bf16.gmra.mrb[0].mxu0 %v727
      %v1073 = vpop.f32.mrb[0].mxu0
      %v1074 = vadd.f32 %v559, %v1073
      %v1075 = vpop.f32.mrb[0].mxu0
      %v1076 = vpop.f32.mrb[0].mxu0
      %v1077 = vadd.f32 %v559, %v1076
      %v1078 = vpop.f32.mrb[0].mxu0
      %1079 = vmatprep.mubr.bf16.mxu0 %v732
      %1080 = vmatmul.mubr.bf16.gmra.mrb[0].mxu0 %v731
      %v1081 = vpop.f32.mrb[0].mxu0
      %v1082 = vadd.f32 %v559, %v1081
      %v1083 = vpop.f32.mrb[0].mxu0
      %v1084 = vpop.f32.mrb[0].mxu0
      %v1085 = vadd.f32 %v559, %v1084
      %v1086 = vpop.f32.mrb[0].mxu0
      %1087 = vmatprep.mubr.bf16.mxu0 %v736
      %1088 = vmatmul.mubr.bf16.gmra.mrb[0].mxu0 %v735
      %v1089 = vpop.f32.mrb[0].mxu0
      %v1090 = vadd.f32 %v559, %v1089
      %v1091 = vpop.f32.mrb[0].mxu0
      %v1092 = vpop.f32.mrb[0].mxu0
      %v1093 = vadd.f32 %v559, %v1092
      %v1094 = vpop.f32.mrb[0].mxu0
      %1095 = vmatprep.mubr.bf16.mxu0 %v740
      %1096 = vmatmul.mubr.bf16.gmra.mrb[0].mxu0 %v739
      %v1097 = vpop.f32.mrb[0].mxu0
      %v1098 = vadd.f32 %v559, %v1097
      %v1099 = vpop.f32.mrb[0].mxu0
      %v1100 = vpop.f32.mrb[0].mxu0
      %v1101 = vadd.f32 %v559, %v1100
      %v1102 = vpop.f32.mrb[0].mxu0
      %1103 = vmatprep.mubr.bf16.mxu0 %v744
      %1104 = vmatmul.mubr.bf16.gmra.mrb[0].mxu0 %v743
      %v1105 = vpop.f32.mrb[0].mxu0
      %v1106 = vadd.f32 %v559, %v1105
      %v1107 = vpop.f32.mrb[0].mxu0
      %v1108 = vpop.f32.mrb[0].mxu0
      %v1109 = vadd.f32 %v559, %v1108
      %v1110 = vpop.f32.mrb[0].mxu0
      %1111 = vmatprep.mubr.bf16.mxu0 %v748
      %1112 = vmatmul.mubr.bf16.gmra.mrb[0].mxu0 %v747
      %v1113 = vpop.f32.mrb[0].mxu0
      %v1114 = vadd.f32 %v559, %v1113
      %v1115 = vpop.f32.mrb[0].mxu0
      %v1116 = vpop.f32.mrb[0].mxu0
      %v1117 = vadd.f32 %v559, %v1116
      %v1118 = vpop.f32.mrb[0].mxu0
      %1119 = vmatprep.mubr.bf16.mxu0 %v752
      %1120 = vmatmul.mubr.bf16.gmra.mrb[0].mxu0 %v751
      %v1121 = vpop.f32.mrb[0].mxu0
      %v1122 = vadd.f32 %v559, %v1121
      %v1123 = vpop.f32.mrb[0].mxu0
      %v1124 = vpop.f32.mrb[0].mxu0
      %v1125 = vadd.f32 %v559, %v1124
      %v1126 = vpop.f32.mrb[0].mxu0
      %1127 = vmatprep.mubr.bf16.mxu0 %v756
      %1128 = vmatmul.mubr.bf16.gmra.mrb[0].mxu0 %v755
      %v1129 = vpop.f32.mrb[0].mxu0
      %v1130 = vadd.f32 %v559, %v1129
      %v1131 = vpop.f32.mrb[0].mxu0
      %v1132 = vpop.f32.mrb[0].mxu0
      %v1133 = vadd.f32 %v559, %v1132
      %v1134 = vpop.f32.mrb[0].mxu0
      %1135 = vmatprep.mubr.bf16.mxu0 %v760
      %1136 = vmatmul.mubr.bf16.gmra.mrb[0].mxu0 %v759
      %v1137 = vpop.f32.mrb[0].mxu0
      %v1138 = vadd.f32 %v559, %v1137
      %v1139 = vpop.f32.mrb[0].mxu0
      %v1140 = vpop.f32.mrb[0].mxu0
      %v1141 = vpop.f32.mrb[0].mxu0
      %1142 = vdwg.mxu0
      %1143 = vmatprep.subr.bf16.mxu0 0
      %1144 = vmatpush1.bf16.msra.mxu0 %v959
      %1145 = vmatprep.subr.bf16.mxu0 0
      %1146 = vmatpush1.bf16.msra.mxu0 %v960
      %1147 = vmatprep.subr.bf16.mxu0 0
      %1148 = vmatpush1.bf16.msra.mxu0 %v961
      %1149 = vmatprep.subr.bf16.mxu0 0
      %1150 = vmatpush1.bf16.msra.mxu0 %v962
      %1151 = vmatprep.subr.bf16.mxu0 0
      %1152 = vmatpush1.bf16.msra.mxu0 %v963
      %1153 = vmatprep.subr.bf16.mxu0 0
      %1154 = vmatpush1.bf16.msra.mxu0 %v964
      %1155 = vmatprep.subr.bf16.mxu0 0
      %1156 = vmatpush1.bf16.msra.mxu0 %v965
      %1157 = vmatprep.subr.bf16.mxu0 0
      %1158 = vmatpush1.bf16.msra.mxu0 %v966
      %1159 = vmatprep.subr.bf16.mxu0 0
      %1160 = vmatpush1.bf16.msra.mxu0 %v967
      %1161 = vmatprep.subr.bf16.mxu0 0
      %1162 = vmatpush1.bf16.msra.mxu0 %v968
      %1163 = vmatprep.subr.bf16.mxu0 0
      %1164 = vmatpush1.bf16.msra.mxu0 %v969
      %1165 = vmatprep.subr.bf16.mxu0 0
      %1166 = vmatpush1.bf16.msra.mxu0 %v970
      %1167 = vmatprep.subr.bf16.mxu0 0
      %1168 = vmatpush1.bf16.msra.mxu0 %v971
      %1169 = vmatprep.subr.bf16.mxu0 0
      %1170 = vmatpush1.bf16.msra.mxu0 %v972
      %1171 = vmatprep.subr.bf16.mxu0 0
      %1172 = vmatpush1.bf16.msra.mxu0 %v973
      %1173 = vmatprep.subr.bf16.mxu0 0
      %1174 = vmatpush1.bf16.msra.mxu0 %v974
      %1175 = vmatprep.mubr.bf16.mxu0 %v714
      %1176 = vmatmul.mubr.bf16.gmra.mrb[0].mxu0 %v713
      %v1177 = vpop.f32.mrb[0].mxu0
      %v1178 = vadd.f32 %v1042, %v1177
      %v1179 = vpop.f32.mrb[0].mxu0
      %v1180 = vpop.f32.mrb[0].mxu0
      %v1181 = vadd.f32 %v1045, %v1180
      %v1182 = vpop.f32.mrb[0].mxu0
      %1183 = vmatprep.mubr.bf16.mxu0 %v718
      %1184 = vmatmul.mubr.bf16.gmra.mrb[0].mxu0 %v717
      %v1185 = vpop.f32.mrb[0].mxu0
      %v1186 = vadd.f32 %v1050, %v1185
      %v1187 = vpop.f32.mrb[0].mxu0
      %v1188 = vpop.f32.mrb[0].mxu0
      %v1189 = vadd.f32 %v1053, %v1188
      %v1190 = vpop.f32.mrb[0].mxu0
      %1191 = vmatprep.mubr.bf16.mxu0 %v722
      %1192 = vmatmul.mubr.bf16.gmra.mrb[0].mxu0 %v721
      %v1193 = vpop.f32.mrb[0].mxu0
      %v1194 = vadd.f32 %v1058, %v1193
      %v1195 = vpop.f32.mrb[0].mxu0
      %v1196 = vpop.f32.mrb[0].mxu0
      %v1197 = vadd.f32 %v1061, %v1196
      %v1198 = vpop.f32.mrb[0].mxu0
      %1199 = vmatprep.mubr.bf16.mxu0 %v726
      %1200 = vmatmul.mubr.bf16.gmra.mrb[0].mxu0 %v725
      %v1201 = vpop.f32.mrb[0].mxu0
      %v1202 = vadd.f32 %v1066, %v1201
      %v1203 = vpop.f32.mrb[0].mxu0
      %v1204 = vpop.f32.mrb[0].mxu0
      %v1205 = vadd.f32 %v1069, %v1204
      %v1206 = vpop.f32.mrb[0].mxu0
      %1207 = vmatprep.mubr.bf16.mxu0 %v730
      %1208 = vmatmul.mubr.bf16.gmra.mrb[0].mxu0 %v729
      %v1209 = vpop.f32.mrb[0].mxu0
      %v1210 = vadd.f32 %v1074, %v1209
      %v1211 = vpop.f32.mrb[0].mxu0
      %v1212 = vpop.f32.mrb[0].mxu0
      %v1213 = vadd.f32 %v1077, %v1212
      %v1214 = vpop.f32.mrb[0].mxu0
      %1215 = vmatprep.mubr.bf16.mxu0 %v734
      %1216 = vmatmul.mubr.bf16.gmra.mrb[0].mxu0 %v733
      %v1217 = vpop.f32.mrb[0].mxu0
      %v1218 = vadd.f32 %v1082, %v1217
      %v1219 = vpop.f32.mrb[0].mxu0
      %v1220 = vpop.f32.mrb[0].mxu0
      %v1221 = vadd.f32 %v1085, %v1220
      %v1222 = vpop.f32.mrb[0].mxu0
      %1223 = vmatprep.mubr.bf16.mxu0 %v738
      %1224 = vmatmul.mubr.bf16.gmra.mrb[0].mxu0 %v737
      %v1225 = vpop.f32.mrb[0].mxu0
      %v1226 = vadd.f32 %v1090, %v1225
      %v1227 = vpop.f32.mrb[0].mxu0
      %v1228 = vpop.f32.mrb[0].mxu0
      %v1229 = vadd.f32 %v1093, %v1228
      %v1230 = vpop.f32.mrb[0].mxu0
      %1231 = vmatprep.mubr.bf16.mxu0 %v742
      %1232 = vmatmul.mubr.bf16.gmra.mrb[0].mxu0 %v741
      %v1233 = vpop.f32.mrb[0].mxu0
      %v1234 = vadd.f32 %v1098, %v1233
      %v1235 = vpop.f32.mrb[0].mxu0
      %v1236 = vpop.f32.mrb[0].mxu0
      %v1237 = vadd.f32 %v1101, %v1236
      %v1238 = vpop.f32.mrb[0].mxu0
      %1239 = vmatprep.mubr.bf16.mxu0 %v746
      %1240 = vmatmul.mubr.bf16.gmra.mrb[0].mxu0 %v745
      %v1241 = vpop.f32.mrb[0].mxu0
      %v1242 = vadd.f32 %v1106, %v1241
      %v1243 = vpop.f32.mrb[0].mxu0
      %v1244 = vpop.f32.mrb[0].mxu0
      %v1245 = vadd.f32 %v1109, %v1244
      %v1246 = vpop.f32.mrb[0].mxu0
      %1247 = vmatprep.mubr.bf16.mxu0 %v750
      %1248 = vmatmul.mubr.bf16.gmra.mrb[0].mxu0 %v749
      %v1249 = vpop.f32.mrb[0].mxu0
      %v1250 = vadd.f32 %v1114, %v1249
      %v1251 = vpop.f32.mrb[0].mxu0
      %v1252 = vpop.f32.mrb[0].mxu0
      %v1253 = vadd.f32 %v1117, %v1252
      %v1254 = vpop.f32.mrb[0].mxu0
      %1255 = vmatprep.mubr.bf16.mxu0 %v754
      %1256 = vmatmul.mubr.bf16.gmra.mrb[0].mxu0 %v753
      %v1257 = vpop.f32.mrb[0].mxu0
      %v1258 = vadd.f32 %v1122, %v1257
      %v1259 = vpop.f32.mrb[0].mxu0
      %v1260 = vpop.f32.mrb[0].mxu0
      %v1261 = vadd.f32 %v1125, %v1260
      %v1262 = vpop.f32.mrb[0].mxu0
      %1263 = vmatprep.mubr.bf16.mxu0 %v758
      %1264 = vmatmul.mubr.bf16.gmra.mrb[0].mxu0 %v757
      %v1265 = vpop.f32.mrb[0].mxu0
      %v1266 = vadd.f32 %v1130, %v1265
      %v1267 = vpop.f32.mrb[0].mxu0
      %v1268 = vpop.f32.mrb[0].mxu0
      %v1269 = vadd.f32 %v1133, %v1268
      %v1270 = vpop.f32.mrb[0].mxu0
      %1271 = vmatprep.mubr.bf16.mxu0 %v762
      %1272 = vmatmul.mubr.bf16.gmra.mrb[0].mxu0 %v761
      %v1273 = vpop.f32.mrb[0].mxu0
      %v1274 = vadd.f32 %v1138, %v1273
      %v1275 = vpop.f32.mrb[0].mxu0
      %v1276 = vpop.f32.mrb[0].mxu0
      %v1277 = vpop.f32.mrb[0].mxu0
      %1278 = vdwg.mxu0
      %v1279 = vmax.f32 %v1178, 0.0
      %v1280 = vmax.f32 %v1181, 0.0
      %v1281 = vmax.f32 %v1186, 0.0
      %v1282 = vmax.f32 %v1189, 0.0
      %v1283 = vmax.f32 %v1194, 0.0
      %v1284 = vmax.f32 %v1197, 0.0
      %v1285 = vmax.f32 %v1202, 0.0
      %v1286 = vmax.f32 %v1205, 0.0
      %v1287 = vmax.f32 %v1210, 0.0
      %v1288 = vmax.f32 %v1213, 0.0
      %v1289 = vmax.f32 %v1218, 0.0
      %v1290 = vmax.f32 %v1221, 0.0
      %v1291 = vmax.f32 %v1226, 0.0
      %v1292 = vmax.f32 %v1229, 0.0
      %v1293 = vmax.f32 %v1234, 0.0
      %v1294 = vmax.f32 %v1237, 0.0
      %v1295 = vmax.f32 %v1242, 0.0
      %v1296 = vmax.f32 %v1245, 0.0
      %v1297 = vmax.f32 %v1250, 0.0
      %v1298 = vmax.f32 %v1253, 0.0
      %v1299 = vmax.f32 %v1258, 0.0
      %v1300 = vmax.f32 %v1261, 0.0
      %v1301 = vmax.f32 %v1266, 0.0
      %v1302 = vmax.f32 %v1269, 0.0
      %v1303 = vmax.f32 %v1274, 0.0
      %1304 = vst [vmem:[#allocation2] sm:$0xff] %v1279
      %1305 = vst [vmem:[#allocation2 + $0x8] sm:$0xff] %v1280
      %1306 = vst [vmem:[#allocation2 + $0x10] sm:$0xff] %v1281
      %1307 = vst [vmem:[#allocation2 + $0x18] sm:$0xff] %v1282
      %1308 = vst [vmem:[#allocation2 + $0x20] sm:$0xff] %v1283
      %1309 = vst [vmem:[#allocation2 + $0x28] sm:$0xff] %v1284
      %1310 = vst [vmem:[#allocation2 + $0x30] sm:$0xff] %v1285
      %1311 = vst [vmem:[#allocation2 + $0x38] sm:$0xff] %v1286
      %1312 = vst [vmem:[#allocation2 + $0x40] sm:$0xff] %v1287
      %1313 = vst [vmem:[#allocation2 + $0x48] sm:$0xff] %v1288
      %1314 = vst [vmem:[#allocation2 + $0x50] sm:$0xff] %v1289
      %1315 = vst [vmem:[#allocation2 + $0x58] sm:$0xff] %v1290
      %1316 = vst [vmem:[#allocation2 + $0x60] sm:$0xff] %v1291
      %1317 = vst [vmem:[#allocation2 + $0x68] sm:$0xff] %v1292
      %1318 = vst [vmem:[#allocation2 + $0x70] sm:$0xff] %v1293
      %1319 = vst [vmem:[#allocation2 + $0x78] sm:$0xff] %v1294
      %1320 = vst [vmem:[#allocation2 + $0x80] sm:$0xff] %v1295
      %1321 = vst [vmem:[#allocation2 + $0x88] sm:$0xff] %v1296
      %1322 = vst [vmem:[#allocation2 + $0x90] sm:$0xff] %v1297
      %1323 = vst [vmem:[#allocation2 + $0x98] sm:$0xff] %v1298
      %1324 = vst [vmem:[#allocation2 + $0xa0] sm:$0xff] %v1299
      %1325 = vst [vmem:[#allocation2 + $0xa8] sm:$0xff] %v1300
      %1326 = vst [vmem:[#allocation2 + $0xb0] sm:$0xff] %v1301
      %1327 = vst [vmem:[#allocation2 + $0xb8] sm:$0xff] %v1302
      %1328 = vst [vmem:[#allocation2 + $0xc0] sm:$0x3f] %v1303
      %v1329 = vld [vmem:[#allocation2] ss:$3 sm:$0xff]
      %s1330 = scalar_lea.vmem [#allocation2], 24
      %v1331 = vld [vmem:[%s1330] ss:$3 sm:$0xff]
      %s1332 = scalar_lea.vmem [#allocation2], 48
      %v1333 = vld [vmem:[%s1332] ss:$3 sm:$0xff]
      %s1334 = scalar_lea.vmem [#allocation2], 72
      %v1335 = vld [vmem:[%s1334] ss:$3 sm:$0xff]
      %s1336 = scalar_lea.vmem [#allocation2], 96
      %v1337 = vld [vmem:[%s1336] ss:$3 sm:$0xff]
      %s1338 = scalar_lea.vmem [#allocation2], 120
      %v1339 = vld [vmem:[%s1338] ss:$3 sm:$0xff]
      %s1340 = scalar_lea.vmem [#allocation2], 144
      %v1341 = vld [vmem:[%s1340] ss:$3 sm:$0xff]
      %s1342 = scalar_lea.vmem [#allocation2], 168
      %v1343 = vld [vmem:[%s1342] ss:$3 sm:$0xff]
      %s1344 = scalar_lea.vmem [#allocation2], 192
      %v1345 = vld [vmem:[%s1344] ss:$3 sm:$0x3]
      %s1346 = scalar_lea.vmem [#allocation2], 1
      %v1347 = vld [vmem:[%s1346] ss:$3 sm:$0xff]
      %s1348 = scalar_lea.vmem [#allocation2], 25
      %v1349 = vld [vmem:[%s1348] ss:$3 sm:$0xff]
      %s1350 = scalar_lea.vmem [#allocation2], 49
      %v1351 = vld [vmem:[%s1350] ss:$3 sm:$0xff]
      %s1352 = scalar_lea.vmem [#allocation2], 73
      %v1353 = vld [vmem:[%s1352] ss:$3 sm:$0xff]
      %s1354 = scalar_lea.vmem [#allocation2], 97
      %v1355 = vld [vmem:[%s1354] ss:$3 sm:$0xff]
      %s1356 = scalar_lea.vmem [#allocation2], 121
      %v1357 = vld [vmem:[%s1356] ss:$3 sm:$0xff]
      %s1358 = scalar_lea.vmem [#allocation2], 145
      %v1359 = vld [vmem:[%s1358] ss:$3 sm:$0xff]
      %s1360 = scalar_lea.vmem [#allocation2], 169
      %v1361 = vld [vmem:[%s1360] ss:$3 sm:$0xff]
      %s1362 = scalar_lea.vmem [#allocation2], 193
      %v1363 = vld [vmem:[%s1362] ss:$3 sm:$0x3]
      %v1364 = vmax.f32 %v1329, %v1347
      %v1365 = vmax.f32 %v1331, %v1349
      %v1366 = vmax.f32 %v1333, %v1351
      %v1367 = vmax.f32 %v1335, %v1353
      %v1368 = vmax.f32 %v1337, %v1355
      %v1369 = vmax.f32 %v1339, %v1357
      %v1370 = vmax.f32 %v1341, %v1359
      %v1371 = vmax.f32 %v1343, %v1361
      %v1372 = vmax.f32 %v1345, %v1363
      %s1373 = scalar_lea.vmem [#allocation2], 2
      %v1374 = vld [vmem:[%s1373] ss:$3 sm:$0xff]
      %s1375 = scalar_lea.vmem [#allocation2], 26
      %v1376 = vld [vmem:[%s1375] ss:$3 sm:$0xff]
      %s1377 = scalar_lea.vmem [#allocation2], 50
      %v1378 = vld [vmem:[%s1377] ss:$3 sm:$0xff]
      %s1379 = scalar_lea.vmem [#allocation2], 74
      %v1380 = vld [vmem:[%s1379] ss:$3 sm:$0xff]
      %s1381 = scalar_lea.vmem [#allocation2], 98
      %v1382 = vld [vmem:[%s1381] ss:$3 sm:$0xff]
      %s1383 = scalar_lea.vmem [#allocation2], 122
      %v1384 = vld [vmem:[%s1383] ss:$3 sm:$0xff]
      %s1385 = scalar_lea.vmem [#allocation2], 146
      %v1386 = vld [vmem:[%s1385] ss:$3 sm:$0xff]
      %s1387 = scalar_lea.vmem [#allocation2], 170
      %v1388 = vld [vmem:[%s1387] ss:$3 sm:$0xff]
      %s1389 = scalar_lea.vmem [#allocation2], 194
      %v1390 = vld [vmem:[%s1389] ss:$3 sm:$0x3]
      %v1391 = vmax.f32 %v1364, %v1374
      %v1392 = vmax.f32 %v1365, %v1376
      %v1393 = vmax.f32 %v1366, %v1378
      %v1394 = vmax.f32 %v1367, %v1380
      %v1395 = vmax.f32 %v1368, %v1382
      %v1396 = vmax.f32 %v1369, %v1384
      %v1397 = vmax.f32 %v1370, %v1386
      %v1398 = vmax.f32 %v1371, %v1388
      %v1399 = vmax.f32 %v1372, %v1390
      %v1400 = vpack.c.bf16 %v1392, %v1391
      %v1401 = vpack.c.bf16 %v1394, %v1393
      %v1402 = vpack.c.bf16 %v1396, %v1395
      %v1403 = vpack.c.bf16 %v1398, %v1397
      %v1404 = vpack.c.bf16 %v1399, %v1399
      %vm1405 = vsmask.f32 7424
      %v1407 = vshrl.u32 %v1400, 16
      %v1409 = vshll.u32 %v1400, 16
      %v1411 = vrot.slane %v1409, 1
      %v1412 = vor.u32 %v1407, %v1411
      %v1414 = vshll.u32 %v1401, 16
      %v1416 = vrot.slane %v1414, 1
      %v1417 = vsel %vm1405, %v1412, %v1416
      %v1418 = vshrl.u32 %v1401, 16
      %v1420 = vor.u32 %v1418, %v1416
      %v1422 = vshll.u32 %v1402, 16
      %v1424 = vrot.slane %v1422, 1
      %v1425 = vsel %vm1405, %v1420, %v1424
      %v1426 = vshrl.u32 %v1402, 16
      %v1428 = vor.u32 %v1426, %v1424
      %v1430 = vshll.u32 %v1403, 16
      %v1432 = vrot.slane %v1430, 1
      %v1433 = vsel %vm1405, %v1428, %v1432
      %v1434 = vshrl.u32 %v1403, 16
      %v1436 = vor.u32 %v1434, %v1432
      %vm1445 = vcmask 1046528
      %v1446 = vrot.slane %v1400, 1
      %v1447 = vrot.slane %v1401, 1
      %v1448 = vsel %vm1445, %v1446, %v1447
      %v1449 = vrot.slane %v1402, 1
      %v1450 = vsel %vm1445, %v1447, %v1449
      %v1451 = vrot.slane %v1403, 1
      %v1452 = vsel %vm1445, %v1449, %v1451
      %vm1457 = vsmask.f32 6400
      %v1458 = vrot.slane %v1407, 1
      %v1459 = vrot.slane %v1409, 2
      %v1460 = vor.u32 %v1458, %v1459
      %v1461 = vrot.slane %v1418, 1
      %v1462 = vrot.slane %v1414, 2
      %v1463 = vor.u32 %v1461, %v1462
      %v1464 = vsel %vm1457, %v1460, %v1463
      %v1465 = vrot.slane %v1426, 1
      %v1466 = vrot.slane %v1422, 2
      %v1467 = vor.u32 %v1465, %v1466
      %v1468 = vsel %vm1457, %v1463, %v1467
      %v1469 = vrot.slane %v1434, 1
      %v1470 = vrot.slane %v1430, 2
      %v1471 = vor.u32 %v1469, %v1470
      %v1472 = vsel %vm1457, %v1467, %v1471
      %vm1477 = vcmask 1045504
      %v1478 = vrot.slane %v1400, 2
      %v1479 = vrot.slane %v1401, 2
      %v1480 = vsel %vm1477, %v1478, %v1479
      %v1481 = vrot.slane %v1402, 2
      %v1482 = vsel %vm1477, %v1479, %v1481
      %v1483 = vrot.slane %v1403, 2
      %v1484 = vsel %vm1477, %v1481, %v1483
      %vm1489 = vsmask.f32 5376
      %v1490 = vrot.slane %v1407, 2
      %v1491 = vrot.slane %v1409, 3
      %v1492 = vor.u32 %v1490, %v1491
      %v1493 = vrot.slane %v1418, 2
      %v1494 = vrot.slane %v1414, 3
      %v1495 = vor.u32 %v1493, %v1494
      %v1496 = vsel %vm1489, %v1492, %v1495
      %v1497 = vrot.slane %v1426, 2
      %v1498 = vrot.slane %v1422, 3
      %v1499 = vor.u32 %v1497, %v1498
      %v1500 = vsel %vm1489, %v1495, %v1499
      %v1501 = vrot.slane %v1434, 2
      %v1502 = vrot.slane %v1430, 3
      %v1503 = vor.u32 %v1501, %v1502
      %v1504 = vsel %vm1489, %v1499, %v1503
      %v1506 = vshll.u32 %v1404, 16
      %v1508 = vrot.slane %v1506, 3
      %v1509 = vsel %vm1489, %v1503, %v1508
      %vm1515 = vcmask 1044480
      %v1516 = vrot.slane %v1400, 3
      %v1517 = vrot.slane %v1401, 3
      %v1518 = vsel %vm1515, %v1516, %v1517
      %v1519 = vrot.slane %v1402, 3
      %v1520 = vsel %vm1515, %v1517, %v1519
      %v1521 = vrot.slane %v1403, 3
      %v1522 = vsel %vm1515, %v1519, %v1521
      %v1523 = vrot.slane %v1404, 3
      %v1524 = vsel %vm1515, %v1521, %v1523
      %v1529 = vld [vmem:[%s3] sm:$0xf]
      %v1530 = vld [vmem:[%s3 + $0x4] sm:$0xf]
      %v1531 = vld [vmem:[%s3 + $0x8] sm:$0xf]
      %v1532 = vld [vmem:[%s3 + $0xc] sm:$0xf]
      %v1533 = vld [vmem:[%s3 + $0x10] sm:$0xf]
      %v1534 = vld [vmem:[%s3 + $0x14] sm:$0xf]
      %v1535 = vld [vmem:[%s3 + $0x18] sm:$0xf]
      %v1536 = vld [vmem:[%s3 + $0x1c] sm:$0xf]
      %v1537 = vld [vmem:[%s3 + $0x20] sm:$0xf]
      %v1538 = vld [vmem:[%s3 + $0x24] sm:$0xf]
      %v1539 = vld [vmem:[%s3 + $0x28] sm:$0xf]
      %v1540 = vld [vmem:[%s3 + $0x2c] sm:$0xf]
      %v1541 = vld [vmem:[%s3 + $0x30] sm:$0xf]
      %v1542 = vld [vmem:[%s3 + $0x34] sm:$0xf]
      %v1543 = vld [vmem:[%s3 + $0x38] sm:$0xf]
      %v1544 = vld [vmem:[%s3 + $0x3c] sm:$0xf]
      %v1545 = vld [vmem:[%s3 + $0x40] sm:$0xf]
      %v1546 = vld [vmem:[%s3 + $0x44] sm:$0xf]
      %v1547 = vld [vmem:[%s3 + $0x48] sm:$0xf]
      %v1548 = vld [vmem:[%s3 + $0x4c] sm:$0xf]
      %v1549 = vld [vmem:[%s3 + $0x50] sm:$0xf]
      %v1550 = vld [vmem:[%s3 + $0x54] sm:$0xf]
      %v1551 = vld [vmem:[%s3 + $0x58] sm:$0xf]
      %v1552 = vld [vmem:[%s3 + $0x5c] sm:$0xf]
      %v1553 = vld [vmem:[%s3 + $0x60] sm:$0xf]
      %v1554 = vld [vmem:[%s3 + $0x64] sm:$0xf]
      %v1555 = vld [vmem:[%s3 + $0x68] sm:$0xf]
      %v1556 = vld [vmem:[%s3 + $0x6c] sm:$0xf]
      %v1557 = vld [vmem:[%s3 + $0x70] sm:$0xf]
      %v1558 = vld [vmem:[%s3 + $0x74] sm:$0xf]
      %v1559 = vld [vmem:[%s3 + $0x78] sm:$0xf]
      %v1560 = vld [vmem:[%s3 + $0x7c] sm:$0xf]
      %v1561 = vld [vmem:[%s3 + $0x80] sm:$0xf]
      %v1562 = vld [vmem:[%s3 + $0x84] sm:$0xf]
      %v1563 = vld [vmem:[%s3 + $0x88] sm:$0xf]
      %v1564 = vld [vmem:[%s3 + $0x8c] sm:$0xf]
      %v1565 = vld [vmem:[%s3 + $0x90] sm:$0xf]
      %v1566 = vld [vmem:[%s3 + $0x94] sm:$0xf]
      %v1567 = vld [vmem:[%s3 + $0x98] sm:$0xf]
      %v1568 = vld [vmem:[%s3 + $0x9c] sm:$0xf]
      %v1569 = vld [vmem:[%s3 + $0xa0] sm:$0xf]
      %v1570 = vld [vmem:[%s3 + $0xa4] sm:$0xf]
      %v1571 = vld [vmem:[%s3 + $0xa8] sm:$0xf]
      %v1572 = vld [vmem:[%s3 + $0xac] sm:$0xf]
      %v1573 = vld [vmem:[%s3 + $0xb0] sm:$0xf]
      %v1574 = vld [vmem:[%s3 + $0xb4] sm:$0xf]
      %v1575 = vld [vmem:[%s3 + $0xb8] sm:$0xf]
      %v1576 = vld [vmem:[%s3 + $0xbc] sm:$0xf]
      %v1577 = vld [vmem:[%s3 + $0xc0] sm:$0xf]
      %v1578 = vld [vmem:[%s3 + $0xc4] sm:$0xf]
      %v1579 = vld [vmem:[%s3 + $0xc8] sm:$0xf]
      %v1580 = vld [vmem:[%s3 + $0xcc] sm:$0xf]
      %v1581 = vld [vmem:[%s3 + $0xd0] sm:$0xf]
      %v1582 = vld [vmem:[%s3 + $0xd4] sm:$0xf]
      %v1583 = vld [vmem:[%s3 + $0xd8] sm:$0xf]
      %v1584 = vld [vmem:[%s3 + $0xdc] sm:$0xf]
      %v1585 = vld [vmem:[%s3 + $0xe0] sm:$0xf]
      %v1586 = vld [vmem:[%s3 + $0xe4] sm:$0xf]
      %v1587 = vld [vmem:[%s3 + $0xe8] sm:$0xf]
      %v1588 = vld [vmem:[%s3 + $0xec] sm:$0xf]
      %v1589 = vld [vmem:[%s3 + $0xf0] sm:$0xf]
      %v1590 = vld [vmem:[%s3 + $0xf4] sm:$0xf]
      %v1591 = vld [vmem:[%s3 + $0xf8] sm:$0xf]
      %v1592 = vld [vmem:[%s3 + $0xfc] sm:$0xf]
      %v1593 = vld [vmem:[%s3 + $0x100] sm:$0xf]
      %v1594 = vld [vmem:[%s3 + $0x104] sm:$0xf]
      %v1595 = vld [vmem:[%s3 + $0x108] sm:$0xf]
      %v1596 = vld [vmem:[%s3 + $0x10c] sm:$0xf]
      %v1597 = vld [vmem:[%s3 + $0x110] sm:$0xf]
      %v1598 = vld [vmem:[%s3 + $0x114] sm:$0xf]
      %v1599 = vld [vmem:[%s3 + $0x118] sm:$0xf]
      %v1600 = vld [vmem:[%s3 + $0x11c] sm:$0xf]
      %v1601 = vld [vmem:[%s3 + $0x120] sm:$0xf]
      %v1602 = vld [vmem:[%s3 + $0x124] sm:$0xf]
      %v1603 = vld [vmem:[%s3 + $0x128] sm:$0xf]
      %v1604 = vld [vmem:[%s3 + $0x12c] sm:$0xf]
      %v1605 = vld [vmem:[%s3 + $0x130] sm:$0xf]
      %v1606 = vld [vmem:[%s3 + $0x134] sm:$0xf]
      %v1607 = vld [vmem:[%s3 + $0x138] sm:$0xf]
      %v1608 = vld [vmem:[%s3 + $0x13c] sm:$0xf]
      %v1609 = vld [vmem:[%s3 + $0x140] sm:$0xf]
      %v1610 = vld [vmem:[%s3 + $0x144] sm:$0xf]
      %v1611 = vld [vmem:[%s3 + $0x148] sm:$0xf]
      %v1612 = vld [vmem:[%s3 + $0x14c] sm:$0xf]
      %v1613 = vld [vmem:[%s3 + $0x150] sm:$0xf]
      %v1614 = vld [vmem:[%s3 + $0x154] sm:$0xf]
      %v1615 = vld [vmem:[%s3 + $0x158] sm:$0xf]
      %v1616 = vld [vmem:[%s3 + $0x15c] sm:$0xf]
      %v1617 = vld [vmem:[%s3 + $0x160] sm:$0xf]
      %v1618 = vld [vmem:[%s3 + $0x164] sm:$0xf]
      %v1619 = vld [vmem:[%s3 + $0x168] sm:$0xf]
      %v1620 = vld [vmem:[%s3 + $0x16c] sm:$0xf]
      %v1621 = vld [vmem:[%s3 + $0x170] sm:$0xf]
      %v1622 = vld [vmem:[%s3 + $0x174] sm:$0xf]
      %v1623 = vld [vmem:[%s3 + $0x178] sm:$0xf]
      %v1624 = vld [vmem:[%s3 + $0x17c] sm:$0xf]
      %v1625 = vld [vmem:[%s3 + $0x180] sm:$0xf]
      %v1626 = vld [vmem:[%s3 + $0x184] sm:$0xf]
      %v1627 = vld [vmem:[%s3 + $0x188] sm:$0xf]
      %v1628 = vld [vmem:[%s3 + $0x18c] sm:$0xf]
      %v1629 = vld [vmem:[%s3 + $0x190] sm:$0xf]
      %v1630 = vld [vmem:[%s3 + $0x194] sm:$0xf]
      %v1631 = vld [vmem:[%s3 + $0x198] sm:$0xf]
      %v1632 = vld [vmem:[%s3 + $0x19c] sm:$0xf]
      %v1633 = vld [vmem:[%s3 + $0x1a0] sm:$0xf]
      %v1634 = vld [vmem:[%s3 + $0x1a4] sm:$0xf]
      %v1635 = vld [vmem:[%s3 + $0x1a8] sm:$0xf]
      %v1636 = vld [vmem:[%s3 + $0x1ac] sm:$0xf]
      %v1637 = vld [vmem:[%s3 + $0x1b0] sm:$0xf]
      %v1638 = vld [vmem:[%s3 + $0x1b4] sm:$0xf]
      %v1639 = vld [vmem:[%s3 + $0x1b8] sm:$0xf]
      %v1640 = vld [vmem:[%s3 + $0x1bc] sm:$0xf]
      %v1641 = vld [vmem:[%s4] sm:$0x1]
      %v1643 = vlaneseq
      %v1644 = vshrl.u32 %v1643, 7
      %v1645 = vsub.s32 0, %v1644
      %v1646 = vrot.slane %v1641, %v1645
      %v1760 = vunpack.c.l.b16 %v1529
      %v1761 = vunpack.c.l.b16 %v1530
      %v1762 = vunpack.c.l.b16 %v1531
      %v1763 = vunpack.c.l.b16 %v1532
      %v1764 = vunpack.c.l.b16 %v1533
      %v1765 = vunpack.c.l.b16 %v1534
      %v1766 = vunpack.c.l.b16 %v1535
      %v1767 = vunpack.c.l.b16 %v1536
      %v1768 = vunpack.c.l.b16 %v1537
      %v1769 = vunpack.c.l.b16 %v1538
      %v1770 = vunpack.c.l.b16 %v1539
      %v1771 = vunpack.c.l.b16 %v1540
      %v1772 = vunpack.c.l.b16 %v1541
      %v1773 = vunpack.c.l.b16 %v1542
      %v1774 = vunpack.c.l.b16 %v1543
      %v1775 = vunpack.c.l.b16 %v1544
      %v1776 = vunpack.c.l.b16 %v1545
      %v1777 = vunpack.c.l.b16 %v1546
      %v1778 = vunpack.c.l.b16 %v1547
      %v1779 = vunpack.c.l.b16 %v1548
      %v1780 = vunpack.c.l.b16 %v1549
      %v1781 = vunpack.c.l.b16 %v1550
      %v1782 = vunpack.c.l.b16 %v1551
      %v1783 = vunpack.c.l.b16 %v1552
      %v1784 = vunpack.c.l.b16 %v1553
      %v1785 = vunpack.c.l.b16 %v1554
      %v1786 = vunpack.c.l.b16 %v1555
      %v1787 = vunpack.c.l.b16 %v1556
      %v1788 = vunpack.c.l.b16 %v1557
      %v1789 = vunpack.c.l.b16 %v1558
      %v1790 = vunpack.c.l.b16 %v1559
      %v1791 = vunpack.c.l.b16 %v1560
      %v1792 = vunpack.c.l.b16 %v1561
      %v1793 = vunpack.c.l.b16 %v1562
      %v1794 = vunpack.c.l.b16 %v1563
      %v1795 = vunpack.c.l.b16 %v1564
      %v1796 = vunpack.c.l.b16 %v1565
      %v1797 = vunpack.c.l.b16 %v1566
      %v1798 = vunpack.c.l.b16 %v1567
      %v1799 = vunpack.c.l.b16 %v1568
      %v1800 = vunpack.c.l.b16 %v1569
      %v1801 = vunpack.c.l.b16 %v1570
      %v1802 = vunpack.c.l.b16 %v1571
      %v1803 = vunpack.c.l.b16 %v1572
      %v1804 = vunpack.c.l.b16 %v1573
      %v1805 = vunpack.c.l.b16 %v1574
      %v1806 = vunpack.c.l.b16 %v1575
      %v1807 = vunpack.c.l.b16 %v1576
      %v1808 = vunpack.c.l.b16 %v1577
      %v1809 = vunpack.c.l.b16 %v1578
      %v1810 = vunpack.c.l.b16 %v1579
      %v1811 = vunpack.c.l.b16 %v1580
      %v1812 = vunpack.c.l.b16 %v1581
      %v1813 = vunpack.c.l.b16 %v1582
      %v1814 = vunpack.c.l.b16 %v1583
      %v1815 = vunpack.c.l.b16 %v1584
      %v1816 = vunpack.c.l.b16 %v1585
      %v1817 = vunpack.c.l.b16 %v1586
      %v1818 = vunpack.c.l.b16 %v1587
      %v1819 = vunpack.c.l.b16 %v1588
      %v1820 = vunpack.c.l.b16 %v1589
      %v1821 = vunpack.c.l.b16 %v1590
      %v1822 = vunpack.c.l.b16 %v1591
      %v1823 = vunpack.c.l.b16 %v1592
      %v1824 = vunpack.c.l.b16 %v1593
      %v1825 = vunpack.c.l.b16 %v1594
      %v1826 = vunpack.c.l.b16 %v1595
      %v1827 = vunpack.c.l.b16 %v1596
      %v1828 = vunpack.c.l.b16 %v1597
      %v1829 = vunpack.c.l.b16 %v1598
      %v1830 = vunpack.c.l.b16 %v1599
      %v1831 = vunpack.c.l.b16 %v1600
      %v1832 = vunpack.c.l.b16 %v1601
      %v1833 = vunpack.c.l.b16 %v1602
      %v1834 = vunpack.c.l.b16 %v1603
      %v1835 = vunpack.c.l.b16 %v1604
      %v1836 = vunpack.c.l.b16 %v1605
      %v1837 = vunpack.c.l.b16 %v1606
      %v1838 = vunpack.c.l.b16 %v1607
      %v1839 = vunpack.c.l.b16 %v1608
      %v1840 = vunpack.c.l.b16 %v1609
      %v1841 = vunpack.c.l.b16 %v1610
      %v1842 = vunpack.c.l.b16 %v1611
      %v1843 = vunpack.c.l.b16 %v1612
      %v1844 = vunpack.c.l.b16 %v1613
      %v1845 = vunpack.c.l.b16 %v1614
      %v1846 = vunpack.c.l.b16 %v1615
      %v1847 = vunpack.c.l.b16 %v1616
      %v1848 = vunpack.c.l.b16 %v1617
      %v1849 = vunpack.c.l.b16 %v1618
      %v1850 = vunpack.c.l.b16 %v1619
      %v1851 = vunpack.c.l.b16 %v1620
      %v1852 = vunpack.c.l.b16 %v1621
      %v1853 = vunpack.c.l.b16 %v1622
      %v1854 = vunpack.c.l.b16 %v1623
      %v1855 = vunpack.c.l.b16 %v1624
      %v1856 = vunpack.c.l.b16 %v1625
      %v1857 = vunpack.c.l.b16 %v1626
      %v1858 = vunpack.c.l.b16 %v1627
      %v1859 = vunpack.c.l.b16 %v1628
      %v1860 = vunpack.c.l.b16 %v1629
      %v1861 = vunpack.c.l.b16 %v1630
      %v1862 = vunpack.c.l.b16 %v1631
      %v1863 = vunpack.c.l.b16 %v1632
      %v1864 = vunpack.c.l.b16 %v1633
      %v1865 = vunpack.c.l.b16 %v1634
      %v1866 = vunpack.c.l.b16 %v1635
      %v1867 = vunpack.c.l.b16 %v1636
      %v1868 = vunpack.c.l.b16 %v1637
      %v1869 = vunpack.c.l.b16 %v1638
      %v1870 = vunpack.c.l.b16 %v1639
      %v1871 = vunpack.c.l.b16 %v1640
      %v1872 = vpack.c.b16 %v1761, %v1760
      %v1873 = vpack.c.b16 %v1763, %v1762
      %v1874 = vpack.c.b16 %v1765, %v1764
      %v1875 = vpack.c.b16 %v1767, %v1766
      %v1876 = vpack.c.b16 %v1769, %v1768
      %v1877 = vpack.c.b16 %v1771, %v1770
      %v1878 = vpack.c.b16 %v1773, %v1772
      %v1879 = vpack.c.b16 %v1775, %v1774
      %v1880 = vpack.c.b16 %v1777, %v1776
      %v1881 = vpack.c.b16 %v1779, %v1778
      %v1882 = vpack.c.b16 %v1781, %v1780
      %v1883 = vpack.c.b16 %v1783, %v1782
      %v1884 = vpack.c.b16 %v1785, %v1784
      %v1885 = vpack.c.b16 %v1787, %v1786
      %v1886 = vpack.c.b16 %v1789, %v1788
      %v1887 = vpack.c.b16 %v1791, %v1790
      %v1888 = vpack.c.b16 %v1793, %v1792
      %v1889 = vpack.c.b16 %v1795, %v1794
      %v1890 = vpack.c.b16 %v1797, %v1796
      %v1891 = vpack.c.b16 %v1799, %v1798
      %v1892 = vpack.c.b16 %v1801, %v1800
      %v1893 = vpack.c.b16 %v1803, %v1802
      %v1894 = vpack.c.b16 %v1805, %v1804
      %v1895 = vpack.c.b16 %v1807, %v1806
      %v1896 = vpack.c.b16 %v1809, %v1808
      %v1897 = vpack.c.b16 %v1811, %v1810
      %v1898 = vpack.c.b16 %v1813, %v1812
      %v1899 = vpack.c.b16 %v1815, %v1814
      %v1900 = vpack.c.b16 %v1817, %v1816
      %v1901 = vpack.c.b16 %v1819, %v1818
      %v1902 = vpack.c.b16 %v1821, %v1820
      %v1903 = vpack.c.b16 %v1823, %v1822
      %v1904 = vpack.c.b16 %v1825, %v1824
      %v1905 = vpack.c.b16 %v1827, %v1826
      %v1906 = vpack.c.b16 %v1829, %v1828
      %v1907 = vpack.c.b16 %v1831, %v1830
      %v1908 = vpack.c.b16 %v1833, %v1832
      %v1909 = vpack.c.b16 %v1835, %v1834
      %v1910 = vpack.c.b16 %v1837, %v1836
      %v1911 = vpack.c.b16 %v1839, %v1838
      %v1912 = vpack.c.b16 %v1841, %v1840
      %v1913 = vpack.c.b16 %v1843, %v1842
      %v1914 = vpack.c.b16 %v1845, %v1844
      %v1915 = vpack.c.b16 %v1847, %v1846
      %v1916 = vpack.c.b16 %v1849, %v1848
      %v1917 = vpack.c.b16 %v1851, %v1850
      %v1918 = vpack.c.b16 %v1853, %v1852
      %v1919 = vpack.c.b16 %v1855, %v1854
      %v1920 = vpack.c.b16 %v1857, %v1856
      %v1921 = vpack.c.b16 %v1859, %v1858
      %v1922 = vpack.c.b16 %v1861, %v1860
      %v1923 = vpack.c.b16 %v1863, %v1862
      %v1924 = vpack.c.b16 %v1865, %v1864
      %v1925 = vpack.c.b16 %v1867, %v1866
      %v1926 = vpack.c.b16 %v1869, %v1868
      %v1927 = vpack.c.b16 %v1871, %v1870
      %1984 = vmatprep.subr.bf16.mxu0 0
      %1985 = vmatpush1.bf16.msra.mxu0 %v1872
      %1986 = vmatprep.subr.bf16.mxu0 0
      %1987 = vmatpush1.bf16.msra.mxu0 %v1873
      %1988 = vmatprep.subr.bf16.mxu0 0
      %1989 = vmatpush1.bf16.msra.mxu0 %v1874
      %1990 = vmatprep.subr.bf16.mxu0 0
      %1991 = vmatpush1.bf16.msra.mxu0 %v1875
      %1992 = vmatprep.subr.bf16.mxu0 0
      %1993 = vmatpush1.bf16.msra.mxu0 %v1876
      %1994 = vmatprep.subr.bf16.mxu0 0
      %1995 = vmatpush1.bf16.msra.mxu0 %v1877
      %1996 = vmatprep.subr.bf16.mxu0 0
      %1997 = vmatpush1.bf16.msra.mxu0 %v1878
      %1998 = vmatprep.subr.bf16.mxu0 0
      %1999 = vmatpush1.bf16.msra.mxu0 %v1879
      %2000 = vmatprep.subr.bf16.mxu0 0
      %2001 = vmatpush1.bf16.msra.mxu0 %v1880
      %2002 = vmatprep.subr.bf16.mxu0 0
      %2003 = vmatpush1.bf16.msra.mxu0 %v1881
      %2004 = vmatprep.subr.bf16.mxu0 0
      %2005 = vmatpush1.bf16.msra.mxu0 %v1882
      %2006 = vmatprep.subr.bf16.mxu0 0
      %2007 = vmatpush1.bf16.msra.mxu0 %v1883
      %2008 = vmatprep.subr.bf16.mxu0 0
      %2009 = vmatpush1.bf16.msra.mxu0 %v1884
      %2010 = vmatprep.subr.bf16.mxu0 0
      %2011 = vmatpush1.bf16.msra.mxu0 %v1885
      %2012 = vmatprep.subr.bf16.mxu0 0
      %2013 = vmatpush1.bf16.msra.mxu0 %v1886
      %2014 = vmatprep.subr.bf16.mxu0 0
      %2015 = vmatpush1.bf16.msra.mxu0 %v1887
      %2016 = vmatprep.mubr.bf16.mxu0 %v1417
      %2017 = vmatmul.mubr.bf16.gmra.mrb[0].mxu0 %v1400
      %v2018 = vpop.f32.mrb[0].mxu0
      %v2019 = vadd.f32 %v1646, %v2018
      %v2020 = vpop.f32.mrb[0].mxu0
      %v2021 = vpop.f32.mrb[0].mxu0
      %v2022 = vadd.f32 %v1646, %v2021
      %v2023 = vpop.f32.mrb[0].mxu0
      %2024 = vmatprep.mubr.bf16.mxu0 %v1425
      %2025 = vmatmul.mubr.bf16.gmra.mrb[0].mxu0 %v1401
      %v2026 = vpop.f32.mrb[0].mxu0
      %v2027 = vadd.f32 %v1646, %v2026
      %v2028 = vpop.f32.mrb[0].mxu0
      %v2029 = vpop.f32.mrb[0].mxu0
      %v2030 = vadd.f32 %v1646, %v2029
      %v2031 = vpop.f32.mrb[0].mxu0
      %2032 = vmatprep.mubr.bf16.mxu0 %v1433
      %2033 = vmatmul.mubr.bf16.gmra.mrb[0].mxu0 %v1402
      %v2034 = vpop.f32.mrb[0].mxu0
      %v2035 = vadd.f32 %v1646, %v2034
      %v2036 = vpop.f32.mrb[0].mxu0
      %v2037 = vpop.f32.mrb[0].mxu0
      %v2038 = vadd.f32 %v1646, %v2037
      %v2039 = vpop.f32.mrb[0].mxu0
      %2040 = vmatprep.mubr.bf16.mxu0 %v1436
      %2041 = vmatmul.mubr.bf16.gmra.mrb[0].mxu0 %v1403
      %v2042 = vpop.f32.mrb[0].mxu0
      %v2043 = vadd.f32 %v1646, %v2042
      %v2044 = vpop.f32.mrb[0].mxu0
      %v2045 = vpop.f32.mrb[0].mxu0
      %v2046 = vadd.f32 %v1646, %v2045
      %v2047 = vpop.f32.mrb[0].mxu0
      %2048 = vdwg.mxu0
      %2049 = vmatprep.subr.bf16.mxu0 0
      %2050 = vmatpush1.bf16.msra.mxu0 %v1888
      %2051 = vmatprep.subr.bf16.mxu0 0
      %2052 = vmatpush1.bf16.msra.mxu0 %v1889
      %2053 = vmatprep.subr.bf16.mxu0 0
      %2054 = vmatpush1.bf16.msra.mxu0 %v1890
      %2055 = vmatprep.subr.bf16.mxu0 0
      %2056 = vmatpush1.bf16.msra.mxu0 %v1891
      %2057 = vmatprep.subr.bf16.mxu0 0
      %2058 = vmatpush1.bf16.msra.mxu0 %v1892
      %2059 = vmatprep.subr.bf16.mxu0 0
      %2060 = vmatpush1.bf16.msra.mxu0 %v1893
      %2061 = vmatprep.subr.bf16.mxu0 0
      %2062 = vmatpush1.bf16.msra.mxu0 %v1894
      %2063 = vmatprep.subr.bf16.mxu0 0
      %2064 = vmatpush1.bf16.msra.mxu0 %v1895
      %2065 = vmatprep.subr.bf16.mxu0 0
      %2066 = vmatpush1.bf16.msra.mxu0 %v1896
      %2067 = vmatprep.subr.bf16.mxu0 0
      %2068 = vmatpush1.bf16.msra.mxu0 %v1897
      %2069 = vmatprep.subr.bf16.mxu0 0
      %2070 = vmatpush1.bf16.msra.mxu0 %v1898
      %2071 = vmatprep.subr.bf16.mxu0 0
      %2072 = vmatpush1.bf16.msra.mxu0 %v1899
      %2073 = vmatprep.subr.bf16.mxu0 0
      %2074 = vmatpush1.bf16.msra.mxu0 %v1900
      %2075 = vmatprep.subr.bf16.mxu0 0
      %2076 = vmatpush1.bf16.msra.mxu0 %v1901
      %2077 = vmatprep.subr.bf16.mxu0 0
      %2078 = vmatpush1.bf16.msra.mxu0 %v1902
      %2079 = vmatprep.subr.bf16.mxu0 0
      %2080 = vmatpush1.bf16.msra.mxu0 %v1903
      %2081 = vmatprep.mubr.bf16.mxu0 %v1464
      %2082 = vmatmul.mubr.bf16.gmra.mrb[0].mxu0 %v1448
      %v2083 = vpop.f32.mrb[0].mxu0
      %v2084 = vadd.f32 %v2019, %v2083
      %v2085 = vpop.f32.mrb[0].mxu0
      %v2086 = vpop.f32.mrb[0].mxu0
      %v2087 = vadd.f32 %v2022, %v2086
      %v2088 = vpop.f32.mrb[0].mxu0
      %2089 = vmatprep.mubr.bf16.mxu0 %v1468
      %2090 = vmatmul.mubr.bf16.gmra.mrb[0].mxu0 %v1450
      %v2091 = vpop.f32.mrb[0].mxu0
      %v2092 = vadd.f32 %v2027, %v2091
      %v2093 = vpop.f32.mrb[0].mxu0
      %v2094 = vpop.f32.mrb[0].mxu0
      %v2095 = vadd.f32 %v2030, %v2094
      %v2096 = vpop.f32.mrb[0].mxu0
      %2097 = vmatprep.mubr.bf16.mxu0 %v1472
      %2098 = vmatmul.mubr.bf16.gmra.mrb[0].mxu0 %v1452
      %v2099 = vpop.f32.mrb[0].mxu0
      %v2100 = vadd.f32 %v2035, %v2099
      %v2101 = vpop.f32.mrb[0].mxu0
      %v2102 = vpop.f32.mrb[0].mxu0
      %v2103 = vadd.f32 %v2038, %v2102
      %v2104 = vpop.f32.mrb[0].mxu0
      %2105 = vmatprep.mubr.bf16.mxu0 %v1471
      %2106 = vmatmul.mubr.bf16.gmra.mrb[0].mxu0 %v1451
      %v2107 = vpop.f32.mrb[0].mxu0
      %v2108 = vadd.f32 %v2043, %v2107
      %v2109 = vpop.f32.mrb[0].mxu0
      %v2110 = vpop.f32.mrb[0].mxu0
      %v2111 = vadd.f32 %v2046, %v2110
      %v2112 = vpop.f32.mrb[0].mxu0
      %2113 = vdwg.mxu0
      %2114 = vmatprep.subr.bf16.mxu0 0
      %2115 = vmatpush1.bf16.msra.mxu0 %v1904
      %2116 = vmatprep.subr.bf16.mxu0 0
      %2117 = vmatpush1.bf16.msra.mxu0 %v1905
      %2118 = vmatprep.subr.bf16.mxu0 0
      %2119 = vmatpush1.bf16.msra.mxu0 %v1906
      %2120 = vmatprep.subr.bf16.mxu0 0
      %2121 = vmatpush1.bf16.msra.mxu0 %v1907
      %2122 = vmatprep.subr.bf16.mxu0 0
      %2123 = vmatpush1.bf16.msra.mxu0 %v1908
      %2124 = vmatprep.subr.bf16.mxu0 0
      %2125 = vmatpush1.bf16.msra.mxu0 %v1909
      %2126 = vmatprep.subr.bf16.mxu0 0
      %2127 = vmatpush1.bf16.msra.mxu0 %v1910
      %2128 = vmatprep.subr.bf16.mxu0 0
      %2129 = vmatpush1.bf16.msra.mxu0 %v1911
      %2130 = vmatprep.subr.bf16.mxu0 0
      %2131 = vmatpush1.bf16.msra.mxu0 %v1912
      %2132 = vmatprep.subr.bf16.mxu0 0
      %2133 = vmatpush1.bf16.msra.mxu0 %v1913
      %2134 = vmatprep.subr.bf16.mxu0 0
      %2135 = vmatpush1.bf16.msra.mxu0 %v1914
      %2136 = vmatprep.subr.bf16.mxu0 0
      %2137 = vmatpush1.bf16.msra.mxu0 %v1915
      %2138 = vmatprep.subr.bf16.mxu0 0
      %2139 = vmatpush1.bf16.msra.mxu0 %v1916
      %2140 = vmatprep.subr.bf16.mxu0 0
      %2141 = vmatpush1.bf16.msra.mxu0 %v1917
      %2142 = vmatprep.subr.bf16.mxu0 0
      %2143 = vmatpush1.bf16.msra.mxu0 %v1918
      %2144 = vmatprep.subr.bf16.mxu0 0
      %2145 = vmatpush1.bf16.msra.mxu0 %v1919
      %2146 = vmatprep.mubr.bf16.mxu0 %v1496
      %2147 = vmatmul.mubr.bf16.gmra.mrb[0].mxu0 %v1480
      %v2148 = vpop.f32.mrb[0].mxu0
      %v2149 = vadd.f32 %v2084, %v2148
      %v2150 = vpop.f32.mrb[0].mxu0
      %v2151 = vpop.f32.mrb[0].mxu0
      %v2152 = vadd.f32 %v2087, %v2151
      %v2153 = vpop.f32.mrb[0].mxu0
      %2154 = vmatprep.mubr.bf16.mxu0 %v1500
      %2155 = vmatmul.mubr.bf16.gmra.mrb[0].mxu0 %v1482
      %v2156 = vpop.f32.mrb[0].mxu0
      %v2157 = vadd.f32 %v2092, %v2156
      %v2158 = vpop.f32.mrb[0].mxu0
      %v2159 = vpop.f32.mrb[0].mxu0
      %v2160 = vadd.f32 %v2095, %v2159
      %v2161 = vpop.f32.mrb[0].mxu0
      %2162 = vmatprep.mubr.bf16.mxu0 %v1504
      %2163 = vmatmul.mubr.bf16.gmra.mrb[0].mxu0 %v1484
      %v2164 = vpop.f32.mrb[0].mxu0
      %v2165 = vadd.f32 %v2100, %v2164
      %v2166 = vpop.f32.mrb[0].mxu0
      %v2167 = vpop.f32.mrb[0].mxu0
      %v2168 = vadd.f32 %v2103, %v2167
      %v2169 = vpop.f32.mrb[0].mxu0
      %2170 = vmatprep.mubr.bf16.mxu0 %v1509
      %2171 = vmatmul.mubr.bf16.gmra.mrb[0].mxu0 %v1483
      %v2172 = vpop.f32.mrb[0].mxu0
      %v2173 = vadd.f32 %v2108, %v2172
      %v2174 = vpop.f32.mrb[0].mxu0
      %v2175 = vpop.f32.mrb[0].mxu0
      %v2176 = vadd.f32 %v2111, %v2175
      %v2177 = vpop.f32.mrb[0].mxu0
      %2178 = vdwg.mxu0
      %2179 = vmatprep.subr.bf16.mxu0 0
      %2180 = vmatpush1.bf16.msra.mxu0 %v1920
      %2181 = vmatprep.subr.bf16.mxu0 0
      %2182 = vmatpush1.bf16.msra.mxu0 %v1921
      %2183 = vmatprep.subr.bf16.mxu0 0
      %2184 = vmatpush1.bf16.msra.mxu0 %v1922
      %2185 = vmatprep.subr.bf16.mxu0 0
      %2186 = vmatpush1.bf16.msra.mxu0 %v1923
      %2187 = vmatprep.subr.bf16.mxu0 0
      %2188 = vmatpush1.bf16.msra.mxu0 %v1924
      %2189 = vmatprep.subr.bf16.mxu0 0
      %2190 = vmatpush1.bf16.msra.mxu0 %v1925
      %2191 = vmatprep.subr.bf16.mxu0 0
      %2192 = vmatpush1.bf16.msra.mxu0 %v1926
      %2193 = vmatprep.subr.bf16.mxu0 0
      %2194 = vmatpush1.bf16.msra.mxu0 %v1927
      %2195 = vmatprep.subr.bf16.mxu0 0
      %2196 = vmatpush1.bf16.msra.mxu0 0
      %2197 = vmatprep.subr.bf16.mxu0 0
      %2198 = vmatpush1.bf16.msra.mxu0 0
      %2199 = vmatprep.subr.bf16.mxu0 0
      %2200 = vmatpush1.bf16.msra.mxu0 0
      %2201 = vmatprep.subr.bf16.mxu0 0
      %2202 = vmatpush1.bf16.msra.mxu0 0
      %2203 = vmatprep.subr.bf16.mxu0 0
      %2204 = vmatpush1.bf16.msra.mxu0 0
      %2205 = vmatprep.subr.bf16.mxu0 0
      %2206 = vmatpush1.bf16.msra.mxu0 0
      %2207 = vmatprep.subr.bf16.mxu0 0
      %2208 = vmatpush1.bf16.msra.mxu0 0
      %2209 = vmatprep.subr.bf16.mxu0 0
      %2210 = vmatpush1.bf16.msra.mxu0 0
      %2211 = vmatprep.mubr.bf16.mxu0 0
      %2212 = vmatmul.mubr.bf16.gmra.mrb[0].mxu0 %v1518
      %v2213 = vpop.f32.mrb[0].mxu0
      %v2214 = vadd.f32 %v2149, %v2213
      %v2215 = vpop.f32.mrb[0].mxu0
      %v2216 = vpop.f32.mrb[0].mxu0
      %v2217 = vadd.f32 %v2152, %v2216
      %v2218 = vpop.f32.mrb[0].mxu0
      %2219 = vmatprep.mubr.bf16.mxu0 0
      %2220 = vmatmul.mubr.bf16.gmra.mrb[0].mxu0 %v1520
      %v2221 = vpop.f32.mrb[0].mxu0
      %v2222 = vadd.f32 %v2157, %v2221
      %v2223 = vpop.f32.mrb[0].mxu0
      %v2224 = vpop.f32.mrb[0].mxu0
      %v2225 = vadd.f32 %v2160, %v2224
      %v2226 = vpop.f32.mrb[0].mxu0
      %2227 = vmatprep.mubr.bf16.mxu0 0
      %2228 = vmatmul.mubr.bf16.gmra.mrb[0].mxu0 %v1522
      %v2229 = vpop.f32.mrb[0].mxu0
      %v2230 = vadd.f32 %v2165, %v2229
      %v2231 = vpop.f32.mrb[0].mxu0
      %v2232 = vpop.f32.mrb[0].mxu0
      %v2233 = vadd.f32 %v2168, %v2232
      %v2234 = vpop.f32.mrb[0].mxu0
      %2235 = vmatprep.mubr.bf16.mxu0 0
      %2236 = vmatmul.mubr.bf16.gmra.mrb[0].mxu0 %v1524
      %v2237 = vpop.f32.mrb[0].mxu0
      %v2238 = vadd.f32 %v2173, %v2237
      %v2239 = vpop.f32.mrb[0].mxu0
      %v2240 = vpop.f32.mrb[0].mxu0
      %v2241 = vadd.f32 %v2176, %v2240
      %v2242 = vpop.f32.mrb[0].mxu0
      %2243 = vdwg.mxu0
      %v2244 = vmax.f32 %v2214, 0.0
      %v2245 = vmax.f32 %v2217, 0.0
      %v2246 = vmax.f32 %v2222, 0.0
      %v2247 = vmax.f32 %v2225, 0.0
      %v2248 = vmax.f32 %v2230, 0.0
      %v2249 = vmax.f32 %v2233, 0.0
      %v2250 = vmax.f32 %v2238, 0.0
      %v2251 = vmax.f32 %v2241, 0.0
      %2252 = vst [vmem:[#allocation2] sm:$0xff] %v2244
      %2253 = vst [vmem:[#allocation2 + $0x8] sm:$0xff] %v2245
      %2254 = vst [vmem:[#allocation2 + $0x10] sm:$0xff] %v2246
      %2255 = vst [vmem:[#allocation2 + $0x18] sm:$0xff] %v2247
      %2256 = vst [vmem:[#allocation2 + $0x20] sm:$0xff] %v2248
      %2257 = vst [vmem:[#allocation2 + $0x28] sm:$0xff] %v2249
      %2258 = vst [vmem:[#allocation2 + $0x30] sm:$0xff] %v2250
      %2259 = vst [vmem:[#allocation2 + $0x38] sm:$0xf] %v2251
      %v2260 = vld [vmem:[#allocation2] ss:$3 sm:$0xff]
      %s2261 = scalar_lea.vmem [#allocation2], 24
      %v2262 = vld [vmem:[%s2261] ss:$3 sm:$0xff]
      %s2263 = scalar_lea.vmem [#allocation2], 48
      %v2264 = vld [vmem:[%s2263] ss:$3 sm:$0xf]
      %v2265 = vld [vmem:[%s1346] ss:$3 sm:$0xff]
      %v2266 = vld [vmem:[%s1348] ss:$3 sm:$0xff]
      %v2267 = vld [vmem:[%s1350] ss:$3 sm:$0xf]
      %v2268 = vmax.f32 %v2260, %v2265
      %v2269 = vmax.f32 %v2262, %v2266
      %v2270 = vmax.f32 %v2264, %v2267
      %v2271 = vld [vmem:[%s1373] ss:$3 sm:$0xff]
      %v2272 = vld [vmem:[%s1375] ss:$3 sm:$0xff]
      %v2273 = vld [vmem:[%s1377] ss:$3 sm:$0xf]
      %v2274 = vmax.f32 %v2268, %v2271
      %v2275 = vmax.f32 %v2269, %v2272
      %v2276 = vmax.f32 %v2270, %v2273
      %v2277 = vpack.c.bf16 %v2275, %v2274
      %v2278 = vpack.c.bf16 %v2276, %v2276
      %v2280 = vshrl.u32 %v2277, 16
      %v2282 = vshll.u32 %v2277, 16
      %v2284 = vrot.slane %v2282, 1
      %v2285 = vor.u32 %v2280, %v2284
      %v2287 = vshll.u32 %v2278, 16
      %v2289 = vrot.slane %v2287, 1
      %v2290 = vsel %vm1405, %v2285, %v2289
      %v2291 = vshrl.u32 %v2278, 16
      %v2293 = vor.u32 %v2291, %v2289
      %v2298 = vrot.slane %v2277, 1
      %v2299 = vrot.slane %v2278, 1
      %v2300 = vsel %vm1445, %v2298, %v2299
      %v2303 = vld [vmem:[%s5] sm:$0xf]
      %v2304 = vld [vmem:[%s5 + $0x4] sm:$0xf]
      %v2305 = vld [vmem:[%s5 + $0x8] sm:$0xf]
      %v2306 = vld [vmem:[%s5 + $0xc] sm:$0xf]
      %v2307 = vld [vmem:[%s5 + $0x10] sm:$0xf]
      %v2308 = vld [vmem:[%s5 + $0x14] sm:$0xf]
      %v2309 = vld [vmem:[%s5 + $0x18] sm:$0xf]
      %v2310 = vld [vmem:[%s5 + $0x1c] sm:$0xf]
      %v2311 = vld [vmem:[%s5 + $0x20] sm:$0xf]
      %v2312 = vld [vmem:[%s5 + $0x24] sm:$0xf]
      %v2313 = vld [vmem:[%s5 + $0x28] sm:$0xf]
      %v2314 = vld [vmem:[%s5 + $0x2c] sm:$0xf]
      %v2315 = vld [vmem:[%s5 + $0x30] sm:$0xf]
      %v2316 = vld [vmem:[%s5 + $0x34] sm:$0xf]
      %v2317 = vld [vmem:[%s5 + $0x38] sm:$0xf]
      %v2318 = vld [vmem:[%s5 + $0x3c] sm:$0xf]
      %v2319 = vld [vmem:[%s5 + $0x40] sm:$0xf]
      %v2320 = vld [vmem:[%s5 + $0x44] sm:$0xf]
      %v2321 = vld [vmem:[%s5 + $0x48] sm:$0xf]
      %v2322 = vld [vmem:[%s5 + $0x4c] sm:$0xf]
      %v2323 = vld [vmem:[%s5 + $0x50] sm:$0xf]
      %v2324 = vld [vmem:[%s5 + $0x54] sm:$0xf]
      %v2325 = vld [vmem:[%s5 + $0x58] sm:$0xf]
      %v2326 = vld [vmem:[%s5 + $0x5c] sm:$0xf]
      %v2327 = vld [vmem:[%s5 + $0x60] sm:$0xf]
      %v2328 = vld [vmem:[%s5 + $0x64] sm:$0xf]
      %v2329 = vld [vmem:[%s5 + $0x68] sm:$0xf]
      %v2330 = vld [vmem:[%s5 + $0x6c] sm:$0xf]
      %v2331 = vld [vmem:[%s5 + $0x70] sm:$0xf]
      %v2332 = vld [vmem:[%s5 + $0x74] sm:$0xf]
      %v2333 = vld [vmem:[%s5 + $0x78] sm:$0xf]
      %v2334 = vld [vmem:[%s5 + $0x7c] sm:$0xf]
      %v2335 = vld [vmem:[%s5 + $0x80] sm:$0xf]
      %v2336 = vld [vmem:[%s5 + $0x84] sm:$0xf]
      %v2337 = vld [vmem:[%s5 + $0x88] sm:$0xf]
      %v2338 = vld [vmem:[%s5 + $0x8c] sm:$0xf]
      %v2339 = vld [vmem:[%s5 + $0x90] sm:$0xf]
      %v2340 = vld [vmem:[%s5 + $0x94] sm:$0xf]
      %v2341 = vld [vmem:[%s5 + $0x98] sm:$0xf]
      %v2342 = vld [vmem:[%s5 + $0x9c] sm:$0xf]
      %v2343 = vld [vmem:[%s5 + $0xa0] sm:$0xf]
      %v2344 = vld [vmem:[%s5 + $0xa4] sm:$0xf]
      %v2345 = vld [vmem:[%s5 + $0xa8] sm:$0xf]
      %v2346 = vld [vmem:[%s5 + $0xac] sm:$0xf]
      %v2347 = vld [vmem:[%s5 + $0xb0] sm:$0xf]
      %v2348 = vld [vmem:[%s5 + $0xb4] sm:$0xf]
      %v2349 = vld [vmem:[%s5 + $0xb8] sm:$0xf]
      %v2350 = vld [vmem:[%s5 + $0xbc] sm:$0xf]
      %v2351 = vld [vmem:[%s6] sm:$0x1]
      %v2353 = vlaneseq
      %v2354 = vshrl.u32 %v2353, 7
      %v2355 = vsub.s32 0, %v2354
      %v2356 = vrot.slane %v2351, %v2355
      %v2406 = vunpack.c.l.b16 %v2303
      %v2407 = vunpack.c.l.b16 %v2304
      %v2408 = vunpack.c.l.b16 %v2305
      %v2409 = vunpack.c.l.b16 %v2306
      %v2410 = vunpack.c.l.b16 %v2307
      %v2411 = vunpack.c.l.b16 %v2308
      %v2412 = vunpack.c.l.b16 %v2309
      %v2413 = vunpack.c.l.b16 %v2310
      %v2414 = vunpack.c.l.b16 %v2311
      %v2415 = vunpack.c.l.b16 %v2312
      %v2416 = vunpack.c.l.b16 %v2313
      %v2417 = vunpack.c.l.b16 %v2314
      %v2418 = vunpack.c.l.b16 %v2315
      %v2419 = vunpack.c.l.b16 %v2316
      %v2420 = vunpack.c.l.b16 %v2317
      %v2421 = vunpack.c.l.b16 %v2318
      %v2422 = vunpack.c.l.b16 %v2319
      %v2423 = vunpack.c.l.b16 %v2320
      %v2424 = vunpack.c.l.b16 %v2321
      %v2425 = vunpack.c.l.b16 %v2322
      %v2426 = vunpack.c.l.b16 %v2323
      %v2427 = vunpack.c.l.b16 %v2324
      %v2428 = vunpack.c.l.b16 %v2325
      %v2429 = vunpack.c.l.b16 %v2326
      %v2430 = vunpack.c.l.b16 %v2327
      %v2431 = vunpack.c.l.b16 %v2328
      %v2432 = vunpack.c.l.b16 %v2329
      %v2433 = vunpack.c.l.b16 %v2330
      %v2434 = vunpack.c.l.b16 %v2331
      %v2435 = vunpack.c.l.b16 %v2332
      %v2436 = vunpack.c.l.b16 %v2333
      %v2437 = vunpack.c.l.b16 %v2334
      %v2438 = vunpack.c.l.b16 %v2335
      %v2439 = vunpack.c.l.b16 %v2336
      %v2440 = vunpack.c.l.b16 %v2337
      %v2441 = vunpack.c.l.b16 %v2338
      %v2442 = vunpack.c.l.b16 %v2339
      %v2443 = vunpack.c.l.b16 %v2340
      %v2444 = vunpack.c.l.b16 %v2341
      %v2445 = vunpack.c.l.b16 %v2342
      %v2446 = vunpack.c.l.b16 %v2343
      %v2447 = vunpack.c.l.b16 %v2344
      %v2448 = vunpack.c.l.b16 %v2345
      %v2449 = vunpack.c.l.b16 %v2346
      %v2450 = vunpack.c.l.b16 %v2347
      %v2451 = vunpack.c.l.b16 %v2348
      %v2452 = vunpack.c.l.b16 %v2349
      %v2453 = vunpack.c.l.b16 %v2350
      %v2454 = vpack.c.b16 %v2407, %v2406
      %v2455 = vpack.c.b16 %v2409, %v2408
      %v2456 = vpack.c.b16 %v2411, %v2410
      %v2457 = vpack.c.b16 %v2413, %v2412
      %v2458 = vpack.c.b16 %v2415, %v2414
      %v2459 = vpack.c.b16 %v2417, %v2416
      %v2460 = vpack.c.b16 %v2419, %v2418
      %v2461 = vpack.c.b16 %v2421, %v2420
      %v2462 = vpack.c.b16 %v2423, %v2422
      %v2463 = vpack.c.b16 %v2425, %v2424
      %v2464 = vpack.c.b16 %v2427, %v2426
      %v2465 = vpack.c.b16 %v2429, %v2428
      %v2466 = vpack.c.b16 %v2431, %v2430
      %v2467 = vpack.c.b16 %v2433, %v2432
      %v2468 = vpack.c.b16 %v2435, %v2434
      %v2469 = vpack.c.b16 %v2437, %v2436
      %v2470 = vpack.c.b16 %v2439, %v2438
      %v2471 = vpack.c.b16 %v2441, %v2440
      %v2472 = vpack.c.b16 %v2443, %v2442
      %v2473 = vpack.c.b16 %v2445, %v2444
      %v2474 = vpack.c.b16 %v2447, %v2446
      %v2475 = vpack.c.b16 %v2449, %v2448
      %v2476 = vpack.c.b16 %v2451, %v2450
      %v2477 = vpack.c.b16 %v2453, %v2452
      %2502 = vmatprep.subr.bf16.mxu0 0
      %2503 = vmatpush1.bf16.msra.mxu0 %v2454
      %2504 = vmatprep.subr.bf16.mxu0 0
      %2505 = vmatpush1.bf16.msra.mxu0 %v2455
      %2506 = vmatprep.subr.bf16.mxu0 0
      %2507 = vmatpush1.bf16.msra.mxu0 %v2456
      %2508 = vmatprep.subr.bf16.mxu0 0
      %2509 = vmatpush1.bf16.msra.mxu0 %v2457
      %2510 = vmatprep.subr.bf16.mxu0 0
      %2511 = vmatpush1.bf16.msra.mxu0 %v2458
      %2512 = vmatprep.subr.bf16.mxu0 0
      %2513 = vmatpush1.bf16.msra.mxu0 %v2459
      %2514 = vmatprep.subr.bf16.mxu0 0
      %2515 = vmatpush1.bf16.msra.mxu0 %v2460
      %2516 = vmatprep.subr.bf16.mxu0 0
      %2517 = vmatpush1.bf16.msra.mxu0 %v2461
      %2518 = vmatprep.subr.bf16.mxu0 0
      %2519 = vmatpush1.bf16.msra.mxu0 %v2462
      %2520 = vmatprep.subr.bf16.mxu0 0
      %2521 = vmatpush1.bf16.msra.mxu0 %v2463
      %2522 = vmatprep.subr.bf16.mxu0 0
      %2523 = vmatpush1.bf16.msra.mxu0 %v2464
      %2524 = vmatprep.subr.bf16.mxu0 0
      %2525 = vmatpush1.bf16.msra.mxu0 %v2465
      %2526 = vmatprep.subr.bf16.mxu0 0
      %2527 = vmatpush1.bf16.msra.mxu0 %v2466
      %2528 = vmatprep.subr.bf16.mxu0 0
      %2529 = vmatpush1.bf16.msra.mxu0 %v2467
      %2530 = vmatprep.subr.bf16.mxu0 0
      %2531 = vmatpush1.bf16.msra.mxu0 %v2468
      %2532 = vmatprep.subr.bf16.mxu0 0
      %2533 = vmatpush1.bf16.msra.mxu0 %v2469
      %2534 = vmatprep.mubr.bf16.mxu0 %v2290
      %2535 = vmatmul.mubr.bf16.gmra.mrb[0].mxu0 %v2277
      %v2536 = vpop.f32.mrb[0].mxu0
      %v2537 = vadd.f32 %v2356, %v2536
      %v2538 = vpop.f32.mrb[0].mxu0
      %v2539 = vpop.f32.mrb[0].mxu0
      %v2540 = vadd.f32 %v2356, %v2539
      %v2541 = vpop.f32.mrb[0].mxu0
      %2542 = vmatprep.mubr.bf16.mxu0 %v2293
      %2543 = vmatmul.mubr.bf16.gmra.mrb[0].mxu0 %v2278
      %v2544 = vpop.f32.mrb[0].mxu0
      %v2545 = vadd.f32 %v2356, %v2544
      %v2546 = vpop.f32.mrb[0].mxu0
      %v2547 = vpop.f32.mrb[0].mxu0
      %v2548 = vpop.f32.mrb[0].mxu0
      %2549 = vdwg.mxu0
      %2550 = vmatprep.subr.bf16.mxu0 0
      %2551 = vmatpush1.bf16.msra.mxu0 %v2470
      %2552 = vmatprep.subr.bf16.mxu0 0
      %2553 = vmatpush1.bf16.msra.mxu0 %v2471
      %2554 = vmatprep.subr.bf16.mxu0 0
      %2555 = vmatpush1.bf16.msra.mxu0 %v2472
      %2556 = vmatprep.subr.bf16.mxu0 0
      %2557 = vmatpush1.bf16.msra.mxu0 %v2473
      %2558 = vmatprep.subr.bf16.mxu0 0
      %2559 = vmatpush1.bf16.msra.mxu0 %v2474
      %2560 = vmatprep.subr.bf16.mxu0 0
      %2561 = vmatpush1.bf16.msra.mxu0 %v2475
      %2562 = vmatprep.subr.bf16.mxu0 0
      %2563 = vmatpush1.bf16.msra.mxu0 %v2476
      %2564 = vmatprep.subr.bf16.mxu0 0
      %2565 = vmatpush1.bf16.msra.mxu0 %v2477
      %2566 = vmatprep.subr.bf16.mxu0 0
      %2567 = vmatpush1.bf16.msra.mxu0 0
      %2568 = vmatprep.subr.bf16.mxu0 0
      %2569 = vmatpush1.bf16.msra.mxu0 0
      %2570 = vmatprep.subr.bf16.mxu0 0
      %2571 = vmatpush1.bf16.msra.mxu0 0
      %2572 = vmatprep.subr.bf16.mxu0 0
      %2573 = vmatpush1.bf16.msra.mxu0 0
      %2574 = vmatprep.subr.bf16.mxu0 0
      %2575 = vmatpush1.bf16.msra.mxu0 0
      %2576 = vmatprep.subr.bf16.mxu0 0
      %2577 = vmatpush1.bf16.msra.mxu0 0
      %2578 = vmatprep.subr.bf16.mxu0 0
      %2579 = vmatpush1.bf16.msra.mxu0 0
      %2580 = vmatprep.subr.bf16.mxu0 0
      %2581 = vmatpush1.bf16.msra.mxu0 0
      %2582 = vmatprep.mubr.bf16.mxu0 0
      %2583 = vmatmul.mubr.bf16.gmra.mrb[0].mxu0 %v2300
      %v2584 = vpop.f32.mrb[0].mxu0
      %v2585 = vadd.f32 %v2537, %v2584
      %v2586 = vpop.f32.mrb[0].mxu0
      %v2587 = vpop.f32.mrb[0].mxu0
      %v2588 = vadd.f32 %v2540, %v2587
      %v2589 = vpop.f32.mrb[0].mxu0
      %2590 = vmatprep.mubr.bf16.mxu0 0
      %2591 = vmatmul.mubr.bf16.gmra.mrb[0].mxu0 %v2299
      %v2592 = vpop.f32.mrb[0].mxu0
      %v2593 = vadd.f32 %v2545, %v2592
      %v2594 = vpop.f32.mrb[0].mxu0
      %v2595 = vpop.f32.mrb[0].mxu0
      %v2596 = vpop.f32.mrb[0].mxu0
      %2597 = vdwg.mxu0
      %v2598 = vmax.f32 %v2585, 0.0
      %v2599 = vmax.f32 %v2588, 0.0
      %v2600 = vmax.f32 %v2593, 0.0
      %v2601 = vpack.c.bf16 %v2599, %v2598
      %v2602 = vpack.c.bf16 %v2600, %v2600
      %v2604 = vshrl.u32 %v2601, 16
      %v2606 = vshll.u32 %v2601, 16
      %v2608 = vrot.slane %v2606, 1
      %v2609 = vor.u32 %v2604, %v2608
      %v2611 = vshll.u32 %v2602, 16
      %v2613 = vrot.slane %v2611, 1
      %v2614 = vsel %vm1405, %v2609, %v2613
      %v2618 = vrot.slane %v2601, 1
      %v2619 = vrot.slane %v2602, 1
      %v2620 = vsel %vm1445, %v2618, %v2619
      %v2622 = vld [vmem:[%s7] sm:$0xf]
      %v2623 = vld [vmem:[%s7 + $0x4] sm:$0xf]
      %v2624 = vld [vmem:[%s7 + $0x8] sm:$0xf]
      %v2625 = vld [vmem:[%s7 + $0xc] sm:$0xf]
      %v2626 = vld [vmem:[%s7 + $0x10] sm:$0xf]
      %v2627 = vld [vmem:[%s7 + $0x14] sm:$0xf]
      %v2628 = vld [vmem:[%s7 + $0x18] sm:$0xf]
      %v2629 = vld [vmem:[%s7 + $0x1c] sm:$0xf]
      %v2630 = vld [vmem:[%s7 + $0x20] sm:$0xf]
      %v2631 = vld [vmem:[%s7 + $0x24] sm:$0xf]
      %v2632 = vld [vmem:[%s7 + $0x28] sm:$0xf]
      %v2633 = vld [vmem:[%s7 + $0x2c] sm:$0xf]
      %v2634 = vld [vmem:[%s7 + $0x30] sm:$0xf]
      %v2635 = vld [vmem:[%s7 + $0x34] sm:$0xf]
      %v2636 = vld [vmem:[%s7 + $0x38] sm:$0xf]
      %v2637 = vld [vmem:[%s7 + $0x3c] sm:$0xf]
      %v2638 = vld [vmem:[%s7 + $0x40] sm:$0xf]
      %v2639 = vld [vmem:[%s7 + $0x44] sm:$0xf]
      %v2640 = vld [vmem:[%s7 + $0x48] sm:$0xf]
      %v2641 = vld [vmem:[%s7 + $0x4c] sm:$0xf]
      %v2642 = vld [vmem:[%s7 + $0x50] sm:$0xf]
      %v2643 = vld [vmem:[%s7 + $0x54] sm:$0xf]
      %v2644 = vld [vmem:[%s7 + $0x58] sm:$0xf]
      %v2645 = vld [vmem:[%s7 + $0x5c] sm:$0xf]
      %v2646 = vld [vmem:[%s7 + $0x60] sm:$0xf]
      %v2647 = vld [vmem:[%s7 + $0x64] sm:$0xf]
      %v2648 = vld [vmem:[%s7 + $0x68] sm:$0xf]
      %v2649 = vld [vmem:[%s7 + $0x6c] sm:$0xf]
      %v2650 = vld [vmem:[%s7 + $0x70] sm:$0xf]
      %v2651 = vld [vmem:[%s7 + $0x74] sm:$0xf]
      %v2652 = vld [vmem:[%s7 + $0x78] sm:$0xf]
      %v2653 = vld [vmem:[%s7 + $0x7c] sm:$0xf]
      %v2654 = vld [vmem:[%s7 + $0x80] sm:$0xf]
      %v2655 = vld [vmem:[%s7 + $0x84] sm:$0xf]
      %v2656 = vld [vmem:[%s7 + $0x88] sm:$0xf]
      %v2657 = vld [vmem:[%s7 + $0x8c] sm:$0xf]
      %v2658 = vld [vmem:[%s7 + $0x90] sm:$0xf]
      %v2659 = vld [vmem:[%s7 + $0x94] sm:$0xf]
      %v2660 = vld [vmem:[%s7 + $0x98] sm:$0xf]
      %v2661 = vld [vmem:[%s7 + $0x9c] sm:$0xf]
      %v2662 = vld [vmem:[%s7 + $0xa0] sm:$0xf]
      %v2663 = vld [vmem:[%s7 + $0xa4] sm:$0xf]
      %v2664 = vld [vmem:[%s7 + $0xa8] sm:$0xf]
      %v2665 = vld [vmem:[%s7 + $0xac] sm:$0xf]
      %v2666 = vld [vmem:[%s7 + $0xb0] sm:$0xf]
      %v2667 = vld [vmem:[%s7 + $0xb4] sm:$0xf]
      %v2668 = vld [vmem:[%s7 + $0xb8] sm:$0xf]
      %v2669 = vld [vmem:[%s7 + $0xbc] sm:$0xf]
      %v2670 = vld [vmem:[%s8] sm:$0x1]
      %v2672 = vlaneseq
      %v2673 = vshrl.u32 %v2672, 7
      %v2674 = vsub.s32 0, %v2673
      %v2675 = vrot.slane %v2670, %v2674
      %v2725 = vunpack.c.l.b16 %v2622
      %v2726 = vunpack.c.l.b16 %v2623
      %v2727 = vunpack.c.l.b16 %v2624
      %v2728 = vunpack.c.l.b16 %v2625
      %v2729 = vunpack.c.l.b16 %v2626
      %v2730 = vunpack.c.l.b16 %v2627
      %v2731 = vunpack.c.l.b16 %v2628
      %v2732 = vunpack.c.l.b16 %v2629
      %v2733 = vunpack.c.l.b16 %v2630
      %v2734 = vunpack.c.l.b16 %v2631
      %v2735 = vunpack.c.l.b16 %v2632
      %v2736 = vunpack.c.l.b16 %v2633
      %v2737 = vunpack.c.l.b16 %v2634
      %v2738 = vunpack.c.l.b16 %v2635
      %v2739 = vunpack.c.l.b16 %v2636
      %v2740 = vunpack.c.l.b16 %v2637
      %v2741 = vunpack.c.l.b16 %v2638
      %v2742 = vunpack.c.l.b16 %v2639
      %v2743 = vunpack.c.l.b16 %v2640
      %v2744 = vunpack.c.l.b16 %v2641
      %v2745 = vunpack.c.l.b16 %v2642
      %v2746 = vunpack.c.l.b16 %v2643
      %v2747 = vunpack.c.l.b16 %v2644
      %v2748 = vunpack.c.l.b16 %v2645
      %v2749 = vunpack.c.l.b16 %v2646
      %v2750 = vunpack.c.l.b16 %v2647
      %v2751 = vunpack.c.l.b16 %v2648
      %v2752 = vunpack.c.l.b16 %v2649
      %v2753 = vunpack.c.l.b16 %v2650
      %v2754 = vunpack.c.l.b16 %v2651
      %v2755 = vunpack.c.l.b16 %v2652
      %v2756 = vunpack.c.l.b16 %v2653
      %v2757 = vunpack.c.l.b16 %v2654
      %v2758 = vunpack.c.l.b16 %v2655
      %v2759 = vunpack.c.l.b16 %v2656
      %v2760 = vunpack.c.l.b16 %v2657
      %v2761 = vunpack.c.l.b16 %v2658
      %v2762 = vunpack.c.l.b16 %v2659
      %v2763 = vunpack.c.l.b16 %v2660
      %v2764 = vunpack.c.l.b16 %v2661
      %v2765 = vunpack.c.l.b16 %v2662
      %v2766 = vunpack.c.l.b16 %v2663
      %v2767 = vunpack.c.l.b16 %v2664
      %v2768 = vunpack.c.l.b16 %v2665
      %v2769 = vunpack.c.l.b16 %v2666
      %v2770 = vunpack.c.l.b16 %v2667
      %v2771 = vunpack.c.l.b16 %v2668
      %v2772 = vunpack.c.l.b16 %v2669
      %v2773 = vpack.c.b16 %v2726, %v2725
      %v2774 = vpack.c.b16 %v2728, %v2727
      %v2775 = vpack.c.b16 %v2730, %v2729
      %v2776 = vpack.c.b16 %v2732, %v2731
      %v2777 = vpack.c.b16 %v2734, %v2733
      %v2778 = vpack.c.b16 %v2736, %v2735
      %v2779 = vpack.c.b16 %v2738, %v2737
      %v2780 = vpack.c.b16 %v2740, %v2739
      %v2781 = vpack.c.b16 %v2742, %v2741
      %v2782 = vpack.c.b16 %v2744, %v2743
      %v2783 = vpack.c.b16 %v2746, %v2745
      %v2784 = vpack.c.b16 %v2748, %v2747
      %v2785 = vpack.c.b16 %v2750, %v2749
      %v2786 = vpack.c.b16 %v2752, %v2751
      %v2787 = vpack.c.b16 %v2754, %v2753
      %v2788 = vpack.c.b16 %v2756, %v2755
      %v2789 = vpack.c.b16 %v2758, %v2757
      %v2790 = vpack.c.b16 %v2760, %v2759
      %v2791 = vpack.c.b16 %v2762, %v2761
      %v2792 = vpack.c.b16 %v2764, %v2763
      %v2793 = vpack.c.b16 %v2766, %v2765
      %v2794 = vpack.c.b16 %v2768, %v2767
      %v2795 = vpack.c.b16 %v2770, %v2769
      %v2796 = vpack.c.b16 %v2772, %v2771
      %2821 = vmatprep.subr.bf16.mxu0 0
      %2822 = vmatpush1.bf16.msra.mxu0 %v2773
      %2823 = vmatprep.subr.bf16.mxu0 0
      %2824 = vmatpush1.bf16.msra.mxu0 %v2774
      %2825 = vmatprep.subr.bf16.mxu0 0
      %2826 = vmatpush1.bf16.msra.mxu0 %v2775
      %2827 = vmatprep.subr.bf16.mxu0 0
      %2828 = vmatpush1.bf16.msra.mxu0 %v2776
      %2829 = vmatprep.subr.bf16.mxu0 0
      %2830 = vmatpush1.bf16.msra.mxu0 %v2777
      %2831 = vmatprep.subr.bf16.mxu0 0
      %2832 = vmatpush1.bf16.msra.mxu0 %v2778
      %2833 = vmatprep.subr.bf16.mxu0 0
      %2834 = vmatpush1.bf16.msra.mxu0 %v2779
      %2835 = vmatprep.subr.bf16.mxu0 0
      %2836 = vmatpush1.bf16.msra.mxu0 %v2780
      %2837 = vmatprep.subr.bf16.mxu0 0
      %2838 = vmatpush1.bf16.msra.mxu0 %v2781
      %2839 = vmatprep.subr.bf16.mxu0 0
      %2840 = vmatpush1.bf16.msra.mxu0 %v2782
      %2841 = vmatprep.subr.bf16.mxu0 0
      %2842 = vmatpush1.bf16.msra.mxu0 %v2783
      %2843 = vmatprep.subr.bf16.mxu0 0
      %2844 = vmatpush1.bf16.msra.mxu0 %v2784
      %2845 = vmatprep.subr.bf16.mxu0 0
      %2846 = vmatpush1.bf16.msra.mxu0 %v2785
      %2847 = vmatprep.subr.bf16.mxu0 0
      %2848 = vmatpush1.bf16.msra.mxu0 %v2786
      %2849 = vmatprep.subr.bf16.mxu0 0
      %2850 = vmatpush1.bf16.msra.mxu0 %v2787
      %2851 = vmatprep.subr.bf16.mxu0 0
      %2852 = vmatpush1.bf16.msra.mxu0 %v2788
      %2853 = vmatprep.mubr.bf16.mxu0 %v2614
      %2854 = vmatmul.mubr.bf16.gmra.mrb[0].mxu0 %v2601
      %v2855 = vpop.f32.mrb[0].mxu0
      %v2856 = vadd.f32 %v2675, %v2855
      %v2857 = vpop.f32.mrb[0].mxu0
      %v2858 = vpop.f32.mrb[0].mxu0
      %v2859 = vadd.f32 %v2675, %v2858
      %v2860 = vpop.f32.mrb[0].mxu0
      %2861 = vdwg.mxu0
      %2862 = vmatprep.subr.bf16.mxu0 0
      %2863 = vmatpush1.bf16.msra.mxu0 %v2789
      %2864 = vmatprep.subr.bf16.mxu0 0
      %2865 = vmatpush1.bf16.msra.mxu0 %v2790
      %2866 = vmatprep.subr.bf16.mxu0 0
      %2867 = vmatpush1.bf16.msra.mxu0 %v2791
      %2868 = vmatprep.subr.bf16.mxu0 0
      %2869 = vmatpush1.bf16.msra.mxu0 %v2792
      %2870 = vmatprep.subr.bf16.mxu0 0
      %2871 = vmatpush1.bf16.msra.mxu0 %v2793
      %2872 = vmatprep.subr.bf16.mxu0 0
      %2873 = vmatpush1.bf16.msra.mxu0 %v2794
      %2874 = vmatprep.subr.bf16.mxu0 0
      %2875 = vmatpush1.bf16.msra.mxu0 %v2795
      %2876 = vmatprep.subr.bf16.mxu0 0
      %2877 = vmatpush1.bf16.msra.mxu0 %v2796
      %2878 = vmatprep.subr.bf16.mxu0 0
      %2879 = vmatpush1.bf16.msra.mxu0 0
      %2880 = vmatprep.subr.bf16.mxu0 0
      %2881 = vmatpush1.bf16.msra.mxu0 0
      %2882 = vmatprep.subr.bf16.mxu0 0
      %2883 = vmatpush1.bf16.msra.mxu0 0
      %2884 = vmatprep.subr.bf16.mxu0 0
      %2885 = vmatpush1.bf16.msra.mxu0 0
      %2886 = vmatprep.subr.bf16.mxu0 0
      %2887 = vmatpush1.bf16.msra.mxu0 0
      %2888 = vmatprep.subr.bf16.mxu0 0
      %2889 = vmatpush1.bf16.msra.mxu0 0
      %2890 = vmatprep.subr.bf16.mxu0 0
      %2891 = vmatpush1.bf16.msra.mxu0 0
      %2892 = vmatprep.subr.bf16.mxu0 0
      %2893 = vmatpush1.bf16.msra.mxu0 0
      %2894 = vmatprep.mubr.bf16.mxu0 0
      %2895 = vmatmul.mubr.bf16.gmra.mrb[0].mxu0 %v2620
      %v2896 = vpop.f32.mrb[0].mxu0
      %v2897 = vadd.f32 %v2856, %v2896
      %v2898 = vpop.f32.mrb[0].mxu0
      %v2899 = vpop.f32.mrb[0].mxu0
      %v2900 = vadd.f32 %v2859, %v2899
      %v2901 = vpop.f32.mrb[0].mxu0
      %2902 = vdwg.mxu0
      %v2903 = vmax.f32 %v2897, 0.0
      %v2904 = vmax.f32 %v2900, 0.0
      %v2905 = vpack.c.bf16 %v2904, %v2903
      %v2907 = vshrl.u32 %v2905, 16
      %v2909 = vshll.u32 %v2905, 16
      %v2911 = vrot.slane %v2909, 1
      %v2912 = vor.u32 %v2907, %v2911
      %v2915 = vrot.slane %v2905, 1
      %v2917 = vld [vmem:[%s9] sm:$0xf]
      %v2918 = vld [vmem:[%s9 + $0x4] sm:$0xf]
      %v2919 = vld [vmem:[%s9 + $0x8] sm:$0xf]
      %v2920 = vld [vmem:[%s9 + $0xc] sm:$0xf]
      %v2921 = vld [vmem:[%s9 + $0x10] sm:$0xf]
      %v2922 = vld [vmem:[%s9 + $0x14] sm:$0xf]
      %v2923 = vld [vmem:[%s9 + $0x18] sm:$0xf]
      %v2924 = vld [vmem:[%s9 + $0x1c] sm:$0xf]
      %v2925 = vld [vmem:[%s9 + $0x20] sm:$0xf]
      %v2926 = vld [vmem:[%s9 + $0x24] sm:$0xf]
      %v2927 = vld [vmem:[%s9 + $0x28] sm:$0xf]
      %v2928 = vld [vmem:[%s9 + $0x2c] sm:$0xf]
      %v2929 = vld [vmem:[%s9 + $0x30] sm:$0xf]
      %v2930 = vld [vmem:[%s9 + $0x34] sm:$0xf]
      %v2931 = vld [vmem:[%s9 + $0x38] sm:$0xf]
      %v2932 = vld [vmem:[%s9 + $0x3c] sm:$0xf]
      %v2933 = vld [vmem:[%s9 + $0x40] sm:$0xf]
      %v2934 = vld [vmem:[%s9 + $0x44] sm:$0xf]
      %v2935 = vld [vmem:[%s9 + $0x48] sm:$0xf]
      %v2936 = vld [vmem:[%s9 + $0x4c] sm:$0xf]
      %v2937 = vld [vmem:[%s9 + $0x50] sm:$0xf]
      %v2938 = vld [vmem:[%s9 + $0x54] sm:$0xf]
      %v2939 = vld [vmem:[%s9 + $0x58] sm:$0xf]
      %v2940 = vld [vmem:[%s9 + $0x5c] sm:$0xf]
      %v2941 = vld [vmem:[%s9 + $0x60] sm:$0xf]
      %v2942 = vld [vmem:[%s9 + $0x64] sm:$0xf]
      %v2943 = vld [vmem:[%s9 + $0x68] sm:$0xf]
      %v2944 = vld [vmem:[%s9 + $0x6c] sm:$0xf]
      %v2945 = vld [vmem:[%s9 + $0x70] sm:$0xf]
      %v2946 = vld [vmem:[%s9 + $0x74] sm:$0xf]
      %v2947 = vld [vmem:[%s9 + $0x78] sm:$0xf]
      %v2948 = vld [vmem:[%s9 + $0x7c] sm:$0xf]
      %v2949 = vld [vmem:[%s9 + $0x80] sm:$0xf]
      %v2950 = vld [vmem:[%s9 + $0x84] sm:$0xf]
      %v2951 = vld [vmem:[%s9 + $0x88] sm:$0xf]
      %v2952 = vld [vmem:[%s9 + $0x8c] sm:$0xf]
      %v2953 = vld [vmem:[%s9 + $0x90] sm:$0xf]
      %v2954 = vld [vmem:[%s9 + $0x94] sm:$0xf]
      %v2955 = vld [vmem:[%s9 + $0x98] sm:$0xf]
      %v2956 = vld [vmem:[%s9 + $0x9c] sm:$0xf]
      %v2957 = vld [vmem:[%s9 + $0xa0] sm:$0xf]
      %v2958 = vld [vmem:[%s9 + $0xa4] sm:$0xf]
      %v2959 = vld [vmem:[%s9 + $0xa8] sm:$0xf]
      %v2960 = vld [vmem:[%s9 + $0xac] sm:$0xf]
      %v2961 = vld [vmem:[%s9 + $0xb0] sm:$0xf]
      %v2962 = vld [vmem:[%s9 + $0xb4] sm:$0xf]
      %v2963 = vld [vmem:[%s9 + $0xb8] sm:$0xf]
      %v2964 = vld [vmem:[%s9 + $0xbc] sm:$0xf]
      %v2965 = vld [vmem:[%s10] sm:$0x1]
      %v2967 = vlaneseq
      %v2968 = vshrl.u32 %v2967, 7
      %v2969 = vsub.s32 0, %v2968
      %v2970 = vrot.slane %v2965, %v2969
      %v3020 = vunpack.c.l.b16 %v2917
      %v3021 = vunpack.c.l.b16 %v2918
      %v3022 = vunpack.c.l.b16 %v2919
      %v3023 = vunpack.c.l.b16 %v2920
      %v3024 = vunpack.c.l.b16 %v2921
      %v3025 = vunpack.c.l.b16 %v2922
      %v3026 = vunpack.c.l.b16 %v2923
      %v3027 = vunpack.c.l.b16 %v2924
      %v3028 = vunpack.c.l.b16 %v2925
      %v3029 = vunpack.c.l.b16 %v2926
      %v3030 = vunpack.c.l.b16 %v2927
      %v3031 = vunpack.c.l.b16 %v2928
      %v3032 = vunpack.c.l.b16 %v2929
      %v3033 = vunpack.c.l.b16 %v2930
      %v3034 = vunpack.c.l.b16 %v2931
      %v3035 = vunpack.c.l.b16 %v2932
      %v3036 = vunpack.c.l.b16 %v2933
      %v3037 = vunpack.c.l.b16 %v2934
      %v3038 = vunpack.c.l.b16 %v2935
      %v3039 = vunpack.c.l.b16 %v2936
      %v3040 = vunpack.c.l.b16 %v2937
      %v3041 = vunpack.c.l.b16 %v2938
      %v3042 = vunpack.c.l.b16 %v2939
      %v3043 = vunpack.c.l.b16 %v2940
      %v3044 = vunpack.c.l.b16 %v2941
      %v3045 = vunpack.c.l.b16 %v2942
      %v3046 = vunpack.c.l.b16 %v2943
      %v3047 = vunpack.c.l.b16 %v2944
      %v3048 = vunpack.c.l.b16 %v2945
      %v3049 = vunpack.c.l.b16 %v2946
      %v3050 = vunpack.c.l.b16 %v2947
      %v3051 = vunpack.c.l.b16 %v2948
      %v3052 = vunpack.c.l.b16 %v2949
      %v3053 = vunpack.c.l.b16 %v2950
      %v3054 = vunpack.c.l.b16 %v2951
      %v3055 = vunpack.c.l.b16 %v2952
      %v3056 = vunpack.c.l.b16 %v2953
      %v3057 = vunpack.c.l.b16 %v2954
      %v3058 = vunpack.c.l.b16 %v2955
      %v3059 = vunpack.c.l.b16 %v2956
      %v3060 = vunpack.c.l.b16 %v2957
      %v3061 = vunpack.c.l.b16 %v2958
      %v3062 = vunpack.c.l.b16 %v2959
      %v3063 = vunpack.c.l.b16 %v2960
      %v3064 = vunpack.c.l.b16 %v2961
      %v3065 = vunpack.c.l.b16 %v2962
      %v3066 = vunpack.c.l.b16 %v2963
      %v3067 = vunpack.c.l.b16 %v2964
      %v3068 = vpack.c.b16 %v3021, %v3020
      %v3069 = vpack.c.b16 %v3023, %v3022
      %v3070 = vpack.c.b16 %v3025, %v3024
      %v3071 = vpack.c.b16 %v3027, %v3026
      %v3072 = vpack.c.b16 %v3029, %v3028
      %v3073 = vpack.c.b16 %v3031, %v3030
      %v3074 = vpack.c.b16 %v3033, %v3032
      %v3075 = vpack.c.b16 %v3035, %v3034
      %v3076 = vpack.c.b16 %v3037, %v3036
      %v3077 = vpack.c.b16 %v3039, %v3038
      %v3078 = vpack.c.b16 %v3041, %v3040
      %v3079 = vpack.c.b16 %v3043, %v3042
      %v3080 = vpack.c.b16 %v3045, %v3044
      %v3081 = vpack.c.b16 %v3047, %v3046
      %v3082 = vpack.c.b16 %v3049, %v3048
      %v3083 = vpack.c.b16 %v3051, %v3050
      %v3084 = vpack.c.b16 %v3053, %v3052
      %v3085 = vpack.c.b16 %v3055, %v3054
      %v3086 = vpack.c.b16 %v3057, %v3056
      %v3087 = vpack.c.b16 %v3059, %v3058
      %v3088 = vpack.c.b16 %v3061, %v3060
      %v3089 = vpack.c.b16 %v3063, %v3062
      %v3090 = vpack.c.b16 %v3065, %v3064
      %v3091 = vpack.c.b16 %v3067, %v3066
      %3116 = vmatprep.subr.bf16.mxu0 0
      %3117 = vmatpush1.bf16.msra.mxu0 %v3068
      %3118 = vmatprep.subr.bf16.mxu0 0
      %3119 = vmatpush1.bf16.msra.mxu0 %v3069
      %3120 = vmatprep.subr.bf16.mxu0 0
      %3121 = vmatpush1.bf16.msra.mxu0 %v3070
      %3122 = vmatprep.subr.bf16.mxu0 0
      %3123 = vmatpush1.bf16.msra.mxu0 %v3071
      %3124 = vmatprep.subr.bf16.mxu0 0
      %3125 = vmatpush1.bf16.msra.mxu0 %v3072
      %3126 = vmatprep.subr.bf16.mxu0 0
      %3127 = vmatpush1.bf16.msra.mxu0 %v3073
      %3128 = vmatprep.subr.bf16.mxu0 0
      %3129 = vmatpush1.bf16.msra.mxu0 %v3074
      %3130 = vmatprep.subr.bf16.mxu0 0
      %3131 = vmatpush1.bf16.msra.mxu0 %v3075
      %3132 = vmatprep.subr.bf16.mxu0 0
      %3133 = vmatpush1.bf16.msra.mxu0 %v3076
      %3134 = vmatprep.subr.bf16.mxu0 0
      %3135 = vmatpush1.bf16.msra.mxu0 %v3077
      %3136 = vmatprep.subr.bf16.mxu0 0
      %3137 = vmatpush1.bf16.msra.mxu0 %v3078
      %3138 = vmatprep.subr.bf16.mxu0 0
      %3139 = vmatpush1.bf16.msra.mxu0 %v3079
      %3140 = vmatprep.subr.bf16.mxu0 0
      %3141 = vmatpush1.bf16.msra.mxu0 %v3080
      %3142 = vmatprep.subr.bf16.mxu0 0
      %3143 = vmatpush1.bf16.msra.mxu0 %v3081
      %3144 = vmatprep.subr.bf16.mxu0 0
      %3145 = vmatpush1.bf16.msra.mxu0 %v3082
      %3146 = vmatprep.subr.bf16.mxu0 0
      %3147 = vmatpush1.bf16.msra.mxu0 %v3083
      %3148 = vmatprep.mubr.bf16.mxu0 %v2912
      %3149 = vmatmul.mubr.bf16.gmra.mrb[0].mxu0 %v2905
      %v3150 = vpop.f32.mrb[0].mxu0
      %v3151 = vadd.f32 %v2970, %v3150
      %v3152 = vpop.f32.mrb[0].mxu0
      %v3153 = vpop.f32.mrb[0].mxu0
      %v3154 = vadd.f32 %v2970, %v3153
      %v3155 = vpop.f32.mrb[0].mxu0
      %3156 = vdwg.mxu0
      %3157 = vmatprep.subr.bf16.mxu0 0
      %3158 = vmatpush1.bf16.msra.mxu0 %v3084
      %3159 = vmatprep.subr.bf16.mxu0 0
      %3160 = vmatpush1.bf16.msra.mxu0 %v3085
      %3161 = vmatprep.subr.bf16.mxu0 0
      %3162 = vmatpush1.bf16.msra.mxu0 %v3086
      %3163 = vmatprep.subr.bf16.mxu0 0
      %3164 = vmatpush1.bf16.msra.mxu0 %v3087
      %3165 = vmatprep.subr.bf16.mxu0 0
      %3166 = vmatpush1.bf16.msra.mxu0 %v3088
      %3167 = vmatprep.subr.bf16.mxu0 0
      %3168 = vmatpush1.bf16.msra.mxu0 %v3089
      %3169 = vmatprep.subr.bf16.mxu0 0
      %3170 = vmatpush1.bf16.msra.mxu0 %v3090
      %3171 = vmatprep.subr.bf16.mxu0 0
      %3172 = vmatpush1.bf16.msra.mxu0 %v3091
      %3173 = vmatprep.subr.bf16.mxu0 0
      %3174 = vmatpush1.bf16.msra.mxu0 0
      %3175 = vmatprep.subr.bf16.mxu0 0
      %3176 = vmatpush1.bf16.msra.mxu0 0
      %3177 = vmatprep.subr.bf16.mxu0 0
      %3178 = vmatpush1.bf16.msra.mxu0 0
      %3179 = vmatprep.subr.bf16.mxu0 0
      %3180 = vmatpush1.bf16.msra.mxu0 0
      %3181 = vmatprep.subr.bf16.mxu0 0
      %3182 = vmatpush1.bf16.msra.mxu0 0
      %3183 = vmatprep.subr.bf16.mxu0 0
      %3184 = vmatpush1.bf16.msra.mxu0 0
      %3185 = vmatprep.subr.bf16.mxu0 0
      %3186 = vmatpush1.bf16.msra.mxu0 0
      %3187 = vmatprep.subr.bf16.mxu0 0
      %3188 = vmatpush1.bf16.msra.mxu0 0
      %3189 = vmatprep.mubr.bf16.mxu0 0
      %3190 = vmatmul.mubr.bf16.gmra.mrb[0].mxu0 %v2915
      %v3191 = vpop.f32.mrb[0].mxu0
      %v3192 = vadd.f32 %v3151, %v3191
      %v3193 = vpop.f32.mrb[0].mxu0
      %v3194 = vpop.f32.mrb[0].mxu0
      %v3195 = vadd.f32 %v3154, %v3194
      %v3196 = vpop.f32.mrb[0].mxu0
      %3197 = vdwg.mxu0
      %v3198 = vmax.f32 %v3192, 0.0
      %v3199 = vmax.f32 %v3195, 0.0
      %v3200 = vpack.c.bf16 %v3199, %v3198
      %v3202 = vshrl.u32 %v3200, 16
      %v3204 = vshll.u32 %v3200, 16
      %v3206 = vrot.slane %v3204, 1
      %v3207 = vor.u32 %v3202, %v3206
      %v3210 = vrot.slane %v3200, 1
      %v3212 = vld [vmem:[%s11] sm:$0xf]
      %v3213 = vld [vmem:[%s11 + $0x4] sm:$0xf]
      %v3214 = vld [vmem:[%s11 + $0x8] sm:$0xf]
      %v3215 = vld [vmem:[%s11 + $0xc] sm:$0xf]
      %v3216 = vld [vmem:[%s11 + $0x10] sm:$0xf]
      %v3217 = vld [vmem:[%s11 + $0x14] sm:$0xf]
      %v3218 = vld [vmem:[%s11 + $0x18] sm:$0xf]
      %v3219 = vld [vmem:[%s11 + $0x1c] sm:$0xf]
      %v3220 = vld [vmem:[%s11 + $0x20] sm:$0xf]
      %v3221 = vld [vmem:[%s11 + $0x24] sm:$0xf]
      %v3222 = vld [vmem:[%s11 + $0x28] sm:$0xf]
      %v3223 = vld [vmem:[%s11 + $0x2c] sm:$0xf]
      %v3224 = vld [vmem:[%s11 + $0x30] sm:$0xf]
      %v3225 = vld [vmem:[%s11 + $0x34] sm:$0xf]
      %v3226 = vld [vmem:[%s11 + $0x38] sm:$0xf]
      %v3227 = vld [vmem:[%s11 + $0x3c] sm:$0xf]
      %v3228 = vld [vmem:[%s11 + $0x40] sm:$0xf]
      %v3229 = vld [vmem:[%s11 + $0x44] sm:$0xf]
      %v3230 = vld [vmem:[%s11 + $0x48] sm:$0xf]
      %v3231 = vld [vmem:[%s11 + $0x4c] sm:$0xf]
      %v3232 = vld [vmem:[%s11 + $0x50] sm:$0xf]
      %v3233 = vld [vmem:[%s11 + $0x54] sm:$0xf]
      %v3234 = vld [vmem:[%s11 + $0x58] sm:$0xf]
      %v3235 = vld [vmem:[%s11 + $0x5c] sm:$0xf]
      %v3236 = vld [vmem:[%s11 + $0x60] sm:$0xf]
      %v3237 = vld [vmem:[%s11 + $0x64] sm:$0xf]
      %v3238 = vld [vmem:[%s11 + $0x68] sm:$0xf]
      %v3239 = vld [vmem:[%s11 + $0x6c] sm:$0xf]
      %v3240 = vld [vmem:[%s11 + $0x70] sm:$0xf]
      %v3241 = vld [vmem:[%s11 + $0x74] sm:$0xf]
      %v3242 = vld [vmem:[%s11 + $0x78] sm:$0xf]
      %v3243 = vld [vmem:[%s11 + $0x7c] sm:$0xf]
      %v3244 = vld [vmem:[%s11 + $0x80] sm:$0xf]
      %v3245 = vld [vmem:[%s11 + $0x84] sm:$0xf]
      %v3246 = vld [vmem:[%s11 + $0x88] sm:$0xf]
      %v3247 = vld [vmem:[%s11 + $0x8c] sm:$0xf]
      %v3248 = vld [vmem:[%s11 + $0x90] sm:$0xf]
      %v3249 = vld [vmem:[%s11 + $0x94] sm:$0xf]
      %v3250 = vld [vmem:[%s11 + $0x98] sm:$0xf]
      %v3251 = vld [vmem:[%s11 + $0x9c] sm:$0xf]
      %v3252 = vld [vmem:[%s11 + $0xa0] sm:$0xf]
      %v3253 = vld [vmem:[%s11 + $0xa4] sm:$0xf]
      %v3254 = vld [vmem:[%s11 + $0xa8] sm:$0xf]
      %v3255 = vld [vmem:[%s11 + $0xac] sm:$0xf]
      %v3256 = vld [vmem:[%s11 + $0xb0] sm:$0xf]
      %v3257 = vld [vmem:[%s11 + $0xb4] sm:$0xf]
      %v3258 = vld [vmem:[%s11 + $0xb8] sm:$0xf]
      %v3259 = vld [vmem:[%s11 + $0xbc] sm:$0xf]
      %v3260 = vld [vmem:[%s12] sm:$0x1]
      %v3262 = vlaneseq
      %v3263 = vshrl.u32 %v3262, 7
      %v3264 = vsub.s32 0, %v3263
      %v3265 = vrot.slane %v3260, %v3264
      %v3315 = vunpack.c.l.b16 %v3212
      %v3316 = vunpack.c.l.b16 %v3213
      %v3317 = vunpack.c.l.b16 %v3214
      %v3318 = vunpack.c.l.b16 %v3215
      %v3319 = vunpack.c.l.b16 %v3216
      %v3320 = vunpack.c.l.b16 %v3217
      %v3321 = vunpack.c.l.b16 %v3218
      %v3322 = vunpack.c.l.b16 %v3219
      %v3323 = vunpack.c.l.b16 %v3220
      %v3324 = vunpack.c.l.b16 %v3221
      %v3325 = vunpack.c.l.b16 %v3222
      %v3326 = vunpack.c.l.b16 %v3223
      %v3327 = vunpack.c.l.b16 %v3224
      %v3328 = vunpack.c.l.b16 %v3225
      %v3329 = vunpack.c.l.b16 %v3226
      %v3330 = vunpack.c.l.b16 %v3227
      %v3331 = vunpack.c.l.b16 %v3228
      %v3332 = vunpack.c.l.b16 %v3229
      %v3333 = vunpack.c.l.b16 %v3230
      %v3334 = vunpack.c.l.b16 %v3231
      %v3335 = vunpack.c.l.b16 %v3232
      %v3336 = vunpack.c.l.b16 %v3233
      %v3337 = vunpack.c.l.b16 %v3234
      %v3338 = vunpack.c.l.b16 %v3235
      %v3339 = vunpack.c.l.b16 %v3236
      %v3340 = vunpack.c.l.b16 %v3237
      %v3341 = vunpack.c.l.b16 %v3238
      %v3342 = vunpack.c.l.b16 %v3239
      %v3343 = vunpack.c.l.b16 %v3240
      %v3344 = vunpack.c.l.b16 %v3241
      %v3345 = vunpack.c.l.b16 %v3242
      %v3346 = vunpack.c.l.b16 %v3243
      %v3347 = vunpack.c.l.b16 %v3244
      %v3348 = vunpack.c.l.b16 %v3245
      %v3349 = vunpack.c.l.b16 %v3246
      %v3350 = vunpack.c.l.b16 %v3247
      %v3351 = vunpack.c.l.b16 %v3248
      %v3352 = vunpack.c.l.b16 %v3249
      %v3353 = vunpack.c.l.b16 %v3250
      %v3354 = vunpack.c.l.b16 %v3251
      %v3355 = vunpack.c.l.b16 %v3252
      %v3356 = vunpack.c.l.b16 %v3253
      %v3357 = vunpack.c.l.b16 %v3254
      %v3358 = vunpack.c.l.b16 %v3255
      %v3359 = vunpack.c.l.b16 %v3256
      %v3360 = vunpack.c.l.b16 %v3257
      %v3361 = vunpack.c.l.b16 %v3258
      %v3362 = vunpack.c.l.b16 %v3259
      %v3363 = vpack.c.b16 %v3316, %v3315
      %v3364 = vpack.c.b16 %v3318, %v3317
      %v3365 = vpack.c.b16 %v3320, %v3319
      %v3366 = vpack.c.b16 %v3322, %v3321
      %v3367 = vpack.c.b16 %v3324, %v3323
      %v3368 = vpack.c.b16 %v3326, %v3325
      %v3369 = vpack.c.b16 %v3328, %v3327
      %v3370 = vpack.c.b16 %v3330, %v3329
      %v3371 = vpack.c.b16 %v3332, %v3331
      %v3372 = vpack.c.b16 %v3334, %v3333
      %v3373 = vpack.c.b16 %v3336, %v3335
      %v3374 = vpack.c.b16 %v3338, %v3337
      %v3375 = vpack.c.b16 %v3340, %v3339
      %v3376 = vpack.c.b16 %v3342, %v3341
      %v3377 = vpack.c.b16 %v3344, %v3343
      %v3378 = vpack.c.b16 %v3346, %v3345
      %v3379 = vpack.c.b16 %v3348, %v3347
      %v3380 = vpack.c.b16 %v3350, %v3349
      %v3381 = vpack.c.b16 %v3352, %v3351
      %v3382 = vpack.c.b16 %v3354, %v3353
      %v3383 = vpack.c.b16 %v3356, %v3355
      %v3384 = vpack.c.b16 %v3358, %v3357
      %v3385 = vpack.c.b16 %v3360, %v3359
      %v3386 = vpack.c.b16 %v3362, %v3361
      %3411 = vmatprep.subr.bf16.mxu0 0
      %3412 = vmatpush1.bf16.msra.mxu0 %v3363
      %3413 = vmatprep.subr.bf16.mxu0 0
      %3414 = vmatpush1.bf16.msra.mxu0 %v3364
      %3415 = vmatprep.subr.bf16.mxu0 0
      %3416 = vmatpush1.bf16.msra.mxu0 %v3365
      %3417 = vmatprep.subr.bf16.mxu0 0
      %3418 = vmatpush1.bf16.msra.mxu0 %v3366
      %3419 = vmatprep.subr.bf16.mxu0 0
      %3420 = vmatpush1.bf16.msra.mxu0 %v3367
      %3421 = vmatprep.subr.bf16.mxu0 0
      %3422 = vmatpush1.bf16.msra.mxu0 %v3368
      %3423 = vmatprep.subr.bf16.mxu0 0
      %3424 = vmatpush1.bf16.msra.mxu0 %v3369
      %3425 = vmatprep.subr.bf16.mxu0 0
      %3426 = vmatpush1.bf16.msra.mxu0 %v3370
      %3427 = vmatprep.subr.bf16.mxu0 0
      %3428 = vmatpush1.bf16.msra.mxu0 %v3371
      %3429 = vmatprep.subr.bf16.mxu0 0
      %3430 = vmatpush1.bf16.msra.mxu0 %v3372
      %3431 = vmatprep.subr.bf16.mxu0 0
      %3432 = vmatpush1.bf16.msra.mxu0 %v3373
      %3433 = vmatprep.subr.bf16.mxu0 0
      %3434 = vmatpush1.bf16.msra.mxu0 %v3374
      %3435 = vmatprep.subr.bf16.mxu0 0
      %3436 = vmatpush1.bf16.msra.mxu0 %v3375
      %3437 = vmatprep.subr.bf16.mxu0 0
      %3438 = vmatpush1.bf16.msra.mxu0 %v3376
      %3439 = vmatprep.subr.bf16.mxu0 0
      %3440 = vmatpush1.bf16.msra.mxu0 %v3377
      %3441 = vmatprep.subr.bf16.mxu0 0
      %3442 = vmatpush1.bf16.msra.mxu0 %v3378
      %3443 = vmatprep.mubr.bf16.mxu0 %v3207
      %3444 = vmatmul.mubr.bf16.gmra.mrb[0].mxu0 %v3200
      %v3445 = vpop.f32.mrb[0].mxu0
      %v3446 = vadd.f32 %v3265, %v3445
      %v3447 = vpop.f32.mrb[0].mxu0
      %v3448 = vpop.f32.mrb[0].mxu0
      %v3449 = vadd.f32 %v3265, %v3448
      %v3450 = vpop.f32.mrb[0].mxu0
      %3451 = vdwg.mxu0
      %3452 = vmatprep.subr.bf16.mxu0 0
      %3453 = vmatpush1.bf16.msra.mxu0 %v3379
      %3454 = vmatprep.subr.bf16.mxu0 0
      %3455 = vmatpush1.bf16.msra.mxu0 %v3380
      %3456 = vmatprep.subr.bf16.mxu0 0
      %3457 = vmatpush1.bf16.msra.mxu0 %v3381
      %3458 = vmatprep.subr.bf16.mxu0 0
      %3459 = vmatpush1.bf16.msra.mxu0 %v3382
      %3460 = vmatprep.subr.bf16.mxu0 0
      %3461 = vmatpush1.bf16.msra.mxu0 %v3383
      %3462 = vmatprep.subr.bf16.mxu0 0
      %3463 = vmatpush1.bf16.msra.mxu0 %v3384
      %3464 = vmatprep.subr.bf16.mxu0 0
      %3465 = vmatpush1.bf16.msra.mxu0 %v3385
      %3466 = vmatprep.subr.bf16.mxu0 0
      %3467 = vmatpush1.bf16.msra.mxu0 %v3386
      %3468 = vmatprep.subr.bf16.mxu0 0
      %3469 = vmatpush1.bf16.msra.mxu0 0
      %3470 = vmatprep.subr.bf16.mxu0 0
      %3471 = vmatpush1.bf16.msra.mxu0 0
      %3472 = vmatprep.subr.bf16.mxu0 0
      %3473 = vmatpush1.bf16.msra.mxu0 0
      %3474 = vmatprep.subr.bf16.mxu0 0
      %3475 = vmatpush1.bf16.msra.mxu0 0
      %3476 = vmatprep.subr.bf16.mxu0 0
      %3477 = vmatpush1.bf16.msra.mxu0 0
      %3478 = vmatprep.subr.bf16.mxu0 0
      %3479 = vmatpush1.bf16.msra.mxu0 0
      %3480 = vmatprep.subr.bf16.mxu0 0
      %3481 = vmatpush1.bf16.msra.mxu0 0
      %3482 = vmatprep.subr.bf16.mxu0 0
      %3483 = vmatpush1.bf16.msra.mxu0 0
      %3484 = vmatprep.mubr.bf16.mxu0 0
      %3485 = vmatmul.mubr.bf16.gmra.mrb[0].mxu0 %v3210
      %v3486 = vpop.f32.mrb[0].mxu0
      %v3487 = vadd.f32 %v3446, %v3486
      %v3488 = vpop.f32.mrb[0].mxu0
      %v3489 = vpop.f32.mrb[0].mxu0
      %v3490 = vadd.f32 %v3449, %v3489
      %v3491 = vpop.f32.mrb[0].mxu0
      %3492 = vdwg.mxu0
      %v3493 = vmax.f32 %v3487, 0.0
      %v3494 = vmax.f32 %v3490, 0.0
      %3495 = vst [vmem:[#allocation2] sm:$0xff] %v3493
      %3496 = vst [vmem:[#allocation2 + $0x8] sm:$0xf] %v3494
      %v3497 = vld [vmem:[#allocation2] ss:$3 sm:$0xf]
      %v3498 = vld [vmem:[%s1346] ss:$3 sm:$0xf]
      %v3499 = vmax.f32 %v3497, %v3498
      %v3500 = vld [vmem:[%s1373] ss:$3 sm:$0xf]
      %v3501 = vmax.f32 %v3499, %v3500
      %v3502 = vpack.c.bf16 %v3501, %v3501
      %3503 = vst [vmem:[%s438] sm:$0x3] %v3502
      %p3504 = scmp.lt.s32.totalorder %s24, 1
      %s3505 = scalar_select %p3504, %s24, 1
      %s3506 = smul.addr %s3505, 2
      %s3507 = scalar_lea.vmem %s13, %s3506
      // Predicated region
      $region73: #{model_forward.2} parent=71 // pred_check
        %p3508 = pneg %p320
      $region74: #{model_forward.2} parent=71 // pred_check_branch
        %3510 = sbr.rel (%p3508) target = $region76
      $region75: #{model_forward.2} parent=71 // pred_region
        _
      $region76: #{model_forward.2} parent=71 // pred_fallthru
        _
    $region72: #{model_forward.2} parent=5 // pred_fallthru
      _
    %p3511 = scmp.le.s32.totalorder 2, %s19
    // Predicated region
    $region77: #{model_forward.2} parent=5 // pred_check
      %p3512 = pneg %p3511
    $region78: #{model_forward.2} parent=5 // pred_check_branch
      %3514 = sbr.rel (%p3512) target = $region80
    $region79: #{model_forward.2} parent=5 // pred_region
      %s3515 = ssub.s32 %s19, 2
      // Predicated region
      $region81: #{model_forward.2} parent=79 // pred_check
        %p3516 = pneg %p326
      $region82: #{model_forward.2} parent=79 // pred_check_branch
        %3518 = sbr.rel (%p3516) target = $region84
      $region83: #{model_forward.2} parent=79 // pred_region
        %p3519 = scmp.lt.s32.totalorder %s25, 1
        %s3520 = scalar_select %p3519, %s25, 1
        %s3521 = smul.addr %s3520, 2
        %s3522 = scalar_lea.vmem %s13, %s3521
      $region84: #{model_forward.2} parent=79 // pred_fallthru
        _
    $region80: #{model_forward.2} parent=5 // pred_fallthru
      _
  $region6: #{model_forward.2} parent=0 // loop_footer
    %s23 = sadd.s32 1, %s19
  $region7: #{model_forward.2} parent=0 // loop_footer_branch
    %18 = sbr.rel target = $region3
  $region8: #{model_forward.2} parent=0 // loop_exit
    _

// kernel: model_forward.3
$region0: #{model_forward.3}
  #allocation0 [shape = 'u32[]', space=smem, size = 0x4, offset = 0x4, fixed_abs, tag = 'smem constant byte address 0x4 - core index']
  #allocation1 [shape = 'u32[144,128]{1,0:T(1,128)}', space=vmem, size = 0x12000, scoped, tag = 'internal scratch']
  %s0 = inlined_call_operand.vmem [shape: bf16[2,512], index: 0, kind: input, shape index: {}]
  %s1 = inlined_call_operand.vmem [shape: bf16[512,1024], index: 1, kind: input, shape index: {}]
  %s2 = inlined_call_operand.vmem [shape: f32[1,1024], index: 2, kind: input, shape index: {}]
  %s3 = inlined_call_operand.vmem [shape: bf16[1024,1024], index: 3, kind: input, shape index: {}]
  %s4 = inlined_call_operand.vmem [shape: f32[1,1024], index: 4, kind: input, shape index: {}]
  %s5 = inlined_call_operand.vmem [shape: bf16[1024,128], index: 5, kind: input, shape index: {}]
  %s6 = inlined_call_operand.vmem [shape: f32[1,128], index: 6, kind: input, shape index: {}]
  %s7 = inlined_call_operand.hbm [shape: f32[2,128], index: 7, kind: output, shape index: {}]
  %s8 = sld [smem:[#allocation0]]
  $region38: #{model_forward.3} parent=0
    _
  %s10 = ssub.s32 1, %s8
  %s11 = scalar_select 0, %s10, %s8
  $region1: #{model_forward.3} parent=0
    #allocation2 [shape = 'u8[1024]{0}', space=vmem, size = 0x400, scoped, tag = 'output window, operand 0, single buffered']
    #allocation3 [shape = 's32[1]{0}', space=sflag, size = 0x4, scoped, tag = 'scoped memory for model_forward.3']
    %12 = vsyncpa [#allocation3], 0
    // Predicated region
    $region2: #{model_forward.3} parent=1 // pred_check
      _
    $region3: #{model_forward.3} parent=1 // pred_check_branch
      %14 = sbr.rel (0) target = $region5
    $region4: #{model_forward.3} parent=1 // pred_region
      _
    $region5: #{model_forward.3} parent=1 // pred_fallthru
      _
    // Predicated region
    $region6: #{model_forward.3} parent=1 // pred_check
      _
    $region7: #{model_forward.3} parent=1 // pred_check_branch
      %16 = sbr.rel (0) target = $region9
    $region8: #{model_forward.3} parent=1 // pred_region
      _
    $region9: #{model_forward.3} parent=1 // pred_fallthru
      _
    // Predicated region
    $region10: #{model_forward.3} parent=1 // pred_check
      _
    $region11: #{model_forward.3} parent=1 // pred_check_branch
      %18 = sbr.rel (0) target = $region13
    $region12: #{model_forward.3} parent=1 // pred_region
      _
    $region13: #{model_forward.3} parent=1 // pred_fallthru
      _
    // Predicated region
    $region14: #{model_forward.3} parent=1 // pred_check
      _
    $region15: #{model_forward.3} parent=1 // pred_check_branch
      %20 = sbr.rel (0) target = $region17
    $region16: #{model_forward.3} parent=1 // pred_region
      _
    $region17: #{model_forward.3} parent=1 // pred_fallthru
      _
    // Predicated region
    $region18: #{model_forward.3} parent=1 // pred_check
      _
    $region19: #{model_forward.3} parent=1 // pred_check_branch
      %22 = sbr.rel (0) target = $region21
    $region20: #{model_forward.3} parent=1 // pred_region
      _
    $region21: #{model_forward.3} parent=1 // pred_fallthru
      _
    // Predicated region
    $region22: #{model_forward.3} parent=1 // pred_check
      _
    $region23: #{model_forward.3} parent=1 // pred_check_branch
      %24 = sbr.rel (0) target = $region25
    $region24: #{model_forward.3} parent=1 // pred_region
      _
    $region25: #{model_forward.3} parent=1 // pred_fallthru
      _
    // Predicated region
    $region26: #{model_forward.3} parent=1 // pred_check
      _
    $region27: #{model_forward.3} parent=1 // pred_check_branch
      %26 = sbr.rel (0) target = $region29
    $region28: #{model_forward.3} parent=1 // pred_region
      _
    $region29: #{model_forward.3} parent=1 // pred_fallthru
      _
    %v28 = vld [vmem:[%s0] sm:$0xf]
    %v29 = vld [vmem:[%s1] sm:$0xff]
    %v30 = vld [vmem:[%s1 + $0x8] sm:$0xff]
    %v31 = vld [vmem:[%s1 + $0x10] sm:$0xff]
    %v32 = vld [vmem:[%s1 + $0x18] sm:$0xff]
    %v33 = vld [vmem:[%s1 + $0x20] sm:$0xff]
    %v34 = vld [vmem:[%s1 + $0x28] sm:$0xff]
    %v35 = vld [vmem:[%s1 + $0x30] sm:$0xff]
    %v36 = vld [vmem:[%s1 + $0x38] sm:$0xff]
    %v37 = vld [vmem:[%s1 + $0x40] sm:$0xff]
    %v38 = vld [vmem:[%s1 + $0x48] sm:$0xff]
    %v39 = vld [vmem:[%s1 + $0x50] sm:$0xff]
    %v40 = vld [vmem:[%s1 + $0x58] sm:$0xff]
    %v41 = vld [vmem:[%s1 + $0x60] sm:$0xff]
    %v42 = vld [vmem:[%s1 + $0x68] sm:$0xff]
    %v43 = vld [vmem:[%s1 + $0x70] sm:$0xff]
    %v44 = vld [vmem:[%s1 + $0x78] sm:$0xff]
    %v45 = vld [vmem:[%s1 + $0x80] sm:$0xff]
    %v46 = vld [vmem:[%s1 + $0x88] sm:$0xff]
    %v47 = vld [vmem:[%s1 + $0x90] sm:$0xff]
    %v48 = vld [vmem:[%s1 + $0x98] sm:$0xff]
    %v49 = vld [vmem:[%s1 + $0xa0] sm:$0xff]
    %v50 = vld [vmem:[%s1 + $0xa8] sm:$0xff]
    %v51 = vld [vmem:[%s1 + $0xb0] sm:$0xff]
    %v52 = vld [vmem:[%s1 + $0xb8] sm:$0xff]
    %v53 = vld [vmem:[%s1 + $0xc0] sm:$0xff]
    %v54 = vld [vmem:[%s1 + $0xc8] sm:$0xff]
    %v55 = vld [vmem:[%s1 + $0xd0] sm:$0xff]
    %v56 = vld [vmem:[%s1 + $0xd8] sm:$0xff]
    %v57 = vld [vmem:[%s1 + $0xe0] sm:$0xff]
    %v58 = vld [vmem:[%s1 + $0xe8] sm:$0xff]
    %v59 = vld [vmem:[%s1 + $0xf0] sm:$0xff]
    %v60 = vld [vmem:[%s1 + $0xf8] sm:$0xff]
    %v61 = vld [vmem:[%s1 + $0x100] sm:$0xff]
    %v62 = vld [vmem:[%s1 + $0x108] sm:$0xff]
    %v63 = vld [vmem:[%s1 + $0x110] sm:$0xff]
    %v64 = vld [vmem:[%s1 + $0x118] sm:$0xff]
    %v65 = vld [vmem:[%s1 + $0x120] sm:$0xff]
    %v66 = vld [vmem:[%s1 + $0x128] sm:$0xff]
    %v67 = vld [vmem:[%s1 + $0x130] sm:$0xff]
    %v68 = vld [vmem:[%s1 + $0x138] sm:$0xff]
    %v69 = vld [vmem:[%s1 + $0x140] sm:$0xff]
    %v70 = vld [vmem:[%s1 + $0x148] sm:$0xff]
    %v71 = vld [vmem:[%s1 + $0x150] sm:$0xff]
    %v72 = vld [vmem:[%s1 + $0x158] sm:$0xff]
    %v73 = vld [vmem:[%s1 + $0x160] sm:$0xff]
    %v74 = vld [vmem:[%s1 + $0x168] sm:$0xff]
    %v75 = vld [vmem:[%s1 + $0x170] sm:$0xff]
    %v76 = vld [vmem:[%s1 + $0x178] sm:$0xff]
    %v77 = vld [vmem:[%s1 + $0x180] sm:$0xff]
    %v78 = vld [vmem:[%s1 + $0x188] sm:$0xff]
    %v79 = vld [vmem:[%s1 + $0x190] sm:$0xff]
    %v80 = vld [vmem:[%s1 + $0x198] sm:$0xff]
    %v81 = vld [vmem:[%s1 + $0x1a0] sm:$0xff]
    %v82 = vld [vmem:[%s1 + $0x1a8] sm:$0xff]
    %v83 = vld [vmem:[%s1 + $0x1b0] sm:$0xff]
    %v84 = vld [vmem:[%s1 + $0x1b8] sm:$0xff]
    %v85 = vld [vmem:[%s1 + $0x1c0] sm:$0xff]
    %v86 = vld [vmem:[%s1 + $0x1c8] sm:$0xff]
    %v87 = vld [vmem:[%s1 + $0x1d0] sm:$0xff]
    %v88 = vld [vmem:[%s1 + $0x1d8] sm:$0xff]
    %v89 = vld [vmem:[%s1 + $0x1e0] sm:$0xff]
    %v90 = vld [vmem:[%s1 + $0x1e8] sm:$0xff]
    %v91 = vld [vmem:[%s1 + $0x1f0] sm:$0xff]
    %v92 = vld [vmem:[%s1 + $0x1f8] sm:$0xff]
    %v93 = vld [vmem:[%s1 + $0x200] sm:$0xff]
    %v94 = vld [vmem:[%s1 + $0x208] sm:$0xff]
    %v95 = vld [vmem:[%s1 + $0x210] sm:$0xff]
    %v96 = vld [vmem:[%s1 + $0x218] sm:$0xff]
    %v97 = vld [vmem:[%s1 + $0x220] sm:$0xff]
    %v98 = vld [vmem:[%s1 + $0x228] sm:$0xff]
    %v99 = vld [vmem:[%s1 + $0x230] sm:$0xff]
    %v100 = vld [vmem:[%s1 + $0x238] sm:$0xff]
    %v101 = vld [vmem:[%s1 + $0x240] sm:$0xff]
    %v102 = vld [vmem:[%s1 + $0x248] sm:$0xff]
    %v103 = vld [vmem:[%s1 + $0x250] sm:$0xff]
    %v104 = vld [vmem:[%s1 + $0x258] sm:$0xff]
    %v105 = vld [vmem:[%s1 + $0x260] sm:$0xff]
    %v106 = vld [vmem:[%s1 + $0x268] sm:$0xff]
    %v107 = vld [vmem:[%s1 + $0x270] sm:$0xff]
    %v108 = vld [vmem:[%s1 + $0x278] sm:$0xff]
    %v109 = vld [vmem:[%s1 + $0x280] sm:$0xff]
    %v110 = vld [vmem:[%s1 + $0x288] sm:$0xff]
    %v111 = vld [vmem:[%s1 + $0x290] sm:$0xff]
    %v112 = vld [vmem:[%s1 + $0x298] sm:$0xff]
    %v113 = vld [vmem:[%s1 + $0x2a0] sm:$0xff]
    %v114 = vld [vmem:[%s1 + $0x2a8] sm:$0xff]
    %v115 = vld [vmem:[%s1 + $0x2b0] sm:$0xff]
    %v116 = vld [vmem:[%s1 + $0x2b8] sm:$0xff]
    %v117 = vld [vmem:[%s1 + $0x2c0] sm:$0xff]
    %v118 = vld [vmem:[%s1 + $0x2c8] sm:$0xff]
    %v119 = vld [vmem:[%s1 + $0x2d0] sm:$0xff]
    %v120 = vld [vmem:[%s1 + $0x2d8] sm:$0xff]
    %v121 = vld [vmem:[%s1 + $0x2e0] sm:$0xff]
    %v122 = vld [vmem:[%s1 + $0x2e8] sm:$0xff]
    %v123 = vld [vmem:[%s1 + $0x2f0] sm:$0xff]
    %v124 = vld [vmem:[%s1 + $0x2f8] sm:$0xff]
    %v125 = vld [vmem:[%s1 + $0x300] sm:$0xff]
    %v126 = vld [vmem:[%s1 + $0x308] sm:$0xff]
    %v127 = vld [vmem:[%s1 + $0x310] sm:$0xff]
    %v128 = vld [vmem:[%s1 + $0x318] sm:$0xff]
    %v129 = vld [vmem:[%s1 + $0x320] sm:$0xff]
    %v130 = vld [vmem:[%s1 + $0x328] sm:$0xff]
    %v131 = vld [vmem:[%s1 + $0x330] sm:$0xff]
    %v132 = vld [vmem:[%s1 + $0x338] sm:$0xff]
    %v133 = vld [vmem:[%s1 + $0x340] sm:$0xff]
    %v134 = vld [vmem:[%s1 + $0x348] sm:$0xff]
    %v135 = vld [vmem:[%s1 + $0x350] sm:$0xff]
    %v136 = vld [vmem:[%s1 + $0x358] sm:$0xff]
    %v137 = vld [vmem:[%s1 + $0x360] sm:$0xff]
    %v138 = vld [vmem:[%s1 + $0x368] sm:$0xff]
    %v139 = vld [vmem:[%s1 + $0x370] sm:$0xff]
    %v140 = vld [vmem:[%s1 + $0x378] sm:$0xff]
    %v141 = vld [vmem:[%s1 + $0x380] sm:$0xff]
    %v142 = vld [vmem:[%s1 + $0x388] sm:$0xff]
    %v143 = vld [vmem:[%s1 + $0x390] sm:$0xff]
    %v144 = vld [vmem:[%s1 + $0x398] sm:$0xff]
    %v145 = vld [vmem:[%s1 + $0x3a0] sm:$0xff]
    %v146 = vld [vmem:[%s1 + $0x3a8] sm:$0xff]
    %v147 = vld [vmem:[%s1 + $0x3b0] sm:$0xff]
    %v148 = vld [vmem:[%s1 + $0x3b8] sm:$0xff]
    %v149 = vld [vmem:[%s1 + $0x3c0] sm:$0xff]
    %v150 = vld [vmem:[%s1 + $0x3c8] sm:$0xff]
    %v151 = vld [vmem:[%s1 + $0x3d0] sm:$0xff]
    %v152 = vld [vmem:[%s1 + $0x3d8] sm:$0xff]
    %v153 = vld [vmem:[%s1 + $0x3e0] sm:$0xff]
    %v154 = vld [vmem:[%s1 + $0x3e8] sm:$0xff]
    %v155 = vld [vmem:[%s1 + $0x3f0] sm:$0xff]
    %v156 = vld [vmem:[%s1 + $0x3f8] sm:$0xff]
    %v157 = vld [vmem:[%s1 + $0x400] sm:$0xff]
    %v158 = vld [vmem:[%s1 + $0x408] sm:$0xff]
    %v159 = vld [vmem:[%s1 + $0x410] sm:$0xff]
    %v160 = vld [vmem:[%s1 + $0x418] sm:$0xff]
    %v161 = vld [vmem:[%s1 + $0x420] sm:$0xff]
    %v162 = vld [vmem:[%s1 + $0x428] sm:$0xff]
    %v163 = vld [vmem:[%s1 + $0x430] sm:$0xff]
    %v164 = vld [vmem:[%s1 + $0x438] sm:$0xff]
    %v165 = vld [vmem:[%s1 + $0x440] sm:$0xff]
    %v166 = vld [vmem:[%s1 + $0x448] sm:$0xff]
    %v167 = vld [vmem:[%s1 + $0x450] sm:$0xff]
    %v168 = vld [vmem:[%s1 + $0x458] sm:$0xff]
    %v169 = vld [vmem:[%s1 + $0x460] sm:$0xff]
    %v170 = vld [vmem:[%s1 + $0x468] sm:$0xff]
    %v171 = vld [vmem:[%s1 + $0x470] sm:$0xff]
    %v172 = vld [vmem:[%s1 + $0x478] sm:$0xff]
    %v173 = vld [vmem:[%s1 + $0x480] sm:$0xff]
    %v174 = vld [vmem:[%s1 + $0x488] sm:$0xff]
    %v175 = vld [vmem:[%s1 + $0x490] sm:$0xff]
    %v176 = vld [vmem:[%s1 + $0x498] sm:$0xff]
    %v177 = vld [vmem:[%s1 + $0x4a0] sm:$0xff]
    %v178 = vld [vmem:[%s1 + $0x4a8] sm:$0xff]
    %v179 = vld [vmem:[%s1 + $0x4b0] sm:$0xff]
    %v180 = vld [vmem:[%s1 + $0x4b8] sm:$0xff]
    %v181 = vld [vmem:[%s1 + $0x4c0] sm:$0xff]
    %v182 = vld [vmem:[%s1 + $0x4c8] sm:$0xff]
    %v183 = vld [vmem:[%s1 + $0x4d0] sm:$0xff]
    %v184 = vld [vmem:[%s1 + $0x4d8] sm:$0xff]
    %v185 = vld [vmem:[%s1 + $0x4e0] sm:$0xff]
    %v186 = vld [vmem:[%s1 + $0x4e8] sm:$0xff]
    %v187 = vld [vmem:[%s1 + $0x4f0] sm:$0xff]
    %v188 = vld [vmem:[%s1 + $0x4f8] sm:$0xff]
    %v189 = vld [vmem:[%s1 + $0x500] sm:$0xff]
    %v190 = vld [vmem:[%s1 + $0x508] sm:$0xff]
    %v191 = vld [vmem:[%s1 + $0x510] sm:$0xff]
    %v192 = vld [vmem:[%s1 + $0x518] sm:$0xff]
    %v193 = vld [vmem:[%s1 + $0x520] sm:$0xff]
    %v194 = vld [vmem:[%s1 + $0x528] sm:$0xff]
    %v195 = vld [vmem:[%s1 + $0x530] sm:$0xff]
    %v196 = vld [vmem:[%s1 + $0x538] sm:$0xff]
    %v197 = vld [vmem:[%s1 + $0x540] sm:$0xff]
    %v198 = vld [vmem:[%s1 + $0x548] sm:$0xff]
    %v199 = vld [vmem:[%s1 + $0x550] sm:$0xff]
    %v200 = vld [vmem:[%s1 + $0x558] sm:$0xff]
    %v201 = vld [vmem:[%s1 + $0x560] sm:$0xff]
    %v202 = vld [vmem:[%s1 + $0x568] sm:$0xff]
    %v203 = vld [vmem:[%s1 + $0x570] sm:$0xff]
    %v204 = vld [vmem:[%s1 + $0x578] sm:$0xff]
    %v205 = vld [vmem:[%s1 + $0x580] sm:$0xff]
    %v206 = vld [vmem:[%s1 + $0x588] sm:$0xff]
    %v207 = vld [vmem:[%s1 + $0x590] sm:$0xff]
    %v208 = vld [vmem:[%s1 + $0x598] sm:$0xff]
    %v209 = vld [vmem:[%s1 + $0x5a0] sm:$0xff]
    %v210 = vld [vmem:[%s1 + $0x5a8] sm:$0xff]
    %v211 = vld [vmem:[%s1 + $0x5b0] sm:$0xff]
    %v212 = vld [vmem:[%s1 + $0x5b8] sm:$0xff]
    %v213 = vld [vmem:[%s1 + $0x5c0] sm:$0xff]
    %v214 = vld [vmem:[%s1 + $0x5c8] sm:$0xff]
    %v215 = vld [vmem:[%s1 + $0x5d0] sm:$0xff]
    %v216 = vld [vmem:[%s1 + $0x5d8] sm:$0xff]
    %v217 = vld [vmem:[%s1 + $0x5e0] sm:$0xff]
    %v218 = vld [vmem:[%s1 + $0x5e8] sm:$0xff]
    %v219 = vld [vmem:[%s1 + $0x5f0] sm:$0xff]
    %v220 = vld [vmem:[%s1 + $0x5f8] sm:$0xff]
    %v221 = vld [vmem:[%s1 + $0x600] sm:$0xff]
    %v222 = vld [vmem:[%s1 + $0x608] sm:$0xff]
    %v223 = vld [vmem:[%s1 + $0x610] sm:$0xff]
    %v224 = vld [vmem:[%s1 + $0x618] sm:$0xff]
    %v225 = vld [vmem:[%s1 + $0x620] sm:$0xff]
    %v226 = vld [vmem:[%s1 + $0x628] sm:$0xff]
    %v227 = vld [vmem:[%s1 + $0x630] sm:$0xff]
    %v228 = vld [vmem:[%s1 + $0x638] sm:$0xff]
    %v229 = vld [vmem:[%s1 + $0x640] sm:$0xff]
    %v230 = vld [vmem:[%s1 + $0x648] sm:$0xff]
    %v231 = vld [vmem:[%s1 + $0x650] sm:$0xff]
    %v232 = vld [vmem:[%s1 + $0x658] sm:$0xff]
    %v233 = vld [vmem:[%s1 + $0x660] sm:$0xff]
    %v234 = vld [vmem:[%s1 + $0x668] sm:$0xff]
    %v235 = vld [vmem:[%s1 + $0x670] sm:$0xff]
    %v236 = vld [vmem:[%s1 + $0x678] sm:$0xff]
    %v237 = vld [vmem:[%s1 + $0x680] sm:$0xff]
    %v238 = vld [vmem:[%s1 + $0x688] sm:$0xff]
    %v239 = vld [vmem:[%s1 + $0x690] sm:$0xff]
    %v240 = vld [vmem:[%s1 + $0x698] sm:$0xff]
    %v241 = vld [vmem:[%s1 + $0x6a0] sm:$0xff]
    %v242 = vld [vmem:[%s1 + $0x6a8] sm:$0xff]
    %v243 = vld [vmem:[%s1 + $0x6b0] sm:$0xff]
    %v244 = vld [vmem:[%s1 + $0x6b8] sm:$0xff]
    %v245 = vld [vmem:[%s1 + $0x6c0] sm:$0xff]
    %v246 = vld [vmem:[%s1 + $0x6c8] sm:$0xff]
    %v247 = vld [vmem:[%s1 + $0x6d0] sm:$0xff]
    %v248 = vld [vmem:[%s1 + $0x6d8] sm:$0xff]
    %v249 = vld [vmem:[%s1 + $0x6e0] sm:$0xff]
    %v250 = vld [vmem:[%s1 + $0x6e8] sm:$0xff]
    %v251 = vld [vmem:[%s1 + $0x6f0] sm:$0xff]
    %v252 = vld [vmem:[%s1 + $0x6f8] sm:$0xff]
    %v253 = vld [vmem:[%s1 + $0x700] sm:$0xff]
    %v254 = vld [vmem:[%s1 + $0x708] sm:$0xff]
    %v255 = vld [vmem:[%s1 + $0x710] sm:$0xff]
    %v256 = vld [vmem:[%s1 + $0x718] sm:$0xff]
    %v257 = vld [vmem:[%s1 + $0x720] sm:$0xff]
    %v258 = vld [vmem:[%s1 + $0x728] sm:$0xff]
    %v259 = vld [vmem:[%s1 + $0x730] sm:$0xff]
    %v260 = vld [vmem:[%s1 + $0x738] sm:$0xff]
    %v261 = vld [vmem:[%s1 + $0x740] sm:$0xff]
    %v262 = vld [vmem:[%s1 + $0x748] sm:$0xff]
    %v263 = vld [vmem:[%s1 + $0x750] sm:$0xff]
    %v264 = vld [vmem:[%s1 + $0x758] sm:$0xff]
    %v265 = vld [vmem:[%s1 + $0x760] sm:$0xff]
    %v266 = vld [vmem:[%s1 + $0x768] sm:$0xff]
    %v267 = vld [vmem:[%s1 + $0x770] sm:$0xff]
    %v268 = vld [vmem:[%s1 + $0x778] sm:$0xff]
    %v269 = vld [vmem:[%s1 + $0x780] sm:$0xff]
    %v270 = vld [vmem:[%s1 + $0x788] sm:$0xff]
    %v271 = vld [vmem:[%s1 + $0x790] sm:$0xff]
    %v272 = vld [vmem:[%s1 + $0x798] sm:$0xff]
    %v273 = vld [vmem:[%s1 + $0x7a0] sm:$0xff]
    %v274 = vld [vmem:[%s1 + $0x7a8] sm:$0xff]
    %v275 = vld [vmem:[%s1 + $0x7b0] sm:$0xff]
    %v276 = vld [vmem:[%s1 + $0x7b8] sm:$0xff]
    %v277 = vld [vmem:[%s1 + $0x7c0] sm:$0xff]
    %v278 = vld [vmem:[%s1 + $0x7c8] sm:$0xff]
    %v279 = vld [vmem:[%s1 + $0x7d0] sm:$0xff]
    %v280 = vld [vmem:[%s1 + $0x7d8] sm:$0xff]
    %v281 = vld [vmem:[%s1 + $0x7e0] sm:$0xff]
    %v282 = vld [vmem:[%s1 + $0x7e8] sm:$0xff]
    %v283 = vld [vmem:[%s1 + $0x7f0] sm:$0xff]
    %v284 = vld [vmem:[%s1 + $0x7f8] sm:$0xff]
    %v285 = vld [vmem:[%s2] sm:$0xff]
    %v287 = vlaneseq
    %v288 = vshrl.u32 %v287, 7
    %v289 = vsub.s32 0, %v288
    %v290 = vrot.slane %v285, %v289
    %v291 = vlaneseq
    %v292 = vshrl.u32 %v291, 7
    %v293 = vsub.s32 1, %v292
    %v294 = vrot.slane %v285, %v293
    %v295 = vlaneseq
    %v296 = vshrl.u32 %v295, 7
    %v297 = vsub.s32 2, %v296
    %v298 = vrot.slane %v285, %v297
    %v299 = vlaneseq
    %v300 = vshrl.u32 %v299, 7
    %v301 = vsub.s32 3, %v300
    %v302 = vrot.slane %v285, %v301
    %v303 = vlaneseq
    %v304 = vshrl.u32 %v303, 7
    %v305 = vsub.s32 4, %v304
    %v306 = vrot.slane %v285, %v305
    %v307 = vlaneseq
    %v308 = vshrl.u32 %v307, 7
    %v309 = vsub.s32 5, %v308
    %v310 = vrot.slane %v285, %v309
    %v311 = vlaneseq
    %v312 = vshrl.u32 %v311, 7
    %v313 = vsub.s32 6, %v312
    %v314 = vrot.slane %v285, %v313
    %v315 = vlaneseq
    %v316 = vshrl.u32 %v315, 7
    %v317 = vsub.s32 7, %v316
    %v318 = vrot.slane %v285, %v317
    %v329 = vunpack.c.l.s4 1966171168
    %v330 = vunpack.c.0.s8 %v329
    %v331 = vlaneseq
    %v332 = vshrl.u32 %v331, 7
    %v333 = vsub.s32 %v330, %v332
    %v334 = vrot.slane %v28, %v333
    %v335 = vcombine.high %v334, %v334
    %v337 = vunpack.c.l.s4 1966171168
    %v338 = vunpack.c.0.s8 %v337
    %v339 = vlaneseq
    %v340 = vshrl.u32 %v339, 7
    %v341 = vsub.s32 %v338, %v340
    %v342 = vrot.slane %v334, %v341
    %v344 = vunpack.c.l.s4 1966171168
    %v345 = vunpack.c.0.s8 %v344
    %v346 = vlaneseq
    %v347 = vshrl.u32 %v346, 7
    %v348 = vsub.s32 %v345, %v347
    %v349 = vrot.slane %v335, %v348
    %v350 = vcombine.high %v342, %v342
    %v351 = vcombine.high %v349, %v349
    %v612 = vunpack.c.l.b16 %v29
    %v613 = vunpack.c.h.b16 %v29
    %v614 = vunpack.c.l.b16 %v30
    %v615 = vunpack.c.h.b16 %v30
    %v616 = vunpack.c.l.b16 %v31
    %v617 = vunpack.c.h.b16 %v31
    %v618 = vunpack.c.l.b16 %v32
    %v619 = vunpack.c.h.b16 %v32
    %v620 = vunpack.c.l.b16 %v33
    %v621 = vunpack.c.h.b16 %v33
    %v622 = vunpack.c.l.b16 %v34
    %v623 = vunpack.c.h.b16 %v34
    %v624 = vunpack.c.l.b16 %v35
    %v625 = vunpack.c.h.b16 %v35
    %v626 = vunpack.c.l.b16 %v36
    %v627 = vunpack.c.h.b16 %v36
    %v628 = vunpack.c.l.b16 %v37
    %v629 = vunpack.c.h.b16 %v37
    %v630 = vunpack.c.l.b16 %v38
    %v631 = vunpack.c.h.b16 %v38
    %v632 = vunpack.c.l.b16 %v39
    %v633 = vunpack.c.h.b16 %v39
    %v634 = vunpack.c.l.b16 %v40
    %v635 = vunpack.c.h.b16 %v40
    %v636 = vunpack.c.l.b16 %v41
    %v637 = vunpack.c.h.b16 %v41
    %v638 = vunpack.c.l.b16 %v42
    %v639 = vunpack.c.h.b16 %v42
    %v640 = vunpack.c.l.b16 %v43
    %v641 = vunpack.c.h.b16 %v43
    %v642 = vunpack.c.l.b16 %v44
    %v643 = vunpack.c.h.b16 %v44
    %v644 = vunpack.c.l.b16 %v45
    %v645 = vunpack.c.h.b16 %v45
    %v646 = vunpack.c.l.b16 %v46
    %v647 = vunpack.c.h.b16 %v46
    %v648 = vunpack.c.l.b16 %v47
    %v649 = vunpack.c.h.b16 %v47
    %v650 = vunpack.c.l.b16 %v48
    %v651 = vunpack.c.h.b16 %v48
    %v652 = vunpack.c.l.b16 %v49
    %v653 = vunpack.c.h.b16 %v49
    %v654 = vunpack.c.l.b16 %v50
    %v655 = vunpack.c.h.b16 %v50
    %v656 = vunpack.c.l.b16 %v51
    %v657 = vunpack.c.h.b16 %v51
    %v658 = vunpack.c.l.b16 %v52
    %v659 = vunpack.c.h.b16 %v52
    %v660 = vunpack.c.l.b16 %v53
    %v661 = vunpack.c.h.b16 %v53
    %v662 = vunpack.c.l.b16 %v54
    %v663 = vunpack.c.h.b16 %v54
    %v664 = vunpack.c.l.b16 %v55
    %v665 = vunpack.c.h.b16 %v55
    %v666 = vunpack.c.l.b16 %v56
    %v667 = vunpack.c.h.b16 %v56
    %v668 = vunpack.c.l.b16 %v57
    %v669 = vunpack.c.h.b16 %v57
    %v670 = vunpack.c.l.b16 %v58
    %v671 = vunpack.c.h.b16 %v58
    %v672 = vunpack.c.l.b16 %v59
    %v673 = vunpack.c.h.b16 %v59
    %v674 = vunpack.c.l.b16 %v60
    %v675 = vunpack.c.h.b16 %v60
    %v676 = vunpack.c.l.b16 %v61
    %v677 = vunpack.c.h.b16 %v61
    %v678 = vunpack.c.l.b16 %v62
    %v679 = vunpack.c.h.b16 %v62
    %v680 = vunpack.c.l.b16 %v63
    %v681 = vunpack.c.h.b16 %v63
    %v682 = vunpack.c.l.b16 %v64
    %v683 = vunpack.c.h.b16 %v64
    %v684 = vunpack.c.l.b16 %v65
    %v685 = vunpack.c.h.b16 %v65
    %v686 = vunpack.c.l.b16 %v66
    %v687 = vunpack.c.h.b16 %v66
    %v688 = vunpack.c.l.b16 %v67
    %v689 = vunpack.c.h.b16 %v67
    %v690 = vunpack.c.l.b16 %v68
    %v691 = vunpack.c.h.b16 %v68
    %v692 = vunpack.c.l.b16 %v69
    %v693 = vunpack.c.h.b16 %v69
    %v694 = vunpack.c.l.b16 %v70
    %v695 = vunpack.c.h.b16 %v70
    %v696 = vunpack.c.l.b16 %v71
    %v697 = vunpack.c.h.b16 %v71
    %v698 = vunpack.c.l.b16 %v72
    %v699 = vunpack.c.h.b16 %v72
    %v700 = vunpack.c.l.b16 %v73
    %v701 = vunpack.c.h.b16 %v73
    %v702 = vunpack.c.l.b16 %v74
    %v703 = vunpack.c.h.b16 %v74
    %v704 = vunpack.c.l.b16 %v75
    %v705 = vunpack.c.h.b16 %v75
    %v706 = vunpack.c.l.b16 %v76
    %v707 = vunpack.c.h.b16 %v76
    %v708 = vunpack.c.l.b16 %v77
    %v709 = vunpack.c.h.b16 %v77
    %v710 = vunpack.c.l.b16 %v78
    %v711 = vunpack.c.h.b16 %v78
    %v712 = vunpack.c.l.b16 %v79
    %v713 = vunpack.c.h.b16 %v79
    %v714 = vunpack.c.l.b16 %v80
    %v715 = vunpack.c.h.b16 %v80
    %v716 = vunpack.c.l.b16 %v81
    %v717 = vunpack.c.h.b16 %v81
    %v718 = vunpack.c.l.b16 %v82
    %v719 = vunpack.c.h.b16 %v82
    %v720 = vunpack.c.l.b16 %v83
    %v721 = vunpack.c.h.b16 %v83
    %v722 = vunpack.c.l.b16 %v84
    %v723 = vunpack.c.h.b16 %v84
    %v724 = vunpack.c.l.b16 %v85
    %v725 = vunpack.c.h.b16 %v85
    %v726 = vunpack.c.l.b16 %v86
    %v727 = vunpack.c.h.b16 %v86
    %v728 = vunpack.c.l.b16 %v87
    %v729 = vunpack.c.h.b16 %v87
    %v730 = vunpack.c.l.b16 %v88
    %v731 = vunpack.c.h.b16 %v88
    %v732 = vunpack.c.l.b16 %v89
    %v733 = vunpack.c.h.b16 %v89
    %v734 = vunpack.c.l.b16 %v90
    %v735 = vunpack.c.h.b16 %v90
    %v736 = vunpack.c.l.b16 %v91
    %v737 = vunpack.c.h.b16 %v91
    %v738 = vunpack.c.l.b16 %v92
    %v739 = vunpack.c.h.b16 %v92
    %v740 = vunpack.c.l.b16 %v93
    %v741 = vunpack.c.h.b16 %v93
    %v742 = vunpack.c.l.b16 %v94
    %v743 = vunpack.c.h.b16 %v94
    %v744 = vunpack.c.l.b16 %v95
    %v745 = vunpack.c.h.b16 %v95
    %v746 = vunpack.c.l.b16 %v96
    %v747 = vunpack.c.h.b16 %v96
    %v748 = vunpack.c.l.b16 %v97
    %v749 = vunpack.c.h.b16 %v97
    %v750 = vunpack.c.l.b16 %v98
    %v751 = vunpack.c.h.b16 %v98
    %v752 = vunpack.c.l.b16 %v99
    %v753 = vunpack.c.h.b16 %v99
    %v754 = vunpack.c.l.b16 %v100
    %v755 = vunpack.c.h.b16 %v100
    %v756 = vunpack.c.l.b16 %v101
    %v757 = vunpack.c.h.b16 %v101
    %v758 = vunpack.c.l.b16 %v102
    %v759 = vunpack.c.h.b16 %v102
    %v760 = vunpack.c.l.b16 %v103
    %v761 = vunpack.c.h.b16 %v103
    %v762 = vunpack.c.l.b16 %v104
    %v763 = vunpack.c.h.b16 %v104
    %v764 = vunpack.c.l.b16 %v105
    %v765 = vunpack.c.h.b16 %v105
    %v766 = vunpack.c.l.b16 %v106
    %v767 = vunpack.c.h.b16 %v106
    %v768 = vunpack.c.l.b16 %v107
    %v769 = vunpack.c.h.b16 %v107
    %v770 = vunpack.c.l.b16 %v108
    %v771 = vunpack.c.h.b16 %v108
    %v772 = vunpack.c.l.b16 %v109
    %v773 = vunpack.c.h.b16 %v109
    %v774 = vunpack.c.l.b16 %v110
    %v775 = vunpack.c.h.b16 %v110
    %v776 = vunpack.c.l.b16 %v111
    %v777 = vunpack.c.h.b16 %v111
    %v778 = vunpack.c.l.b16 %v112
    %v779 = vunpack.c.h.b16 %v112
    %v780 = vunpack.c.l.b16 %v113
    %v781 = vunpack.c.h.b16 %v113
    %v782 = vunpack.c.l.b16 %v114
    %v783 = vunpack.c.h.b16 %v114
    %v784 = vunpack.c.l.b16 %v115
    %v785 = vunpack.c.h.b16 %v115
    %v786 = vunpack.c.l.b16 %v116
    %v787 = vunpack.c.h.b16 %v116
    %v788 = vunpack.c.l.b16 %v117
    %v789 = vunpack.c.h.b16 %v117
    %v790 = vunpack.c.l.b16 %v118
    %v791 = vunpack.c.h.b16 %v118
    %v792 = vunpack.c.l.b16 %v119
    %v793 = vunpack.c.h.b16 %v119
    %v794 = vunpack.c.l.b16 %v120
    %v795 = vunpack.c.h.b16 %v120
    %v796 = vunpack.c.l.b16 %v121
    %v797 = vunpack.c.h.b16 %v121
    %v798 = vunpack.c.l.b16 %v122
    %v799 = vunpack.c.h.b16 %v122
    %v800 = vunpack.c.l.b16 %v123
    %v801 = vunpack.c.h.b16 %v123
    %v802 = vunpack.c.l.b16 %v124
    %v803 = vunpack.c.h.b16 %v124
    %v804 = vunpack.c.l.b16 %v125
    %v805 = vunpack.c.h.b16 %v125
    %v806 = vunpack.c.l.b16 %v126
    %v807 = vunpack.c.h.b16 %v126
    %v808 = vunpack.c.l.b16 %v127
    %v809 = vunpack.c.h.b16 %v127
    %v810 = vunpack.c.l.b16 %v128
    %v811 = vunpack.c.h.b16 %v128
    %v812 = vunpack.c.l.b16 %v129
    %v813 = vunpack.c.h.b16 %v129
    %v814 = vunpack.c.l.b16 %v130
    %v815 = vunpack.c.h.b16 %v130
    %v816 = vunpack.c.l.b16 %v131
    %v817 = vunpack.c.h.b16 %v131
    %v818 = vunpack.c.l.b16 %v132
    %v819 = vunpack.c.h.b16 %v132
    %v820 = vunpack.c.l.b16 %v133
    %v821 = vunpack.c.h.b16 %v133
    %v822 = vunpack.c.l.b16 %v134
    %v823 = vunpack.c.h.b16 %v134
    %v824 = vunpack.c.l.b16 %v135
    %v825 = vunpack.c.h.b16 %v135
    %v826 = vunpack.c.l.b16 %v136
    %v827 = vunpack.c.h.b16 %v136
    %v828 = vunpack.c.l.b16 %v137
    %v829 = vunpack.c.h.b16 %v137
    %v830 = vunpack.c.l.b16 %v138
    %v831 = vunpack.c.h.b16 %v138
    %v832 = vunpack.c.l.b16 %v139
    %v833 = vunpack.c.h.b16 %v139
    %v834 = vunpack.c.l.b16 %v140
    %v835 = vunpack.c.h.b16 %v140
    %v836 = vunpack.c.l.b16 %v141
    %v837 = vunpack.c.h.b16 %v141
    %v838 = vunpack.c.l.b16 %v142
    %v839 = vunpack.c.h.b16 %v142
    %v840 = vunpack.c.l.b16 %v143
    %v841 = vunpack.c.h.b16 %v143
    %v842 = vunpack.c.l.b16 %v144
    %v843 = vunpack.c.h.b16 %v144
    %v844 = vunpack.c.l.b16 %v145
    %v845 = vunpack.c.h.b16 %v145
    %v846 = vunpack.c.l.b16 %v146
    %v847 = vunpack.c.h.b16 %v146
    %v848 = vunpack.c.l.b16 %v147
    %v849 = vunpack.c.h.b16 %v147
    %v850 = vunpack.c.l.b16 %v148
    %v851 = vunpack.c.h.b16 %v148
    %v852 = vunpack.c.l.b16 %v149
    %v853 = vunpack.c.h.b16 %v149
    %v854 = vunpack.c.l.b16 %v150
    %v855 = vunpack.c.h.b16 %v150
    %v856 = vunpack.c.l.b16 %v151
    %v857 = vunpack.c.h.b16 %v151
    %v858 = vunpack.c.l.b16 %v152
    %v859 = vunpack.c.h.b16 %v152
    %v860 = vunpack.c.l.b16 %v153
    %v861 = vunpack.c.h.b16 %v153
    %v862 = vunpack.c.l.b16 %v154
    %v863 = vunpack.c.h.b16 %v154
    %v864 = vunpack.c.l.b16 %v155
    %v865 = vunpack.c.h.b16 %v155
    %v866 = vunpack.c.l.b16 %v156
    %v867 = vunpack.c.h.b16 %v156
    %v868 = vunpack.c.l.b16 %v157
    %v869 = vunpack.c.h.b16 %v157
    %v870 = vunpack.c.l.b16 %v158
    %v871 = vunpack.c.h.b16 %v158
    %v872 = vunpack.c.l.b16 %v159
    %v873 = vunpack.c.h.b16 %v159
    %v874 = vunpack.c.l.b16 %v160
    %v875 = vunpack.c.h.b16 %v160
    %v876 = vunpack.c.l.b16 %v161
    %v877 = vunpack.c.h.b16 %v161
    %v878 = vunpack.c.l.b16 %v162
    %v879 = vunpack.c.h.b16 %v162
    %v880 = vunpack.c.l.b16 %v163
    %v881 = vunpack.c.h.b16 %v163
    %v882 = vunpack.c.l.b16 %v164
    %v883 = vunpack.c.h.b16 %v164
    %v884 = vunpack.c.l.b16 %v165
    %v885 = vunpack.c.h.b16 %v165
    %v886 = vunpack.c.l.b16 %v166
    %v887 = vunpack.c.h.b16 %v166
    %v888 = vunpack.c.l.b16 %v167
    %v889 = vunpack.c.h.b16 %v167
    %v890 = vunpack.c.l.b16 %v168
    %v891 = vunpack.c.h.b16 %v168
    %v892 = vunpack.c.l.b16 %v169
    %v893 = vunpack.c.h.b16 %v169
    %v894 = vunpack.c.l.b16 %v170
    %v895 = vunpack.c.h.b16 %v170
    %v896 = vunpack.c.l.b16 %v171
    %v897 = vunpack.c.h.b16 %v171
    %v898 = vunpack.c.l.b16 %v172
    %v899 = vunpack.c.h.b16 %v172
    %v900 = vunpack.c.l.b16 %v173
    %v901 = vunpack.c.h.b16 %v173
    %v902 = vunpack.c.l.b16 %v174
    %v903 = vunpack.c.h.b16 %v174
    %v904 = vunpack.c.l.b16 %v175
    %v905 = vunpack.c.h.b16 %v175
    %v906 = vunpack.c.l.b16 %v176
    %v907 = vunpack.c.h.b16 %v176
    %v908 = vunpack.c.l.b16 %v177
    %v909 = vunpack.c.h.b16 %v177
    %v910 = vunpack.c.l.b16 %v178
    %v911 = vunpack.c.h.b16 %v178
    %v912 = vunpack.c.l.b16 %v179
    %v913 = vunpack.c.h.b16 %v179
    %v914 = vunpack.c.l.b16 %v180
    %v915 = vunpack.c.h.b16 %v180
    %v916 = vunpack.c.l.b16 %v181
    %v917 = vunpack.c.h.b16 %v181
    %v918 = vunpack.c.l.b16 %v182
    %v919 = vunpack.c.h.b16 %v182
    %v920 = vunpack.c.l.b16 %v183
    %v921 = vunpack.c.h.b16 %v183
    %v922 = vunpack.c.l.b16 %v184
    %v923 = vunpack.c.h.b16 %v184
    %v924 = vunpack.c.l.b16 %v185
    %v925 = vunpack.c.h.b16 %v185
    %v926 = vunpack.c.l.b16 %v186
    %v927 = vunpack.c.h.b16 %v186
    %v928 = vunpack.c.l.b16 %v187
    %v929 = vunpack.c.h.b16 %v187
    %v930 = vunpack.c.l.b16 %v188
    %v931 = vunpack.c.h.b16 %v188
    %v932 = vunpack.c.l.b16 %v189
    %v933 = vunpack.c.h.b16 %v189
    %v934 = vunpack.c.l.b16 %v190
    %v935 = vunpack.c.h.b16 %v190
    %v936 = vunpack.c.l.b16 %v191
    %v937 = vunpack.c.h.b16 %v191
    %v938 = vunpack.c.l.b16 %v192
    %v939 = vunpack.c.h.b16 %v192
    %v940 = vunpack.c.l.b16 %v193
    %v941 = vunpack.c.h.b16 %v193
    %v942 = vunpack.c.l.b16 %v194
    %v943 = vunpack.c.h.b16 %v194
    %v944 = vunpack.c.l.b16 %v195
    %v945 = vunpack.c.h.b16 %v195
    %v946 = vunpack.c.l.b16 %v196
    %v947 = vunpack.c.h.b16 %v196
    %v948 = vunpack.c.l.b16 %v197
    %v949 = vunpack.c.h.b16 %v197
    %v950 = vunpack.c.l.b16 %v198
    %v951 = vunpack.c.h.b16 %v198
    %v952 = vunpack.c.l.b16 %v199
    %v953 = vunpack.c.h.b16 %v199
    %v954 = vunpack.c.l.b16 %v200
    %v955 = vunpack.c.h.b16 %v200
    %v956 = vunpack.c.l.b16 %v201
    %v957 = vunpack.c.h.b16 %v201
    %v958 = vunpack.c.l.b16 %v202
    %v959 = vunpack.c.h.b16 %v202
    %v960 = vunpack.c.l.b16 %v203
    %v961 = vunpack.c.h.b16 %v203
    %v962 = vunpack.c.l.b16 %v204
    %v963 = vunpack.c.h.b16 %v204
    %v964 = vunpack.c.l.b16 %v205
    %v965 = vunpack.c.h.b16 %v205
    %v966 = vunpack.c.l.b16 %v206
    %v967 = vunpack.c.h.b16 %v206
    %v968 = vunpack.c.l.b16 %v207
    %v969 = vunpack.c.h.b16 %v207
    %v970 = vunpack.c.l.b16 %v208
    %v971 = vunpack.c.h.b16 %v208
    %v972 = vunpack.c.l.b16 %v209
    %v973 = vunpack.c.h.b16 %v209
    %v974 = vunpack.c.l.b16 %v210
    %v975 = vunpack.c.h.b16 %v210
    %v976 = vunpack.c.l.b16 %v211
    %v977 = vunpack.c.h.b16 %v211
    %v978 = vunpack.c.l.b16 %v212
    %v979 = vunpack.c.h.b16 %v212
    %v980 = vunpack.c.l.b16 %v213
    %v981 = vunpack.c.h.b16 %v213
    %v982 = vunpack.c.l.b16 %v214
    %v983 = vunpack.c.h.b16 %v214
    %v984 = vunpack.c.l.b16 %v215
    %v985 = vunpack.c.h.b16 %v215
    %v986 = vunpack.c.l.b16 %v216
    %v987 = vunpack.c.h.b16 %v216
    %v988 = vunpack.c.l.b16 %v217
    %v989 = vunpack.c.h.b16 %v217
    %v990 = vunpack.c.l.b16 %v218
    %v991 = vunpack.c.h.b16 %v218
    %v992 = vunpack.c.l.b16 %v219
    %v993 = vunpack.c.h.b16 %v219
    %v994 = vunpack.c.l.b16 %v220
    %v995 = vunpack.c.h.b16 %v220
    %v996 = vunpack.c.l.b16 %v221
    %v997 = vunpack.c.h.b16 %v221
    %v998 = vunpack.c.l.b16 %v222
    %v999 = vunpack.c.h.b16 %v222
    %v1000 = vunpack.c.l.b16 %v223
    %v1001 = vunpack.c.h.b16 %v223
    %v1002 = vunpack.c.l.b16 %v224
    %v1003 = vunpack.c.h.b16 %v224
    %v1004 = vunpack.c.l.b16 %v225
    %v1005 = vunpack.c.h.b16 %v225
    %v1006 = vunpack.c.l.b16 %v226
    %v1007 = vunpack.c.h.b16 %v226
    %v1008 = vunpack.c.l.b16 %v227
    %v1009 = vunpack.c.h.b16 %v227
    %v1010 = vunpack.c.l.b16 %v228
    %v1011 = vunpack.c.h.b16 %v228
    %v1012 = vunpack.c.l.b16 %v229
    %v1013 = vunpack.c.h.b16 %v229
    %v1014 = vunpack.c.l.b16 %v230
    %v1015 = vunpack.c.h.b16 %v230
    %v1016 = vunpack.c.l.b16 %v231
    %v1017 = vunpack.c.h.b16 %v231
    %v1018 = vunpack.c.l.b16 %v232
    %v1019 = vunpack.c.h.b16 %v232
    %v1020 = vunpack.c.l.b16 %v233
    %v1021 = vunpack.c.h.b16 %v233
    %v1022 = vunpack.c.l.b16 %v234
    %v1023 = vunpack.c.h.b16 %v234
    %v1024 = vunpack.c.l.b16 %v235
    %v1025 = vunpack.c.h.b16 %v235
    %v1026 = vunpack.c.l.b16 %v236
    %v1027 = vunpack.c.h.b16 %v236
    %v1028 = vunpack.c.l.b16 %v237
    %v1029 = vunpack.c.h.b16 %v237
    %v1030 = vunpack.c.l.b16 %v238
    %v1031 = vunpack.c.h.b16 %v238
    %v1032 = vunpack.c.l.b16 %v239
    %v1033 = vunpack.c.h.b16 %v239
    %v1034 = vunpack.c.l.b16 %v240
    %v1035 = vunpack.c.h.b16 %v240
    %v1036 = vunpack.c.l.b16 %v241
    %v1037 = vunpack.c.h.b16 %v241
    %v1038 = vunpack.c.l.b16 %v242
    %v1039 = vunpack.c.h.b16 %v242
    %v1040 = vunpack.c.l.b16 %v243
    %v1041 = vunpack.c.h.b16 %v243
    %v1042 = vunpack.c.l.b16 %v244
    %v1043 = vunpack.c.h.b16 %v244
    %v1044 = vunpack.c.l.b16 %v245
    %v1045 = vunpack.c.h.b16 %v245
    %v1046 = vunpack.c.l.b16 %v246
    %v1047 = vunpack.c.h.b16 %v246
    %v1048 = vunpack.c.l.b16 %v247
    %v1049 = vunpack.c.h.b16 %v247
    %v1050 = vunpack.c.l.b16 %v248
    %v1051 = vunpack.c.h.b16 %v248
    %v1052 = vunpack.c.l.b16 %v249
    %v1053 = vunpack.c.h.b16 %v249
    %v1054 = vunpack.c.l.b16 %v250
    %v1055 = vunpack.c.h.b16 %v250
    %v1056 = vunpack.c.l.b16 %v251
    %v1057 = vunpack.c.h.b16 %v251
    %v1058 = vunpack.c.l.b16 %v252
    %v1059 = vunpack.c.h.b16 %v252
    %v1060 = vunpack.c.l.b16 %v253
    %v1061 = vunpack.c.h.b16 %v253
    %v1062 = vunpack.c.l.b16 %v254
    %v1063 = vunpack.c.h.b16 %v254
    %v1064 = vunpack.c.l.b16 %v255
    %v1065 = vunpack.c.h.b16 %v255
    %v1066 = vunpack.c.l.b16 %v256
    %v1067 = vunpack.c.h.b16 %v256
    %v1068 = vunpack.c.l.b16 %v257
    %v1069 = vunpack.c.h.b16 %v257
    %v1070 = vunpack.c.l.b16 %v258
    %v1071 = vunpack.c.h.b16 %v258
    %v1072 = vunpack.c.l.b16 %v259
    %v1073 = vunpack.c.h.b16 %v259
    %v1074 = vunpack.c.l.b16 %v260
    %v1075 = vunpack.c.h.b16 %v260
    %v1076 = vunpack.c.l.b16 %v261
    %v1077 = vunpack.c.h.b16 %v261
    %v1078 = vunpack.c.l.b16 %v262
    %v1079 = vunpack.c.h.b16 %v262
    %v1080 = vunpack.c.l.b16 %v263
    %v1081 = vunpack.c.h.b16 %v263
    %v1082 = vunpack.c.l.b16 %v264
    %v1083 = vunpack.c.h.b16 %v264
    %v1084 = vunpack.c.l.b16 %v265
    %v1085 = vunpack.c.h.b16 %v265
    %v1086 = vunpack.c.l.b16 %v266
    %v1087 = vunpack.c.h.b16 %v266
    %v1088 = vunpack.c.l.b16 %v267
    %v1089 = vunpack.c.h.b16 %v267
    %v1090 = vunpack.c.l.b16 %v268
    %v1091 = vunpack.c.h.b16 %v268
    %v1092 = vunpack.c.l.b16 %v269
    %v1093 = vunpack.c.h.b16 %v269
    %v1094 = vunpack.c.l.b16 %v270
    %v1095 = vunpack.c.h.b16 %v270
    %v1096 = vunpack.c.l.b16 %v271
    %v1097 = vunpack.c.h.b16 %v271
    %v1098 = vunpack.c.l.b16 %v272
    %v1099 = vunpack.c.h.b16 %v272
    %v1100 = vunpack.c.l.b16 %v273
    %v1101 = vunpack.c.h.b16 %v273
    %v1102 = vunpack.c.l.b16 %v274
    %v1103 = vunpack.c.h.b16 %v274
    %v1104 = vunpack.c.l.b16 %v275
    %v1105 = vunpack.c.h.b16 %v275
    %v1106 = vunpack.c.l.b16 %v276
    %v1107 = vunpack.c.h.b16 %v276
    %v1108 = vunpack.c.l.b16 %v277
    %v1109 = vunpack.c.h.b16 %v277
    %v1110 = vunpack.c.l.b16 %v278
    %v1111 = vunpack.c.h.b16 %v278
    %v1112 = vunpack.c.l.b16 %v279
    %v1113 = vunpack.c.h.b16 %v279
    %v1114 = vunpack.c.l.b16 %v280
    %v1115 = vunpack.c.h.b16 %v280
    %v1116 = vunpack.c.l.b16 %v281
    %v1117 = vunpack.c.h.b16 %v281
    %v1118 = vunpack.c.l.b16 %v282
    %v1119 = vunpack.c.h.b16 %v282
    %v1120 = vunpack.c.l.b16 %v283
    %v1121 = vunpack.c.h.b16 %v283
    %v1122 = vunpack.c.l.b16 %v284
    %v1123 = vunpack.c.h.b16 %v284
    %v1124 = vpack.c.b16 %v620, %v612
    %v1125 = vpack.c.b16 %v621, %v613
    %v1126 = vpack.c.b16 %v622, %v614
    %v1127 = vpack.c.b16 %v623, %v615
    %v1128 = vpack.c.b16 %v624, %v616
    %v1129 = vpack.c.b16 %v625, %v617
    %v1130 = vpack.c.b16 %v626, %v618
    %v1131 = vpack.c.b16 %v627, %v619
    %v1132 = vpack.c.b16 %v636, %v628
    %v1133 = vpack.c.b16 %v637, %v629
    %v1134 = vpack.c.b16 %v638, %v630
    %v1135 = vpack.c.b16 %v639, %v631
    %v1136 = vpack.c.b16 %v640, %v632
    %v1137 = vpack.c.b16 %v641, %v633
    %v1138 = vpack.c.b16 %v642, %v634
    %v1139 = vpack.c.b16 %v643, %v635
    %v1140 = vpack.c.b16 %v652, %v644
    %v1141 = vpack.c.b16 %v653, %v645
    %v1142 = vpack.c.b16 %v654, %v646
    %v1143 = vpack.c.b16 %v655, %v647
    %v1144 = vpack.c.b16 %v656, %v648
    %v1145 = vpack.c.b16 %v657, %v649
    %v1146 = vpack.c.b16 %v658, %v650
    %v1147 = vpack.c.b16 %v659, %v651
    %v1148 = vpack.c.b16 %v668, %v660
    %v1149 = vpack.c.b16 %v669, %v661
    %v1150 = vpack.c.b16 %v670, %v662
    %v1151 = vpack.c.b16 %v671, %v663
    %v1152 = vpack.c.b16 %v672, %v664
    %v1153 = vpack.c.b16 %v673, %v665
    %v1154 = vpack.c.b16 %v674, %v666
    %v1155 = vpack.c.b16 %v675, %v667
    %v1156 = vpack.c.b16 %v684, %v676
    %v1157 = vpack.c.b16 %v685, %v677
    %v1158 = vpack.c.b16 %v686, %v678
    %v1159 = vpack.c.b16 %v687, %v679
    %v1160 = vpack.c.b16 %v688, %v680
    %v1161 = vpack.c.b16 %v689, %v681
    %v1162 = vpack.c.b16 %v690, %v682
    %v1163 = vpack.c.b16 %v691, %v683
    %v1164 = vpack.c.b16 %v700, %v692
    %v1165 = vpack.c.b16 %v701, %v693
    %v1166 = vpack.c.b16 %v702, %v694
    %v1167 = vpack.c.b16 %v703, %v695
    %v1168 = vpack.c.b16 %v704, %v696
    %v1169 = vpack.c.b16 %v705, %v697
    %v1170 = vpack.c.b16 %v706, %v698
    %v1171 = vpack.c.b16 %v707, %v699
    %v1172 = vpack.c.b16 %v716, %v708
    %v1173 = vpack.c.b16 %v717, %v709
    %v1174 = vpack.c.b16 %v718, %v710
    %v1175 = vpack.c.b16 %v719, %v711
    %v1176 = vpack.c.b16 %v720, %v712
    %v1177 = vpack.c.b16 %v721, %v713
    %v1178 = vpack.c.b16 %v722, %v714
    %v1179 = vpack.c.b16 %v723, %v715
    %v1180 = vpack.c.b16 %v732, %v724
    %v1181 = vpack.c.b16 %v733, %v725
    %v1182 = vpack.c.b16 %v734, %v726
    %v1183 = vpack.c.b16 %v735, %v727
    %v1184 = vpack.c.b16 %v736, %v728
    %v1185 = vpack.c.b16 %v737, %v729
    %v1186 = vpack.c.b16 %v738, %v730
    %v1187 = vpack.c.b16 %v739, %v731
    %v1188 = vpack.c.b16 %v748, %v740
    %v1189 = vpack.c.b16 %v749, %v741
    %v1190 = vpack.c.b16 %v750, %v742
    %v1191 = vpack.c.b16 %v751, %v743
    %v1192 = vpack.c.b16 %v752, %v744
    %v1193 = vpack.c.b16 %v753, %v745
    %v1194 = vpack.c.b16 %v754, %v746
    %v1195 = vpack.c.b16 %v755, %v747
    %v1196 = vpack.c.b16 %v764, %v756
    %v1197 = vpack.c.b16 %v765, %v757
    %v1198 = vpack.c.b16 %v766, %v758
    %v1199 = vpack.c.b16 %v767, %v759
    %v1200 = vpack.c.b16 %v768, %v760
    %v1201 = vpack.c.b16 %v769, %v761
    %v1202 = vpack.c.b16 %v770, %v762
    %v1203 = vpack.c.b16 %v771, %v763
    %v1204 = vpack.c.b16 %v780, %v772
    %v1205 = vpack.c.b16 %v781, %v773
    %v1206 = vpack.c.b16 %v782, %v774
    %v1207 = vpack.c.b16 %v783, %v775
    %v1208 = vpack.c.b16 %v784, %v776
    %v1209 = vpack.c.b16 %v785, %v777
    %v1210 = vpack.c.b16 %v786, %v778
    %v1211 = vpack.c.b16 %v787, %v779
    %v1212 = vpack.c.b16 %v796, %v788
    %v1213 = vpack.c.b16 %v797, %v789
    %v1214 = vpack.c.b16 %v798, %v790
    %v1215 = vpack.c.b16 %v799, %v791
    %v1216 = vpack.c.b16 %v800, %v792
    %v1217 = vpack.c.b16 %v801, %v793
    %v1218 = vpack.c.b16 %v802, %v794
    %v1219 = vpack.c.b16 %v803, %v795
    %v1220 = vpack.c.b16 %v812, %v804
    %v1221 = vpack.c.b16 %v813, %v805
    %v1222 = vpack.c.b16 %v814, %v806
    %v1223 = vpack.c.b16 %v815, %v807
    %v1224 = vpack.c.b16 %v816, %v808
    %v1225 = vpack.c.b16 %v817, %v809
    %v1226 = vpack.c.b16 %v818, %v810
    %v1227 = vpack.c.b16 %v819, %v811
    %v1228 = vpack.c.b16 %v828, %v820
    %v1229 = vpack.c.b16 %v829, %v821
    %v1230 = vpack.c.b16 %v830, %v822
    %v1231 = vpack.c.b16 %v831, %v823
    %v1232 = vpack.c.b16 %v832, %v824
    %v1233 = vpack.c.b16 %v833, %v825
    %v1234 = vpack.c.b16 %v834, %v826
    %v1235 = vpack.c.b16 %v835, %v827
    %v1236 = vpack.c.b16 %v844, %v836
    %v1237 = vpack.c.b16 %v845, %v837
    %v1238 = vpack.c.b16 %v846, %v838
    %v1239 = vpack.c.b16 %v847, %v839
    %v1240 = vpack.c.b16 %v848, %v840
    %v1241 = vpack.c.b16 %v849, %v841
    %v1242 = vpack.c.b16 %v850, %v842
    %v1243 = vpack.c.b16 %v851, %v843
    %v1244 = vpack.c.b16 %v860, %v852
    %v1245 = vpack.c.b16 %v861, %v853
    %v1246 = vpack.c.b16 %v862, %v854
    %v1247 = vpack.c.b16 %v863, %v855
    %v1248 = vpack.c.b16 %v864, %v856
    %v1249 = vpack.c.b16 %v865, %v857
    %v1250 = vpack.c.b16 %v866, %v858
    %v1251 = vpack.c.b16 %v867, %v859
    %v1252 = vpack.c.b16 %v876, %v868
    %v1253 = vpack.c.b16 %v877, %v869
    %v1254 = vpack.c.b16 %v878, %v870
    %v1255 = vpack.c.b16 %v879, %v871
    %v1256 = vpack.c.b16 %v880, %v872
    %v1257 = vpack.c.b16 %v881, %v873
    %v1258 = vpack.c.b16 %v882, %v874
    %v1259 = vpack.c.b16 %v883, %v875
    %v1260 = vpack.c.b16 %v892, %v884
    %v1261 = vpack.c.b16 %v893, %v885
    %v1262 = vpack.c.b16 %v894, %v886
    %v1263 = vpack.c.b16 %v895, %v887
    %v1264 = vpack.c.b16 %v896, %v888
    %v1265 = vpack.c.b16 %v897, %v889
    %v1266 = vpack.c.b16 %v898, %v890
    %v1267 = vpack.c.b16 %v899, %v891
    %v1268 = vpack.c.b16 %v908, %v900
    %v1269 = vpack.c.b16 %v909, %v901
    %v1270 = vpack.c.b16 %v910, %v902
    %v1271 = vpack.c.b16 %v911, %v903
    %v1272 = vpack.c.b16 %v912, %v904
    %v1273 = vpack.c.b16 %v913, %v905
    %v1274 = vpack.c.b16 %v914, %v906
    %v1275 = vpack.c.b16 %v915, %v907
    %v1276 = vpack.c.b16 %v924, %v916
    %v1277 = vpack.c.b16 %v925, %v917
    %v1278 = vpack.c.b16 %v926, %v918
    %v1279 = vpack.c.b16 %v927, %v919
    %v1280 = vpack.c.b16 %v928, %v920
    %v1281 = vpack.c.b16 %v929, %v921
    %v1282 = vpack.c.b16 %v930, %v922
    %v1283 = vpack.c.b16 %v931, %v923
    %v1284 = vpack.c.b16 %v940, %v932
    %v1285 = vpack.c.b16 %v941, %v933
    %v1286 = vpack.c.b16 %v942, %v934
    %v1287 = vpack.c.b16 %v943, %v935
    %v1288 = vpack.c.b16 %v944, %v936
    %v1289 = vpack.c.b16 %v945, %v937
    %v1290 = vpack.c.b16 %v946, %v938
    %v1291 = vpack.c.b16 %v947, %v939
    %v1292 = vpack.c.b16 %v956, %v948
    %v1293 = vpack.c.b16 %v957, %v949
    %v1294 = vpack.c.b16 %v958, %v950
    %v1295 = vpack.c.b16 %v959, %v951
    %v1296 = vpack.c.b16 %v960, %v952
    %v1297 = vpack.c.b16 %v961, %v953
    %v1298 = vpack.c.b16 %v962, %v954
    %v1299 = vpack.c.b16 %v963, %v955
    %v1300 = vpack.c.b16 %v972, %v964
    %v1301 = vpack.c.b16 %v973, %v965
    %v1302 = vpack.c.b16 %v974, %v966
    %v1303 = vpack.c.b16 %v975, %v967
    %v1304 = vpack.c.b16 %v976, %v968
    %v1305 = vpack.c.b16 %v977, %v969
    %v1306 = vpack.c.b16 %v978, %v970
    %v1307 = vpack.c.b16 %v979, %v971
    %v1308 = vpack.c.b16 %v988, %v980
    %v1309 = vpack.c.b16 %v989, %v981
    %v1310 = vpack.c.b16 %v990, %v982
    %v1311 = vpack.c.b16 %v991, %v983
    %v1312 = vpack.c.b16 %v992, %v984
    %v1313 = vpack.c.b16 %v993, %v985
    %v1314 = vpack.c.b16 %v994, %v986
    %v1315 = vpack.c.b16 %v995, %v987
    %v1316 = vpack.c.b16 %v1004, %v996
    %v1317 = vpack.c.b16 %v1005, %v997
    %v1318 = vpack.c.b16 %v1006, %v998
    %v1319 = vpack.c.b16 %v1007, %v999
    %v1320 = vpack.c.b16 %v1008, %v1000
    %v1321 = vpack.c.b16 %v1009, %v1001
    %v1322 = vpack.c.b16 %v1010, %v1002
    %v1323 = vpack.c.b16 %v1011, %v1003
    %v1324 = vpack.c.b16 %v1020, %v1012
    %v1325 = vpack.c.b16 %v1021, %v1013
    %v1326 = vpack.c.b16 %v1022, %v1014
    %v1327 = vpack.c.b16 %v1023, %v1015
    %v1328 = vpack.c.b16 %v1024, %v1016
    %v1329 = vpack.c.b16 %v1025, %v1017
    %v1330 = vpack.c.b16 %v1026, %v1018
    %v1331 = vpack.c.b16 %v1027, %v1019
    %v1332 = vpack.c.b16 %v1036, %v1028
    %v1333 = vpack.c.b16 %v1037, %v1029
    %v1334 = vpack.c.b16 %v1038, %v1030
    %v1335 = vpack.c.b16 %v1039, %v1031
    %v1336 = vpack.c.b16 %v1040, %v1032
    %v1337 = vpack.c.b16 %v1041, %v1033
    %v1338 = vpack.c.b16 %v1042, %v1034
    %v1339 = vpack.c.b16 %v1043, %v1035
    %v1340 = vpack.c.b16 %v1052, %v1044
    %v1341 = vpack.c.b16 %v1053, %v1045
    %v1342 = vpack.c.b16 %v1054, %v1046
    %v1343 = vpack.c.b16 %v1055, %v1047
    %v1344 = vpack.c.b16 %v1056, %v1048
    %v1345 = vpack.c.b16 %v1057, %v1049
    %v1346 = vpack.c.b16 %v1058, %v1050
    %v1347 = vpack.c.b16 %v1059, %v1051
    %v1348 = vpack.c.b16 %v1068, %v1060
    %v1349 = vpack.c.b16 %v1069, %v1061
    %v1350 = vpack.c.b16 %v1070, %v1062
    %v1351 = vpack.c.b16 %v1071, %v1063
    %v1352 = vpack.c.b16 %v1072, %v1064
    %v1353 = vpack.c.b16 %v1073, %v1065
    %v1354 = vpack.c.b16 %v1074, %v1066
    %v1355 = vpack.c.b16 %v1075, %v1067
    %v1356 = vpack.c.b16 %v1084, %v1076
    %v1357 = vpack.c.b16 %v1085, %v1077
    %v1358 = vpack.c.b16 %v1086, %v1078
    %v1359 = vpack.c.b16 %v1087, %v1079
    %v1360 = vpack.c.b16 %v1088, %v1080
    %v1361 = vpack.c.b16 %v1089, %v1081
    %v1362 = vpack.c.b16 %v1090, %v1082
    %v1363 = vpack.c.b16 %v1091, %v1083
    %v1364 = vpack.c.b16 %v1100, %v1092
    %v1365 = vpack.c.b16 %v1101, %v1093
    %v1366 = vpack.c.b16 %v1102, %v1094
    %v1367 = vpack.c.b16 %v1103, %v1095
    %v1368 = vpack.c.b16 %v1104, %v1096
    %v1369 = vpack.c.b16 %v1105, %v1097
    %v1370 = vpack.c.b16 %v1106, %v1098
    %v1371 = vpack.c.b16 %v1107, %v1099
    %v1372 = vpack.c.b16 %v1116, %v1108
    %v1373 = vpack.c.b16 %v1117, %v1109
    %v1374 = vpack.c.b16 %v1118, %v1110
    %v1375 = vpack.c.b16 %v1119, %v1111
    %v1376 = vpack.c.b16 %v1120, %v1112
    %v1377 = vpack.c.b16 %v1121, %v1113
    %v1378 = vpack.c.b16 %v1122, %v1114
    %v1379 = vpack.c.b16 %v1123, %v1115
    %1636 = vmatprep.subr.bf16.mxu0 %v1125
    %1637 = vmatpush1.bf16.msra.mxu0 %v1124
    %1638 = vmatprep.subr.bf16.mxu0 %v1133
    %1639 = vmatpush1.bf16.msra.mxu0 %v1132
    %1640 = vmatprep.subr.bf16.mxu0 %v1141
    %1641 = vmatpush1.bf16.msra.mxu0 %v1140
    %1642 = vmatprep.subr.bf16.mxu0 %v1149
    %1643 = vmatpush1.bf16.msra.mxu0 %v1148
    %1644 = vmatprep.subr.bf16.mxu0 %v1157
    %1645 = vmatpush1.bf16.msra.mxu0 %v1156
    %1646 = vmatprep.subr.bf16.mxu0 %v1165
    %1647 = vmatpush1.bf16.msra.mxu0 %v1164
    %1648 = vmatprep.subr.bf16.mxu0 %v1173
    %1649 = vmatpush1.bf16.msra.mxu0 %v1172
    %1650 = vmatprep.subr.bf16.mxu0 %v1181
    %1651 = vmatpush1.bf16.msra.mxu0 %v1180
    %1652 = vmatprep.subr.bf16.mxu0 %v1189
    %1653 = vmatpush1.bf16.msra.mxu0 %v1188
    %1654 = vmatprep.subr.bf16.mxu0 %v1197
    %1655 = vmatpush1.bf16.msra.mxu0 %v1196
    %1656 = vmatprep.subr.bf16.mxu0 %v1205
    %1657 = vmatpush1.bf16.msra.mxu0 %v1204
    %1658 = vmatprep.subr.bf16.mxu0 %v1213
    %1659 = vmatpush1.bf16.msra.mxu0 %v1212
    %1660 = vmatprep.subr.bf16.mxu0 %v1221
    %1661 = vmatpush1.bf16.msra.mxu0 %v1220
    %1662 = vmatprep.subr.bf16.mxu0 %v1229
    %1663 = vmatpush1.bf16.msra.mxu0 %v1228
    %1664 = vmatprep.subr.bf16.mxu0 %v1237
    %1665 = vmatpush1.bf16.msra.mxu0 %v1236
    %1666 = vmatprep.subr.bf16.mxu0 %v1245
    %1667 = vmatpush1.bf16.msra.mxu0 %v1244
    %1668 = vmatprep.mubr.bf16.mxu0 %v349
    %1669 = vmatmul.mubr.bf16.gmra.mrb[0].mxu0 %v342
    %v1670 = vpop.f32.mrb[0].mxu0
    %v1671 = vadd.f32 %v290, %v1670
    %v1672 = vpop.f32.mrb[0].mxu0
    %v1673 = vadd.f32 %v294, %v1672
    %v1674 = vpop.f32.mrb[0].mxu0
    %v1675 = vpop.f32.mrb[0].mxu0
    %1676 = vdwg.mxu0
    %1677 = vmatprep.subr.bf16.mxu0 %v1253
    %1678 = vmatpush1.bf16.msra.mxu0 %v1252
    %1679 = vmatprep.subr.bf16.mxu0 %v1261
    %1680 = vmatpush1.bf16.msra.mxu0 %v1260
    %1681 = vmatprep.subr.bf16.mxu0 %v1269
    %1682 = vmatpush1.bf16.msra.mxu0 %v1268
    %1683 = vmatprep.subr.bf16.mxu0 %v1277
    %1684 = vmatpush1.bf16.msra.mxu0 %v1276
    %1685 = vmatprep.subr.bf16.mxu0 %v1285
    %1686 = vmatpush1.bf16.msra.mxu0 %v1284
    %1687 = vmatprep.subr.bf16.mxu0 %v1293
    %1688 = vmatpush1.bf16.msra.mxu0 %v1292
    %1689 = vmatprep.subr.bf16.mxu0 %v1301
    %1690 = vmatpush1.bf16.msra.mxu0 %v1300
    %1691 = vmatprep.subr.bf16.mxu0 %v1309
    %1692 = vmatpush1.bf16.msra.mxu0 %v1308
    %1693 = vmatprep.subr.bf16.mxu0 %v1317
    %1694 = vmatpush1.bf16.msra.mxu0 %v1316
    %1695 = vmatprep.subr.bf16.mxu0 %v1325
    %1696 = vmatpush1.bf16.msra.mxu0 %v1324
    %1697 = vmatprep.subr.bf16.mxu0 %v1333
    %1698 = vmatpush1.bf16.msra.mxu0 %v1332
    %1699 = vmatprep.subr.bf16.mxu0 %v1341
    %1700 = vmatpush1.bf16.msra.mxu0 %v1340
    %1701 = vmatprep.subr.bf16.mxu0 %v1349
    %1702 = vmatpush1.bf16.msra.mxu0 %v1348
    %1703 = vmatprep.subr.bf16.mxu0 %v1357
    %1704 = vmatpush1.bf16.msra.mxu0 %v1356
    %1705 = vmatprep.subr.bf16.mxu0 %v1365
    %1706 = vmatpush1.bf16.msra.mxu0 %v1364
    %1707 = vmatprep.subr.bf16.mxu0 %v1373
    %1708 = vmatpush1.bf16.msra.mxu0 %v1372
    %1709 = vmatprep.mubr.bf16.mxu0 %v351
    %1710 = vmatmul.mubr.bf16.gmra.mrb[0].mxu0 %v350
    %v1711 = vpop.f32.mrb[0].mxu0
    %v1712 = vadd.f32 %v1671, %v1711
    %v1713 = vpop.f32.mrb[0].mxu0
    %v1714 = vadd.f32 %v1673, %v1713
    %v1715 = vpop.f32.mrb[0].mxu0
    %v1716 = vpop.f32.mrb[0].mxu0
    %1717 = vdwg.mxu0
    %1718 = vmatprep.subr.bf16.mxu0 %v1127
    %1719 = vmatpush1.bf16.msra.mxu0 %v1126
    %1720 = vmatprep.subr.bf16.mxu0 %v1135
    %1721 = vmatpush1.bf16.msra.mxu0 %v1134
    %1722 = vmatprep.subr.bf16.mxu0 %v1143
    %1723 = vmatpush1.bf16.msra.mxu0 %v1142
    %1724 = vmatprep.subr.bf16.mxu0 %v1151
    %1725 = vmatpush1.bf16.msra.mxu0 %v1150
    %1726 = vmatprep.subr.bf16.mxu0 %v1159
    %1727 = vmatpush1.bf16.msra.mxu0 %v1158
    %1728 = vmatprep.subr.bf16.mxu0 %v1167
    %1729 = vmatpush1.bf16.msra.mxu0 %v1166
    %1730 = vmatprep.subr.bf16.mxu0 %v1175
    %1731 = vmatpush1.bf16.msra.mxu0 %v1174
    %1732 = vmatprep.subr.bf16.mxu0 %v1183
    %1733 = vmatpush1.bf16.msra.mxu0 %v1182
    %1734 = vmatprep.subr.bf16.mxu0 %v1191
    %1735 = vmatpush1.bf16.msra.mxu0 %v1190
    %1736 = vmatprep.subr.bf16.mxu0 %v1199
    %1737 = vmatpush1.bf16.msra.mxu0 %v1198
    %1738 = vmatprep.subr.bf16.mxu0 %v1207
    %1739 = vmatpush1.bf16.msra.mxu0 %v1206
    %1740 = vmatprep.subr.bf16.mxu0 %v1215
    %1741 = vmatpush1.bf16.msra.mxu0 %v1214
    %1742 = vmatprep.subr.bf16.mxu0 %v1223
    %1743 = vmatpush1.bf16.msra.mxu0 %v1222
    %1744 = vmatprep.subr.bf16.mxu0 %v1231
    %1745 = vmatpush1.bf16.msra.mxu0 %v1230
    %1746 = vmatprep.subr.bf16.mxu0 %v1239
    %1747 = vmatpush1.bf16.msra.mxu0 %v1238
    %1748 = vmatprep.subr.bf16.mxu0 %v1247
    %1749 = vmatpush1.bf16.msra.mxu0 %v1246
    %1750 = vmatprep.mubr.bf16.mxu0 %v349
    %1751 = vmatmul.mubr.bf16.gmra.mrb[0].mxu0 %v342
    %v1752 = vpop.f32.mrb[0].mxu0
    %v1753 = vadd.f32 %v298, %v1752
    %v1754 = vpop.f32.mrb[0].mxu0
    %v1755 = vadd.f32 %v302, %v1754
    %v1756 = vpop.f32.mrb[0].mxu0
    %v1757 = vpop.f32.mrb[0].mxu0
    %1758 = vdwg.mxu0
    %1759 = vmatprep.subr.bf16.mxu0 %v1255
    %1760 = vmatpush1.bf16.msra.mxu0 %v1254
    %1761 = vmatprep.subr.bf16.mxu0 %v1263
    %1762 = vmatpush1.bf16.msra.mxu0 %v1262
    %1763 = vmatprep.subr.bf16.mxu0 %v1271
    %1764 = vmatpush1.bf16.msra.mxu0 %v1270
    %1765 = vmatprep.subr.bf16.mxu0 %v1279
    %1766 = vmatpush1.bf16.msra.mxu0 %v1278
    %1767 = vmatprep.subr.bf16.mxu0 %v1287
    %1768 = vmatpush1.bf16.msra.mxu0 %v1286
    %1769 = vmatprep.subr.bf16.mxu0 %v1295
    %1770 = vmatpush1.bf16.msra.mxu0 %v1294
    %1771 = vmatprep.subr.bf16.mxu0 %v1303
    %1772 = vmatpush1.bf16.msra.mxu0 %v1302
    %1773 = vmatprep.subr.bf16.mxu0 %v1311
    %1774 = vmatpush1.bf16.msra.mxu0 %v1310
    %1775 = vmatprep.subr.bf16.mxu0 %v1319
    %1776 = vmatpush1.bf16.msra.mxu0 %v1318
    %1777 = vmatprep.subr.bf16.mxu0 %v1327
    %1778 = vmatpush1.bf16.msra.mxu0 %v1326
    %1779 = vmatprep.subr.bf16.mxu0 %v1335
    %1780 = vmatpush1.bf16.msra.mxu0 %v1334
    %1781 = vmatprep.subr.bf16.mxu0 %v1343
    %1782 = vmatpush1.bf16.msra.mxu0 %v1342
    %1783 = vmatprep.subr.bf16.mxu0 %v1351
    %1784 = vmatpush1.bf16.msra.mxu0 %v1350
    %1785 = vmatprep.subr.bf16.mxu0 %v1359
    %1786 = vmatpush1.bf16.msra.mxu0 %v1358
    %1787 = vmatprep.subr.bf16.mxu0 %v1367
    %1788 = vmatpush1.bf16.msra.mxu0 %v1366
    %1789 = vmatprep.subr.bf16.mxu0 %v1375
    %1790 = vmatpush1.bf16.msra.mxu0 %v1374
    %1791 = vmatprep.mubr.bf16.mxu0 %v351
    %1792 = vmatmul.mubr.bf16.gmra.mrb[0].mxu0 %v350
    %v1793 = vpop.f32.mrb[0].mxu0
    %v1794 = vadd.f32 %v1753, %v1793
    %v1795 = vpop.f32.mrb[0].mxu0
    %v1796 = vadd.f32 %v1755, %v1795
    %v1797 = vpop.f32.mrb[0].mxu0
    %v1798 = vpop.f32.mrb[0].mxu0
    %1799 = vdwg.mxu0
    %1800 = vmatprep.subr.bf16.mxu0 %v1129
    %1801 = vmatpush1.bf16.msra.mxu0 %v1128
    %1802 = vmatprep.subr.bf16.mxu0 %v1137
    %1803 = vmatpush1.bf16.msra.mxu0 %v1136
    %1804 = vmatprep.subr.bf16.mxu0 %v1145
    %1805 = vmatpush1.bf16.msra.mxu0 %v1144
    %1806 = vmatprep.subr.bf16.mxu0 %v1153
    %1807 = vmatpush1.bf16.msra.mxu0 %v1152
    %1808 = vmatprep.subr.bf16.mxu0 %v1161
    %1809 = vmatpush1.bf16.msra.mxu0 %v1160
    %1810 = vmatprep.subr.bf16.mxu0 %v1169
    %1811 = vmatpush1.bf16.msra.mxu0 %v1168
    %1812 = vmatprep.subr.bf16.mxu0 %v1177
    %1813 = vmatpush1.bf16.msra.mxu0 %v1176
    %1814 = vmatprep.subr.bf16.mxu0 %v1185
    %1815 = vmatpush1.bf16.msra.mxu0 %v1184
    %1816 = vmatprep.subr.bf16.mxu0 %v1193
    %1817 = vmatpush1.bf16.msra.mxu0 %v1192
    %1818 = vmatprep.subr.bf16.mxu0 %v1201
    %1819 = vmatpush1.bf16.msra.mxu0 %v1200
    %1820 = vmatprep.subr.bf16.mxu0 %v1209
    %1821 = vmatpush1.bf16.msra.mxu0 %v1208
    %1822 = vmatprep.subr.bf16.mxu0 %v1217
    %1823 = vmatpush1.bf16.msra.mxu0 %v1216
    %1824 = vmatprep.subr.bf16.mxu0 %v1225
    %1825 = vmatpush1.bf16.msra.mxu0 %v1224
    %1826 = vmatprep.subr.bf16.mxu0 %v1233
    %1827 = vmatpush1.bf16.msra.mxu0 %v1232
    %1828 = vmatprep.subr.bf16.mxu0 %v1241
    %1829 = vmatpush1.bf16.msra.mxu0 %v1240
    %1830 = vmatprep.subr.bf16.mxu0 %v1249
    %1831 = vmatpush1.bf16.msra.mxu0 %v1248
    %1832 = vmatprep.mubr.bf16.mxu0 %v349
    %1833 = vmatmul.mubr.bf16.gmra.mrb[0].mxu0 %v342
    %v1834 = vpop.f32.mrb[0].mxu0
    %v1835 = vadd.f32 %v306, %v1834
    %v1836 = vpop.f32.mrb[0].mxu0
    %v1837 = vadd.f32 %v310, %v1836
    %v1838 = vpop.f32.mrb[0].mxu0
    %v1839 = vpop.f32.mrb[0].mxu0
    %1840 = vdwg.mxu0
    %1841 = vmatprep.subr.bf16.mxu0 %v1257
    %1842 = vmatpush1.bf16.msra.mxu0 %v1256
    %1843 = vmatprep.subr.bf16.mxu0 %v1265
    %1844 = vmatpush1.bf16.msra.mxu0 %v1264
    %1845 = vmatprep.subr.bf16.mxu0 %v1273
    %1846 = vmatpush1.bf16.msra.mxu0 %v1272
    %1847 = vmatprep.subr.bf16.mxu0 %v1281
    %1848 = vmatpush1.bf16.msra.mxu0 %v1280
    %1849 = vmatprep.subr.bf16.mxu0 %v1289
    %1850 = vmatpush1.bf16.msra.mxu0 %v1288
    %1851 = vmatprep.subr.bf16.mxu0 %v1297
    %1852 = vmatpush1.bf16.msra.mxu0 %v1296
    %1853 = vmatprep.subr.bf16.mxu0 %v1305
    %1854 = vmatpush1.bf16.msra.mxu0 %v1304
    %1855 = vmatprep.subr.bf16.mxu0 %v1313
    %1856 = vmatpush1.bf16.msra.mxu0 %v1312
    %1857 = vmatprep.subr.bf16.mxu0 %v1321
    %1858 = vmatpush1.bf16.msra.mxu0 %v1320
    %1859 = vmatprep.subr.bf16.mxu0 %v1329
    %1860 = vmatpush1.bf16.msra.mxu0 %v1328
    %1861 = vmatprep.subr.bf16.mxu0 %v1337
    %1862 = vmatpush1.bf16.msra.mxu0 %v1336
    %1863 = vmatprep.subr.bf16.mxu0 %v1345
    %1864 = vmatpush1.bf16.msra.mxu0 %v1344
    %1865 = vmatprep.subr.bf16.mxu0 %v1353
    %1866 = vmatpush1.bf16.msra.mxu0 %v1352
    %1867 = vmatprep.subr.bf16.mxu0 %v1361
    %1868 = vmatpush1.bf16.msra.mxu0 %v1360
    %1869 = vmatprep.subr.bf16.mxu0 %v1369
    %1870 = vmatpush1.bf16.msra.mxu0 %v1368
    %1871 = vmatprep.subr.bf16.mxu0 %v1377
    %1872 = vmatpush1.bf16.msra.mxu0 %v1376
    %1873 = vmatprep.mubr.bf16.mxu0 %v351
    %1874 = vmatmul.mubr.bf16.gmra.mrb[0].mxu0 %v350
    %v1875 = vpop.f32.mrb[0].mxu0
    %v1876 = vadd.f32 %v1835, %v1875
    %v1877 = vpop.f32.mrb[0].mxu0
    %v1878 = vadd.f32 %v1837, %v1877
    %v1879 = vpop.f32.mrb[0].mxu0
    %v1880 = vpop.f32.mrb[0].mxu0
    %1881 = vdwg.mxu0
    %1882 = vmatprep.subr.bf16.mxu0 %v1131
    %1883 = vmatpush1.bf16.msra.mxu0 %v1130
    %1884 = vmatprep.subr.bf16.mxu0 %v1139
    %1885 = vmatpush1.bf16.msra.mxu0 %v1138
    %1886 = vmatprep.subr.bf16.mxu0 %v1147
    %1887 = vmatpush1.bf16.msra.mxu0 %v1146
    %1888 = vmatprep.subr.bf16.mxu0 %v1155
    %1889 = vmatpush1.bf16.msra.mxu0 %v1154
    %1890 = vmatprep.subr.bf16.mxu0 %v1163
    %1891 = vmatpush1.bf16.msra.mxu0 %v1162
    %1892 = vmatprep.subr.bf16.mxu0 %v1171
    %1893 = vmatpush1.bf16.msra.mxu0 %v1170
    %1894 = vmatprep.subr.bf16.mxu0 %v1179
    %1895 = vmatpush1.bf16.msra.mxu0 %v1178
    %1896 = vmatprep.subr.bf16.mxu0 %v1187
    %1897 = vmatpush1.bf16.msra.mxu0 %v1186
    %1898 = vmatprep.subr.bf16.mxu0 %v1195
    %1899 = vmatpush1.bf16.msra.mxu0 %v1194
    %1900 = vmatprep.subr.bf16.mxu0 %v1203
    %1901 = vmatpush1.bf16.msra.mxu0 %v1202
    %1902 = vmatprep.subr.bf16.mxu0 %v1211
    %1903 = vmatpush1.bf16.msra.mxu0 %v1210
    %1904 = vmatprep.subr.bf16.mxu0 %v1219
    %1905 = vmatpush1.bf16.msra.mxu0 %v1218
    %1906 = vmatprep.subr.bf16.mxu0 %v1227
    %1907 = vmatpush1.bf16.msra.mxu0 %v1226
    %1908 = vmatprep.subr.bf16.mxu0 %v1235
    %1909 = vmatpush1.bf16.msra.mxu0 %v1234
    %1910 = vmatprep.subr.bf16.mxu0 %v1243
    %1911 = vmatpush1.bf16.msra.mxu0 %v1242
    %1912 = vmatprep.subr.bf16.mxu0 %v1251
    %1913 = vmatpush1.bf16.msra.mxu0 %v1250
    %1914 = vmatprep.mubr.bf16.mxu0 %v349
    %1915 = vmatmul.mubr.bf16.gmra.mrb[0].mxu0 %v342
    %v1916 = vpop.f32.mrb[0].mxu0
    %v1917 = vadd.f32 %v314, %v1916
    %v1918 = vpop.f32.mrb[0].mxu0
    %v1919 = vadd.f32 %v318, %v1918
    %v1920 = vpop.f32.mrb[0].mxu0
    %v1921 = vpop.f32.mrb[0].mxu0
    %1922 = vdwg.mxu0
    %1923 = vmatprep.subr.bf16.mxu0 %v1259
    %1924 = vmatpush1.bf16.msra.mxu0 %v1258
    %1925 = vmatprep.subr.bf16.mxu0 %v1267
    %1926 = vmatpush1.bf16.msra.mxu0 %v1266
    %1927 = vmatprep.subr.bf16.mxu0 %v1275
    %1928 = vmatpush1.bf16.msra.mxu0 %v1274
    %1929 = vmatprep.subr.bf16.mxu0 %v1283
    %1930 = vmatpush1.bf16.msra.mxu0 %v1282
    %1931 = vmatprep.subr.bf16.mxu0 %v1291
    %1932 = vmatpush1.bf16.msra.mxu0 %v1290
    %1933 = vmatprep.subr.bf16.mxu0 %v1299
    %1934 = vmatpush1.bf16.msra.mxu0 %v1298
    %1935 = vmatprep.subr.bf16.mxu0 %v1307
    %1936 = vmatpush1.bf16.msra.mxu0 %v1306
    %1937 = vmatprep.subr.bf16.mxu0 %v1315
    %1938 = vmatpush1.bf16.msra.mxu0 %v1314
    %1939 = vmatprep.subr.bf16.mxu0 %v1323
    %1940 = vmatpush1.bf16.msra.mxu0 %v1322
    %1941 = vmatprep.subr.bf16.mxu0 %v1331
    %1942 = vmatpush1.bf16.msra.mxu0 %v1330
    %1943 = vmatprep.subr.bf16.mxu0 %v1339
    %1944 = vmatpush1.bf16.msra.mxu0 %v1338
    %1945 = vmatprep.subr.bf16.mxu0 %v1347
    %1946 = vmatpush1.bf16.msra.mxu0 %v1346
    %1947 = vmatprep.subr.bf16.mxu0 %v1355
    %1948 = vmatpush1.bf16.msra.mxu0 %v1354
    %1949 = vmatprep.subr.bf16.mxu0 %v1363
    %1950 = vmatpush1.bf16.msra.mxu0 %v1362
    %1951 = vmatprep.subr.bf16.mxu0 %v1371
    %1952 = vmatpush1.bf16.msra.mxu0 %v1370
    %1953 = vmatprep.subr.bf16.mxu0 %v1379
    %1954 = vmatpush1.bf16.msra.mxu0 %v1378
    %1955 = vmatprep.mubr.bf16.mxu0 %v351
    %1956 = vmatmul.mubr.bf16.gmra.mrb[0].mxu0 %v350
    %v1957 = vpop.f32.mrb[0].mxu0
    %v1958 = vadd.f32 %v1917, %v1957
    %v1959 = vpop.f32.mrb[0].mxu0
    %v1960 = vadd.f32 %v1919, %v1959
    %v1961 = vpop.f32.mrb[0].mxu0
    %v1962 = vpop.f32.mrb[0].mxu0
    %1963 = vdwg.mxu0
    %v1964 = vmax.f32 %v1712, 0.0
    %v1965 = vmax.f32 %v1714, 0.0
    %v1966 = vmax.f32 %v1794, 0.0
    %v1967 = vmax.f32 %v1796, 0.0
    %v1968 = vmax.f32 %v1876, 0.0
    %v1969 = vmax.f32 %v1878, 0.0
    %v1970 = vmax.f32 %v1958, 0.0
    %v1971 = vmax.f32 %v1960, 0.0
    %v1972 = vpack.c.bf16 %v1964, %v1964
    %v1973 = vpack.c.bf16 %v1965, %v1965
    %v1974 = vpack.c.bf16 %v1966, %v1966
    %v1975 = vpack.c.bf16 %v1967, %v1967
    %v1976 = vpack.c.bf16 %v1968, %v1968
    %v1977 = vpack.c.bf16 %v1969, %v1969
    %v1978 = vpack.c.bf16 %v1970, %v1970
    %v1979 = vpack.c.bf16 %v1971, %v1971
    %v1980 = vld [vmem:[%s3] sm:$0xff]
    %v1981 = vld [vmem:[%s3 + $0x8] sm:$0xff]
    %v1982 = vld [vmem:[%s3 + $0x10] sm:$0xff]
    %v1983 = vld [vmem:[%s3 + $0x18] sm:$0xff]
    %v1984 = vld [vmem:[%s3 + $0x20] sm:$0xff]
    %v1985 = vld [vmem:[%s3 + $0x28] sm:$0xff]
    %v1986 = vld [vmem:[%s3 + $0x30] sm:$0xff]
    %v1987 = vld [vmem:[%s3 + $0x38] sm:$0xff]
    %v1988 = vld [vmem:[%s3 + $0x40] sm:$0xff]
    %v1989 = vld [vmem:[%s3 + $0x48] sm:$0xff]
    %v1990 = vld [vmem:[%s3 + $0x50] sm:$0xff]
    %v1991 = vld [vmem:[%s3 + $0x58] sm:$0xff]
    %v1992 = vld [vmem:[%s3 + $0x60] sm:$0xff]
    %v1993 = vld [vmem:[%s3 + $0x68] sm:$0xff]
    %v1994 = vld [vmem:[%s3 + $0x70] sm:$0xff]
    %v1995 = vld [vmem:[%s3 + $0x78] sm:$0xff]
    %v1996 = vld [vmem:[%s3 + $0x80] sm:$0xff]
    %v1997 = vld [vmem:[%s3 + $0x88] sm:$0xff]
    %v1998 = vld [vmem:[%s3 + $0x90] sm:$0xff]
    %v1999 = vld [vmem:[%s3 + $0x98] sm:$0xff]
    %v2000 = vld [vmem:[%s3 + $0xa0] sm:$0xff]
    %v2001 = vld [vmem:[%s3 + $0xa8] sm:$0xff]
    %v2002 = vld [vmem:[%s3 + $0xb0] sm:$0xff]
    %v2003 = vld [vmem:[%s3 + $0xb8] sm:$0xff]
    %v2004 = vld [vmem:[%s3 + $0xc0] sm:$0xff]
    %v2005 = vld [vmem:[%s3 + $0xc8] sm:$0xff]
    %v2006 = vld [vmem:[%s3 + $0xd0] sm:$0xff]
    %v2007 = vld [vmem:[%s3 + $0xd8] sm:$0xff]
    %v2008 = vld [vmem:[%s3 + $0xe0] sm:$0xff]
    %v2009 = vld [vmem:[%s3 + $0xe8] sm:$0xff]
    %v2010 = vld [vmem:[%s3 + $0xf0] sm:$0xff]
    %v2011 = vld [vmem:[%s3 + $0xf8] sm:$0xff]
    %v2012 = vld [vmem:[%s3 + $0x100] sm:$0xff]
    %v2013 = vld [vmem:[%s3 + $0x108] sm:$0xff]
    %v2014 = vld [vmem:[%s3 + $0x110] sm:$0xff]
    %v2015 = vld [vmem:[%s3 + $0x118] sm:$0xff]
    %v2016 = vld [vmem:[%s3 + $0x120] sm:$0xff]
    %v2017 = vld [vmem:[%s3 + $0x128] sm:$0xff]
    %v2018 = vld [vmem:[%s3 + $0x130] sm:$0xff]
    %v2019 = vld [vmem:[%s3 + $0x138] sm:$0xff]
    %v2020 = vld [vmem:[%s3 + $0x140] sm:$0xff]
    %v2021 = vld [vmem:[%s3 + $0x148] sm:$0xff]
    %v2022 = vld [vmem:[%s3 + $0x150] sm:$0xff]
    %v2023 = vld [vmem:[%s3 + $0x158] sm:$0xff]
    %v2024 = vld [vmem:[%s3 + $0x160] sm:$0xff]
    %v2025 = vld [vmem:[%s3 + $0x168] sm:$0xff]
    %v2026 = vld [vmem:[%s3 + $0x170] sm:$0xff]
    %v2027 = vld [vmem:[%s3 + $0x178] sm:$0xff]
    %v2028 = vld [vmem:[%s3 + $0x180] sm:$0xff]
    %v2029 = vld [vmem:[%s3 + $0x188] sm:$0xff]
    %v2030 = vld [vmem:[%s3 + $0x190] sm:$0xff]
    %v2031 = vld [vmem:[%s3 + $0x198] sm:$0xff]
    %v2032 = vld [vmem:[%s3 + $0x1a0] sm:$0xff]
    %v2033 = vld [vmem:[%s3 + $0x1a8] sm:$0xff]
    %v2034 = vld [vmem:[%s3 + $0x1b0] sm:$0xff]
    %v2035 = vld [vmem:[%s3 + $0x1b8] sm:$0xff]
    %v2036 = vld [vmem:[%s3 + $0x1c0] sm:$0xff]
    %v2037 = vld [vmem:[%s3 + $0x1c8] sm:$0xff]
    %v2038 = vld [vmem:[%s3 + $0x1d0] sm:$0xff]
    %v2039 = vld [vmem:[%s3 + $0x1d8] sm:$0xff]
    %v2040 = vld [vmem:[%s3 + $0x1e0] sm:$0xff]
    %v2041 = vld [vmem:[%s3 + $0x1e8] sm:$0xff]
    %v2042 = vld [vmem:[%s3 + $0x1f0] sm:$0xff]
    %v2043 = vld [vmem:[%s3 + $0x1f8] sm:$0xff]
    %v2044 = vld [vmem:[%s3 + $0x200] sm:$0xff]
    %v2045 = vld [vmem:[%s3 + $0x208] sm:$0xff]
    %v2046 = vld [vmem:[%s3 + $0x210] sm:$0xff]
    %v2047 = vld [vmem:[%s3 + $0x218] sm:$0xff]
    %v2048 = vld [vmem:[%s3 + $0x220] sm:$0xff]
    %v2049 = vld [vmem:[%s3 + $0x228] sm:$0xff]
    %v2050 = vld [vmem:[%s3 + $0x230] sm:$0xff]
    %v2051 = vld [vmem:[%s3 + $0x238] sm:$0xff]
    %v2052 = vld [vmem:[%s3 + $0x240] sm:$0xff]
    %v2053 = vld [vmem:[%s3 + $0x248] sm:$0xff]
    %v2054 = vld [vmem:[%s3 + $0x250] sm:$0xff]
    %v2055 = vld [vmem:[%s3 + $0x258] sm:$0xff]
    %v2056 = vld [vmem:[%s3 + $0x260] sm:$0xff]
    %v2057 = vld [vmem:[%s3 + $0x268] sm:$0xff]
    %v2058 = vld [vmem:[%s3 + $0x270] sm:$0xff]
    %v2059 = vld [vmem:[%s3 + $0x278] sm:$0xff]
    %v2060 = vld [vmem:[%s3 + $0x280] sm:$0xff]
    %v2061 = vld [vmem:[%s3 + $0x288] sm:$0xff]
    %v2062 = vld [vmem:[%s3 + $0x290] sm:$0xff]
    %v2063 = vld [vmem:[%s3 + $0x298] sm:$0xff]
    %v2064 = vld [vmem:[%s3 + $0x2a0] sm:$0xff]
    %v2065 = vld [vmem:[%s3 + $0x2a8] sm:$0xff]
    %v2066 = vld [vmem:[%s3 + $0x2b0] sm:$0xff]
    %v2067 = vld [vmem:[%s3 + $0x2b8] sm:$0xff]
    %v2068 = vld [vmem:[%s3 + $0x2c0] sm:$0xff]
    %v2069 = vld [vmem:[%s3 + $0x2c8] sm:$0xff]
    %v2070 = vld [vmem:[%s3 + $0x2d0] sm:$0xff]
    %v2071 = vld [vmem:[%s3 + $0x2d8] sm:$0xff]
    %v2072 = vld [vmem:[%s3 + $0x2e0] sm:$0xff]
    %v2073 = vld [vmem:[%s3 + $0x2e8] sm:$0xff]
    %v2074 = vld [vmem:[%s3 + $0x2f0] sm:$0xff]
    %v2075 = vld [vmem:[%s3 + $0x2f8] sm:$0xff]
    %v2076 = vld [vmem:[%s3 + $0x300] sm:$0xff]
    %v2077 = vld [vmem:[%s3 + $0x308] sm:$0xff]
    %v2078 = vld [vmem:[%s3 + $0x310] sm:$0xff]
    %v2079 = vld [vmem:[%s3 + $0x318] sm:$0xff]
    %v2080 = vld [vmem:[%s3 + $0x320] sm:$0xff]
    %v2081 = vld [vmem:[%s3 + $0x328] sm:$0xff]
    %v2082 = vld [vmem:[%s3 + $0x330] sm:$0xff]
    %v2083 = vld [vmem:[%s3 + $0x338] sm:$0xff]
    %v2084 = vld [vmem:[%s3 + $0x340] sm:$0xff]
    %v2085 = vld [vmem:[%s3 + $0x348] sm:$0xff]
    %v2086 = vld [vmem:[%s3 + $0x350] sm:$0xff]
    %v2087 = vld [vmem:[%s3 + $0x358] sm:$0xff]
    %v2088 = vld [vmem:[%s3 + $0x360] sm:$0xff]
    %v2089 = vld [vmem:[%s3 + $0x368] sm:$0xff]
    %v2090 = vld [vmem:[%s3 + $0x370] sm:$0xff]
    %v2091 = vld [vmem:[%s3 + $0x378] sm:$0xff]
    %v2092 = vld [vmem:[%s3 + $0x380] sm:$0xff]
    %v2093 = vld [vmem:[%s3 + $0x388] sm:$0xff]
    %v2094 = vld [vmem:[%s3 + $0x390] sm:$0xff]
    %v2095 = vld [vmem:[%s3 + $0x398] sm:$0xff]
    %v2096 = vld [vmem:[%s3 + $0x3a0] sm:$0xff]
    %v2097 = vld [vmem:[%s3 + $0x3a8] sm:$0xff]
    %v2098 = vld [vmem:[%s3 + $0x3b0] sm:$0xff]
    %v2099 = vld [vmem:[%s3 + $0x3b8] sm:$0xff]
    %v2100 = vld [vmem:[%s3 + $0x3c0] sm:$0xff]
    %v2101 = vld [vmem:[%s3 + $0x3c8] sm:$0xff]
    %v2102 = vld [vmem:[%s3 + $0x3d0] sm:$0xff]
    %v2103 = vld [vmem:[%s3 + $0x3d8] sm:$0xff]
    %v2104 = vld [vmem:[%s3 + $0x3e0] sm:$0xff]
    %v2105 = vld [vmem:[%s3 + $0x3e8] sm:$0xff]
    %v2106 = vld [vmem:[%s3 + $0x3f0] sm:$0xff]
    %v2107 = vld [vmem:[%s3 + $0x3f8] sm:$0xff]
    %v2108 = vld [vmem:[%s3 + $0x400] sm:$0xff]
    %v2109 = vld [vmem:[%s3 + $0x408] sm:$0xff]
    %v2110 = vld [vmem:[%s3 + $0x410] sm:$0xff]
    %v2111 = vld [vmem:[%s3 + $0x418] sm:$0xff]
    %v2112 = vld [vmem:[%s3 + $0x420] sm:$0xff]
    %v2113 = vld [vmem:[%s3 + $0x428] sm:$0xff]
    %v2114 = vld [vmem:[%s3 + $0x430] sm:$0xff]
    %v2115 = vld [vmem:[%s3 + $0x438] sm:$0xff]
    %v2116 = vld [vmem:[%s3 + $0x440] sm:$0xff]
    %v2117 = vld [vmem:[%s3 + $0x448] sm:$0xff]
    %v2118 = vld [vmem:[%s3 + $0x450] sm:$0xff]
    %v2119 = vld [vmem:[%s3 + $0x458] sm:$0xff]
    %v2120 = vld [vmem:[%s3 + $0x460] sm:$0xff]
    %v2121 = vld [vmem:[%s3 + $0x468] sm:$0xff]
    %v2122 = vld [vmem:[%s3 + $0x470] sm:$0xff]
    %v2123 = vld [vmem:[%s3 + $0x478] sm:$0xff]
    %v2124 = vld [vmem:[%s3 + $0x480] sm:$0xff]
    %v2125 = vld [vmem:[%s3 + $0x488] sm:$0xff]
    %v2126 = vld [vmem:[%s3 + $0x490] sm:$0xff]
    %v2127 = vld [vmem:[%s3 + $0x498] sm:$0xff]
    %v2128 = vld [vmem:[%s3 + $0x4a0] sm:$0xff]
    %v2129 = vld [vmem:[%s3 + $0x4a8] sm:$0xff]
    %v2130 = vld [vmem:[%s3 + $0x4b0] sm:$0xff]
    %v2131 = vld [vmem:[%s3 + $0x4b8] sm:$0xff]
    %v2132 = vld [vmem:[%s3 + $0x4c0] sm:$0xff]
    %v2133 = vld [vmem:[%s3 + $0x4c8] sm:$0xff]
    %v2134 = vld [vmem:[%s3 + $0x4d0] sm:$0xff]
    %v2135 = vld [vmem:[%s3 + $0x4d8] sm:$0xff]
    %v2136 = vld [vmem:[%s3 + $0x4e0] sm:$0xff]
    %v2137 = vld [vmem:[%s3 + $0x4e8] sm:$0xff]
    %v2138 = vld [vmem:[%s3 + $0x4f0] sm:$0xff]
    %v2139 = vld [vmem:[%s3 + $0x4f8] sm:$0xff]
    %v2140 = vld [vmem:[%s3 + $0x500] sm:$0xff]
    %v2141 = vld [vmem:[%s3 + $0x508] sm:$0xff]
    %v2142 = vld [vmem:[%s3 + $0x510] sm:$0xff]
    %v2143 = vld [vmem:[%s3 + $0x518] sm:$0xff]
    %v2144 = vld [vmem:[%s3 + $0x520] sm:$0xff]
    %v2145 = vld [vmem:[%s3 + $0x528] sm:$0xff]
    %v2146 = vld [vmem:[%s3 + $0x530] sm:$0xff]
    %v2147 = vld [vmem:[%s3 + $0x538] sm:$0xff]
    %v2148 = vld [vmem:[%s3 + $0x540] sm:$0xff]
    %v2149 = vld [vmem:[%s3 + $0x548] sm:$0xff]
    %v2150 = vld [vmem:[%s3 + $0x550] sm:$0xff]
    %v2151 = vld [vmem:[%s3 + $0x558] sm:$0xff]
    %v2152 = vld [vmem:[%s3 + $0x560] sm:$0xff]
    %v2153 = vld [vmem:[%s3 + $0x568] sm:$0xff]
    %v2154 = vld [vmem:[%s3 + $0x570] sm:$0xff]
    %v2155 = vld [vmem:[%s3 + $0x578] sm:$0xff]
    %v2156 = vld [vmem:[%s3 + $0x580] sm:$0xff]
    %v2157 = vld [vmem:[%s3 + $0x588] sm:$0xff]
    %v2158 = vld [vmem:[%s3 + $0x590] sm:$0xff]
    %v2159 = vld [vmem:[%s3 + $0x598] sm:$0xff]
    %v2160 = vld [vmem:[%s3 + $0x5a0] sm:$0xff]
    %v2161 = vld [vmem:[%s3 + $0x5a8] sm:$0xff]
    %v2162 = vld [vmem:[%s3 + $0x5b0] sm:$0xff]
    %v2163 = vld [vmem:[%s3 + $0x5b8] sm:$0xff]
    %v2164 = vld [vmem:[%s3 + $0x5c0] sm:$0xff]
    %v2165 = vld [vmem:[%s3 + $0x5c8] sm:$0xff]
    %v2166 = vld [vmem:[%s3 + $0x5d0] sm:$0xff]
    %v2167 = vld [vmem:[%s3 + $0x5d8] sm:$0xff]
    %v2168 = vld [vmem:[%s3 + $0x5e0] sm:$0xff]
    %v2169 = vld [vmem:[%s3 + $0x5e8] sm:$0xff]
    %v2170 = vld [vmem:[%s3 + $0x5f0] sm:$0xff]
    %v2171 = vld [vmem:[%s3 + $0x5f8] sm:$0xff]
    %v2172 = vld [vmem:[%s3 + $0x600] sm:$0xff]
    %v2173 = vld [vmem:[%s3 + $0x608] sm:$0xff]
    %v2174 = vld [vmem:[%s3 + $0x610] sm:$0xff]
    %v2175 = vld [vmem:[%s3 + $0x618] sm:$0xff]
    %v2176 = vld [vmem:[%s3 + $0x620] sm:$0xff]
    %v2177 = vld [vmem:[%s3 + $0x628] sm:$0xff]
    %v2178 = vld [vmem:[%s3 + $0x630] sm:$0xff]
    %v2179 = vld [vmem:[%s3 + $0x638] sm:$0xff]
    %v2180 = vld [vmem:[%s3 + $0x640] sm:$0xff]
    %v2181 = vld [vmem:[%s3 + $0x648] sm:$0xff]
    %v2182 = vld [vmem:[%s3 + $0x650] sm:$0xff]
    %v2183 = vld [vmem:[%s3 + $0x658] sm:$0xff]
    %v2184 = vld [vmem:[%s3 + $0x660] sm:$0xff]
    %v2185 = vld [vmem:[%s3 + $0x668] sm:$0xff]
    %v2186 = vld [vmem:[%s3 + $0x670] sm:$0xff]
    %v2187 = vld [vmem:[%s3 + $0x678] sm:$0xff]
    %v2188 = vld [vmem:[%s3 + $0x680] sm:$0xff]
    %v2189 = vld [vmem:[%s3 + $0x688] sm:$0xff]
    %v2190 = vld [vmem:[%s3 + $0x690] sm:$0xff]
    %v2191 = vld [vmem:[%s3 + $0x698] sm:$0xff]
    %v2192 = vld [vmem:[%s3 + $0x6a0] sm:$0xff]
    %v2193 = vld [vmem:[%s3 + $0x6a8] sm:$0xff]
    %v2194 = vld [vmem:[%s3 + $0x6b0] sm:$0xff]
    %v2195 = vld [vmem:[%s3 + $0x6b8] sm:$0xff]
    %v2196 = vld [vmem:[%s3 + $0x6c0] sm:$0xff]
    %v2197 = vld [vmem:[%s3 + $0x6c8] sm:$0xff]
    %v2198 = vld [vmem:[%s3 + $0x6d0] sm:$0xff]
    %v2199 = vld [vmem:[%s3 + $0x6d8] sm:$0xff]
    %v2200 = vld [vmem:[%s3 + $0x6e0] sm:$0xff]
    %v2201 = vld [vmem:[%s3 + $0x6e8] sm:$0xff]
    %v2202 = vld [vmem:[%s3 + $0x6f0] sm:$0xff]
    %v2203 = vld [vmem:[%s3 + $0x6f8] sm:$0xff]
    %v2204 = vld [vmem:[%s3 + $0x700] sm:$0xff]
    %v2205 = vld [vmem:[%s3 + $0x708] sm:$0xff]
    %v2206 = vld [vmem:[%s3 + $0x710] sm:$0xff]
    %v2207 = vld [vmem:[%s3 + $0x718] sm:$0xff]
    %v2208 = vld [vmem:[%s3 + $0x720] sm:$0xff]
    %v2209 = vld [vmem:[%s3 + $0x728] sm:$0xff]
    %v2210 = vld [vmem:[%s3 + $0x730] sm:$0xff]
    %v2211 = vld [vmem:[%s3 + $0x738] sm:$0xff]
    %v2212 = vld [vmem:[%s3 + $0x740] sm:$0xff]
    %v2213 = vld [vmem:[%s3 + $0x748] sm:$0xff]
    %v2214 = vld [vmem:[%s3 + $0x750] sm:$0xff]
    %v2215 = vld [vmem:[%s3 + $0x758] sm:$0xff]
    %v2216 = vld [vmem:[%s3 + $0x760] sm:$0xff]
    %v2217 = vld [vmem:[%s3 + $0x768] sm:$0xff]
    %v2218 = vld [vmem:[%s3 + $0x770] sm:$0xff]
    %v2219 = vld [vmem:[%s3 + $0x778] sm:$0xff]
    %v2220 = vld [vmem:[%s3 + $0x780] sm:$0xff]
    %v2221 = vld [vmem:[%s3 + $0x788] sm:$0xff]
    %v2222 = vld [vmem:[%s3 + $0x790] sm:$0xff]
    %v2223 = vld [vmem:[%s3 + $0x798] sm:$0xff]
    %v2224 = vld [vmem:[%s3 + $0x7a0] sm:$0xff]
    %v2225 = vld [vmem:[%s3 + $0x7a8] sm:$0xff]
    %v2226 = vld [vmem:[%s3 + $0x7b0] sm:$0xff]
    %v2227 = vld [vmem:[%s3 + $0x7b8] sm:$0xff]
    %v2228 = vld [vmem:[%s3 + $0x7c0] sm:$0xff]
    %v2229 = vld [vmem:[%s3 + $0x7c8] sm:$0xff]
    %v2230 = vld [vmem:[%s3 + $0x7d0] sm:$0xff]
    %v2231 = vld [vmem:[%s3 + $0x7d8] sm:$0xff]
    %v2232 = vld [vmem:[%s3 + $0x7e0] sm:$0xff]
    %v2233 = vld [vmem:[%s3 + $0x7e8] sm:$0xff]
    %v2234 = vld [vmem:[%s3 + $0x7f0] sm:$0xff]
    %v2235 = vld [vmem:[%s3 + $0x7f8] sm:$0xff]
    %v2236 = vld [vmem:[%s3 + $0x800] sm:$0xff]
    %v2237 = vld [vmem:[%s3 + $0x808] sm:$0xff]
    %v2238 = vld [vmem:[%s3 + $0x810] sm:$0xff]
    %v2239 = vld [vmem:[%s3 + $0x818] sm:$0xff]
    %v2240 = vld [vmem:[%s3 + $0x820] sm:$0xff]
    %v2241 = vld [vmem:[%s3 + $0x828] sm:$0xff]
    %v2242 = vld [vmem:[%s3 + $0x830] sm:$0xff]
    %v2243 = vld [vmem:[%s3 + $0x838] sm:$0xff]
    %v2244 = vld [vmem:[%s3 + $0x840] sm:$0xff]
    %v2245 = vld [vmem:[%s3 + $0x848] sm:$0xff]
    %v2246 = vld [vmem:[%s3 + $0x850] sm:$0xff]
    %v2247 = vld [vmem:[%s3 + $0x858] sm:$0xff]
    %v2248 = vld [vmem:[%s3 + $0x860] sm:$0xff]
    %v2249 = vld [vmem:[%s3 + $0x868] sm:$0xff]
    %v2250 = vld [vmem:[%s3 + $0x870] sm:$0xff]
    %v2251 = vld [vmem:[%s3 + $0x878] sm:$0xff]
    %v2252 = vld [vmem:[%s3 + $0x880] sm:$0xff]
    %v2253 = vld [vmem:[%s3 + $0x888] sm:$0xff]
    %v2254 = vld [vmem:[%s3 + $0x890] sm:$0xff]
    %v2255 = vld [vmem:[%s3 + $0x898] sm:$0xff]
    %v2256 = vld [vmem:[%s3 + $0x8a0] sm:$0xff]
    %v2257 = vld [vmem:[%s3 + $0x8a8] sm:$0xff]
    %v2258 = vld [vmem:[%s3 + $0x8b0] sm:$0xff]
    %v2259 = vld [vmem:[%s3 + $0x8b8] sm:$0xff]
    %v2260 = vld [vmem:[%s3 + $0x8c0] sm:$0xff]
    %v2261 = vld [vmem:[%s3 + $0x8c8] sm:$0xff]
    %v2262 = vld [vmem:[%s3 + $0x8d0] sm:$0xff]
    %v2263 = vld [vmem:[%s3 + $0x8d8] sm:$0xff]
    %v2264 = vld [vmem:[%s3 + $0x8e0] sm:$0xff]
    %v2265 = vld [vmem:[%s3 + $0x8e8] sm:$0xff]
    %v2266 = vld [vmem:[%s3 + $0x8f0] sm:$0xff]
    %v2267 = vld [vmem:[%s3 + $0x8f8] sm:$0xff]
    %v2268 = vld [vmem:[%s3 + $0x900] sm:$0xff]
    %v2269 = vld [vmem:[%s3 + $0x908] sm:$0xff]
    %v2270 = vld [vmem:[%s3 + $0x910] sm:$0xff]
    %v2271 = vld [vmem:[%s3 + $0x918] sm:$0xff]
    %v2272 = vld [vmem:[%s3 + $0x920] sm:$0xff]
    %v2273 = vld [vmem:[%s3 + $0x928] sm:$0xff]
    %v2274 = vld [vmem:[%s3 + $0x930] sm:$0xff]
    %v2275 = vld [vmem:[%s3 + $0x938] sm:$0xff]
    %v2276 = vld [vmem:[%s3 + $0x940] sm:$0xff]
    %v2277 = vld [vmem:[%s3 + $0x948] sm:$0xff]
    %v2278 = vld [vmem:[%s3 + $0x950] sm:$0xff]
    %v2279 = vld [vmem:[%s3 + $0x958] sm:$0xff]
    %v2280 = vld [vmem:[%s3 + $0x960] sm:$0xff]
    %v2281 = vld [vmem:[%s3 + $0x968] sm:$0xff]
    %v2282 = vld [vmem:[%s3 + $0x970] sm:$0xff]
    %v2283 = vld [vmem:[%s3 + $0x978] sm:$0xff]
    %v2284 = vld [vmem:[%s3 + $0x980] sm:$0xff]
    %v2285 = vld [vmem:[%s3 + $0x988] sm:$0xff]
    %v2286 = vld [vmem:[%s3 + $0x990] sm:$0xff]
    %v2287 = vld [vmem:[%s3 + $0x998] sm:$0xff]
    %v2288 = vld [vmem:[%s3 + $0x9a0] sm:$0xff]
    %v2289 = vld [vmem:[%s3 + $0x9a8] sm:$0xff]
    %v2290 = vld [vmem:[%s3 + $0x9b0] sm:$0xff]
    %v2291 = vld [vmem:[%s3 + $0x9b8] sm:$0xff]
    %v2292 = vld [vmem:[%s3 + $0x9c0] sm:$0xff]
    %v2293 = vld [vmem:[%s3 + $0x9c8] sm:$0xff]
    %v2294 = vld [vmem:[%s3 + $0x9d0] sm:$0xff]
    %v2295 = vld [vmem:[%s3 + $0x9d8] sm:$0xff]
    %v2296 = vld [vmem:[%s3 + $0x9e0] sm:$0xff]
    %v2297 = vld [vmem:[%s3 + $0x9e8] sm:$0xff]
    %v2298 = vld [vmem:[%s3 + $0x9f0] sm:$0xff]
    %v2299 = vld [vmem:[%s3 + $0x9f8] sm:$0xff]
    %v2300 = vld [vmem:[%s3 + $0xa00] sm:$0xff]
    %v2301 = vld [vmem:[%s3 + $0xa08] sm:$0xff]
    %v2302 = vld [vmem:[%s3 + $0xa10] sm:$0xff]
    %v2303 = vld [vmem:[%s3 + $0xa18] sm:$0xff]
    %v2304 = vld [vmem:[%s3 + $0xa20] sm:$0xff]
    %v2305 = vld [vmem:[%s3 + $0xa28] sm:$0xff]
    %v2306 = vld [vmem:[%s3 + $0xa30] sm:$0xff]
    %v2307 = vld [vmem:[%s3 + $0xa38] sm:$0xff]
    %v2308 = vld [vmem:[%s3 + $0xa40] sm:$0xff]
    %v2309 = vld [vmem:[%s3 + $0xa48] sm:$0xff]
    %v2310 = vld [vmem:[%s3 + $0xa50] sm:$0xff]
    %v2311 = vld [vmem:[%s3 + $0xa58] sm:$0xff]
    %v2312 = vld [vmem:[%s3 + $0xa60] sm:$0xff]
    %v2313 = vld [vmem:[%s3 + $0xa68] sm:$0xff]
    %v2314 = vld [vmem:[%s3 + $0xa70] sm:$0xff]
    %v2315 = vld [vmem:[%s3 + $0xa78] sm:$0xff]
    %v2316 = vld [vmem:[%s3 + $0xa80] sm:$0xff]
    %v2317 = vld [vmem:[%s3 + $0xa88] sm:$0xff]
    %v2318 = vld [vmem:[%s3 + $0xa90] sm:$0xff]
    %v2319 = vld [vmem:[%s3 + $0xa98] sm:$0xff]
    %v2320 = vld [vmem:[%s3 + $0xaa0] sm:$0xff]
    %v2321 = vld [vmem:[%s3 + $0xaa8] sm:$0xff]
    %v2322 = vld [vmem:[%s3 + $0xab0] sm:$0xff]
    %v2323 = vld [vmem:[%s3 + $0xab8] sm:$0xff]
    %v2324 = vld [vmem:[%s3 + $0xac0] sm:$0xff]
    %v2325 = vld [vmem:[%s3 + $0xac8] sm:$0xff]
    %v2326 = vld [vmem:[%s3 + $0xad0] sm:$0xff]
    %v2327 = vld [vmem:[%s3 + $0xad8] sm:$0xff]
    %v2328 = vld [vmem:[%s3 + $0xae0] sm:$0xff]
    %v2329 = vld [vmem:[%s3 + $0xae8] sm:$0xff]
    %v2330 = vld [vmem:[%s3 + $0xaf0] sm:$0xff]
    %v2331 = vld [vmem:[%s3 + $0xaf8] sm:$0xff]
    %v2332 = vld [vmem:[%s3 + $0xb00] sm:$0xff]
    %v2333 = vld [vmem:[%s3 + $0xb08] sm:$0xff]
    %v2334 = vld [vmem:[%s3 + $0xb10] sm:$0xff]
    %v2335 = vld [vmem:[%s3 + $0xb18] sm:$0xff]
    %v2336 = vld [vmem:[%s3 + $0xb20] sm:$0xff]
    %v2337 = vld [vmem:[%s3 + $0xb28] sm:$0xff]
    %v2338 = vld [vmem:[%s3 + $0xb30] sm:$0xff]
    %v2339 = vld [vmem:[%s3 + $0xb38] sm:$0xff]
    %v2340 = vld [vmem:[%s3 + $0xb40] sm:$0xff]
    %v2341 = vld [vmem:[%s3 + $0xb48] sm:$0xff]
    %v2342 = vld [vmem:[%s3 + $0xb50] sm:$0xff]
    %v2343 = vld [vmem:[%s3 + $0xb58] sm:$0xff]
    %v2344 = vld [vmem:[%s3 + $0xb60] sm:$0xff]
    %v2345 = vld [vmem:[%s3 + $0xb68] sm:$0xff]
    %v2346 = vld [vmem:[%s3 + $0xb70] sm:$0xff]
    %v2347 = vld [vmem:[%s3 + $0xb78] sm:$0xff]
    %v2348 = vld [vmem:[%s3 + $0xb80] sm:$0xff]
    %v2349 = vld [vmem:[%s3 + $0xb88] sm:$0xff]
    %v2350 = vld [vmem:[%s3 + $0xb90] sm:$0xff]
    %v2351 = vld [vmem:[%s3 + $0xb98] sm:$0xff]
    %v2352 = vld [vmem:[%s3 + $0xba0] sm:$0xff]
    %v2353 = vld [vmem:[%s3 + $0xba8] sm:$0xff]
    %v2354 = vld [vmem:[%s3 + $0xbb0] sm:$0xff]
    %v2355 = vld [vmem:[%s3 + $0xbb8] sm:$0xff]
    %v2356 = vld [vmem:[%s3 + $0xbc0] sm:$0xff]
    %v2357 = vld [vmem:[%s3 + $0xbc8] sm:$0xff]
    %v2358 = vld [vmem:[%s3 + $0xbd0] sm:$0xff]
    %v2359 = vld [vmem:[%s3 + $0xbd8] sm:$0xff]
    %v2360 = vld [vmem:[%s3 + $0xbe0] sm:$0xff]
    %v2361 = vld [vmem:[%s3 + $0xbe8] sm:$0xff]
    %v2362 = vld [vmem:[%s3 + $0xbf0] sm:$0xff]
    %v2363 = vld [vmem:[%s3 + $0xbf8] sm:$0xff]
    %v2364 = vld [vmem:[%s3 + $0xc00] sm:$0xff]
    %v2365 = vld [vmem:[%s3 + $0xc08] sm:$0xff]
    %v2366 = vld [vmem:[%s3 + $0xc10] sm:$0xff]
    %v2367 = vld [vmem:[%s3 + $0xc18] sm:$0xff]
    %v2368 = vld [vmem:[%s3 + $0xc20] sm:$0xff]
    %v2369 = vld [vmem:[%s3 + $0xc28] sm:$0xff]
    %v2370 = vld [vmem:[%s3 + $0xc30] sm:$0xff]
    %v2371 = vld [vmem:[%s3 + $0xc38] sm:$0xff]
    %v2372 = vld [vmem:[%s3 + $0xc40] sm:$0xff]
    %v2373 = vld [vmem:[%s3 + $0xc48] sm:$0xff]
    %v2374 = vld [vmem:[%s3 + $0xc50] sm:$0xff]
    %v2375 = vld [vmem:[%s3 + $0xc58] sm:$0xff]
    %v2376 = vld [vmem:[%s3 + $0xc60] sm:$0xff]
    %v2377 = vld [vmem:[%s3 + $0xc68] sm:$0xff]
    %v2378 = vld [vmem:[%s3 + $0xc70] sm:$0xff]
    %v2379 = vld [vmem:[%s3 + $0xc78] sm:$0xff]
    %v2380 = vld [vmem:[%s3 + $0xc80] sm:$0xff]
    %v2381 = vld [vmem:[%s3 + $0xc88] sm:$0xff]
    %v2382 = vld [vmem:[%s3 + $0xc90] sm:$0xff]
    %v2383 = vld [vmem:[%s3 + $0xc98] sm:$0xff]
    %v2384 = vld [vmem:[%s3 + $0xca0] sm:$0xff]
    %v2385 = vld [vmem:[%s3 + $0xca8] sm:$0xff]
    %v2386 = vld [vmem:[%s3 + $0xcb0] sm:$0xff]
    %v2387 = vld [vmem:[%s3 + $0xcb8] sm:$0xff]
    %v2388 = vld [vmem:[%s3 + $0xcc0] sm:$0xff]
    %v2389 = vld [vmem:[%s3 + $0xcc8] sm:$0xff]
    %v2390 = vld [vmem:[%s3 + $0xcd0] sm:$0xff]
    %v2391 = vld [vmem:[%s3 + $0xcd8] sm:$0xff]
    %v2392 = vld [vmem:[%s3 + $0xce0] sm:$0xff]
    %v2393 = vld [vmem:[%s3 + $0xce8] sm:$0xff]
    %v2394 = vld [vmem:[%s3 + $0xcf0] sm:$0xff]
    %v2395 = vld [vmem:[%s3 + $0xcf8] sm:$0xff]
    %v2396 = vld [vmem:[%s3 + $0xd00] sm:$0xff]
    %v2397 = vld [vmem:[%s3 + $0xd08] sm:$0xff]
    %v2398 = vld [vmem:[%s3 + $0xd10] sm:$0xff]
    %v2399 = vld [vmem:[%s3 + $0xd18] sm:$0xff]
    %v2400 = vld [vmem:[%s3 + $0xd20] sm:$0xff]
    %v2401 = vld [vmem:[%s3 + $0xd28] sm:$0xff]
    %v2402 = vld [vmem:[%s3 + $0xd30] sm:$0xff]
    %v2403 = vld [vmem:[%s3 + $0xd38] sm:$0xff]
    %v2404 = vld [vmem:[%s3 + $0xd40] sm:$0xff]
    %v2405 = vld [vmem:[%s3 + $0xd48] sm:$0xff]
    %v2406 = vld [vmem:[%s3 + $0xd50] sm:$0xff]
    %v2407 = vld [vmem:[%s3 + $0xd58] sm:$0xff]
    %v2408 = vld [vmem:[%s3 + $0xd60] sm:$0xff]
    %v2409 = vld [vmem:[%s3 + $0xd68] sm:$0xff]
    %v2410 = vld [vmem:[%s3 + $0xd70] sm:$0xff]
    %v2411 = vld [vmem:[%s3 + $0xd78] sm:$0xff]
    %v2412 = vld [vmem:[%s3 + $0xd80] sm:$0xff]
    %v2413 = vld [vmem:[%s3 + $0xd88] sm:$0xff]
    %v2414 = vld [vmem:[%s3 + $0xd90] sm:$0xff]
    %v2415 = vld [vmem:[%s3 + $0xd98] sm:$0xff]
    %v2416 = vld [vmem:[%s3 + $0xda0] sm:$0xff]
    %v2417 = vld [vmem:[%s3 + $0xda8] sm:$0xff]
    %v2418 = vld [vmem:[%s3 + $0xdb0] sm:$0xff]
    %v2419 = vld [vmem:[%s3 + $0xdb8] sm:$0xff]
    %v2420 = vld [vmem:[%s3 + $0xdc0] sm:$0xff]
    %v2421 = vld [vmem:[%s3 + $0xdc8] sm:$0xff]
    %v2422 = vld [vmem:[%s3 + $0xdd0] sm:$0xff]
    %v2423 = vld [vmem:[%s3 + $0xdd8] sm:$0xff]
    %v2424 = vld [vmem:[%s3 + $0xde0] sm:$0xff]
    %v2425 = vld [vmem:[%s3 + $0xde8] sm:$0xff]
    %v2426 = vld [vmem:[%s3 + $0xdf0] sm:$0xff]
    %v2427 = vld [vmem:[%s3 + $0xdf8] sm:$0xff]
    %v2428 = vld [vmem:[%s3 + $0xe00] sm:$0xff]
    %v2429 = vld [vmem:[%s3 + $0xe08] sm:$0xff]
    %v2430 = vld [vmem:[%s3 + $0xe10] sm:$0xff]
    %v2431 = vld [vmem:[%s3 + $0xe18] sm:$0xff]
    %v2432 = vld [vmem:[%s3 + $0xe20] sm:$0xff]
    %v2433 = vld [vmem:[%s3 + $0xe28] sm:$0xff]
    %v2434 = vld [vmem:[%s3 + $0xe30] sm:$0xff]
    %v2435 = vld [vmem:[%s3 + $0xe38] sm:$0xff]
    %v2436 = vld [vmem:[%s3 + $0xe40] sm:$0xff]
    %v2437 = vld [vmem:[%s3 + $0xe48] sm:$0xff]
    %v2438 = vld [vmem:[%s3 + $0xe50] sm:$0xff]
    %v2439 = vld [vmem:[%s3 + $0xe58] sm:$0xff]
    %v2440 = vld [vmem:[%s3 + $0xe60] sm:$0xff]
    %v2441 = vld [vmem:[%s3 + $0xe68] sm:$0xff]
    %v2442 = vld [vmem:[%s3 + $0xe70] sm:$0xff]
    %v2443 = vld [vmem:[%s3 + $0xe78] sm:$0xff]
    %v2444 = vld [vmem:[%s3 + $0xe80] sm:$0xff]
    %v2445 = vld [vmem:[%s3 + $0xe88] sm:$0xff]
    %v2446 = vld [vmem:[%s3 + $0xe90] sm:$0xff]
    %v2447 = vld [vmem:[%s3 + $0xe98] sm:$0xff]
    %v2448 = vld [vmem:[%s3 + $0xea0] sm:$0xff]
    %v2449 = vld [vmem:[%s3 + $0xea8] sm:$0xff]
    %v2450 = vld [vmem:[%s3 + $0xeb0] sm:$0xff]
    %v2451 = vld [vmem:[%s3 + $0xeb8] sm:$0xff]
    %v2452 = vld [vmem:[%s3 + $0xec0] sm:$0xff]
    %v2453 = vld [vmem:[%s3 + $0xec8] sm:$0xff]
    %v2454 = vld [vmem:[%s3 + $0xed0] sm:$0xff]
    %v2455 = vld [vmem:[%s3 + $0xed8] sm:$0xff]
    %v2456 = vld [vmem:[%s3 + $0xee0] sm:$0xff]
    %v2457 = vld [vmem:[%s3 + $0xee8] sm:$0xff]
    %v2458 = vld [vmem:[%s3 + $0xef0] sm:$0xff]
    %v2459 = vld [vmem:[%s3 + $0xef8] sm:$0xff]
    %v2460 = vld [vmem:[%s3 + $0xf00] sm:$0xff]
    %v2461 = vld [vmem:[%s3 + $0xf08] sm:$0xff]
    %v2462 = vld [vmem:[%s3 + $0xf10] sm:$0xff]
    %v2463 = vld [vmem:[%s3 + $0xf18] sm:$0xff]
    %v2464 = vld [vmem:[%s3 + $0xf20] sm:$0xff]
    %v2465 = vld [vmem:[%s3 + $0xf28] sm:$0xff]
    %v2466 = vld [vmem:[%s3 + $0xf30] sm:$0xff]
    %v2467 = vld [vmem:[%s3 + $0xf38] sm:$0xff]
    %v2468 = vld [vmem:[%s3 + $0xf40] sm:$0xff]
    %v2469 = vld [vmem:[%s3 + $0xf48] sm:$0xff]
    %v2470 = vld [vmem:[%s3 + $0xf50] sm:$0xff]
    %v2471 = vld [vmem:[%s3 + $0xf58] sm:$0xff]
    %v2472 = vld [vmem:[%s3 + $0xf60] sm:$0xff]
    %v2473 = vld [vmem:[%s3 + $0xf68] sm:$0xff]
    %v2474 = vld [vmem:[%s3 + $0xf70] sm:$0xff]
    %v2475 = vld [vmem:[%s3 + $0xf78] sm:$0xff]
    %v2476 = vld [vmem:[%s3 + $0xf80] sm:$0xff]
    %v2477 = vld [vmem:[%s3 + $0xf88] sm:$0xff]
    %v2478 = vld [vmem:[%s3 + $0xf90] sm:$0xff]
    %v2479 = vld [vmem:[%s3 + $0xf98] sm:$0xff]
    %v2480 = vld [vmem:[%s3 + $0xfa0] sm:$0xff]
    %v2481 = vld [vmem:[%s3 + $0xfa8] sm:$0xff]
    %v2482 = vld [vmem:[%s3 + $0xfb0] sm:$0xff]
    %v2483 = vld [vmem:[%s3 + $0xfb8] sm:$0xff]
    %v2484 = vld [vmem:[%s3 + $0xfc0] sm:$0xff]
    %v2485 = vld [vmem:[%s3 + $0xfc8] sm:$0xff]
    %v2486 = vld [vmem:[%s3 + $0xfd0] sm:$0xff]
    %v2487 = vld [vmem:[%s3 + $0xfd8] sm:$0xff]
    %v2488 = vld [vmem:[%s3 + $0xfe0] sm:$0xff]
    %v2489 = vld [vmem:[%s3 + $0xfe8] sm:$0xff]
    %v2490 = vld [vmem:[%s3 + $0xff0] sm:$0xff]
    %v2491 = vld [vmem:[%s3 + $0xff8] sm:$0xff]
    %v2492 = vld [vmem:[%s4] sm:$0xff]
    %v2494 = vlaneseq
    %v2495 = vshrl.u32 %v2494, 7
    %v2496 = vsub.s32 0, %v2495
    %v2497 = vrot.slane %v2492, %v2496
    %v2498 = vlaneseq
    %v2499 = vshrl.u32 %v2498, 7
    %v2500 = vsub.s32 1, %v2499
    %v2501 = vrot.slane %v2492, %v2500
    %v2502 = vlaneseq
    %v2503 = vshrl.u32 %v2502, 7
    %v2504 = vsub.s32 2, %v2503
    %v2505 = vrot.slane %v2492, %v2504
    %v2506 = vlaneseq
    %v2507 = vshrl.u32 %v2506, 7
    %v2508 = vsub.s32 3, %v2507
    %v2509 = vrot.slane %v2492, %v2508
    %v2510 = vlaneseq
    %v2511 = vshrl.u32 %v2510, 7
    %v2512 = vsub.s32 4, %v2511
    %v2513 = vrot.slane %v2492, %v2512
    %v2514 = vlaneseq
    %v2515 = vshrl.u32 %v2514, 7
    %v2516 = vsub.s32 5, %v2515
    %v2517 = vrot.slane %v2492, %v2516
    %v2518 = vlaneseq
    %v2519 = vshrl.u32 %v2518, 7
    %v2520 = vsub.s32 6, %v2519
    %v2521 = vrot.slane %v2492, %v2520
    %v2522 = vlaneseq
    %v2523 = vshrl.u32 %v2522, 7
    %v2524 = vsub.s32 7, %v2523
    %v2525 = vrot.slane %v2492, %v2524
    %v3046 = vunpack.c.l.b16 %v1980
    %v3047 = vunpack.c.h.b16 %v1980
    %v3048 = vunpack.c.l.b16 %v1981
    %v3049 = vunpack.c.h.b16 %v1981
    %v3050 = vunpack.c.l.b16 %v1982
    %v3051 = vunpack.c.h.b16 %v1982
    %v3052 = vunpack.c.l.b16 %v1983
    %v3053 = vunpack.c.h.b16 %v1983
    %v3054 = vunpack.c.l.b16 %v1984
    %v3055 = vunpack.c.h.b16 %v1984
    %v3056 = vunpack.c.l.b16 %v1985
    %v3057 = vunpack.c.h.b16 %v1985
    %v3058 = vunpack.c.l.b16 %v1986
    %v3059 = vunpack.c.h.b16 %v1986
    %v3060 = vunpack.c.l.b16 %v1987
    %v3061 = vunpack.c.h.b16 %v1987
    %v3062 = vunpack.c.l.b16 %v1988
    %v3063 = vunpack.c.h.b16 %v1988
    %v3064 = vunpack.c.l.b16 %v1989
    %v3065 = vunpack.c.h.b16 %v1989
    %v3066 = vunpack.c.l.b16 %v1990
    %v3067 = vunpack.c.h.b16 %v1990
    %v3068 = vunpack.c.l.b16 %v1991
    %v3069 = vunpack.c.h.b16 %v1991
    %v3070 = vunpack.c.l.b16 %v1992
    %v3071 = vunpack.c.h.b16 %v1992
    %v3072 = vunpack.c.l.b16 %v1993
    %v3073 = vunpack.c.h.b16 %v1993
    %v3074 = vunpack.c.l.b16 %v1994
    %v3075 = vunpack.c.h.b16 %v1994
    %v3076 = vunpack.c.l.b16 %v1995
    %v3077 = vunpack.c.h.b16 %v1995
    %v3078 = vunpack.c.l.b16 %v1996
    %v3079 = vunpack.c.h.b16 %v1996
    %v3080 = vunpack.c.l.b16 %v1997
    %v3081 = vunpack.c.h.b16 %v1997
    %v3082 = vunpack.c.l.b16 %v1998
    %v3083 = vunpack.c.h.b16 %v1998
    %v3084 = vunpack.c.l.b16 %v1999
    %v3085 = vunpack.c.h.b16 %v1999
    %v3086 = vunpack.c.l.b16 %v2000
    %v3087 = vunpack.c.h.b16 %v2000
    %v3088 = vunpack.c.l.b16 %v2001
    %v3089 = vunpack.c.h.b16 %v2001
    %v3090 = vunpack.c.l.b16 %v2002
    %v3091 = vunpack.c.h.b16 %v2002
    %v3092 = vunpack.c.l.b16 %v2003
    %v3093 = vunpack.c.h.b16 %v2003
    %v3094 = vunpack.c.l.b16 %v2004
    %v3095 = vunpack.c.h.b16 %v2004
    %v3096 = vunpack.c.l.b16 %v2005
    %v3097 = vunpack.c.h.b16 %v2005
    %v3098 = vunpack.c.l.b16 %v2006
    %v3099 = vunpack.c.h.b16 %v2006
    %v3100 = vunpack.c.l.b16 %v2007
    %v3101 = vunpack.c.h.b16 %v2007
    %v3102 = vunpack.c.l.b16 %v2008
    %v3103 = vunpack.c.h.b16 %v2008
    %v3104 = vunpack.c.l.b16 %v2009
    %v3105 = vunpack.c.h.b16 %v2009
    %v3106 = vunpack.c.l.b16 %v2010
    %v3107 = vunpack.c.h.b16 %v2010
    %v3108 = vunpack.c.l.b16 %v2011
    %v3109 = vunpack.c.h.b16 %v2011
    %v3110 = vunpack.c.l.b16 %v2012
    %v3111 = vunpack.c.h.b16 %v2012
    %v3112 = vunpack.c.l.b16 %v2013
    %v3113 = vunpack.c.h.b16 %v2013
    %v3114 = vunpack.c.l.b16 %v2014
    %v3115 = vunpack.c.h.b16 %v2014
    %v3116 = vunpack.c.l.b16 %v2015
    %v3117 = vunpack.c.h.b16 %v2015
    %v3118 = vunpack.c.l.b16 %v2016
    %v3119 = vunpack.c.h.b16 %v2016
    %v3120 = vunpack.c.l.b16 %v2017
    %v3121 = vunpack.c.h.b16 %v2017
    %v3122 = vunpack.c.l.b16 %v2018
    %v3123 = vunpack.c.h.b16 %v2018
    %v3124 = vunpack.c.l.b16 %v2019
    %v3125 = vunpack.c.h.b16 %v2019
    %v3126 = vunpack.c.l.b16 %v2020
    %v3127 = vunpack.c.h.b16 %v2020
    %v3128 = vunpack.c.l.b16 %v2021
    %v3129 = vunpack.c.h.b16 %v2021
    %v3130 = vunpack.c.l.b16 %v2022
    %v3131 = vunpack.c.h.b16 %v2022
    %v3132 = vunpack.c.l.b16 %v2023
    %v3133 = vunpack.c.h.b16 %v2023
    %v3134 = vunpack.c.l.b16 %v2024
    %v3135 = vunpack.c.h.b16 %v2024
    %v3136 = vunpack.c.l.b16 %v2025
    %v3137 = vunpack.c.h.b16 %v2025
    %v3138 = vunpack.c.l.b16 %v2026
    %v3139 = vunpack.c.h.b16 %v2026
    %v3140 = vunpack.c.l.b16 %v2027
    %v3141 = vunpack.c.h.b16 %v2027
    %v3142 = vunpack.c.l.b16 %v2028
    %v3143 = vunpack.c.h.b16 %v2028
    %v3144 = vunpack.c.l.b16 %v2029
    %v3145 = vunpack.c.h.b16 %v2029
    %v3146 = vunpack.c.l.b16 %v2030
    %v3147 = vunpack.c.h.b16 %v2030
    %v3148 = vunpack.c.l.b16 %v2031
    %v3149 = vunpack.c.h.b16 %v2031
    %v3150 = vunpack.c.l.b16 %v2032
    %v3151 = vunpack.c.h.b16 %v2032
    %v3152 = vunpack.c.l.b16 %v2033
    %v3153 = vunpack.c.h.b16 %v2033
    %v3154 = vunpack.c.l.b16 %v2034
    %v3155 = vunpack.c.h.b16 %v2034
    %v3156 = vunpack.c.l.b16 %v2035
    %v3157 = vunpack.c.h.b16 %v2035
    %v3158 = vunpack.c.l.b16 %v2036
    %v3159 = vunpack.c.h.b16 %v2036
    %v3160 = vunpack.c.l.b16 %v2037
    %v3161 = vunpack.c.h.b16 %v2037
    %v3162 = vunpack.c.l.b16 %v2038
    %v3163 = vunpack.c.h.b16 %v2038
    %v3164 = vunpack.c.l.b16 %v2039
    %v3165 = vunpack.c.h.b16 %v2039
    %v3166 = vunpack.c.l.b16 %v2040
    %v3167 = vunpack.c.h.b16 %v2040
    %v3168 = vunpack.c.l.b16 %v2041
    %v3169 = vunpack.c.h.b16 %v2041
    %v3170 = vunpack.c.l.b16 %v2042
    %v3171 = vunpack.c.h.b16 %v2042
    %v3172 = vunpack.c.l.b16 %v2043
    %v3173 = vunpack.c.h.b16 %v2043
    %v3174 = vunpack.c.l.b16 %v2044
    %v3175 = vunpack.c.h.b16 %v2044
    %v3176 = vunpack.c.l.b16 %v2045
    %v3177 = vunpack.c.h.b16 %v2045
    %v3178 = vunpack.c.l.b16 %v2046
    %v3179 = vunpack.c.h.b16 %v2046
    %v3180 = vunpack.c.l.b16 %v2047
    %v3181 = vunpack.c.h.b16 %v2047
    %v3182 = vunpack.c.l.b16 %v2048
    %v3183 = vunpack.c.h.b16 %v2048
    %v3184 = vunpack.c.l.b16 %v2049
    %v3185 = vunpack.c.h.b16 %v2049
    %v3186 = vunpack.c.l.b16 %v2050
    %v3187 = vunpack.c.h.b16 %v2050
    %v3188 = vunpack.c.l.b16 %v2051
    %v3189 = vunpack.c.h.b16 %v2051
    %v3190 = vunpack.c.l.b16 %v2052
    %v3191 = vunpack.c.h.b16 %v2052
    %v3192 = vunpack.c.l.b16 %v2053
    %v3193 = vunpack.c.h.b16 %v2053
    %v3194 = vunpack.c.l.b16 %v2054
    %v3195 = vunpack.c.h.b16 %v2054
    %v3196 = vunpack.c.l.b16 %v2055
    %v3197 = vunpack.c.h.b16 %v2055
    %v3198 = vunpack.c.l.b16 %v2056
    %v3199 = vunpack.c.h.b16 %v2056
    %v3200 = vunpack.c.l.b16 %v2057
    %v3201 = vunpack.c.h.b16 %v2057
    %v3202 = vunpack.c.l.b16 %v2058
    %v3203 = vunpack.c.h.b16 %v2058
    %v3204 = vunpack.c.l.b16 %v2059
    %v3205 = vunpack.c.h.b16 %v2059
    %v3206 = vunpack.c.l.b16 %v2060
    %v3207 = vunpack.c.h.b16 %v2060
    %v3208 = vunpack.c.l.b16 %v2061
    %v3209 = vunpack.c.h.b16 %v2061
    %v3210 = vunpack.c.l.b16 %v2062
    %v3211 = vunpack.c.h.b16 %v2062
    %v3212 = vunpack.c.l.b16 %v2063
    %v3213 = vunpack.c.h.b16 %v2063
    %v3214 = vunpack.c.l.b16 %v2064
    %v3215 = vunpack.c.h.b16 %v2064
    %v3216 = vunpack.c.l.b16 %v2065
    %v3217 = vunpack.c.h.b16 %v2065
    %v3218 = vunpack.c.l.b16 %v2066
    %v3219 = vunpack.c.h.b16 %v2066
    %v3220 = vunpack.c.l.b16 %v2067
    %v3221 = vunpack.c.h.b16 %v2067
    %v3222 = vunpack.c.l.b16 %v2068
    %v3223 = vunpack.c.h.b16 %v2068
    %v3224 = vunpack.c.l.b16 %v2069
    %v3225 = vunpack.c.h.b16 %v2069
    %v3226 = vunpack.c.l.b16 %v2070
    %v3227 = vunpack.c.h.b16 %v2070
    %v3228 = vunpack.c.l.b16 %v2071
    %v3229 = vunpack.c.h.b16 %v2071
    %v3230 = vunpack.c.l.b16 %v2072
    %v3231 = vunpack.c.h.b16 %v2072
    %v3232 = vunpack.c.l.b16 %v2073
    %v3233 = vunpack.c.h.b16 %v2073
    %v3234 = vunpack.c.l.b16 %v2074
    %v3235 = vunpack.c.h.b16 %v2074
    %v3236 = vunpack.c.l.b16 %v2075
    %v3237 = vunpack.c.h.b16 %v2075
    %v3238 = vunpack.c.l.b16 %v2076
    %v3239 = vunpack.c.h.b16 %v2076
    %v3240 = vunpack.c.l.b16 %v2077
    %v3241 = vunpack.c.h.b16 %v2077
    %v3242 = vunpack.c.l.b16 %v2078
    %v3243 = vunpack.c.h.b16 %v2078
    %v3244 = vunpack.c.l.b16 %v2079
    %v3245 = vunpack.c.h.b16 %v2079
    %v3246 = vunpack.c.l.b16 %v2080
    %v3247 = vunpack.c.h.b16 %v2080
    %v3248 = vunpack.c.l.b16 %v2081
    %v3249 = vunpack.c.h.b16 %v2081
    %v3250 = vunpack.c.l.b16 %v2082
    %v3251 = vunpack.c.h.b16 %v2082
    %v3252 = vunpack.c.l.b16 %v2083
    %v3253 = vunpack.c.h.b16 %v2083
    %v3254 = vunpack.c.l.b16 %v2084
    %v3255 = vunpack.c.h.b16 %v2084
    %v3256 = vunpack.c.l.b16 %v2085
    %v3257 = vunpack.c.h.b16 %v2085
    %v3258 = vunpack.c.l.b16 %v2086
    %v3259 = vunpack.c.h.b16 %v2086
    %v3260 = vunpack.c.l.b16 %v2087
    %v3261 = vunpack.c.h.b16 %v2087
    %v3262 = vunpack.c.l.b16 %v2088
    %v3263 = vunpack.c.h.b16 %v2088
    %v3264 = vunpack.c.l.b16 %v2089
    %v3265 = vunpack.c.h.b16 %v2089
    %v3266 = vunpack.c.l.b16 %v2090
    %v3267 = vunpack.c.h.b16 %v2090
    %v3268 = vunpack.c.l.b16 %v2091
    %v3269 = vunpack.c.h.b16 %v2091
    %v3270 = vunpack.c.l.b16 %v2092
    %v3271 = vunpack.c.h.b16 %v2092
    %v3272 = vunpack.c.l.b16 %v2093
    %v3273 = vunpack.c.h.b16 %v2093
    %v3274 = vunpack.c.l.b16 %v2094
    %v3275 = vunpack.c.h.b16 %v2094
    %v3276 = vunpack.c.l.b16 %v2095
    %v3277 = vunpack.c.h.b16 %v2095
    %v3278 = vunpack.c.l.b16 %v2096
    %v3279 = vunpack.c.h.b16 %v2096
    %v3280 = vunpack.c.l.b16 %v2097
    %v3281 = vunpack.c.h.b16 %v2097
    %v3282 = vunpack.c.l.b16 %v2098
    %v3283 = vunpack.c.h.b16 %v2098
    %v3284 = vunpack.c.l.b16 %v2099
    %v3285 = vunpack.c.h.b16 %v2099
    %v3286 = vunpack.c.l.b16 %v2100
    %v3287 = vunpack.c.h.b16 %v2100
    %v3288 = vunpack.c.l.b16 %v2101
    %v3289 = vunpack.c.h.b16 %v2101
    %v3290 = vunpack.c.l.b16 %v2102
    %v3291 = vunpack.c.h.b16 %v2102
    %v3292 = vunpack.c.l.b16 %v2103
    %v3293 = vunpack.c.h.b16 %v2103
    %v3294 = vunpack.c.l.b16 %v2104
    %v3295 = vunpack.c.h.b16 %v2104
    %v3296 = vunpack.c.l.b16 %v2105
    %v3297 = vunpack.c.h.b16 %v2105
    %v3298 = vunpack.c.l.b16 %v2106
    %v3299 = vunpack.c.h.b16 %v2106
    %v3300 = vunpack.c.l.b16 %v2107
    %v3301 = vunpack.c.h.b16 %v2107
    %v3302 = vunpack.c.l.b16 %v2108
    %v3303 = vunpack.c.h.b16 %v2108
    %v3304 = vunpack.c.l.b16 %v2109
    %v3305 = vunpack.c.h.b16 %v2109
    %v3306 = vunpack.c.l.b16 %v2110
    %v3307 = vunpack.c.h.b16 %v2110
    %v3308 = vunpack.c.l.b16 %v2111
    %v3309 = vunpack.c.h.b16 %v2111
    %v3310 = vunpack.c.l.b16 %v2112
    %v3311 = vunpack.c.h.b16 %v2112
    %v3312 = vunpack.c.l.b16 %v2113
    %v3313 = vunpack.c.h.b16 %v2113
    %v3314 = vunpack.c.l.b16 %v2114
    %v3315 = vunpack.c.h.b16 %v2114
    %v3316 = vunpack.c.l.b16 %v2115
    %v3317 = vunpack.c.h.b16 %v2115
    %v3318 = vunpack.c.l.b16 %v2116
    %v3319 = vunpack.c.h.b16 %v2116
    %v3320 = vunpack.c.l.b16 %v2117
    %v3321 = vunpack.c.h.b16 %v2117
    %v3322 = vunpack.c.l.b16 %v2118
    %v3323 = vunpack.c.h.b16 %v2118
    %v3324 = vunpack.c.l.b16 %v2119
    %v3325 = vunpack.c.h.b16 %v2119
    %v3326 = vunpack.c.l.b16 %v2120
    %v3327 = vunpack.c.h.b16 %v2120
    %v3328 = vunpack.c.l.b16 %v2121
    %v3329 = vunpack.c.h.b16 %v2121
    %v3330 = vunpack.c.l.b16 %v2122
    %v3331 = vunpack.c.h.b16 %v2122
    %v3332 = vunpack.c.l.b16 %v2123
    %v3333 = vunpack.c.h.b16 %v2123
    %v3334 = vunpack.c.l.b16 %v2124
    %v3335 = vunpack.c.h.b16 %v2124
    %v3336 = vunpack.c.l.b16 %v2125
    %v3337 = vunpack.c.h.b16 %v2125
    %v3338 = vunpack.c.l.b16 %v2126
    %v3339 = vunpack.c.h.b16 %v2126
    %v3340 = vunpack.c.l.b16 %v2127
    %v3341 = vunpack.c.h.b16 %v2127
    %v3342 = vunpack.c.l.b16 %v2128
    %v3343 = vunpack.c.h.b16 %v2128
    %v3344 = vunpack.c.l.b16 %v2129
    %v3345 = vunpack.c.h.b16 %v2129
    %v3346 = vunpack.c.l.b16 %v2130
    %v3347 = vunpack.c.h.b16 %v2130
    %v3348 = vunpack.c.l.b16 %v2131
    %v3349 = vunpack.c.h.b16 %v2131
    %v3350 = vunpack.c.l.b16 %v2132
    %v3351 = vunpack.c.h.b16 %v2132
    %v3352 = vunpack.c.l.b16 %v2133
    %v3353 = vunpack.c.h.b16 %v2133
    %v3354 = vunpack.c.l.b16 %v2134
    %v3355 = vunpack.c.h.b16 %v2134
    %v3356 = vunpack.c.l.b16 %v2135
    %v3357 = vunpack.c.h.b16 %v2135
    %v3358 = vunpack.c.l.b16 %v2136
    %v3359 = vunpack.c.h.b16 %v2136
    %v3360 = vunpack.c.l.b16 %v2137
    %v3361 = vunpack.c.h.b16 %v2137
    %v3362 = vunpack.c.l.b16 %v2138
    %v3363 = vunpack.c.h.b16 %v2138
    %v3364 = vunpack.c.l.b16 %v2139
    %v3365 = vunpack.c.h.b16 %v2139
    %v3366 = vunpack.c.l.b16 %v2140
    %v3367 = vunpack.c.h.b16 %v2140
    %v3368 = vunpack.c.l.b16 %v2141
    %v3369 = vunpack.c.h.b16 %v2141
    %v3370 = vunpack.c.l.b16 %v2142
    %v3371 = vunpack.c.h.b16 %v2142
    %v3372 = vunpack.c.l.b16 %v2143
    %v3373 = vunpack.c.h.b16 %v2143
    %v3374 = vunpack.c.l.b16 %v2144
    %v3375 = vunpack.c.h.b16 %v2144
    %v3376 = vunpack.c.l.b16 %v2145
    %v3377 = vunpack.c.h.b16 %v2145
    %v3378 = vunpack.c.l.b16 %v2146
    %v3379 = vunpack.c.h.b16 %v2146
    %v3380 = vunpack.c.l.b16 %v2147
    %v3381 = vunpack.c.h.b16 %v2147
    %v3382 = vunpack.c.l.b16 %v2148
    %v3383 = vunpack.c.h.b16 %v2148
    %v3384 = vunpack.c.l.b16 %v2149
    %v3385 = vunpack.c.h.b16 %v2149
    %v3386 = vunpack.c.l.b16 %v2150
    %v3387 = vunpack.c.h.b16 %v2150
    %v3388 = vunpack.c.l.b16 %v2151
    %v3389 = vunpack.c.h.b16 %v2151
    %v3390 = vunpack.c.l.b16 %v2152
    %v3391 = vunpack.c.h.b16 %v2152
    %v3392 = vunpack.c.l.b16 %v2153
    %v3393 = vunpack.c.h.b16 %v2153
    %v3394 = vunpack.c.l.b16 %v2154
    %v3395 = vunpack.c.h.b16 %v2154
    %v3396 = vunpack.c.l.b16 %v2155
    %v3397 = vunpack.c.h.b16 %v2155
    %v3398 = vunpack.c.l.b16 %v2156
    %v3399 = vunpack.c.h.b16 %v2156
    %v3400 = vunpack.c.l.b16 %v2157
    %v3401 = vunpack.c.h.b16 %v2157
    %v3402 = vunpack.c.l.b16 %v2158
    %v3403 = vunpack.c.h.b16 %v2158
    %v3404 = vunpack.c.l.b16 %v2159
    %v3405 = vunpack.c.h.b16 %v2159
    %v3406 = vunpack.c.l.b16 %v2160
    %v3407 = vunpack.c.h.b16 %v2160
    %v3408 = vunpack.c.l.b16 %v2161
    %v3409 = vunpack.c.h.b16 %v2161
    %v3410 = vunpack.c.l.b16 %v2162
    %v3411 = vunpack.c.h.b16 %v2162
    %v3412 = vunpack.c.l.b16 %v2163
    %v3413 = vunpack.c.h.b16 %v2163
    %v3414 = vunpack.c.l.b16 %v2164
    %v3415 = vunpack.c.h.b16 %v2164
    %v3416 = vunpack.c.l.b16 %v2165
    %v3417 = vunpack.c.h.b16 %v2165
    %v3418 = vunpack.c.l.b16 %v2166
    %v3419 = vunpack.c.h.b16 %v2166
    %v3420 = vunpack.c.l.b16 %v2167
    %v3421 = vunpack.c.h.b16 %v2167
    %v3422 = vunpack.c.l.b16 %v2168
    %v3423 = vunpack.c.h.b16 %v2168
    %v3424 = vunpack.c.l.b16 %v2169
    %v3425 = vunpack.c.h.b16 %v2169
    %v3426 = vunpack.c.l.b16 %v2170
    %v3427 = vunpack.c.h.b16 %v2170
    %v3428 = vunpack.c.l.b16 %v2171
    %v3429 = vunpack.c.h.b16 %v2171
    %v3430 = vunpack.c.l.b16 %v2172
    %v3431 = vunpack.c.h.b16 %v2172
    %v3432 = vunpack.c.l.b16 %v2173
    %v3433 = vunpack.c.h.b16 %v2173
    %v3434 = vunpack.c.l.b16 %v2174
    %v3435 = vunpack.c.h.b16 %v2174
    %v3436 = vunpack.c.l.b16 %v2175
    %v3437 = vunpack.c.h.b16 %v2175
    %v3438 = vunpack.c.l.b16 %v2176
    %v3439 = vunpack.c.h.b16 %v2176
    %v3440 = vunpack.c.l.b16 %v2177
    %v3441 = vunpack.c.h.b16 %v2177
    %v3442 = vunpack.c.l.b16 %v2178
    %v3443 = vunpack.c.h.b16 %v2178
    %v3444 = vunpack.c.l.b16 %v2179
    %v3445 = vunpack.c.h.b16 %v2179
    %v3446 = vunpack.c.l.b16 %v2180
    %v3447 = vunpack.c.h.b16 %v2180
    %v3448 = vunpack.c.l.b16 %v2181
    %v3449 = vunpack.c.h.b16 %v2181
    %v3450 = vunpack.c.l.b16 %v2182
    %v3451 = vunpack.c.h.b16 %v2182
    %v3452 = vunpack.c.l.b16 %v2183
    %v3453 = vunpack.c.h.b16 %v2183
    %v3454 = vunpack.c.l.b16 %v2184
    %v3455 = vunpack.c.h.b16 %v2184
    %v3456 = vunpack.c.l.b16 %v2185
    %v3457 = vunpack.c.h.b16 %v2185
    %v3458 = vunpack.c.l.b16 %v2186
    %v3459 = vunpack.c.h.b16 %v2186
    %v3460 = vunpack.c.l.b16 %v2187
    %v3461 = vunpack.c.h.b16 %v2187
    %v3462 = vunpack.c.l.b16 %v2188
    %v3463 = vunpack.c.h.b16 %v2188
    %v3464 = vunpack.c.l.b16 %v2189
    %v3465 = vunpack.c.h.b16 %v2189
    %v3466 = vunpack.c.l.b16 %v2190
    %v3467 = vunpack.c.h.b16 %v2190
    %v3468 = vunpack.c.l.b16 %v2191
    %v3469 = vunpack.c.h.b16 %v2191
    %v3470 = vunpack.c.l.b16 %v2192
    %v3471 = vunpack.c.h.b16 %v2192
    %v3472 = vunpack.c.l.b16 %v2193
    %v3473 = vunpack.c.h.b16 %v2193
    %v3474 = vunpack.c.l.b16 %v2194
    %v3475 = vunpack.c.h.b16 %v2194
    %v3476 = vunpack.c.l.b16 %v2195
    %v3477 = vunpack.c.h.b16 %v2195
    %v3478 = vunpack.c.l.b16 %v2196
    %v3479 = vunpack.c.h.b16 %v2196
    %v3480 = vunpack.c.l.b16 %v2197
    %v3481 = vunpack.c.h.b16 %v2197
    %v3482 = vunpack.c.l.b16 %v2198
    %v3483 = vunpack.c.h.b16 %v2198
    %v3484 = vunpack.c.l.b16 %v2199
    %v3485 = vunpack.c.h.b16 %v2199
    %v3486 = vunpack.c.l.b16 %v2200
    %v3487 = vunpack.c.h.b16 %v2200
    %v3488 = vunpack.c.l.b16 %v2201
    %v3489 = vunpack.c.h.b16 %v2201
    %v3490 = vunpack.c.l.b16 %v2202
    %v3491 = vunpack.c.h.b16 %v2202
    %v3492 = vunpack.c.l.b16 %v2203
    %v3493 = vunpack.c.h.b16 %v2203
    %v3494 = vunpack.c.l.b16 %v2204
    %v3495 = vunpack.c.h.b16 %v2204
    %v3496 = vunpack.c.l.b16 %v2205
    %v3497 = vunpack.c.h.b16 %v2205
    %v3498 = vunpack.c.l.b16 %v2206
    %v3499 = vunpack.c.h.b16 %v2206
    %v3500 = vunpack.c.l.b16 %v2207
    %v3501 = vunpack.c.h.b16 %v2207
    %v3502 = vunpack.c.l.b16 %v2208
    %v3503 = vunpack.c.h.b16 %v2208
    %v3504 = vunpack.c.l.b16 %v2209
    %v3505 = vunpack.c.h.b16 %v2209
    %v3506 = vunpack.c.l.b16 %v2210
    %v3507 = vunpack.c.h.b16 %v2210
    %v3508 = vunpack.c.l.b16 %v2211
    %v3509 = vunpack.c.h.b16 %v2211
    %v3510 = vunpack.c.l.b16 %v2212
    %v3511 = vunpack.c.h.b16 %v2212
    %v3512 = vunpack.c.l.b16 %v2213
    %v3513 = vunpack.c.h.b16 %v2213
    %v3514 = vunpack.c.l.b16 %v2214
    %v3515 = vunpack.c.h.b16 %v2214
    %v3516 = vunpack.c.l.b16 %v2215
    %v3517 = vunpack.c.h.b16 %v2215
    %v3518 = vunpack.c.l.b16 %v2216
    %v3519 = vunpack.c.h.b16 %v2216
    %v3520 = vunpack.c.l.b16 %v2217
    %v3521 = vunpack.c.h.b16 %v2217
    %v3522 = vunpack.c.l.b16 %v2218
    %v3523 = vunpack.c.h.b16 %v2218
    %v3524 = vunpack.c.l.b16 %v2219
    %v3525 = vunpack.c.h.b16 %v2219
    %v3526 = vunpack.c.l.b16 %v2220
    %v3527 = vunpack.c.h.b16 %v2220
    %v3528 = vunpack.c.l.b16 %v2221
    %v3529 = vunpack.c.h.b16 %v2221
    %v3530 = vunpack.c.l.b16 %v2222
    %v3531 = vunpack.c.h.b16 %v2222
    %v3532 = vunpack.c.l.b16 %v2223
    %v3533 = vunpack.c.h.b16 %v2223
    %v3534 = vunpack.c.l.b16 %v2224
    %v3535 = vunpack.c.h.b16 %v2224
    %v3536 = vunpack.c.l.b16 %v2225
    %v3537 = vunpack.c.h.b16 %v2225
    %v3538 = vunpack.c.l.b16 %v2226
    %v3539 = vunpack.c.h.b16 %v2226
    %v3540 = vunpack.c.l.b16 %v2227
    %v3541 = vunpack.c.h.b16 %v2227
    %v3542 = vunpack.c.l.b16 %v2228
    %v3543 = vunpack.c.h.b16 %v2228
    %v3544 = vunpack.c.l.b16 %v2229
    %v3545 = vunpack.c.h.b16 %v2229
    %v3546 = vunpack.c.l.b16 %v2230
    %v3547 = vunpack.c.h.b16 %v2230
    %v3548 = vunpack.c.l.b16 %v2231
    %v3549 = vunpack.c.h.b16 %v2231
    %v3550 = vunpack.c.l.b16 %v2232
    %v3551 = vunpack.c.h.b16 %v2232
    %v3552 = vunpack.c.l.b16 %v2233
    %v3553 = vunpack.c.h.b16 %v2233
    %v3554 = vunpack.c.l.b16 %v2234
    %v3555 = vunpack.c.h.b16 %v2234
    %v3556 = vunpack.c.l.b16 %v2235
    %v3557 = vunpack.c.h.b16 %v2235
    %v3558 = vunpack.c.l.b16 %v2236
    %v3559 = vunpack.c.h.b16 %v2236
    %v3560 = vunpack.c.l.b16 %v2237
    %v3561 = vunpack.c.h.b16 %v2237
    %v3562 = vunpack.c.l.b16 %v2238
    %v3563 = vunpack.c.h.b16 %v2238
    %v3564 = vunpack.c.l.b16 %v2239
    %v3565 = vunpack.c.h.b16 %v2239
    %v3566 = vunpack.c.l.b16 %v2240
    %v3567 = vunpack.c.h.b16 %v2240
    %v3568 = vunpack.c.l.b16 %v2241
    %v3569 = vunpack.c.h.b16 %v2241
    %v3570 = vunpack.c.l.b16 %v2242
    %v3571 = vunpack.c.h.b16 %v2242
    %v3572 = vunpack.c.l.b16 %v2243
    %v3573 = vunpack.c.h.b16 %v2243
    %v3574 = vunpack.c.l.b16 %v2244
    %v3575 = vunpack.c.h.b16 %v2244
    %v3576 = vunpack.c.l.b16 %v2245
    %v3577 = vunpack.c.h.b16 %v2245
    %v3578 = vunpack.c.l.b16 %v2246
    %v3579 = vunpack.c.h.b16 %v2246
    %v3580 = vunpack.c.l.b16 %v2247
    %v3581 = vunpack.c.h.b16 %v2247
    %v3582 = vunpack.c.l.b16 %v2248
    %v3583 = vunpack.c.h.b16 %v2248
    %v3584 = vunpack.c.l.b16 %v2249
    %v3585 = vunpack.c.h.b16 %v2249
    %v3586 = vunpack.c.l.b16 %v2250
    %v3587 = vunpack.c.h.b16 %v2250
    %v3588 = vunpack.c.l.b16 %v2251
    %v3589 = vunpack.c.h.b16 %v2251
    %v3590 = vunpack.c.l.b16 %v2252
    %v3591 = vunpack.c.h.b16 %v2252
    %v3592 = vunpack.c.l.b16 %v2253
    %v3593 = vunpack.c.h.b16 %v2253
    %v3594 = vunpack.c.l.b16 %v2254
    %v3595 = vunpack.c.h.b16 %v2254
    %v3596 = vunpack.c.l.b16 %v2255
    %v3597 = vunpack.c.h.b16 %v2255
    %v3598 = vunpack.c.l.b16 %v2256
    %v3599 = vunpack.c.h.b16 %v2256
    %v3600 = vunpack.c.l.b16 %v2257
    %v3601 = vunpack.c.h.b16 %v2257
    %v3602 = vunpack.c.l.b16 %v2258
    %v3603 = vunpack.c.h.b16 %v2258
    %v3604 = vunpack.c.l.b16 %v2259
    %v3605 = vunpack.c.h.b16 %v2259
    %v3606 = vunpack.c.l.b16 %v2260
    %v3607 = vunpack.c.h.b16 %v2260
    %v3608 = vunpack.c.l.b16 %v2261
    %v3609 = vunpack.c.h.b16 %v2261
    %v3610 = vunpack.c.l.b16 %v2262
    %v3611 = vunpack.c.h.b16 %v2262
    %v3612 = vunpack.c.l.b16 %v2263
    %v3613 = vunpack.c.h.b16 %v2263
    %v3614 = vunpack.c.l.b16 %v2264
    %v3615 = vunpack.c.h.b16 %v2264
    %v3616 = vunpack.c.l.b16 %v2265
    %v3617 = vunpack.c.h.b16 %v2265
    %v3618 = vunpack.c.l.b16 %v2266
    %v3619 = vunpack.c.h.b16 %v2266
    %v3620 = vunpack.c.l.b16 %v2267
    %v3621 = vunpack.c.h.b16 %v2267
    %v3622 = vunpack.c.l.b16 %v2268
    %v3623 = vunpack.c.h.b16 %v2268
    %v3624 = vunpack.c.l.b16 %v2269
    %v3625 = vunpack.c.h.b16 %v2269
    %v3626 = vunpack.c.l.b16 %v2270
    %v3627 = vunpack.c.h.b16 %v2270
    %v3628 = vunpack.c.l.b16 %v2271
    %v3629 = vunpack.c.h.b16 %v2271
    %v3630 = vunpack.c.l.b16 %v2272
    %v3631 = vunpack.c.h.b16 %v2272
    %v3632 = vunpack.c.l.b16 %v2273
    %v3633 = vunpack.c.h.b16 %v2273
    %v3634 = vunpack.c.l.b16 %v2274
    %v3635 = vunpack.c.h.b16 %v2274
    %v3636 = vunpack.c.l.b16 %v2275
    %v3637 = vunpack.c.h.b16 %v2275
    %v3638 = vunpack.c.l.b16 %v2276
    %v3639 = vunpack.c.h.b16 %v2276
    %v3640 = vunpack.c.l.b16 %v2277
    %v3641 = vunpack.c.h.b16 %v2277
    %v3642 = vunpack.c.l.b16 %v2278
    %v3643 = vunpack.c.h.b16 %v2278
    %v3644 = vunpack.c.l.b16 %v2279
    %v3645 = vunpack.c.h.b16 %v2279
    %v3646 = vunpack.c.l.b16 %v2280
    %v3647 = vunpack.c.h.b16 %v2280
    %v3648 = vunpack.c.l.b16 %v2281
    %v3649 = vunpack.c.h.b16 %v2281
    %v3650 = vunpack.c.l.b16 %v2282
    %v3651 = vunpack.c.h.b16 %v2282
    %v3652 = vunpack.c.l.b16 %v2283
    %v3653 = vunpack.c.h.b16 %v2283
    %v3654 = vunpack.c.l.b16 %v2284
    %v3655 = vunpack.c.h.b16 %v2284
    %v3656 = vunpack.c.l.b16 %v2285
    %v3657 = vunpack.c.h.b16 %v2285
    %v3658 = vunpack.c.l.b16 %v2286
    %v3659 = vunpack.c.h.b16 %v2286
    %v3660 = vunpack.c.l.b16 %v2287
    %v3661 = vunpack.c.h.b16 %v2287
    %v3662 = vunpack.c.l.b16 %v2288
    %v3663 = vunpack.c.h.b16 %v2288
    %v3664 = vunpack.c.l.b16 %v2289
    %v3665 = vunpack.c.h.b16 %v2289
    %v3666 = vunpack.c.l.b16 %v2290
    %v3667 = vunpack.c.h.b16 %v2290
    %v3668 = vunpack.c.l.b16 %v2291
    %v3669 = vunpack.c.h.b16 %v2291
    %v3670 = vunpack.c.l.b16 %v2292
    %v3671 = vunpack.c.h.b16 %v2292
    %v3672 = vunpack.c.l.b16 %v2293
    %v3673 = vunpack.c.h.b16 %v2293
    %v3674 = vunpack.c.l.b16 %v2294
    %v3675 = vunpack.c.h.b16 %v2294
    %v3676 = vunpack.c.l.b16 %v2295
    %v3677 = vunpack.c.h.b16 %v2295
    %v3678 = vunpack.c.l.b16 %v2296
    %v3679 = vunpack.c.h.b16 %v2296
    %v3680 = vunpack.c.l.b16 %v2297
    %v3681 = vunpack.c.h.b16 %v2297
    %v3682 = vunpack.c.l.b16 %v2298
    %v3683 = vunpack.c.h.b16 %v2298
    %v3684 = vunpack.c.l.b16 %v2299
    %v3685 = vunpack.c.h.b16 %v2299
    %v3686 = vunpack.c.l.b16 %v2300
    %v3687 = vunpack.c.h.b16 %v2300
    %v3688 = vunpack.c.l.b16 %v2301
    %v3689 = vunpack.c.h.b16 %v2301
    %v3690 = vunpack.c.l.b16 %v2302
    %v3691 = vunpack.c.h.b16 %v2302
    %v3692 = vunpack.c.l.b16 %v2303
    %v3693 = vunpack.c.h.b16 %v2303
    %v3694 = vunpack.c.l.b16 %v2304
    %v3695 = vunpack.c.h.b16 %v2304
    %v3696 = vunpack.c.l.b16 %v2305
    %v3697 = vunpack.c.h.b16 %v2305
    %v3698 = vunpack.c.l.b16 %v2306
    %v3699 = vunpack.c.h.b16 %v2306
    %v3700 = vunpack.c.l.b16 %v2307
    %v3701 = vunpack.c.h.b16 %v2307
    %v3702 = vunpack.c.l.b16 %v2308
    %v3703 = vunpack.c.h.b16 %v2308
    %v3704 = vunpack.c.l.b16 %v2309
    %v3705 = vunpack.c.h.b16 %v2309
    %v3706 = vunpack.c.l.b16 %v2310
    %v3707 = vunpack.c.h.b16 %v2310
    %v3708 = vunpack.c.l.b16 %v2311
    %v3709 = vunpack.c.h.b16 %v2311
    %v3710 = vunpack.c.l.b16 %v2312
    %v3711 = vunpack.c.h.b16 %v2312
    %v3712 = vunpack.c.l.b16 %v2313
    %v3713 = vunpack.c.h.b16 %v2313
    %v3714 = vunpack.c.l.b16 %v2314
    %v3715 = vunpack.c.h.b16 %v2314
    %v3716 = vunpack.c.l.b16 %v2315
    %v3717 = vunpack.c.h.b16 %v2315
    %v3718 = vunpack.c.l.b16 %v2316
    %v3719 = vunpack.c.h.b16 %v2316
    %v3720 = vunpack.c.l.b16 %v2317
    %v3721 = vunpack.c.h.b16 %v2317
    %v3722 = vunpack.c.l.b16 %v2318
    %v3723 = vunpack.c.h.b16 %v2318
    %v3724 = vunpack.c.l.b16 %v2319
    %v3725 = vunpack.c.h.b16 %v2319
    %v3726 = vunpack.c.l.b16 %v2320
    %v3727 = vunpack.c.h.b16 %v2320
    %v3728 = vunpack.c.l.b16 %v2321
    %v3729 = vunpack.c.h.b16 %v2321
    %v3730 = vunpack.c.l.b16 %v2322
    %v3731 = vunpack.c.h.b16 %v2322
    %v3732 = vunpack.c.l.b16 %v2323
    %v3733 = vunpack.c.h.b16 %v2323
    %v3734 = vunpack.c.l.b16 %v2324
    %v3735 = vunpack.c.h.b16 %v2324
    %v3736 = vunpack.c.l.b16 %v2325
    %v3737 = vunpack.c.h.b16 %v2325
    %v3738 = vunpack.c.l.b16 %v2326
    %v3739 = vunpack.c.h.b16 %v2326
    %v3740 = vunpack.c.l.b16 %v2327
    %v3741 = vunpack.c.h.b16 %v2327
    %v3742 = vunpack.c.l.b16 %v2328
    %v3743 = vunpack.c.h.b16 %v2328
    %v3744 = vunpack.c.l.b16 %v2329
    %v3745 = vunpack.c.h.b16 %v2329
    %v3746 = vunpack.c.l.b16 %v2330
    %v3747 = vunpack.c.h.b16 %v2330
    %v3748 = vunpack.c.l.b16 %v2331
    %v3749 = vunpack.c.h.b16 %v2331
    %v3750 = vunpack.c.l.b16 %v2332
    %v3751 = vunpack.c.h.b16 %v2332
    %v3752 = vunpack.c.l.b16 %v2333
    %v3753 = vunpack.c.h.b16 %v2333
    %v3754 = vunpack.c.l.b16 %v2334
    %v3755 = vunpack.c.h.b16 %v2334
    %v3756 = vunpack.c.l.b16 %v2335
    %v3757 = vunpack.c.h.b16 %v2335
    %v3758 = vunpack.c.l.b16 %v2336
    %v3759 = vunpack.c.h.b16 %v2336
    %v3760 = vunpack.c.l.b16 %v2337
    %v3761 = vunpack.c.h.b16 %v2337
    %v3762 = vunpack.c.l.b16 %v2338
    %v3763 = vunpack.c.h.b16 %v2338
    %v3764 = vunpack.c.l.b16 %v2339
    %v3765 = vunpack.c.h.b16 %v2339
    %v3766 = vunpack.c.l.b16 %v2340
    %v3767 = vunpack.c.h.b16 %v2340
    %v3768 = vunpack.c.l.b16 %v2341
    %v3769 = vunpack.c.h.b16 %v2341
    %v3770 = vunpack.c.l.b16 %v2342
    %v3771 = vunpack.c.h.b16 %v2342
    %v3772 = vunpack.c.l.b16 %v2343
    %v3773 = vunpack.c.h.b16 %v2343
    %v3774 = vunpack.c.l.b16 %v2344
    %v3775 = vunpack.c.h.b16 %v2344
    %v3776 = vunpack.c.l.b16 %v2345
    %v3777 = vunpack.c.h.b16 %v2345
    %v3778 = vunpack.c.l.b16 %v2346
    %v3779 = vunpack.c.h.b16 %v2346
    %v3780 = vunpack.c.l.b16 %v2347
    %v3781 = vunpack.c.h.b16 %v2347
    %v3782 = vunpack.c.l.b16 %v2348
    %v3783 = vunpack.c.h.b16 %v2348
    %v3784 = vunpack.c.l.b16 %v2349
    %v3785 = vunpack.c.h.b16 %v2349
    %v3786 = vunpack.c.l.b16 %v2350
    %v3787 = vunpack.c.h.b16 %v2350
    %v3788 = vunpack.c.l.b16 %v2351
    %v3789 = vunpack.c.h.b16 %v2351
    %v3790 = vunpack.c.l.b16 %v2352
    %v3791 = vunpack.c.h.b16 %v2352
    %v3792 = vunpack.c.l.b16 %v2353
    %v3793 = vunpack.c.h.b16 %v2353
    %v3794 = vunpack.c.l.b16 %v2354
    %v3795 = vunpack.c.h.b16 %v2354
    %v3796 = vunpack.c.l.b16 %v2355
    %v3797 = vunpack.c.h.b16 %v2355
    %v3798 = vunpack.c.l.b16 %v2356
    %v3799 = vunpack.c.h.b16 %v2356
    %v3800 = vunpack.c.l.b16 %v2357
    %v3801 = vunpack.c.h.b16 %v2357
    %v3802 = vunpack.c.l.b16 %v2358
    %v3803 = vunpack.c.h.b16 %v2358
    %v3804 = vunpack.c.l.b16 %v2359
    %v3805 = vunpack.c.h.b16 %v2359
    %v3806 = vunpack.c.l.b16 %v2360
    %v3807 = vunpack.c.h.b16 %v2360
    %v3808 = vunpack.c.l.b16 %v2361
    %v3809 = vunpack.c.h.b16 %v2361
    %v3810 = vunpack.c.l.b16 %v2362
    %v3811 = vunpack.c.h.b16 %v2362
    %v3812 = vunpack.c.l.b16 %v2363
    %v3813 = vunpack.c.h.b16 %v2363
    %v3814 = vunpack.c.l.b16 %v2364
    %v3815 = vunpack.c.h.b16 %v2364
    %v3816 = vunpack.c.l.b16 %v2365
    %v3817 = vunpack.c.h.b16 %v2365
    %v3818 = vunpack.c.l.b16 %v2366
    %v3819 = vunpack.c.h.b16 %v2366
    %v3820 = vunpack.c.l.b16 %v2367
    %v3821 = vunpack.c.h.b16 %v2367
    %v3822 = vunpack.c.l.b16 %v2368
    %v3823 = vunpack.c.h.b16 %v2368
    %v3824 = vunpack.c.l.b16 %v2369
    %v3825 = vunpack.c.h.b16 %v2369
    %v3826 = vunpack.c.l.b16 %v2370
    %v3827 = vunpack.c.h.b16 %v2370
    %v3828 = vunpack.c.l.b16 %v2371
    %v3829 = vunpack.c.h.b16 %v2371
    %v3830 = vunpack.c.l.b16 %v2372
    %v3831 = vunpack.c.h.b16 %v2372
    %v3832 = vunpack.c.l.b16 %v2373
    %v3833 = vunpack.c.h.b16 %v2373
    %v3834 = vunpack.c.l.b16 %v2374
    %v3835 = vunpack.c.h.b16 %v2374
    %v3836 = vunpack.c.l.b16 %v2375
    %v3837 = vunpack.c.h.b16 %v2375
    %v3838 = vunpack.c.l.b16 %v2376
    %v3839 = vunpack.c.h.b16 %v2376
    %v3840 = vunpack.c.l.b16 %v2377
    %v3841 = vunpack.c.h.b16 %v2377
    %v3842 = vunpack.c.l.b16 %v2378
    %v3843 = vunpack.c.h.b16 %v2378
    %v3844 = vunpack.c.l.b16 %v2379
    %v3845 = vunpack.c.h.b16 %v2379
    %v3846 = vunpack.c.l.b16 %v2380
    %v3847 = vunpack.c.h.b16 %v2380
    %v3848 = vunpack.c.l.b16 %v2381
    %v3849 = vunpack.c.h.b16 %v2381
    %v3850 = vunpack.c.l.b16 %v2382
    %v3851 = vunpack.c.h.b16 %v2382
    %v3852 = vunpack.c.l.b16 %v2383
    %v3853 = vunpack.c.h.b16 %v2383
    %v3854 = vunpack.c.l.b16 %v2384
    %v3855 = vunpack.c.h.b16 %v2384
    %v3856 = vunpack.c.l.b16 %v2385
    %v3857 = vunpack.c.h.b16 %v2385
    %v3858 = vunpack.c.l.b16 %v2386
    %v3859 = vunpack.c.h.b16 %v2386
    %v3860 = vunpack.c.l.b16 %v2387
    %v3861 = vunpack.c.h.b16 %v2387
    %v3862 = vunpack.c.l.b16 %v2388
    %v3863 = vunpack.c.h.b16 %v2388
    %v3864 = vunpack.c.l.b16 %v2389
    %v3865 = vunpack.c.h.b16 %v2389
    %v3866 = vunpack.c.l.b16 %v2390
    %v3867 = vunpack.c.h.b16 %v2390
    %v3868 = vunpack.c.l.b16 %v2391
    %v3869 = vunpack.c.h.b16 %v2391
    %v3870 = vunpack.c.l.b16 %v2392
    %v3871 = vunpack.c.h.b16 %v2392
    %v3872 = vunpack.c.l.b16 %v2393
    %v3873 = vunpack.c.h.b16 %v2393
    %v3874 = vunpack.c.l.b16 %v2394
    %v3875 = vunpack.c.h.b16 %v2394
    %v3876 = vunpack.c.l.b16 %v2395
    %v3877 = vunpack.c.h.b16 %v2395
    %v3878 = vunpack.c.l.b16 %v2396
    %v3879 = vunpack.c.h.b16 %v2396
    %v3880 = vunpack.c.l.b16 %v2397
    %v3881 = vunpack.c.h.b16 %v2397
    %v3882 = vunpack.c.l.b16 %v2398
    %v3883 = vunpack.c.h.b16 %v2398
    %v3884 = vunpack.c.l.b16 %v2399
    %v3885 = vunpack.c.h.b16 %v2399
    %v3886 = vunpack.c.l.b16 %v2400
    %v3887 = vunpack.c.h.b16 %v2400
    %v3888 = vunpack.c.l.b16 %v2401
    %v3889 = vunpack.c.h.b16 %v2401
    %v3890 = vunpack.c.l.b16 %v2402
    %v3891 = vunpack.c.h.b16 %v2402
    %v3892 = vunpack.c.l.b16 %v2403
    %v3893 = vunpack.c.h.b16 %v2403
    %v3894 = vunpack.c.l.b16 %v2404
    %v3895 = vunpack.c.h.b16 %v2404
    %v3896 = vunpack.c.l.b16 %v2405
    %v3897 = vunpack.c.h.b16 %v2405
    %v3898 = vunpack.c.l.b16 %v2406
    %v3899 = vunpack.c.h.b16 %v2406
    %v3900 = vunpack.c.l.b16 %v2407
    %v3901 = vunpack.c.h.b16 %v2407
    %v3902 = vunpack.c.l.b16 %v2408
    %v3903 = vunpack.c.h.b16 %v2408
    %v3904 = vunpack.c.l.b16 %v2409
    %v3905 = vunpack.c.h.b16 %v2409
    %v3906 = vunpack.c.l.b16 %v2410
    %v3907 = vunpack.c.h.b16 %v2410
    %v3908 = vunpack.c.l.b16 %v2411
    %v3909 = vunpack.c.h.b16 %v2411
    %v3910 = vunpack.c.l.b16 %v2412
    %v3911 = vunpack.c.h.b16 %v2412
    %v3912 = vunpack.c.l.b16 %v2413
    %v3913 = vunpack.c.h.b16 %v2413
    %v3914 = vunpack.c.l.b16 %v2414
    %v3915 = vunpack.c.h.b16 %v2414
    %v3916 = vunpack.c.l.b16 %v2415
    %v3917 = vunpack.c.h.b16 %v2415
    %v3918 = vunpack.c.l.b16 %v2416
    %v3919 = vunpack.c.h.b16 %v2416
    %v3920 = vunpack.c.l.b16 %v2417
    %v3921 = vunpack.c.h.b16 %v2417
    %v3922 = vunpack.c.l.b16 %v2418
    %v3923 = vunpack.c.h.b16 %v2418
    %v3924 = vunpack.c.l.b16 %v2419
    %v3925 = vunpack.c.h.b16 %v2419
    %v3926 = vunpack.c.l.b16 %v2420
    %v3927 = vunpack.c.h.b16 %v2420
    %v3928 = vunpack.c.l.b16 %v2421
    %v3929 = vunpack.c.h.b16 %v2421
    %v3930 = vunpack.c.l.b16 %v2422
    %v3931 = vunpack.c.h.b16 %v2422
    %v3932 = vunpack.c.l.b16 %v2423
    %v3933 = vunpack.c.h.b16 %v2423
    %v3934 = vunpack.c.l.b16 %v2424
    %v3935 = vunpack.c.h.b16 %v2424
    %v3936 = vunpack.c.l.b16 %v2425
    %v3937 = vunpack.c.h.b16 %v2425
    %v3938 = vunpack.c.l.b16 %v2426
    %v3939 = vunpack.c.h.b16 %v2426
    %v3940 = vunpack.c.l.b16 %v2427
    %v3941 = vunpack.c.h.b16 %v2427
    %v3942 = vunpack.c.l.b16 %v2428
    %v3943 = vunpack.c.h.b16 %v2428
    %v3944 = vunpack.c.l.b16 %v2429
    %v3945 = vunpack.c.h.b16 %v2429
    %v3946 = vunpack.c.l.b16 %v2430
    %v3947 = vunpack.c.h.b16 %v2430
    %v3948 = vunpack.c.l.b16 %v2431
    %v3949 = vunpack.c.h.b16 %v2431
    %v3950 = vunpack.c.l.b16 %v2432
    %v3951 = vunpack.c.h.b16 %v2432
    %v3952 = vunpack.c.l.b16 %v2433
    %v3953 = vunpack.c.h.b16 %v2433
    %v3954 = vunpack.c.l.b16 %v2434
    %v3955 = vunpack.c.h.b16 %v2434
    %v3956 = vunpack.c.l.b16 %v2435
    %v3957 = vunpack.c.h.b16 %v2435
    %v3958 = vunpack.c.l.b16 %v2436
    %v3959 = vunpack.c.h.b16 %v2436
    %v3960 = vunpack.c.l.b16 %v2437
    %v3961 = vunpack.c.h.b16 %v2437
    %v3962 = vunpack.c.l.b16 %v2438
    %v3963 = vunpack.c.h.b16 %v2438
    %v3964 = vunpack.c.l.b16 %v2439
    %v3965 = vunpack.c.h.b16 %v2439
    %v3966 = vunpack.c.l.b16 %v2440
    %v3967 = vunpack.c.h.b16 %v2440
    %v3968 = vunpack.c.l.b16 %v2441
    %v3969 = vunpack.c.h.b16 %v2441
    %v3970 = vunpack.c.l.b16 %v2442
    %v3971 = vunpack.c.h.b16 %v2442
    %v3972 = vunpack.c.l.b16 %v2443
    %v3973 = vunpack.c.h.b16 %v2443
    %v3974 = vunpack.c.l.b16 %v2444
    %v3975 = vunpack.c.h.b16 %v2444
    %v3976 = vunpack.c.l.b16 %v2445
    %v3977 = vunpack.c.h.b16 %v2445
    %v3978 = vunpack.c.l.b16 %v2446
    %v3979 = vunpack.c.h.b16 %v2446
    %v3980 = vunpack.c.l.b16 %v2447
    %v3981 = vunpack.c.h.b16 %v2447
    %v3982 = vunpack.c.l.b16 %v2448
    %v3983 = vunpack.c.h.b16 %v2448
    %v3984 = vunpack.c.l.b16 %v2449
    %v3985 = vunpack.c.h.b16 %v2449
    %v3986 = vunpack.c.l.b16 %v2450
    %v3987 = vunpack.c.h.b16 %v2450
    %v3988 = vunpack.c.l.b16 %v2451
    %v3989 = vunpack.c.h.b16 %v2451
    %v3990 = vunpack.c.l.b16 %v2452
    %v3991 = vunpack.c.h.b16 %v2452
    %v3992 = vunpack.c.l.b16 %v2453
    %v3993 = vunpack.c.h.b16 %v2453
    %v3994 = vunpack.c.l.b16 %v2454
    %v3995 = vunpack.c.h.b16 %v2454
    %v3996 = vunpack.c.l.b16 %v2455
    %v3997 = vunpack.c.h.b16 %v2455
    %v3998 = vunpack.c.l.b16 %v2456
    %v3999 = vunpack.c.h.b16 %v2456
    %v4000 = vunpack.c.l.b16 %v2457
    %v4001 = vunpack.c.h.b16 %v2457
    %v4002 = vunpack.c.l.b16 %v2458
    %v4003 = vunpack.c.h.b16 %v2458
    %v4004 = vunpack.c.l.b16 %v2459
    %v4005 = vunpack.c.h.b16 %v2459
    %v4006 = vunpack.c.l.b16 %v2460
    %v4007 = vunpack.c.h.b16 %v2460
    %v4008 = vunpack.c.l.b16 %v2461
    %v4009 = vunpack.c.h.b16 %v2461
    %v4010 = vunpack.c.l.b16 %v2462
    %v4011 = vunpack.c.h.b16 %v2462
    %v4012 = vunpack.c.l.b16 %v2463
    %v4013 = vunpack.c.h.b16 %v2463
    %v4014 = vunpack.c.l.b16 %v2464
    %v4015 = vunpack.c.h.b16 %v2464
    %v4016 = vunpack.c.l.b16 %v2465
    %v4017 = vunpack.c.h.b16 %v2465
    %v4018 = vunpack.c.l.b16 %v2466
    %v4019 = vunpack.c.h.b16 %v2466
    %v4020 = vunpack.c.l.b16 %v2467
    %v4021 = vunpack.c.h.b16 %v2467
    %v4022 = vunpack.c.l.b16 %v2468
    %v4023 = vunpack.c.h.b16 %v2468
    %v4024 = vunpack.c.l.b16 %v2469
    %v4025 = vunpack.c.h.b16 %v2469
    %v4026 = vunpack.c.l.b16 %v2470
    %v4027 = vunpack.c.h.b16 %v2470
    %v4028 = vunpack.c.l.b16 %v2471
    %v4029 = vunpack.c.h.b16 %v2471
    %v4030 = vunpack.c.l.b16 %v2472
    %v4031 = vunpack.c.h.b16 %v2472
    %v4032 = vunpack.c.l.b16 %v2473
    %v4033 = vunpack.c.h.b16 %v2473
    %v4034 = vunpack.c.l.b16 %v2474
    %v4035 = vunpack.c.h.b16 %v2474
    %v4036 = vunpack.c.l.b16 %v2475
    %v4037 = vunpack.c.h.b16 %v2475
    %v4038 = vunpack.c.l.b16 %v2476
    %v4039 = vunpack.c.h.b16 %v2476
    %v4040 = vunpack.c.l.b16 %v2477
    %v4041 = vunpack.c.h.b16 %v2477
    %v4042 = vunpack.c.l.b16 %v2478
    %v4043 = vunpack.c.h.b16 %v2478
    %v4044 = vunpack.c.l.b16 %v2479
    %v4045 = vunpack.c.h.b16 %v2479
    %v4046 = vunpack.c.l.b16 %v2480
    %v4047 = vunpack.c.h.b16 %v2480
    %v4048 = vunpack.c.l.b16 %v2481
    %v4049 = vunpack.c.h.b16 %v2481
    %v4050 = vunpack.c.l.b16 %v2482
    %v4051 = vunpack.c.h.b16 %v2482
    %v4052 = vunpack.c.l.b16 %v2483
    %v4053 = vunpack.c.h.b16 %v2483
    %v4054 = vunpack.c.l.b16 %v2484
    %v4055 = vunpack.c.h.b16 %v2484
    %v4056 = vunpack.c.l.b16 %v2485
    %v4057 = vunpack.c.h.b16 %v2485
    %v4058 = vunpack.c.l.b16 %v2486
    %v4059 = vunpack.c.h.b16 %v2486
    %v4060 = vunpack.c.l.b16 %v2487
    %v4061 = vunpack.c.h.b16 %v2487
    %v4062 = vunpack.c.l.b16 %v2488
    %v4063 = vunpack.c.h.b16 %v2488
    %v4064 = vunpack.c.l.b16 %v2489
    %v4065 = vunpack.c.h.b16 %v2489
    %v4066 = vunpack.c.l.b16 %v2490
    %v4067 = vunpack.c.h.b16 %v2490
    %v4068 = vunpack.c.l.b16 %v2491
    %v4069 = vunpack.c.h.b16 %v2491
    %v4070 = vpack.c.b16 %v3054, %v3046
    %v4071 = vpack.c.b16 %v3055, %v3047
    %v4072 = vpack.c.b16 %v3056, %v3048
    %v4073 = vpack.c.b16 %v3057, %v3049
    %v4074 = vpack.c.b16 %v3058, %v3050
    %v4075 = vpack.c.b16 %v3059, %v3051
    %v4076 = vpack.c.b16 %v3060, %v3052
    %v4077 = vpack.c.b16 %v3061, %v3053
    %v4078 = vpack.c.b16 %v3070, %v3062
    %v4079 = vpack.c.b16 %v3071, %v3063
    %v4080 = vpack.c.b16 %v3072, %v3064
    %v4081 = vpack.c.b16 %v3073, %v3065
    %v4082 = vpack.c.b16 %v3074, %v3066
    %v4083 = vpack.c.b16 %v3075, %v3067
    %v4084 = vpack.c.b16 %v3076, %v3068
    %v4085 = vpack.c.b16 %v3077, %v3069
    %v4086 = vpack.c.b16 %v3086, %v3078
    %v4087 = vpack.c.b16 %v3087, %v3079
    %v4088 = vpack.c.b16 %v3088, %v3080
    %v4089 = vpack.c.b16 %v3089, %v3081
    %v4090 = vpack.c.b16 %v3090, %v3082
    %v4091 = vpack.c.b16 %v3091, %v3083
    %v4092 = vpack.c.b16 %v3092, %v3084
    %v4093 = vpack.c.b16 %v3093, %v3085
    %v4094 = vpack.c.b16 %v3102, %v3094
    %v4095 = vpack.c.b16 %v3103, %v3095
    %v4096 = vpack.c.b16 %v3104, %v3096
    %v4097 = vpack.c.b16 %v3105, %v3097
    %v4098 = vpack.c.b16 %v3106, %v3098
    %v4099 = vpack.c.b16 %v3107, %v3099
    %v4100 = vpack.c.b16 %v3108, %v3100
    %v4101 = vpack.c.b16 %v3109, %v3101
    %v4102 = vpack.c.b16 %v3118, %v3110
    %v4103 = vpack.c.b16 %v3119, %v3111
    %v4104 = vpack.c.b16 %v3120, %v3112
    %v4105 = vpack.c.b16 %v3121, %v3113
    %v4106 = vpack.c.b16 %v3122, %v3114
    %v4107 = vpack.c.b16 %v3123, %v3115
    %v4108 = vpack.c.b16 %v3124, %v3116
    %v4109 = vpack.c.b16 %v3125, %v3117
    %v4110 = vpack.c.b16 %v3134, %v3126
    %v4111 = vpack.c.b16 %v3135, %v3127
    %v4112 = vpack.c.b16 %v3136, %v3128
    %v4113 = vpack.c.b16 %v3137, %v3129
    %v4114 = vpack.c.b16 %v3138, %v3130
    %v4115 = vpack.c.b16 %v3139, %v3131
    %v4116 = vpack.c.b16 %v3140, %v3132
    %v4117 = vpack.c.b16 %v3141, %v3133
    %v4118 = vpack.c.b16 %v3150, %v3142
    %v4119 = vpack.c.b16 %v3151, %v3143
    %v4120 = vpack.c.b16 %v3152, %v3144
    %v4121 = vpack.c.b16 %v3153, %v3145
    %v4122 = vpack.c.b16 %v3154, %v3146
    %v4123 = vpack.c.b16 %v3155, %v3147
    %v4124 = vpack.c.b16 %v3156, %v3148
    %v4125 = vpack.c.b16 %v3157, %v3149
    %v4126 = vpack.c.b16 %v3166, %v3158
    %v4127 = vpack.c.b16 %v3167, %v3159
    %v4128 = vpack.c.b16 %v3168, %v3160
    %v4129 = vpack.c.b16 %v3169, %v3161
    %v4130 = vpack.c.b16 %v3170, %v3162
    %v4131 = vpack.c.b16 %v3171, %v3163
    %v4132 = vpack.c.b16 %v3172, %v3164
    %v4133 = vpack.c.b16 %v3173, %v3165
    %v4134 = vpack.c.b16 %v3182, %v3174
    %v4135 = vpack.c.b16 %v3183, %v3175
    %v4136 = vpack.c.b16 %v3184, %v3176
    %v4137 = vpack.c.b16 %v3185, %v3177
    %v4138 = vpack.c.b16 %v3186, %v3178
    %v4139 = vpack.c.b16 %v3187, %v3179
    %v4140 = vpack.c.b16 %v3188, %v3180
    %v4141 = vpack.c.b16 %v3189, %v3181
    %v4142 = vpack.c.b16 %v3198, %v3190
    %v4143 = vpack.c.b16 %v3199, %v3191
    %v4144 = vpack.c.b16 %v3200, %v3192
    %v4145 = vpack.c.b16 %v3201, %v3193
    %v4146 = vpack.c.b16 %v3202, %v3194
    %v4147 = vpack.c.b16 %v3203, %v3195
    %v4148 = vpack.c.b16 %v3204, %v3196
    %v4149 = vpack.c.b16 %v3205, %v3197
    %v4150 = vpack.c.b16 %v3214, %v3206
    %v4151 = vpack.c.b16 %v3215, %v3207
    %v4152 = vpack.c.b16 %v3216, %v3208
    %v4153 = vpack.c.b16 %v3217, %v3209
    %v4154 = vpack.c.b16 %v3218, %v3210
    %v4155 = vpack.c.b16 %v3219, %v3211
    %v4156 = vpack.c.b16 %v3220, %v3212
    %v4157 = vpack.c.b16 %v3221, %v3213
    %v4158 = vpack.c.b16 %v3230, %v3222
    %v4159 = vpack.c.b16 %v3231, %v3223
    %v4160 = vpack.c.b16 %v3232, %v3224
    %v4161 = vpack.c.b16 %v3233, %v3225
    %v4162 = vpack.c.b16 %v3234, %v3226
    %v4163 = vpack.c.b16 %v3235, %v3227
    %v4164 = vpack.c.b16 %v3236, %v3228
    %v4165 = vpack.c.b16 %v3237, %v3229
    %v4166 = vpack.c.b16 %v3246, %v3238
    %v4167 = vpack.c.b16 %v3247, %v3239
    %v4168 = vpack.c.b16 %v3248, %v3240
    %v4169 = vpack.c.b16 %v3249, %v3241
    %v4170 = vpack.c.b16 %v3250, %v3242
    %v4171 = vpack.c.b16 %v3251, %v3243
    %v4172 = vpack.c.b16 %v3252, %v3244
    %v4173 = vpack.c.b16 %v3253, %v3245
    %v4174 = vpack.c.b16 %v3262, %v3254
    %v4175 = vpack.c.b16 %v3263, %v3255
    %v4176 = vpack.c.b16 %v3264, %v3256
    %v4177 = vpack.c.b16 %v3265, %v3257
    %v4178 = vpack.c.b16 %v3266, %v3258
    %v4179 = vpack.c.b16 %v3267, %v3259
    %v4180 = vpack.c.b16 %v3268, %v3260
    %v4181 = vpack.c.b16 %v3269, %v3261
    %v4182 = vpack.c.b16 %v3278, %v3270
    %v4183 = vpack.c.b16 %v3279, %v3271
    %v4184 = vpack.c.b16 %v3280, %v3272
    %v4185 = vpack.c.b16 %v3281, %v3273
    %v4186 = vpack.c.b16 %v3282, %v3274
    %v4187 = vpack.c.b16 %v3283, %v3275
    %v4188 = vpack.c.b16 %v3284, %v3276
    %v4189 = vpack.c.b16 %v3285, %v3277
    %v4190 = vpack.c.b16 %v3294, %v3286
    %v4191 = vpack.c.b16 %v3295, %v3287
    %v4192 = vpack.c.b16 %v3296, %v3288
    %v4193 = vpack.c.b16 %v3297, %v3289
    %v4194 = vpack.c.b16 %v3298, %v3290
    %v4195 = vpack.c.b16 %v3299, %v3291
    %v4196 = vpack.c.b16 %v3300, %v3292
    %v4197 = vpack.c.b16 %v3301, %v3293
    %v4198 = vpack.c.b16 %v3310, %v3302
    %v4199 = vpack.c.b16 %v3311, %v3303
    %v4200 = vpack.c.b16 %v3312, %v3304
    %v4201 = vpack.c.b16 %v3313, %v3305
    %v4202 = vpack.c.b16 %v3314, %v3306
    %v4203 = vpack.c.b16 %v3315, %v3307
    %v4204 = vpack.c.b16 %v3316, %v3308
    %v4205 = vpack.c.b16 %v3317, %v3309
    %v4206 = vpack.c.b16 %v3326, %v3318
    %v4207 = vpack.c.b16 %v3327, %v3319
    %v4208 = vpack.c.b16 %v3328, %v3320
    %v4209 = vpack.c.b16 %v3329, %v3321
    %v4210 = vpack.c.b16 %v3330, %v3322
    %v4211 = vpack.c.b16 %v3331, %v3323
    %v4212 = vpack.c.b16 %v3332, %v3324
    %v4213 = vpack.c.b16 %v3333, %v3325
    %v4214 = vpack.c.b16 %v3342, %v3334
    %v4215 = vpack.c.b16 %v3343, %v3335
    %v4216 = vpack.c.b16 %v3344, %v3336
    %v4217 = vpack.c.b16 %v3345, %v3337
    %v4218 = vpack.c.b16 %v3346, %v3338
    %v4219 = vpack.c.b16 %v3347, %v3339
    %v4220 = vpack.c.b16 %v3348, %v3340
    %v4221 = vpack.c.b16 %v3349, %v3341
    %v4222 = vpack.c.b16 %v3358, %v3350
    %v4223 = vpack.c.b16 %v3359, %v3351
    %v4224 = vpack.c.b16 %v3360, %v3352
    %v4225 = vpack.c.b16 %v3361, %v3353
    %v4226 = vpack.c.b16 %v3362, %v3354
    %v4227 = vpack.c.b16 %v3363, %v3355
    %v4228 = vpack.c.b16 %v3364, %v3356
    %v4229 = vpack.c.b16 %v3365, %v3357
    %v4230 = vpack.c.b16 %v3374, %v3366
    %v4231 = vpack.c.b16 %v3375, %v3367
    %v4232 = vpack.c.b16 %v3376, %v3368
    %v4233 = vpack.c.b16 %v3377, %v3369
    %v4234 = vpack.c.b16 %v3378, %v3370
    %v4235 = vpack.c.b16 %v3379, %v3371
    %v4236 = vpack.c.b16 %v3380, %v3372
    %v4237 = vpack.c.b16 %v3381, %v3373
    %v4238 = vpack.c.b16 %v3390, %v3382
    %v4239 = vpack.c.b16 %v3391, %v3383
    %v4240 = vpack.c.b16 %v3392, %v3384
    %v4241 = vpack.c.b16 %v3393, %v3385
    %v4242 = vpack.c.b16 %v3394, %v3386
    %v4243 = vpack.c.b16 %v3395, %v3387
    %v4244 = vpack.c.b16 %v3396, %v3388
    %v4245 = vpack.c.b16 %v3397, %v3389
    %v4246 = vpack.c.b16 %v3406, %v3398
    %v4247 = vpack.c.b16 %v3407, %v3399
    %v4248 = vpack.c.b16 %v3408, %v3400
    %v4249 = vpack.c.b16 %v3409, %v3401
    %v4250 = vpack.c.b16 %v3410, %v3402
    %v4251 = vpack.c.b16 %v3411, %v3403
    %v4252 = vpack.c.b16 %v3412, %v3404
    %v4253 = vpack.c.b16 %v3413, %v3405
    %v4254 = vpack.c.b16 %v3422, %v3414
    %v4255 = vpack.c.b16 %v3423, %v3415
    %v4256 = vpack.c.b16 %v3424, %v3416
    %v4257 = vpack.c.b16 %v3425, %v3417
    %v4258 = vpack.c.b16 %v3426, %v3418
    %v4259 = vpack.c.b16 %v3427, %v3419
    %v4260 = vpack.c.b16 %v3428, %v3420
    %v4261 = vpack.c.b16 %v3429, %v3421
    %v4262 = vpack.c.b16 %v3438, %v3430
    %v4263 = vpack.c.b16 %v3439, %v3431
    %v4264 = vpack.c.b16 %v3440, %v3432
    %v4265 = vpack.c.b16 %v3441, %v3433
    %v4266 = vpack.c.b16 %v3442, %v3434
    %v4267 = vpack.c.b16 %v3443, %v3435
    %v4268 = vpack.c.b16 %v3444, %v3436
    %v4269 = vpack.c.b16 %v3445, %v3437
    %v4270 = vpack.c.b16 %v3454, %v3446
    %v4271 = vpack.c.b16 %v3455, %v3447
    %v4272 = vpack.c.b16 %v3456, %v3448
    %v4273 = vpack.c.b16 %v3457, %v3449
    %v4274 = vpack.c.b16 %v3458, %v3450
    %v4275 = vpack.c.b16 %v3459, %v3451
    %v4276 = vpack.c.b16 %v3460, %v3452
    %v4277 = vpack.c.b16 %v3461, %v3453
    %v4278 = vpack.c.b16 %v3470, %v3462
    %v4279 = vpack.c.b16 %v3471, %v3463
    %v4280 = vpack.c.b16 %v3472, %v3464
    %v4281 = vpack.c.b16 %v3473, %v3465
    %v4282 = vpack.c.b16 %v3474, %v3466
    %v4283 = vpack.c.b16 %v3475, %v3467
    %v4284 = vpack.c.b16 %v3476, %v3468
    %v4285 = vpack.c.b16 %v3477, %v3469
    %v4286 = vpack.c.b16 %v3486, %v3478
    %v4287 = vpack.c.b16 %v3487, %v3479
    %v4288 = vpack.c.b16 %v3488, %v3480
    %v4289 = vpack.c.b16 %v3489, %v3481
    %v4290 = vpack.c.b16 %v3490, %v3482
    %v4291 = vpack.c.b16 %v3491, %v3483
    %v4292 = vpack.c.b16 %v3492, %v3484
    %v4293 = vpack.c.b16 %v3493, %v3485
    %v4294 = vpack.c.b16 %v3502, %v3494
    %v4295 = vpack.c.b16 %v3503, %v3495
    %v4296 = vpack.c.b16 %v3504, %v3496
    %v4297 = vpack.c.b16 %v3505, %v3497
    %v4298 = vpack.c.b16 %v3506, %v3498
    %v4299 = vpack.c.b16 %v3507, %v3499
    %v4300 = vpack.c.b16 %v3508, %v3500
    %v4301 = vpack.c.b16 %v3509, %v3501
    %v4302 = vpack.c.b16 %v3518, %v3510
    %v4303 = vpack.c.b16 %v3519, %v3511
    %v4304 = vpack.c.b16 %v3520, %v3512
    %v4305 = vpack.c.b16 %v3521, %v3513
    %v4306 = vpack.c.b16 %v3522, %v3514
    %v4307 = vpack.c.b16 %v3523, %v3515
    %v4308 = vpack.c.b16 %v3524, %v3516
    %v4309 = vpack.c.b16 %v3525, %v3517
    %v4310 = vpack.c.b16 %v3534, %v3526
    %v4311 = vpack.c.b16 %v3535, %v3527
    %v4312 = vpack.c.b16 %v3536, %v3528
    %v4313 = vpack.c.b16 %v3537, %v3529
    %v4314 = vpack.c.b16 %v3538, %v3530
    %v4315 = vpack.c.b16 %v3539, %v3531
    %v4316 = vpack.c.b16 %v3540, %v3532
    %v4317 = vpack.c.b16 %v3541, %v3533
    %v4318 = vpack.c.b16 %v3550, %v3542
    %v4319 = vpack.c.b16 %v3551, %v3543
    %v4320 = vpack.c.b16 %v3552, %v3544
    %v4321 = vpack.c.b16 %v3553, %v3545
    %v4322 = vpack.c.b16 %v3554, %v3546
    %v4323 = vpack.c.b16 %v3555, %v3547
    %v4324 = vpack.c.b16 %v3556, %v3548
    %v4325 = vpack.c.b16 %v3557, %v3549
    %v4326 = vpack.c.b16 %v3566, %v3558
    %v4327 = vpack.c.b16 %v3567, %v3559
    %v4328 = vpack.c.b16 %v3568, %v3560
    %v4329 = vpack.c.b16 %v3569, %v3561
    %v4330 = vpack.c.b16 %v3570, %v3562
    %v4331 = vpack.c.b16 %v3571, %v3563
    %v4332 = vpack.c.b16 %v3572, %v3564
    %v4333 = vpack.c.b16 %v3573, %v3565
    %v4334 = vpack.c.b16 %v3582, %v3574
    %v4335 = vpack.c.b16 %v3583, %v3575
    %v4336 = vpack.c.b16 %v3584, %v3576
    %v4337 = vpack.c.b16 %v3585, %v3577
    %v4338 = vpack.c.b16 %v3586, %v3578
    %v4339 = vpack.c.b16 %v3587, %v3579
    %v4340 = vpack.c.b16 %v3588, %v3580
    %v4341 = vpack.c.b16 %v3589, %v3581
    %v4342 = vpack.c.b16 %v3598, %v3590
    %v4343 = vpack.c.b16 %v3599, %v3591
    %v4344 = vpack.c.b16 %v3600, %v3592
    %v4345 = vpack.c.b16 %v3601, %v3593
    %v4346 = vpack.c.b16 %v3602, %v3594
    %v4347 = vpack.c.b16 %v3603, %v3595
    %v4348 = vpack.c.b16 %v3604, %v3596
    %v4349 = vpack.c.b16 %v3605, %v3597
    %v4350 = vpack.c.b16 %v3614, %v3606
    %v4351 = vpack.c.b16 %v3615, %v3607
    %v4352 = vpack.c.b16 %v3616, %v3608
    %v4353 = vpack.c.b16 %v3617, %v3609
    %v4354 = vpack.c.b16 %v3618, %v3610
    %v4355 = vpack.c.b16 %v3619, %v3611
    %v4356 = vpack.c.b16 %v3620, %v3612
    %v4357 = vpack.c.b16 %v3621, %v3613
    %v4358 = vpack.c.b16 %v3630, %v3622
    %v4359 = vpack.c.b16 %v3631, %v3623
    %v4360 = vpack.c.b16 %v3632, %v3624
    %v4361 = vpack.c.b16 %v3633, %v3625
    %v4362 = vpack.c.b16 %v3634, %v3626
    %v4363 = vpack.c.b16 %v3635, %v3627
    %v4364 = vpack.c.b16 %v3636, %v3628
    %v4365 = vpack.c.b16 %v3637, %v3629
    %v4366 = vpack.c.b16 %v3646, %v3638
    %v4367 = vpack.c.b16 %v3647, %v3639
    %v4368 = vpack.c.b16 %v3648, %v3640
    %v4369 = vpack.c.b16 %v3649, %v3641
    %v4370 = vpack.c.b16 %v3650, %v3642
    %v4371 = vpack.c.b16 %v3651, %v3643
    %v4372 = vpack.c.b16 %v3652, %v3644
    %v4373 = vpack.c.b16 %v3653, %v3645
    %v4374 = vpack.c.b16 %v3662, %v3654
    %v4375 = vpack.c.b16 %v3663, %v3655
    %v4376 = vpack.c.b16 %v3664, %v3656
    %v4377 = vpack.c.b16 %v3665, %v3657
    %v4378 = vpack.c.b16 %v3666, %v3658
    %v4379 = vpack.c.b16 %v3667, %v3659
    %v4380 = vpack.c.b16 %v3668, %v3660
    %v4381 = vpack.c.b16 %v3669, %v3661
    %v4382 = vpack.c.b16 %v3678, %v3670
    %v4383 = vpack.c.b16 %v3679, %v3671
    %v4384 = vpack.c.b16 %v3680, %v3672
    %v4385 = vpack.c.b16 %v3681, %v3673
    %v4386 = vpack.c.b16 %v3682, %v3674
    %v4387 = vpack.c.b16 %v3683, %v3675
    %v4388 = vpack.c.b16 %v3684, %v3676
    %v4389 = vpack.c.b16 %v3685, %v3677
    %v4390 = vpack.c.b16 %v3694, %v3686
    %v4391 = vpack.c.b16 %v3695, %v3687
    %v4392 = vpack.c.b16 %v3696, %v3688
    %v4393 = vpack.c.b16 %v3697, %v3689
    %v4394 = vpack.c.b16 %v3698, %v3690
    %v4395 = vpack.c.b16 %v3699, %v3691
    %v4396 = vpack.c.b16 %v3700, %v3692
    %v4397 = vpack.c.b16 %v3701, %v3693
    %v4398 = vpack.c.b16 %v3710, %v3702
    %v4399 = vpack.c.b16 %v3711, %v3703
    %v4400 = vpack.c.b16 %v3712, %v3704
    %v4401 = vpack.c.b16 %v3713, %v3705
    %v4402 = vpack.c.b16 %v3714, %v3706
    %v4403 = vpack.c.b16 %v3715, %v3707
    %v4404 = vpack.c.b16 %v3716, %v3708
    %v4405 = vpack.c.b16 %v3717, %v3709
    %v4406 = vpack.c.b16 %v3726, %v3718
    %v4407 = vpack.c.b16 %v3727, %v3719
    %v4408 = vpack.c.b16 %v3728, %v3720
    %v4409 = vpack.c.b16 %v3729, %v3721
    %v4410 = vpack.c.b16 %v3730, %v3722
    %v4411 = vpack.c.b16 %v3731, %v3723
    %v4412 = vpack.c.b16 %v3732, %v3724
    %v4413 = vpack.c.b16 %v3733, %v3725
    %v4414 = vpack.c.b16 %v3742, %v3734
    %v4415 = vpack.c.b16 %v3743, %v3735
    %v4416 = vpack.c.b16 %v3744, %v3736
    %v4417 = vpack.c.b16 %v3745, %v3737
    %v4418 = vpack.c.b16 %v3746, %v3738
    %v4419 = vpack.c.b16 %v3747, %v3739
    %v4420 = vpack.c.b16 %v3748, %v3740
    %v4421 = vpack.c.b16 %v3749, %v3741
    %v4422 = vpack.c.b16 %v3758, %v3750
    %v4423 = vpack.c.b16 %v3759, %v3751
    %v4424 = vpack.c.b16 %v3760, %v3752
    %v4425 = vpack.c.b16 %v3761, %v3753
    %v4426 = vpack.c.b16 %v3762, %v3754
    %v4427 = vpack.c.b16 %v3763, %v3755
    %v4428 = vpack.c.b16 %v3764, %v3756
    %v4429 = vpack.c.b16 %v3765, %v3757
    %v4430 = vpack.c.b16 %v3774, %v3766
    %v4431 = vpack.c.b16 %v3775, %v3767
    %v4432 = vpack.c.b16 %v3776, %v3768
    %v4433 = vpack.c.b16 %v3777, %v3769
    %v4434 = vpack.c.b16 %v3778, %v3770
    %v4435 = vpack.c.b16 %v3779, %v3771
    %v4436 = vpack.c.b16 %v3780, %v3772
    %v4437 = vpack.c.b16 %v3781, %v3773
    %v4438 = vpack.c.b16 %v3790, %v3782
    %v4439 = vpack.c.b16 %v3791, %v3783
    %v4440 = vpack.c.b16 %v3792, %v3784
    %v4441 = vpack.c.b16 %v3793, %v3785
    %v4442 = vpack.c.b16 %v3794, %v3786
    %v4443 = vpack.c.b16 %v3795, %v3787
    %v4444 = vpack.c.b16 %v3796, %v3788
    %v4445 = vpack.c.b16 %v3797, %v3789
    %v4446 = vpack.c.b16 %v3806, %v3798
    %v4447 = vpack.c.b16 %v3807, %v3799
    %v4448 = vpack.c.b16 %v3808, %v3800
    %v4449 = vpack.c.b16 %v3809, %v3801
    %v4450 = vpack.c.b16 %v3810, %v3802
    %v4451 = vpack.c.b16 %v3811, %v3803
    %v4452 = vpack.c.b16 %v3812, %v3804
    %v4453 = vpack.c.b16 %v3813, %v3805
    %v4454 = vpack.c.b16 %v3822, %v3814
    %v4455 = vpack.c.b16 %v3823, %v3815
    %v4456 = vpack.c.b16 %v3824, %v3816
    %v4457 = vpack.c.b16 %v3825, %v3817
    %v4458 = vpack.c.b16 %v3826, %v3818
    %v4459 = vpack.c.b16 %v3827, %v3819
    %v4460 = vpack.c.b16 %v3828, %v3820
    %v4461 = vpack.c.b16 %v3829, %v3821
    %v4462 = vpack.c.b16 %v3838, %v3830
    %v4463 = vpack.c.b16 %v3839, %v3831
    %v4464 = vpack.c.b16 %v3840, %v3832
    %v4465 = vpack.c.b16 %v3841, %v3833
    %v4466 = vpack.c.b16 %v3842, %v3834
    %v4467 = vpack.c.b16 %v3843, %v3835
    %v4468 = vpack.c.b16 %v3844, %v3836
    %v4469 = vpack.c.b16 %v3845, %v3837
    %v4470 = vpack.c.b16 %v3854, %v3846
    %v4471 = vpack.c.b16 %v3855, %v3847
    %v4472 = vpack.c.b16 %v3856, %v3848
    %v4473 = vpack.c.b16 %v3857, %v3849
    %v4474 = vpack.c.b16 %v3858, %v3850
    %v4475 = vpack.c.b16 %v3859, %v3851
    %v4476 = vpack.c.b16 %v3860, %v3852
    %v4477 = vpack.c.b16 %v3861, %v3853
    %v4478 = vpack.c.b16 %v3870, %v3862
    %v4479 = vpack.c.b16 %v3871, %v3863
    %v4480 = vpack.c.b16 %v3872, %v3864
    %v4481 = vpack.c.b16 %v3873, %v3865
    %v4482 = vpack.c.b16 %v3874, %v3866
    %v4483 = vpack.c.b16 %v3875, %v3867
    %v4484 = vpack.c.b16 %v3876, %v3868
    %v4485 = vpack.c.b16 %v3877, %v3869
    %v4486 = vpack.c.b16 %v3886, %v3878
    %v4487 = vpack.c.b16 %v3887, %v3879
    %v4488 = vpack.c.b16 %v3888, %v3880
    %v4489 = vpack.c.b16 %v3889, %v3881
    %v4490 = vpack.c.b16 %v3890, %v3882
    %v4491 = vpack.c.b16 %v3891, %v3883
    %v4492 = vpack.c.b16 %v3892, %v3884
    %v4493 = vpack.c.b16 %v3893, %v3885
    %v4494 = vpack.c.b16 %v3902, %v3894
    %v4495 = vpack.c.b16 %v3903, %v3895
    %v4496 = vpack.c.b16 %v3904, %v3896
    %v4497 = vpack.c.b16 %v3905, %v3897
    %v4498 = vpack.c.b16 %v3906, %v3898
    %v4499 = vpack.c.b16 %v3907, %v3899
    %v4500 = vpack.c.b16 %v3908, %v3900
    %v4501 = vpack.c.b16 %v3909, %v3901
    %v4502 = vpack.c.b16 %v3918, %v3910
    %v4503 = vpack.c.b16 %v3919, %v3911
    %v4504 = vpack.c.b16 %v3920, %v3912
    %v4505 = vpack.c.b16 %v3921, %v3913
    %v4506 = vpack.c.b16 %v3922, %v3914
    %v4507 = vpack.c.b16 %v3923, %v3915
    %v4508 = vpack.c.b16 %v3924, %v3916
    %v4509 = vpack.c.b16 %v3925, %v3917
    %v4510 = vpack.c.b16 %v3934, %v3926
    %v4511 = vpack.c.b16 %v3935, %v3927
    %v4512 = vpack.c.b16 %v3936, %v3928
    %v4513 = vpack.c.b16 %v3937, %v3929
    %v4514 = vpack.c.b16 %v3938, %v3930
    %v4515 = vpack.c.b16 %v3939, %v3931
    %v4516 = vpack.c.b16 %v3940, %v3932
    %v4517 = vpack.c.b16 %v3941, %v3933
    %v4518 = vpack.c.b16 %v3950, %v3942
    %v4519 = vpack.c.b16 %v3951, %v3943
    %v4520 = vpack.c.b16 %v3952, %v3944
    %v4521 = vpack.c.b16 %v3953, %v3945
    %v4522 = vpack.c.b16 %v3954, %v3946
    %v4523 = vpack.c.b16 %v3955, %v3947
    %v4524 = vpack.c.b16 %v3956, %v3948
    %v4525 = vpack.c.b16 %v3957, %v3949
    %v4526 = vpack.c.b16 %v3966, %v3958
    %v4527 = vpack.c.b16 %v3967, %v3959
    %v4528 = vpack.c.b16 %v3968, %v3960
    %v4529 = vpack.c.b16 %v3969, %v3961
    %v4530 = vpack.c.b16 %v3970, %v3962
    %v4531 = vpack.c.b16 %v3971, %v3963
    %v4532 = vpack.c.b16 %v3972, %v3964
    %v4533 = vpack.c.b16 %v3973, %v3965
    %v4534 = vpack.c.b16 %v3982, %v3974
    %v4535 = vpack.c.b16 %v3983, %v3975
    %v4536 = vpack.c.b16 %v3984, %v3976
    %v4537 = vpack.c.b16 %v3985, %v3977
    %v4538 = vpack.c.b16 %v3986, %v3978
    %v4539 = vpack.c.b16 %v3987, %v3979
    %v4540 = vpack.c.b16 %v3988, %v3980
    %v4541 = vpack.c.b16 %v3989, %v3981
    %v4542 = vpack.c.b16 %v3998, %v3990
    %v4543 = vpack.c.b16 %v3999, %v3991
    %v4544 = vpack.c.b16 %v4000, %v3992
    %v4545 = vpack.c.b16 %v4001, %v3993
    %v4546 = vpack.c.b16 %v4002, %v3994
    %v4547 = vpack.c.b16 %v4003, %v3995
    %v4548 = vpack.c.b16 %v4004, %v3996
    %v4549 = vpack.c.b16 %v4005, %v3997
    %v4550 = vpack.c.b16 %v4014, %v4006
    %v4551 = vpack.c.b16 %v4015, %v4007
    %v4552 = vpack.c.b16 %v4016, %v4008
    %v4553 = vpack.c.b16 %v4017, %v4009
    %v4554 = vpack.c.b16 %v4018, %v4010
    %v4555 = vpack.c.b16 %v4019, %v4011
    %v4556 = vpack.c.b16 %v4020, %v4012
    %v4557 = vpack.c.b16 %v4021, %v4013
    %v4558 = vpack.c.b16 %v4030, %v4022
    %v4559 = vpack.c.b16 %v4031, %v4023
    %v4560 = vpack.c.b16 %v4032, %v4024
    %v4561 = vpack.c.b16 %v4033, %v4025
    %v4562 = vpack.c.b16 %v4034, %v4026
    %v4563 = vpack.c.b16 %v4035, %v4027
    %v4564 = vpack.c.b16 %v4036, %v4028
    %v4565 = vpack.c.b16 %v4037, %v4029
    %v4566 = vpack.c.b16 %v4046, %v4038
    %v4567 = vpack.c.b16 %v4047, %v4039
    %v4568 = vpack.c.b16 %v4048, %v4040
    %v4569 = vpack.c.b16 %v4049, %v4041
    %v4570 = vpack.c.b16 %v4050, %v4042
    %v4571 = vpack.c.b16 %v4051, %v4043
    %v4572 = vpack.c.b16 %v4052, %v4044
    %v4573 = vpack.c.b16 %v4053, %v4045
    %v4574 = vpack.c.b16 %v4062, %v4054
    %v4575 = vpack.c.b16 %v4063, %v4055
    %v4576 = vpack.c.b16 %v4064, %v4056
    %v4577 = vpack.c.b16 %v4065, %v4057
    %v4578 = vpack.c.b16 %v4066, %v4058
    %v4579 = vpack.c.b16 %v4067, %v4059
    %v4580 = vpack.c.b16 %v4068, %v4060
    %v4581 = vpack.c.b16 %v4069, %v4061
    %5094 = vmatprep.subr.bf16.mxu0 %v4071
    %5095 = vmatpush1.bf16.msra.mxu0 %v4070
    %5096 = vmatprep.subr.bf16.mxu0 %v4079
    %5097 = vmatpush1.bf16.msra.mxu0 %v4078
    %5098 = vmatprep.subr.bf16.mxu0 %v4087
    %5099 = vmatpush1.bf16.msra.mxu0 %v4086
    %5100 = vmatprep.subr.bf16.mxu0 %v4095
    %5101 = vmatpush1.bf16.msra.mxu0 %v4094
    %5102 = vmatprep.subr.bf16.mxu0 %v4103
    %5103 = vmatpush1.bf16.msra.mxu0 %v4102
    %5104 = vmatprep.subr.bf16.mxu0 %v4111
    %5105 = vmatpush1.bf16.msra.mxu0 %v4110
    %5106 = vmatprep.subr.bf16.mxu0 %v4119
    %5107 = vmatpush1.bf16.msra.mxu0 %v4118
    %5108 = vmatprep.subr.bf16.mxu0 %v4127
    %5109 = vmatpush1.bf16.msra.mxu0 %v4126
    %5110 = vmatprep.subr.bf16.mxu0 %v4135
    %5111 = vmatpush1.bf16.msra.mxu0 %v4134
    %5112 = vmatprep.subr.bf16.mxu0 %v4143
    %5113 = vmatpush1.bf16.msra.mxu0 %v4142
    %5114 = vmatprep.subr.bf16.mxu0 %v4151
    %5115 = vmatpush1.bf16.msra.mxu0 %v4150
    %5116 = vmatprep.subr.bf16.mxu0 %v4159
    %5117 = vmatpush1.bf16.msra.mxu0 %v4158
    %5118 = vmatprep.subr.bf16.mxu0 %v4167
    %5119 = vmatpush1.bf16.msra.mxu0 %v4166
    %5120 = vmatprep.subr.bf16.mxu0 %v4175
    %5121 = vmatpush1.bf16.msra.mxu0 %v4174
    %5122 = vmatprep.subr.bf16.mxu0 %v4183
    %5123 = vmatpush1.bf16.msra.mxu0 %v4182
    %5124 = vmatprep.subr.bf16.mxu0 %v4191
    %5125 = vmatpush1.bf16.msra.mxu0 %v4190
    %5126 = vmatprep.mubr.bf16.mxu0 %v1973
    %5127 = vmatmul.mubr.bf16.gmra.mrb[0].mxu0 %v1972
    %v5128 = vpop.f32.mrb[0].mxu0
    %v5129 = vadd.f32 %v2497, %v5128
    %v5130 = vpop.f32.mrb[0].mxu0
    %v5131 = vadd.f32 %v2501, %v5130
    %v5132 = vpop.f32.mrb[0].mxu0
    %v5133 = vpop.f32.mrb[0].mxu0
    %5134 = vdwg.mxu0
    %5135 = vmatprep.subr.bf16.mxu0 %v4199
    %5136 = vmatpush1.bf16.msra.mxu0 %v4198
    %5137 = vmatprep.subr.bf16.mxu0 %v4207
    %5138 = vmatpush1.bf16.msra.mxu0 %v4206
    %5139 = vmatprep.subr.bf16.mxu0 %v4215
    %5140 = vmatpush1.bf16.msra.mxu0 %v4214
    %5141 = vmatprep.subr.bf16.mxu0 %v4223
    %5142 = vmatpush1.bf16.msra.mxu0 %v4222
    %5143 = vmatprep.subr.bf16.mxu0 %v4231
    %5144 = vmatpush1.bf16.msra.mxu0 %v4230
    %5145 = vmatprep.subr.bf16.mxu0 %v4239
    %5146 = vmatpush1.bf16.msra.mxu0 %v4238
    %5147 = vmatprep.subr.bf16.mxu0 %v4247
    %5148 = vmatpush1.bf16.msra.mxu0 %v4246
    %5149 = vmatprep.subr.bf16.mxu0 %v4255
    %5150 = vmatpush1.bf16.msra.mxu0 %v4254
    %5151 = vmatprep.subr.bf16.mxu0 %v4263
    %5152 = vmatpush1.bf16.msra.mxu0 %v4262
    %5153 = vmatprep.subr.bf16.mxu0 %v4271
    %5154 = vmatpush1.bf16.msra.mxu0 %v4270
    %5155 = vmatprep.subr.bf16.mxu0 %v4279
    %5156 = vmatpush1.bf16.msra.mxu0 %v4278
    %5157 = vmatprep.subr.bf16.mxu0 %v4287
    %5158 = vmatpush1.bf16.msra.mxu0 %v4286
    %5159 = vmatprep.subr.bf16.mxu0 %v4295
    %5160 = vmatpush1.bf16.msra.mxu0 %v4294
    %5161 = vmatprep.subr.bf16.mxu0 %v4303
    %5162 = vmatpush1.bf16.msra.mxu0 %v4302
    %5163 = vmatprep.subr.bf16.mxu0 %v4311
    %5164 = vmatpush1.bf16.msra.mxu0 %v4310
    %5165 = vmatprep.subr.bf16.mxu0 %v4319
    %5166 = vmatpush1.bf16.msra.mxu0 %v4318
    %5167 = vmatprep.mubr.bf16.mxu0 %v1975
    %5168 = vmatmul.mubr.bf16.gmra.mrb[0].mxu0 %v1974
    %v5169 = vpop.f32.mrb[0].mxu0
    %v5170 = vadd.f32 %v5129, %v5169
    %v5171 = vpop.f32.mrb[0].mxu0
    %v5172 = vadd.f32 %v5131, %v5171
    %v5173 = vpop.f32.mrb[0].mxu0
    %v5174 = vpop.f32.mrb[0].mxu0
    %5175 = vdwg.mxu0
    %5176 = vmatprep.subr.bf16.mxu0 %v4327
    %5177 = vmatpush1.bf16.msra.mxu0 %v4326
    %5178 = vmatprep.subr.bf16.mxu0 %v4335
    %5179 = vmatpush1.bf16.msra.mxu0 %v4334
    %5180 = vmatprep.subr.bf16.mxu0 %v4343
    %5181 = vmatpush1.bf16.msra.mxu0 %v4342
    %5182 = vmatprep.subr.bf16.mxu0 %v4351
    %5183 = vmatpush1.bf16.msra.mxu0 %v4350
    %5184 = vmatprep.subr.bf16.mxu0 %v4359
    %5185 = vmatpush1.bf16.msra.mxu0 %v4358
    %5186 = vmatprep.subr.bf16.mxu0 %v4367
    %5187 = vmatpush1.bf16.msra.mxu0 %v4366
    %5188 = vmatprep.subr.bf16.mxu0 %v4375
    %5189 = vmatpush1.bf16.msra.mxu0 %v4374
    %5190 = vmatprep.subr.bf16.mxu0 %v4383
    %5191 = vmatpush1.bf16.msra.mxu0 %v4382
    %5192 = vmatprep.subr.bf16.mxu0 %v4391
    %5193 = vmatpush1.bf16.msra.mxu0 %v4390
    %5194 = vmatprep.subr.bf16.mxu0 %v4399
    %5195 = vmatpush1.bf16.msra.mxu0 %v4398
    %5196 = vmatprep.subr.bf16.mxu0 %v4407
    %5197 = vmatpush1.bf16.msra.mxu0 %v4406
    %5198 = vmatprep.subr.bf16.mxu0 %v4415
    %5199 = vmatpush1.bf16.msra.mxu0 %v4414
    %5200 = vmatprep.subr.bf16.mxu0 %v4423
    %5201 = vmatpush1.bf16.msra.mxu0 %v4422
    %5202 = vmatprep.subr.bf16.mxu0 %v4431
    %5203 = vmatpush1.bf16.msra.mxu0 %v4430
    %5204 = vmatprep.subr.bf16.mxu0 %v4439
    %5205 = vmatpush1.bf16.msra.mxu0 %v4438
    %5206 = vmatprep.subr.bf16.mxu0 %v4447
    %5207 = vmatpush1.bf16.msra.mxu0 %v4446
    %5208 = vmatprep.mubr.bf16.mxu0 %v1977
    %5209 = vmatmul.mubr.bf16.gmra.mrb[0].mxu0 %v1976
    %v5210 = vpop.f32.mrb[0].mxu0
    %v5211 = vadd.f32 %v5170, %v5210
    %v5212 = vpop.f32.mrb[0].mxu0
    %v5213 = vadd.f32 %v5172, %v5212
    %v5214 = vpop.f32.mrb[0].mxu0
    %v5215 = vpop.f32.mrb[0].mxu0
    %5216 = vdwg.mxu0
    %5217 = vmatprep.subr.bf16.mxu0 %v4455
    %5218 = vmatpush1.bf16.msra.mxu0 %v4454
    %5219 = vmatprep.subr.bf16.mxu0 %v4463
    %5220 = vmatpush1.bf16.msra.mxu0 %v4462
    %5221 = vmatprep.subr.bf16.mxu0 %v4471
    %5222 = vmatpush1.bf16.msra.mxu0 %v4470
    %5223 = vmatprep.subr.bf16.mxu0 %v4479
    %5224 = vmatpush1.bf16.msra.mxu0 %v4478
    %5225 = vmatprep.subr.bf16.mxu0 %v4487
    %5226 = vmatpush1.bf16.msra.mxu0 %v4486
    %5227 = vmatprep.subr.bf16.mxu0 %v4495
    %5228 = vmatpush1.bf16.msra.mxu0 %v4494
    %5229 = vmatprep.subr.bf16.mxu0 %v4503
    %5230 = vmatpush1.bf16.msra.mxu0 %v4502
    %5231 = vmatprep.subr.bf16.mxu0 %v4511
    %5232 = vmatpush1.bf16.msra.mxu0 %v4510
    %5233 = vmatprep.subr.bf16.mxu0 %v4519
    %5234 = vmatpush1.bf16.msra.mxu0 %v4518
    %5235 = vmatprep.subr.bf16.mxu0 %v4527
    %5236 = vmatpush1.bf16.msra.mxu0 %v4526
    %5237 = vmatprep.subr.bf16.mxu0 %v4535
    %5238 = vmatpush1.bf16.msra.mxu0 %v4534
    %5239 = vmatprep.subr.bf16.mxu0 %v4543
    %5240 = vmatpush1.bf16.msra.mxu0 %v4542
    %5241 = vmatprep.subr.bf16.mxu0 %v4551
    %5242 = vmatpush1.bf16.msra.mxu0 %v4550
    %5243 = vmatprep.subr.bf16.mxu0 %v4559
    %5244 = vmatpush1.bf16.msra.mxu0 %v4558
    %5245 = vmatprep.subr.bf16.mxu0 %v4567
    %5246 = vmatpush1.bf16.msra.mxu0 %v4566
    %5247 = vmatprep.subr.bf16.mxu0 %v4575
    %5248 = vmatpush1.bf16.msra.mxu0 %v4574
    %5249 = vmatprep.mubr.bf16.mxu0 %v1979
    %5250 = vmatmul.mubr.bf16.gmra.mrb[0].mxu0 %v1978
    %v5251 = vpop.f32.mrb[0].mxu0
    %v5252 = vadd.f32 %v5211, %v5251
    %v5253 = vpop.f32.mrb[0].mxu0
    %v5254 = vadd.f32 %v5213, %v5253
    %v5255 = vpop.f32.mrb[0].mxu0
    %v5256 = vpop.f32.mrb[0].mxu0
    %5257 = vdwg.mxu0
    %5258 = vmatprep.subr.bf16.mxu0 %v4073
    %5259 = vmatpush1.bf16.msra.mxu0 %v4072
    %5260 = vmatprep.subr.bf16.mxu0 %v4081
    %5261 = vmatpush1.bf16.msra.mxu0 %v4080
    %5262 = vmatprep.subr.bf16.mxu0 %v4089
    %5263 = vmatpush1.bf16.msra.mxu0 %v4088
    %5264 = vmatprep.subr.bf16.mxu0 %v4097
    %5265 = vmatpush1.bf16.msra.mxu0 %v4096
    %5266 = vmatprep.subr.bf16.mxu0 %v4105
    %5267 = vmatpush1.bf16.msra.mxu0 %v4104
    %5268 = vmatprep.subr.bf16.mxu0 %v4113
    %5269 = vmatpush1.bf16.msra.mxu0 %v4112
    %5270 = vmatprep.subr.bf16.mxu0 %v4121
    %5271 = vmatpush1.bf16.msra.mxu0 %v4120
    %5272 = vmatprep.subr.bf16.mxu0 %v4129
    %5273 = vmatpush1.bf16.msra.mxu0 %v4128
    %5274 = vmatprep.subr.bf16.mxu0 %v4137
    %5275 = vmatpush1.bf16.msra.mxu0 %v4136
    %5276 = vmatprep.subr.bf16.mxu0 %v4145
    %5277 = vmatpush1.bf16.msra.mxu0 %v4144
    %5278 = vmatprep.subr.bf16.mxu0 %v4153
    %5279 = vmatpush1.bf16.msra.mxu0 %v4152
    %5280 = vmatprep.subr.bf16.mxu0 %v4161
    %5281 = vmatpush1.bf16.msra.mxu0 %v4160
    %5282 = vmatprep.subr.bf16.mxu0 %v4169
    %5283 = vmatpush1.bf16.msra.mxu0 %v4168
    %5284 = vmatprep.subr.bf16.mxu0 %v4177
    %5285 = vmatpush1.bf16.msra.mxu0 %v4176
    %5286 = vmatprep.subr.bf16.mxu0 %v4185
    %5287 = vmatpush1.bf16.msra.mxu0 %v4184
    %5288 = vmatprep.subr.bf16.mxu0 %v4193
    %5289 = vmatpush1.bf16.msra.mxu0 %v4192
    %5290 = vmatprep.mubr.bf16.mxu0 %v1973
    %5291 = vmatmul.mubr.bf16.gmra.mrb[0].mxu0 %v1972
    %v5292 = vpop.f32.mrb[0].mxu0
    %v5293 = vadd.f32 %v2505, %v5292
    %v5294 = vpop.f32.mrb[0].mxu0
    %v5295 = vadd.f32 %v2509, %v5294
    %v5296 = vpop.f32.mrb[0].mxu0
    %v5297 = vpop.f32.mrb[0].mxu0
    %5298 = vdwg.mxu0
    %5299 = vmatprep.subr.bf16.mxu0 %v4201
    %5300 = vmatpush1.bf16.msra.mxu0 %v4200
    %5301 = vmatprep.subr.bf16.mxu0 %v4209
    %5302 = vmatpush1.bf16.msra.mxu0 %v4208
    %5303 = vmatprep.subr.bf16.mxu0 %v4217
    %5304 = vmatpush1.bf16.msra.mxu0 %v4216
    %5305 = vmatprep.subr.bf16.mxu0 %v4225
    %5306 = vmatpush1.bf16.msra.mxu0 %v4224
    %5307 = vmatprep.subr.bf16.mxu0 %v4233
    %5308 = vmatpush1.bf16.msra.mxu0 %v4232
    %5309 = vmatprep.subr.bf16.mxu0 %v4241
    %5310 = vmatpush1.bf16.msra.mxu0 %v4240
    %5311 = vmatprep.subr.bf16.mxu0 %v4249
    %5312 = vmatpush1.bf16.msra.mxu0 %v4248
    %5313 = vmatprep.subr.bf16.mxu0 %v4257
    %5314 = vmatpush1.bf16.msra.mxu0 %v4256
    %5315 = vmatprep.subr.bf16.mxu0 %v4265
    %5316 = vmatpush1.bf16.msra.mxu0 %v4264
    %5317 = vmatprep.subr.bf16.mxu0 %v4273
    %5318 = vmatpush1.bf16.msra.mxu0 %v4272
    %5319 = vmatprep.subr.bf16.mxu0 %v4281
    %5320 = vmatpush1.bf16.msra.mxu0 %v4280
    %5321 = vmatprep.subr.bf16.mxu0 %v4289
    %5322 = vmatpush1.bf16.msra.mxu0 %v4288
    %5323 = vmatprep.subr.bf16.mxu0 %v4297
    %5324 = vmatpush1.bf16.msra.mxu0 %v4296
    %5325 = vmatprep.subr.bf16.mxu0 %v4305
    %5326 = vmatpush1.bf16.msra.mxu0 %v4304
    %5327 = vmatprep.subr.bf16.mxu0 %v4313
    %5328 = vmatpush1.bf16.msra.mxu0 %v4312
    %5329 = vmatprep.subr.bf16.mxu0 %v4321
    %5330 = vmatpush1.bf16.msra.mxu0 %v4320
    %5331 = vmatprep.mubr.bf16.mxu0 %v1975
    %5332 = vmatmul.mubr.bf16.gmra.mrb[0].mxu0 %v1974
    %v5333 = vpop.f32.mrb[0].mxu0
    %v5334 = vadd.f32 %v5293, %v5333
    %v5335 = vpop.f32.mrb[0].mxu0
    %v5336 = vadd.f32 %v5295, %v5335
    %v5337 = vpop.f32.mrb[0].mxu0
    %v5338 = vpop.f32.mrb[0].mxu0
    %5339 = vdwg.mxu0
    %5340 = vmatprep.subr.bf16.mxu0 %v4329
    %5341 = vmatpush1.bf16.msra.mxu0 %v4328
    %5342 = vmatprep.subr.bf16.mxu0 %v4337
    %5343 = vmatpush1.bf16.msra.mxu0 %v4336
    %5344 = vmatprep.subr.bf16.mxu0 %v4345
    %5345 = vmatpush1.bf16.msra.mxu0 %v4344
    %5346 = vmatprep.subr.bf16.mxu0 %v4353
    %5347 = vmatpush1.bf16.msra.mxu0 %v4352
    %5348 = vmatprep.subr.bf16.mxu0 %v4361
    %5349 = vmatpush1.bf16.msra.mxu0 %v4360
    %5350 = vmatprep.subr.bf16.mxu0 %v4369
    %5351 = vmatpush1.bf16.msra.mxu0 %v4368
    %5352 = vmatprep.subr.bf16.mxu0 %v4377
    %5353 = vmatpush1.bf16.msra.mxu0 %v4376
    %5354 = vmatprep.subr.bf16.mxu0 %v4385
    %5355 = vmatpush1.bf16.msra.mxu0 %v4384
    %5356 = vmatprep.subr.bf16.mxu0 %v4393
    %5357 = vmatpush1.bf16.msra.mxu0 %v4392
    %5358 = vmatprep.subr.bf16.mxu0 %v4401
    %5359 = vmatpush1.bf16.msra.mxu0 %v4400
    %5360 = vmatprep.subr.bf16.mxu0 %v4409
    %5361 = vmatpush1.bf16.msra.mxu0 %v4408
    %5362 = vmatprep.subr.bf16.mxu0 %v4417
    %5363 = vmatpush1.bf16.msra.mxu0 %v4416
    %5364 = vmatprep.subr.bf16.mxu0 %v4425
    %5365 = vmatpush1.bf16.msra.mxu0 %v4424
    %5366 = vmatprep.subr.bf16.mxu0 %v4433
    %5367 = vmatpush1.bf16.msra.mxu0 %v4432
    %5368 = vmatprep.subr.bf16.mxu0 %v4441
    %5369 = vmatpush1.bf16.msra.mxu0 %v4440
    %5370 = vmatprep.subr.bf16.mxu0 %v4449
    %5371 = vmatpush1.bf16.msra.mxu0 %v4448
    %5372 = vmatprep.mubr.bf16.mxu0 %v1977
    %5373 = vmatmul.mubr.bf16.gmra.mrb[0].mxu0 %v1976
    %v5374 = vpop.f32.mrb[0].mxu0
    %v5375 = vadd.f32 %v5334, %v5374
    %v5376 = vpop.f32.mrb[0].mxu0
    %v5377 = vadd.f32 %v5336, %v5376
    %v5378 = vpop.f32.mrb[0].mxu0
    %v5379 = vpop.f32.mrb[0].mxu0
    %5380 = vdwg.mxu0
    %5381 = vmatprep.subr.bf16.mxu0 %v4457
    %5382 = vmatpush1.bf16.msra.mxu0 %v4456
    %5383 = vmatprep.subr.bf16.mxu0 %v4465
    %5384 = vmatpush1.bf16.msra.mxu0 %v4464
    %5385 = vmatprep.subr.bf16.mxu0 %v4473
    %5386 = vmatpush1.bf16.msra.mxu0 %v4472
    %5387 = vmatprep.subr.bf16.mxu0 %v4481
    %5388 = vmatpush1.bf16.msra.mxu0 %v4480
    %5389 = vmatprep.subr.bf16.mxu0 %v4489
    %5390 = vmatpush1.bf16.msra.mxu0 %v4488
    %5391 = vmatprep.subr.bf16.mxu0 %v4497
    %5392 = vmatpush1.bf16.msra.mxu0 %v4496
    %5393 = vmatprep.subr.bf16.mxu0 %v4505
    %5394 = vmatpush1.bf16.msra.mxu0 %v4504
    %5395 = vmatprep.subr.bf16.mxu0 %v4513
    %5396 = vmatpush1.bf16.msra.mxu0 %v4512
    %5397 = vmatprep.subr.bf16.mxu0 %v4521
    %5398 = vmatpush1.bf16.msra.mxu0 %v4520
    %5399 = vmatprep.subr.bf16.mxu0 %v4529
    %5400 = vmatpush1.bf16.msra.mxu0 %v4528
    %5401 = vmatprep.subr.bf16.mxu0 %v4537
    %5402 = vmatpush1.bf16.msra.mxu0 %v4536
    %5403 = vmatprep.subr.bf16.mxu0 %v4545
    %5404 = vmatpush1.bf16.msra.mxu0 %v4544
    %5405 = vmatprep.subr.bf16.mxu0 %v4553
    %5406 = vmatpush1.bf16.msra.mxu0 %v4552
    %5407 = vmatprep.subr.bf16.mxu0 %v4561
    %5408 = vmatpush1.bf16.msra.mxu0 %v4560
    %5409 = vmatprep.subr.bf16.mxu0 %v4569
    %5410 = vmatpush1.bf16.msra.mxu0 %v4568
    %5411 = vmatprep.subr.bf16.mxu0 %v4577
    %5412 = vmatpush1.bf16.msra.mxu0 %v4576
    %5413 = vmatprep.mubr.bf16.mxu0 %v1979
    %5414 = vmatmul.mubr.bf16.gmra.mrb[0].mxu0 %v1978
    %v5415 = vpop.f32.mrb[0].mxu0
    %v5416 = vadd.f32 %v5375, %v5415
    %v5417 = vpop.f32.mrb[0].mxu0
    %v5418 = vadd.f32 %v5377, %v5417
    %v5419 = vpop.f32.mrb[0].mxu0
    %v5420 = vpop.f32.mrb[0].mxu0
    %5421 = vdwg.mxu0
    %5422 = vmatprep.subr.bf16.mxu0 %v4075
    %5423 = vmatpush1.bf16.msra.mxu0 %v4074
    %5424 = vmatprep.subr.bf16.mxu0 %v4083
    %5425 = vmatpush1.bf16.msra.mxu0 %v4082
    %5426 = vmatprep.subr.bf16.mxu0 %v4091
    %5427 = vmatpush1.bf16.msra.mxu0 %v4090
    %5428 = vmatprep.subr.bf16.mxu0 %v4099
    %5429 = vmatpush1.bf16.msra.mxu0 %v4098
    %5430 = vmatprep.subr.bf16.mxu0 %v4107
    %5431 = vmatpush1.bf16.msra.mxu0 %v4106
    %5432 = vmatprep.subr.bf16.mxu0 %v4115
    %5433 = vmatpush1.bf16.msra.mxu0 %v4114
    %5434 = vmatprep.subr.bf16.mxu0 %v4123
    %5435 = vmatpush1.bf16.msra.mxu0 %v4122
    %5436 = vmatprep.subr.bf16.mxu0 %v4131
    %5437 = vmatpush1.bf16.msra.mxu0 %v4130
    %5438 = vmatprep.subr.bf16.mxu0 %v4139
    %5439 = vmatpush1.bf16.msra.mxu0 %v4138
    %5440 = vmatprep.subr.bf16.mxu0 %v4147
    %5441 = vmatpush1.bf16.msra.mxu0 %v4146
    %5442 = vmatprep.subr.bf16.mxu0 %v4155
    %5443 = vmatpush1.bf16.msra.mxu0 %v4154
    %5444 = vmatprep.subr.bf16.mxu0 %v4163
    %5445 = vmatpush1.bf16.msra.mxu0 %v4162
    %5446 = vmatprep.subr.bf16.mxu0 %v4171
    %5447 = vmatpush1.bf16.msra.mxu0 %v4170
    %5448 = vmatprep.subr.bf16.mxu0 %v4179
    %5449 = vmatpush1.bf16.msra.mxu0 %v4178
    %5450 = vmatprep.subr.bf16.mxu0 %v4187
    %5451 = vmatpush1.bf16.msra.mxu0 %v4186
    %5452 = vmatprep.subr.bf16.mxu0 %v4195
    %5453 = vmatpush1.bf16.msra.mxu0 %v4194
    %5454 = vmatprep.mubr.bf16.mxu0 %v1973
    %5455 = vmatmul.mubr.bf16.gmra.mrb[0].mxu0 %v1972
    %v5456 = vpop.f32.mrb[0].mxu0
    %v5457 = vadd.f32 %v2513, %v5456
    %v5458 = vpop.f32.mrb[0].mxu0
    %v5459 = vadd.f32 %v2517, %v5458
    %v5460 = vpop.f32.mrb[0].mxu0
    %v5461 = vpop.f32.mrb[0].mxu0
    %5462 = vdwg.mxu0
    %5463 = vmatprep.subr.bf16.mxu0 %v4203
    %5464 = vmatpush1.bf16.msra.mxu0 %v4202
    %5465 = vmatprep.subr.bf16.mxu0 %v4211
    %5466 = vmatpush1.bf16.msra.mxu0 %v4210
    %5467 = vmatprep.subr.bf16.mxu0 %v4219
    %5468 = vmatpush1.bf16.msra.mxu0 %v4218
    %5469 = vmatprep.subr.bf16.mxu0 %v4227
    %5470 = vmatpush1.bf16.msra.mxu0 %v4226
    %5471 = vmatprep.subr.bf16.mxu0 %v4235
    %5472 = vmatpush1.bf16.msra.mxu0 %v4234
    %5473 = vmatprep.subr.bf16.mxu0 %v4243
    %5474 = vmatpush1.bf16.msra.mxu0 %v4242
    %5475 = vmatprep.subr.bf16.mxu0 %v4251
    %5476 = vmatpush1.bf16.msra.mxu0 %v4250
    %5477 = vmatprep.subr.bf16.mxu0 %v4259
    %5478 = vmatpush1.bf16.msra.mxu0 %v4258
    %5479 = vmatprep.subr.bf16.mxu0 %v4267
    %5480 = vmatpush1.bf16.msra.mxu0 %v4266
    %5481 = vmatprep.subr.bf16.mxu0 %v4275
    %5482 = vmatpush1.bf16.msra.mxu0 %v4274
    %5483 = vmatprep.subr.bf16.mxu0 %v4283
    %5484 = vmatpush1.bf16.msra.mxu0 %v4282
    %5485 = vmatprep.subr.bf16.mxu0 %v4291
    %5486 = vmatpush1.bf16.msra.mxu0 %v4290
    %5487 = vmatprep.subr.bf16.mxu0 %v4299
    %5488 = vmatpush1.bf16.msra.mxu0 %v4298
    %5489 = vmatprep.subr.bf16.mxu0 %v4307
    %5490 = vmatpush1.bf16.msra.mxu0 %v4306
    %5491 = vmatprep.subr.bf16.mxu0 %v4315
    %5492 = vmatpush1.bf16.msra.mxu0 %v4314
    %5493 = vmatprep.subr.bf16.mxu0 %v4323
    %5494 = vmatpush1.bf16.msra.mxu0 %v4322
    %5495 = vmatprep.mubr.bf16.mxu0 %v1975
    %5496 = vmatmul.mubr.bf16.gmra.mrb[0].mxu0 %v1974
    %v5497 = vpop.f32.mrb[0].mxu0
    %v5498 = vadd.f32 %v5457, %v5497
    %v5499 = vpop.f32.mrb[0].mxu0
    %v5500 = vadd.f32 %v5459, %v5499
    %v5501 = vpop.f32.mrb[0].mxu0
    %v5502 = vpop.f32.mrb[0].mxu0
    %5503 = vdwg.mxu0
    %5504 = vmatprep.subr.bf16.mxu0 %v4331
    %5505 = vmatpush1.bf16.msra.mxu0 %v4330
    %5506 = vmatprep.subr.bf16.mxu0 %v4339
    %5507 = vmatpush1.bf16.msra.mxu0 %v4338
    %5508 = vmatprep.subr.bf16.mxu0 %v4347
    %5509 = vmatpush1.bf16.msra.mxu0 %v4346
    %5510 = vmatprep.subr.bf16.mxu0 %v4355
    %5511 = vmatpush1.bf16.msra.mxu0 %v4354
    %5512 = vmatprep.subr.bf16.mxu0 %v4363
    %5513 = vmatpush1.bf16.msra.mxu0 %v4362
    %5514 = vmatprep.subr.bf16.mxu0 %v4371
    %5515 = vmatpush1.bf16.msra.mxu0 %v4370
    %5516 = vmatprep.subr.bf16.mxu0 %v4379
    %5517 = vmatpush1.bf16.msra.mxu0 %v4378
    %5518 = vmatprep.subr.bf16.mxu0 %v4387
    %5519 = vmatpush1.bf16.msra.mxu0 %v4386
    %5520 = vmatprep.subr.bf16.mxu0 %v4395
    %5521 = vmatpush1.bf16.msra.mxu0 %v4394
    %5522 = vmatprep.subr.bf16.mxu0 %v4403
    %5523 = vmatpush1.bf16.msra.mxu0 %v4402
    %5524 = vmatprep.subr.bf16.mxu0 %v4411
    %5525 = vmatpush1.bf16.msra.mxu0 %v4410
    %5526 = vmatprep.subr.bf16.mxu0 %v4419
    %5527 = vmatpush1.bf16.msra.mxu0 %v4418
    %5528 = vmatprep.subr.bf16.mxu0 %v4427
    %5529 = vmatpush1.bf16.msra.mxu0 %v4426
    %5530 = vmatprep.subr.bf16.mxu0 %v4435
    %5531 = vmatpush1.bf16.msra.mxu0 %v4434
    %5532 = vmatprep.subr.bf16.mxu0 %v4443
    %5533 = vmatpush1.bf16.msra.mxu0 %v4442
    %5534 = vmatprep.subr.bf16.mxu0 %v4451
    %5535 = vmatpush1.bf16.msra.mxu0 %v4450
    %5536 = vmatprep.mubr.bf16.mxu0 %v1977
    %5537 = vmatmul.mubr.bf16.gmra.mrb[0].mxu0 %v1976
    %v5538 = vpop.f32.mrb[0].mxu0
    %v5539 = vadd.f32 %v5498, %v5538
    %v5540 = vpop.f32.mrb[0].mxu0
    %v5541 = vadd.f32 %v5500, %v5540
    %v5542 = vpop.f32.mrb[0].mxu0
    %v5543 = vpop.f32.mrb[0].mxu0
    %5544 = vdwg.mxu0
    %5545 = vmatprep.subr.bf16.mxu0 %v4459
    %5546 = vmatpush1.bf16.msra.mxu0 %v4458
    %5547 = vmatprep.subr.bf16.mxu0 %v4467
    %5548 = vmatpush1.bf16.msra.mxu0 %v4466
    %5549 = vmatprep.subr.bf16.mxu0 %v4475
    %5550 = vmatpush1.bf16.msra.mxu0 %v4474
    %5551 = vmatprep.subr.bf16.mxu0 %v4483
    %5552 = vmatpush1.bf16.msra.mxu0 %v4482
    %5553 = vmatprep.subr.bf16.mxu0 %v4491
    %5554 = vmatpush1.bf16.msra.mxu0 %v4490
    %5555 = vmatprep.subr.bf16.mxu0 %v4499
    %5556 = vmatpush1.bf16.msra.mxu0 %v4498
    %5557 = vmatprep.subr.bf16.mxu0 %v4507
    %5558 = vmatpush1.bf16.msra.mxu0 %v4506
    %5559 = vmatprep.subr.bf16.mxu0 %v4515
    %5560 = vmatpush1.bf16.msra.mxu0 %v4514
    %5561 = vmatprep.subr.bf16.mxu0 %v4523
    %5562 = vmatpush1.bf16.msra.mxu0 %v4522
    %5563 = vmatprep.subr.bf16.mxu0 %v4531
    %5564 = vmatpush1.bf16.msra.mxu0 %v4530
    %5565 = vmatprep.subr.bf16.mxu0 %v4539
    %5566 = vmatpush1.bf16.msra.mxu0 %v4538
    %5567 = vmatprep.subr.bf16.mxu0 %v4547
    %5568 = vmatpush1.bf16.msra.mxu0 %v4546
    %5569 = vmatprep.subr.bf16.mxu0 %v4555
    %5570 = vmatpush1.bf16.msra.mxu0 %v4554
    %5571 = vmatprep.subr.bf16.mxu0 %v4563
    %5572 = vmatpush1.bf16.msra.mxu0 %v4562
    %5573 = vmatprep.subr.bf16.mxu0 %v4571
    %5574 = vmatpush1.bf16.msra.mxu0 %v4570
    %5575 = vmatprep.subr.bf16.mxu0 %v4579
    %5576 = vmatpush1.bf16.msra.mxu0 %v4578
    %5577 = vmatprep.mubr.bf16.mxu0 %v1979
    %5578 = vmatmul.mubr.bf16.gmra.mrb[0].mxu0 %v1978
    %v5579 = vpop.f32.mrb[0].mxu0
    %v5580 = vadd.f32 %v5539, %v5579
    %v5581 = vpop.f32.mrb[0].mxu0
    %v5582 = vadd.f32 %v5541, %v5581
    %v5583 = vpop.f32.mrb[0].mxu0
    %v5584 = vpop.f32.mrb[0].mxu0
    %5585 = vdwg.mxu0
    %5586 = vmatprep.subr.bf16.mxu0 %v4077
    %5587 = vmatpush1.bf16.msra.mxu0 %v4076
    %5588 = vmatprep.subr.bf16.mxu0 %v4085
    %5589 = vmatpush1.bf16.msra.mxu0 %v4084
    %5590 = vmatprep.subr.bf16.mxu0 %v4093
    %5591 = vmatpush1.bf16.msra.mxu0 %v4092
    %5592 = vmatprep.subr.bf16.mxu0 %v4101
    %5593 = vmatpush1.bf16.msra.mxu0 %v4100
    %5594 = vmatprep.subr.bf16.mxu0 %v4109
    %5595 = vmatpush1.bf16.msra.mxu0 %v4108
    %5596 = vmatprep.subr.bf16.mxu0 %v4117
    %5597 = vmatpush1.bf16.msra.mxu0 %v4116
    %5598 = vmatprep.subr.bf16.mxu0 %v4125
    %5599 = vmatpush1.bf16.msra.mxu0 %v4124
    %5600 = vmatprep.subr.bf16.mxu0 %v4133
    %5601 = vmatpush1.bf16.msra.mxu0 %v4132
    %5602 = vmatprep.subr.bf16.mxu0 %v4141
    %5603 = vmatpush1.bf16.msra.mxu0 %v4140
    %5604 = vmatprep.subr.bf16.mxu0 %v4149
    %5605 = vmatpush1.bf16.msra.mxu0 %v4148
    %5606 = vmatprep.subr.bf16.mxu0 %v4157
    %5607 = vmatpush1.bf16.msra.mxu0 %v4156
    %5608 = vmatprep.subr.bf16.mxu0 %v4165
    %5609 = vmatpush1.bf16.msra.mxu0 %v4164
    %5610 = vmatprep.subr.bf16.mxu0 %v4173
    %5611 = vmatpush1.bf16.msra.mxu0 %v4172
    %5612 = vmatprep.subr.bf16.mxu0 %v4181
    %5613 = vmatpush1.bf16.msra.mxu0 %v4180
    %5614 = vmatprep.subr.bf16.mxu0 %v4189
    %5615 = vmatpush1.bf16.msra.mxu0 %v4188
    %5616 = vmatprep.subr.bf16.mxu0 %v4197
    %5617 = vmatpush1.bf16.msra.mxu0 %v4196
    %5618 = vmatprep.mubr.bf16.mxu0 %v1973
    %5619 = vmatmul.mubr.bf16.gmra.mrb[0].mxu0 %v1972
    %v5620 = vpop.f32.mrb[0].mxu0
    %v5621 = vadd.f32 %v2521, %v5620
    %v5622 = vpop.f32.mrb[0].mxu0
    %v5623 = vadd.f32 %v2525, %v5622
    %v5624 = vpop.f32.mrb[0].mxu0
    %v5625 = vpop.f32.mrb[0].mxu0
    %5626 = vdwg.mxu0
    %5627 = vmatprep.subr.bf16.mxu0 %v4205
    %5628 = vmatpush1.bf16.msra.mxu0 %v4204
    %5629 = vmatprep.subr.bf16.mxu0 %v4213
    %5630 = vmatpush1.bf16.msra.mxu0 %v4212
    %5631 = vmatprep.subr.bf16.mxu0 %v4221
    %5632 = vmatpush1.bf16.msra.mxu0 %v4220
    %5633 = vmatprep.subr.bf16.mxu0 %v4229
    %5634 = vmatpush1.bf16.msra.mxu0 %v4228
    %5635 = vmatprep.subr.bf16.mxu0 %v4237
    %5636 = vmatpush1.bf16.msra.mxu0 %v4236
    %5637 = vmatprep.subr.bf16.mxu0 %v4245
    %5638 = vmatpush1.bf16.msra.mxu0 %v4244
    %5639 = vmatprep.subr.bf16.mxu0 %v4253
    %5640 = vmatpush1.bf16.msra.mxu0 %v4252
    %5641 = vmatprep.subr.bf16.mxu0 %v4261
    %5642 = vmatpush1.bf16.msra.mxu0 %v4260
    %5643 = vmatprep.subr.bf16.mxu0 %v4269
    %5644 = vmatpush1.bf16.msra.mxu0 %v4268
    %5645 = vmatprep.subr.bf16.mxu0 %v4277
    %5646 = vmatpush1.bf16.msra.mxu0 %v4276
    %5647 = vmatprep.subr.bf16.mxu0 %v4285
    %5648 = vmatpush1.bf16.msra.mxu0 %v4284
    %5649 = vmatprep.subr.bf16.mxu0 %v4293
    %5650 = vmatpush1.bf16.msra.mxu0 %v4292
    %5651 = vmatprep.subr.bf16.mxu0 %v4301
    %5652 = vmatpush1.bf16.msra.mxu0 %v4300
    %5653 = vmatprep.subr.bf16.mxu0 %v4309
    %5654 = vmatpush1.bf16.msra.mxu0 %v4308
    %5655 = vmatprep.subr.bf16.mxu0 %v4317
    %5656 = vmatpush1.bf16.msra.mxu0 %v4316
    %5657 = vmatprep.subr.bf16.mxu0 %v4325
    %5658 = vmatpush1.bf16.msra.mxu0 %v4324
    %5659 = vmatprep.mubr.bf16.mxu0 %v1975
    %5660 = vmatmul.mubr.bf16.gmra.mrb[0].mxu0 %v1974
    %v5661 = vpop.f32.mrb[0].mxu0
    %v5662 = vadd.f32 %v5621, %v5661
    %v5663 = vpop.f32.mrb[0].mxu0
    %v5664 = vadd.f32 %v5623, %v5663
    %v5665 = vpop.f32.mrb[0].mxu0
    %v5666 = vpop.f32.mrb[0].mxu0
    %5667 = vdwg.mxu0
    %5668 = vmatprep.subr.bf16.mxu0 %v4333
    %5669 = vmatpush1.bf16.msra.mxu0 %v4332
    %5670 = vmatprep.subr.bf16.mxu0 %v4341
    %5671 = vmatpush1.bf16.msra.mxu0 %v4340
    %5672 = vmatprep.subr.bf16.mxu0 %v4349
    %5673 = vmatpush1.bf16.msra.mxu0 %v4348
    %5674 = vmatprep.subr.bf16.mxu0 %v4357
    %5675 = vmatpush1.bf16.msra.mxu0 %v4356
    %5676 = vmatprep.subr.bf16.mxu0 %v4365
    %5677 = vmatpush1.bf16.msra.mxu0 %v4364
    %5678 = vmatprep.subr.bf16.mxu0 %v4373
    %5679 = vmatpush1.bf16.msra.mxu0 %v4372
    %5680 = vmatprep.subr.bf16.mxu0 %v4381
    %5681 = vmatpush1.bf16.msra.mxu0 %v4380
    %5682 = vmatprep.subr.bf16.mxu0 %v4389
    %5683 = vmatpush1.bf16.msra.mxu0 %v4388
    %5684 = vmatprep.subr.bf16.mxu0 %v4397
    %5685 = vmatpush1.bf16.msra.mxu0 %v4396
    %5686 = vmatprep.subr.bf16.mxu0 %v4405
    %5687 = vmatpush1.bf16.msra.mxu0 %v4404
    %5688 = vmatprep.subr.bf16.mxu0 %v4413
    %5689 = vmatpush1.bf16.msra.mxu0 %v4412
    %5690 = vmatprep.subr.bf16.mxu0 %v4421
    %5691 = vmatpush1.bf16.msra.mxu0 %v4420
    %5692 = vmatprep.subr.bf16.mxu0 %v4429
    %5693 = vmatpush1.bf16.msra.mxu0 %v4428
    %5694 = vmatprep.subr.bf16.mxu0 %v4437
    %5695 = vmatpush1.bf16.msra.mxu0 %v4436
    %5696 = vmatprep.subr.bf16.mxu0 %v4445
    %5697 = vmatpush1.bf16.msra.mxu0 %v4444
    %5698 = vmatprep.subr.bf16.mxu0 %v4453
    %5699 = vmatpush1.bf16.msra.mxu0 %v4452
    %5700 = vmatprep.mubr.bf16.mxu0 %v1977
    %5701 = vmatmul.mubr.bf16.gmra.mrb[0].mxu0 %v1976
    %v5702 = vpop.f32.mrb[0].mxu0
    %v5703 = vadd.f32 %v5662, %v5702
    %v5704 = vpop.f32.mrb[0].mxu0
    %v5705 = vadd.f32 %v5664, %v5704
    %v5706 = vpop.f32.mrb[0].mxu0
    %v5707 = vpop.f32.mrb[0].mxu0
    %5708 = vdwg.mxu0
    %5709 = vmatprep.subr.bf16.mxu0 %v4461
    %5710 = vmatpush1.bf16.msra.mxu0 %v4460
    %5711 = vmatprep.subr.bf16.mxu0 %v4469
    %5712 = vmatpush1.bf16.msra.mxu0 %v4468
    %5713 = vmatprep.subr.bf16.mxu0 %v4477
    %5714 = vmatpush1.bf16.msra.mxu0 %v4476
    %5715 = vmatprep.subr.bf16.mxu0 %v4485
    %5716 = vmatpush1.bf16.msra.mxu0 %v4484
    %5717 = vmatprep.subr.bf16.mxu0 %v4493
    %5718 = vmatpush1.bf16.msra.mxu0 %v4492
    %5719 = vmatprep.subr.bf16.mxu0 %v4501
    %5720 = vmatpush1.bf16.msra.mxu0 %v4500
    %5721 = vmatprep.subr.bf16.mxu0 %v4509
    %5722 = vmatpush1.bf16.msra.mxu0 %v4508
    %5723 = vmatprep.subr.bf16.mxu0 %v4517
    %5724 = vmatpush1.bf16.msra.mxu0 %v4516
    %5725 = vmatprep.subr.bf16.mxu0 %v4525
    %5726 = vmatpush1.bf16.msra.mxu0 %v4524
    %5727 = vmatprep.subr.bf16.mxu0 %v4533
    %5728 = vmatpush1.bf16.msra.mxu0 %v4532
    %5729 = vmatprep.subr.bf16.mxu0 %v4541
    %5730 = vmatpush1.bf16.msra.mxu0 %v4540
    %5731 = vmatprep.subr.bf16.mxu0 %v4549
    %5732 = vmatpush1.bf16.msra.mxu0 %v4548
    %5733 = vmatprep.subr.bf16.mxu0 %v4557
    %5734 = vmatpush1.bf16.msra.mxu0 %v4556
    %5735 = vmatprep.subr.bf16.mxu0 %v4565
    %5736 = vmatpush1.bf16.msra.mxu0 %v4564
    %5737 = vmatprep.subr.bf16.mxu0 %v4573
    %5738 = vmatpush1.bf16.msra.mxu0 %v4572
    %5739 = vmatprep.subr.bf16.mxu0 %v4581
    %5740 = vmatpush1.bf16.msra.mxu0 %v4580
    %5741 = vmatprep.mubr.bf16.mxu0 %v1979
    %5742 = vmatmul.mubr.bf16.gmra.mrb[0].mxu0 %v1978
    %v5743 = vpop.f32.mrb[0].mxu0
    %v5744 = vadd.f32 %v5703, %v5743
    %v5745 = vpop.f32.mrb[0].mxu0
    %v5746 = vadd.f32 %v5705, %v5745
    %v5747 = vpop.f32.mrb[0].mxu0
    %v5748 = vpop.f32.mrb[0].mxu0
    %5749 = vdwg.mxu0
    %v5750 = vmax.f32 %v5252, 0.0
    %v5751 = vmax.f32 %v5254, 0.0
    %v5752 = vmax.f32 %v5416, 0.0
    %v5753 = vmax.f32 %v5418, 0.0
    %v5754 = vmax.f32 %v5580, 0.0
    %v5755 = vmax.f32 %v5582, 0.0
    %v5756 = vmax.f32 %v5744, 0.0
    %v5757 = vmax.f32 %v5746, 0.0
    %v5758 = vpack.c.bf16 %v5750, %v5750
    %v5759 = vpack.c.bf16 %v5751, %v5751
    %v5760 = vpack.c.bf16 %v5752, %v5752
    %v5761 = vpack.c.bf16 %v5753, %v5753
    %v5762 = vpack.c.bf16 %v5754, %v5754
    %v5763 = vpack.c.bf16 %v5755, %v5755
    %v5764 = vpack.c.bf16 %v5756, %v5756
    %v5765 = vpack.c.bf16 %v5757, %v5757
    %v5766 = vld [vmem:[%s5] sm:$0xf]
    %v5767 = vld [vmem:[%s5 + $0x4] sm:$0xf]
    %v5768 = vld [vmem:[%s5 + $0x8] sm:$0xf]
    %v5769 = vld [vmem:[%s5 + $0xc] sm:$0xf]
    %v5770 = vld [vmem:[%s5 + $0x10] sm:$0xf]
    %v5771 = vld [vmem:[%s5 + $0x14] sm:$0xf]
    %v5772 = vld [vmem:[%s5 + $0x18] sm:$0xf]
    %v5773 = vld [vmem:[%s5 + $0x1c] sm:$0xf]
    %v5774 = vld [vmem:[%s5 + $0x20] sm:$0xf]
    %v5775 = vld [vmem:[%s5 + $0x24] sm:$0xf]
    %v5776 = vld [vmem:[%s5 + $0x28] sm:$0xf]
    %v5777 = vld [vmem:[%s5 + $0x2c] sm:$0xf]
    %v5778 = vld [vmem:[%s5 + $0x30] sm:$0xf]
    %v5779 = vld [vmem:[%s5 + $0x34] sm:$0xf]
    %v5780 = vld [vmem:[%s5 + $0x38] sm:$0xf]
    %v5781 = vld [vmem:[%s5 + $0x3c] sm:$0xf]
    %v5782 = vld [vmem:[%s5 + $0x40] sm:$0xf]
    %v5783 = vld [vmem:[%s5 + $0x44] sm:$0xf]
    %v5784 = vld [vmem:[%s5 + $0x48] sm:$0xf]
    %v5785 = vld [vmem:[%s5 + $0x4c] sm:$0xf]
    %v5786 = vld [vmem:[%s5 + $0x50] sm:$0xf]
    %v5787 = vld [vmem:[%s5 + $0x54] sm:$0xf]
    %v5788 = vld [vmem:[%s5 + $0x58] sm:$0xf]
    %v5789 = vld [vmem:[%s5 + $0x5c] sm:$0xf]
    %v5790 = vld [vmem:[%s5 + $0x60] sm:$0xf]
    %v5791 = vld [vmem:[%s5 + $0x64] sm:$0xf]
    %v5792 = vld [vmem:[%s5 + $0x68] sm:$0xf]
    %v5793 = vld [vmem:[%s5 + $0x6c] sm:$0xf]
    %v5794 = vld [vmem:[%s5 + $0x70] sm:$0xf]
    %v5795 = vld [vmem:[%s5 + $0x74] sm:$0xf]
    %v5796 = vld [vmem:[%s5 + $0x78] sm:$0xf]
    %v5797 = vld [vmem:[%s5 + $0x7c] sm:$0xf]
    %v5798 = vld [vmem:[%s5 + $0x80] sm:$0xf]
    %v5799 = vld [vmem:[%s5 + $0x84] sm:$0xf]
    %v5800 = vld [vmem:[%s5 + $0x88] sm:$0xf]
    %v5801 = vld [vmem:[%s5 + $0x8c] sm:$0xf]
    %v5802 = vld [vmem:[%s5 + $0x90] sm:$0xf]
    %v5803 = vld [vmem:[%s5 + $0x94] sm:$0xf]
    %v5804 = vld [vmem:[%s5 + $0x98] sm:$0xf]
    %v5805 = vld [vmem:[%s5 + $0x9c] sm:$0xf]
    %v5806 = vld [vmem:[%s5 + $0xa0] sm:$0xf]
    %v5807 = vld [vmem:[%s5 + $0xa4] sm:$0xf]
    %v5808 = vld [vmem:[%s5 + $0xa8] sm:$0xf]
    %v5809 = vld [vmem:[%s5 + $0xac] sm:$0xf]
    %v5810 = vld [vmem:[%s5 + $0xb0] sm:$0xf]
    %v5811 = vld [vmem:[%s5 + $0xb4] sm:$0xf]
    %v5812 = vld [vmem:[%s5 + $0xb8] sm:$0xf]
    %v5813 = vld [vmem:[%s5 + $0xbc] sm:$0xf]
    %v5814 = vld [vmem:[%s5 + $0xc0] sm:$0xf]
    %v5815 = vld [vmem:[%s5 + $0xc4] sm:$0xf]
    %v5816 = vld [vmem:[%s5 + $0xc8] sm:$0xf]
    %v5817 = vld [vmem:[%s5 + $0xcc] sm:$0xf]
    %v5818 = vld [vmem:[%s5 + $0xd0] sm:$0xf]
    %v5819 = vld [vmem:[%s5 + $0xd4] sm:$0xf]
    %v5820 = vld [vmem:[%s5 + $0xd8] sm:$0xf]
    %v5821 = vld [vmem:[%s5 + $0xdc] sm:$0xf]
    %v5822 = vld [vmem:[%s5 + $0xe0] sm:$0xf]
    %v5823 = vld [vmem:[%s5 + $0xe4] sm:$0xf]
    %v5824 = vld [vmem:[%s5 + $0xe8] sm:$0xf]
    %v5825 = vld [vmem:[%s5 + $0xec] sm:$0xf]
    %v5826 = vld [vmem:[%s5 + $0xf0] sm:$0xf]
    %v5827 = vld [vmem:[%s5 + $0xf4] sm:$0xf]
    %v5828 = vld [vmem:[%s5 + $0xf8] sm:$0xf]
    %v5829 = vld [vmem:[%s5 + $0xfc] sm:$0xf]
    %v5830 = vld [vmem:[%s5 + $0x100] sm:$0xf]
    %v5831 = vld [vmem:[%s5 + $0x104] sm:$0xf]
    %v5832 = vld [vmem:[%s5 + $0x108] sm:$0xf]
    %v5833 = vld [vmem:[%s5 + $0x10c] sm:$0xf]
    %v5834 = vld [vmem:[%s5 + $0x110] sm:$0xf]
    %v5835 = vld [vmem:[%s5 + $0x114] sm:$0xf]
    %v5836 = vld [vmem:[%s5 + $0x118] sm:$0xf]
    %v5837 = vld [vmem:[%s5 + $0x11c] sm:$0xf]
    %v5838 = vld [vmem:[%s5 + $0x120] sm:$0xf]
    %v5839 = vld [vmem:[%s5 + $0x124] sm:$0xf]
    %v5840 = vld [vmem:[%s5 + $0x128] sm:$0xf]
    %v5841 = vld [vmem:[%s5 + $0x12c] sm:$0xf]
    %v5842 = vld [vmem:[%s5 + $0x130] sm:$0xf]
    %v5843 = vld [vmem:[%s5 + $0x134] sm:$0xf]
    %v5844 = vld [vmem:[%s5 + $0x138] sm:$0xf]
    %v5845 = vld [vmem:[%s5 + $0x13c] sm:$0xf]
    %v5846 = vld [vmem:[%s5 + $0x140] sm:$0xf]
    %v5847 = vld [vmem:[%s5 + $0x144] sm:$0xf]
    %v5848 = vld [vmem:[%s5 + $0x148] sm:$0xf]
    %v5849 = vld [vmem:[%s5 + $0x14c] sm:$0xf]
    %v5850 = vld [vmem:[%s5 + $0x150] sm:$0xf]
    %v5851 = vld [vmem:[%s5 + $0x154] sm:$0xf]
    %v5852 = vld [vmem:[%s5 + $0x158] sm:$0xf]
    %v5853 = vld [vmem:[%s5 + $0x15c] sm:$0xf]
    %v5854 = vld [vmem:[%s5 + $0x160] sm:$0xf]
    %v5855 = vld [vmem:[%s5 + $0x164] sm:$0xf]
    %v5856 = vld [vmem:[%s5 + $0x168] sm:$0xf]
    %v5857 = vld [vmem:[%s5 + $0x16c] sm:$0xf]
    %v5858 = vld [vmem:[%s5 + $0x170] sm:$0xf]
    %v5859 = vld [vmem:[%s5 + $0x174] sm:$0xf]
    %v5860 = vld [vmem:[%s5 + $0x178] sm:$0xf]
    %v5861 = vld [vmem:[%s5 + $0x17c] sm:$0xf]
    %v5862 = vld [vmem:[%s5 + $0x180] sm:$0xf]
    %v5863 = vld [vmem:[%s5 + $0x184] sm:$0xf]
    %v5864 = vld [vmem:[%s5 + $0x188] sm:$0xf]
    %v5865 = vld [vmem:[%s5 + $0x18c] sm:$0xf]
    %v5866 = vld [vmem:[%s5 + $0x190] sm:$0xf]
    %v5867 = vld [vmem:[%s5 + $0x194] sm:$0xf]
    %v5868 = vld [vmem:[%s5 + $0x198] sm:$0xf]
    %v5869 = vld [vmem:[%s5 + $0x19c] sm:$0xf]
    %v5870 = vld [vmem:[%s5 + $0x1a0] sm:$0xf]
    %v5871 = vld [vmem:[%s5 + $0x1a4] sm:$0xf]
    %v5872 = vld [vmem:[%s5 + $0x1a8] sm:$0xf]
    %v5873 = vld [vmem:[%s5 + $0x1ac] sm:$0xf]
    %v5874 = vld [vmem:[%s5 + $0x1b0] sm:$0xf]
    %v5875 = vld [vmem:[%s5 + $0x1b4] sm:$0xf]
    %v5876 = vld [vmem:[%s5 + $0x1b8] sm:$0xf]
    %v5877 = vld [vmem:[%s5 + $0x1bc] sm:$0xf]
    %v5878 = vld [vmem:[%s5 + $0x1c0] sm:$0xf]
    %v5879 = vld [vmem:[%s5 + $0x1c4] sm:$0xf]
    %v5880 = vld [vmem:[%s5 + $0x1c8] sm:$0xf]
    %v5881 = vld [vmem:[%s5 + $0x1cc] sm:$0xf]
    %v5882 = vld [vmem:[%s5 + $0x1d0] sm:$0xf]
    %v5883 = vld [vmem:[%s5 + $0x1d4] sm:$0xf]
    %v5884 = vld [vmem:[%s5 + $0x1d8] sm:$0xf]
    %v5885 = vld [vmem:[%s5 + $0x1dc] sm:$0xf]
    %v5886 = vld [vmem:[%s5 + $0x1e0] sm:$0xf]
    %v5887 = vld [vmem:[%s5 + $0x1e4] sm:$0xf]
    %v5888 = vld [vmem:[%s5 + $0x1e8] sm:$0xf]
    %v5889 = vld [vmem:[%s5 + $0x1ec] sm:$0xf]
    %v5890 = vld [vmem:[%s5 + $0x1f0] sm:$0xf]
    %v5891 = vld [vmem:[%s5 + $0x1f4] sm:$0xf]
    %v5892 = vld [vmem:[%s5 + $0x1f8] sm:$0xf]
    %v5893 = vld [vmem:[%s5 + $0x1fc] sm:$0xf]
    %v5894 = vld [vmem:[%s6] sm:$0x1]
    %v5896 = vlaneseq
    %v5897 = vshrl.u32 %v5896, 7
    %v5898 = vsub.s32 0, %v5897
    %v5899 = vrot.slane %v5894, %v5898
    %v6029 = vunpack.c.l.b16 %v5766
    %v6030 = vunpack.c.l.b16 %v5767
    %v6031 = vunpack.c.l.b16 %v5768
    %v6032 = vunpack.c.l.b16 %v5769
    %v6033 = vunpack.c.l.b16 %v5770
    %v6034 = vunpack.c.l.b16 %v5771
    %v6035 = vunpack.c.l.b16 %v5772
    %v6036 = vunpack.c.l.b16 %v5773
    %v6037 = vunpack.c.l.b16 %v5774
    %v6038 = vunpack.c.l.b16 %v5775
    %v6039 = vunpack.c.l.b16 %v5776
    %v6040 = vunpack.c.l.b16 %v5777
    %v6041 = vunpack.c.l.b16 %v5778
    %v6042 = vunpack.c.l.b16 %v5779
    %v6043 = vunpack.c.l.b16 %v5780
    %v6044 = vunpack.c.l.b16 %v5781
    %v6045 = vunpack.c.l.b16 %v5782
    %v6046 = vunpack.c.l.b16 %v5783
    %v6047 = vunpack.c.l.b16 %v5784
    %v6048 = vunpack.c.l.b16 %v5785
    %v6049 = vunpack.c.l.b16 %v5786
    %v6050 = vunpack.c.l.b16 %v5787
    %v6051 = vunpack.c.l.b16 %v5788
    %v6052 = vunpack.c.l.b16 %v5789
    %v6053 = vunpack.c.l.b16 %v5790
    %v6054 = vunpack.c.l.b16 %v5791
    %v6055 = vunpack.c.l.b16 %v5792
    %v6056 = vunpack.c.l.b16 %v5793
    %v6057 = vunpack.c.l.b16 %v5794
    %v6058 = vunpack.c.l.b16 %v5795
    %v6059 = vunpack.c.l.b16 %v5796
    %v6060 = vunpack.c.l.b16 %v5797
    %v6061 = vunpack.c.l.b16 %v5798
    %v6062 = vunpack.c.l.b16 %v5799
    %v6063 = vunpack.c.l.b16 %v5800
    %v6064 = vunpack.c.l.b16 %v5801
    %v6065 = vunpack.c.l.b16 %v5802
    %v6066 = vunpack.c.l.b16 %v5803
    %v6067 = vunpack.c.l.b16 %v5804
    %v6068 = vunpack.c.l.b16 %v5805
    %v6069 = vunpack.c.l.b16 %v5806
    %v6070 = vunpack.c.l.b16 %v5807
    %v6071 = vunpack.c.l.b16 %v5808
    %v6072 = vunpack.c.l.b16 %v5809
    %v6073 = vunpack.c.l.b16 %v5810
    %v6074 = vunpack.c.l.b16 %v5811
    %v6075 = vunpack.c.l.b16 %v5812
    %v6076 = vunpack.c.l.b16 %v5813
    %v6077 = vunpack.c.l.b16 %v5814
    %v6078 = vunpack.c.l.b16 %v5815
    %v6079 = vunpack.c.l.b16 %v5816
    %v6080 = vunpack.c.l.b16 %v5817
    %v6081 = vunpack.c.l.b16 %v5818
    %v6082 = vunpack.c.l.b16 %v5819
    %v6083 = vunpack.c.l.b16 %v5820
    %v6084 = vunpack.c.l.b16 %v5821
    %v6085 = vunpack.c.l.b16 %v5822
    %v6086 = vunpack.c.l.b16 %v5823
    %v6087 = vunpack.c.l.b16 %v5824
    %v6088 = vunpack.c.l.b16 %v5825
    %v6089 = vunpack.c.l.b16 %v5826
    %v6090 = vunpack.c.l.b16 %v5827
    %v6091 = vunpack.c.l.b16 %v5828
    %v6092 = vunpack.c.l.b16 %v5829
    %v6093 = vunpack.c.l.b16 %v5830
    %v6094 = vunpack.c.l.b16 %v5831
    %v6095 = vunpack.c.l.b16 %v5832
    %v6096 = vunpack.c.l.b16 %v5833
    %v6097 = vunpack.c.l.b16 %v5834
    %v6098 = vunpack.c.l.b16 %v5835
    %v6099 = vunpack.c.l.b16 %v5836
    %v6100 = vunpack.c.l.b16 %v5837
    %v6101 = vunpack.c.l.b16 %v5838
    %v6102 = vunpack.c.l.b16 %v5839
    %v6103 = vunpack.c.l.b16 %v5840
    %v6104 = vunpack.c.l.b16 %v5841
    %v6105 = vunpack.c.l.b16 %v5842
    %v6106 = vunpack.c.l.b16 %v5843
    %v6107 = vunpack.c.l.b16 %v5844
    %v6108 = vunpack.c.l.b16 %v5845
    %v6109 = vunpack.c.l.b16 %v5846
    %v6110 = vunpack.c.l.b16 %v5847
    %v6111 = vunpack.c.l.b16 %v5848
    %v6112 = vunpack.c.l.b16 %v5849
    %v6113 = vunpack.c.l.b16 %v5850
    %v6114 = vunpack.c.l.b16 %v5851
    %v6115 = vunpack.c.l.b16 %v5852
    %v6116 = vunpack.c.l.b16 %v5853
    %v6117 = vunpack.c.l.b16 %v5854
    %v6118 = vunpack.c.l.b16 %v5855
    %v6119 = vunpack.c.l.b16 %v5856
    %v6120 = vunpack.c.l.b16 %v5857
    %v6121 = vunpack.c.l.b16 %v5858
    %v6122 = vunpack.c.l.b16 %v5859
    %v6123 = vunpack.c.l.b16 %v5860
    %v6124 = vunpack.c.l.b16 %v5861
    %v6125 = vunpack.c.l.b16 %v5862
    %v6126 = vunpack.c.l.b16 %v5863
    %v6127 = vunpack.c.l.b16 %v5864
    %v6128 = vunpack.c.l.b16 %v5865
    %v6129 = vunpack.c.l.b16 %v5866
    %v6130 = vunpack.c.l.b16 %v5867
    %v6131 = vunpack.c.l.b16 %v5868
    %v6132 = vunpack.c.l.b16 %v5869
    %v6133 = vunpack.c.l.b16 %v5870
    %v6134 = vunpack.c.l.b16 %v5871
    %v6135 = vunpack.c.l.b16 %v5872
    %v6136 = vunpack.c.l.b16 %v5873
    %v6137 = vunpack.c.l.b16 %v5874
    %v6138 = vunpack.c.l.b16 %v5875
    %v6139 = vunpack.c.l.b16 %v5876
    %v6140 = vunpack.c.l.b16 %v5877
    %v6141 = vunpack.c.l.b16 %v5878
    %v6142 = vunpack.c.l.b16 %v5879
    %v6143 = vunpack.c.l.b16 %v5880
    %v6144 = vunpack.c.l.b16 %v5881
    %v6145 = vunpack.c.l.b16 %v5882
    %v6146 = vunpack.c.l.b16 %v5883
    %v6147 = vunpack.c.l.b16 %v5884
    %v6148 = vunpack.c.l.b16 %v5885
    %v6149 = vunpack.c.l.b16 %v5886
    %v6150 = vunpack.c.l.b16 %v5887
    %v6151 = vunpack.c.l.b16 %v5888
    %v6152 = vunpack.c.l.b16 %v5889
    %v6153 = vunpack.c.l.b16 %v5890
    %v6154 = vunpack.c.l.b16 %v5891
    %v6155 = vunpack.c.l.b16 %v5892
    %v6156 = vunpack.c.l.b16 %v5893
    %v6157 = vpack.c.b16 %v6030, %v6029
    %v6158 = vpack.c.b16 %v6032, %v6031
    %v6159 = vpack.c.b16 %v6034, %v6033
    %v6160 = vpack.c.b16 %v6036, %v6035
    %v6161 = vpack.c.b16 %v6038, %v6037
    %v6162 = vpack.c.b16 %v6040, %v6039
    %v6163 = vpack.c.b16 %v6042, %v6041
    %v6164 = vpack.c.b16 %v6044, %v6043
    %v6165 = vpack.c.b16 %v6046, %v6045
    %v6166 = vpack.c.b16 %v6048, %v6047
    %v6167 = vpack.c.b16 %v6050, %v6049
    %v6168 = vpack.c.b16 %v6052, %v6051
    %v6169 = vpack.c.b16 %v6054, %v6053
    %v6170 = vpack.c.b16 %v6056, %v6055
    %v6171 = vpack.c.b16 %v6058, %v6057
    %v6172 = vpack.c.b16 %v6060, %v6059
    %v6173 = vpack.c.b16 %v6062, %v6061
    %v6174 = vpack.c.b16 %v6064, %v6063
    %v6175 = vpack.c.b16 %v6066, %v6065
    %v6176 = vpack.c.b16 %v6068, %v6067
    %v6177 = vpack.c.b16 %v6070, %v6069
    %v6178 = vpack.c.b16 %v6072, %v6071
    %v6179 = vpack.c.b16 %v6074, %v6073
    %v6180 = vpack.c.b16 %v6076, %v6075
    %v6181 = vpack.c.b16 %v6078, %v6077
    %v6182 = vpack.c.b16 %v6080, %v6079
    %v6183 = vpack.c.b16 %v6082, %v6081
    %v6184 = vpack.c.b16 %v6084, %v6083
    %v6185 = vpack.c.b16 %v6086, %v6085
    %v6186 = vpack.c.b16 %v6088, %v6087
    %v6187 = vpack.c.b16 %v6090, %v6089
    %v6188 = vpack.c.b16 %v6092, %v6091
    %v6189 = vpack.c.b16 %v6094, %v6093
    %v6190 = vpack.c.b16 %v6096, %v6095
    %v6191 = vpack.c.b16 %v6098, %v6097
    %v6192 = vpack.c.b16 %v6100, %v6099
    %v6193 = vpack.c.b16 %v6102, %v6101
    %v6194 = vpack.c.b16 %v6104, %v6103
    %v6195 = vpack.c.b16 %v6106, %v6105
    %v6196 = vpack.c.b16 %v6108, %v6107
    %v6197 = vpack.c.b16 %v6110, %v6109
    %v6198 = vpack.c.b16 %v6112, %v6111
    %v6199 = vpack.c.b16 %v6114, %v6113
    %v6200 = vpack.c.b16 %v6116, %v6115
    %v6201 = vpack.c.b16 %v6118, %v6117
    %v6202 = vpack.c.b16 %v6120, %v6119
    %v6203 = vpack.c.b16 %v6122, %v6121
    %v6204 = vpack.c.b16 %v6124, %v6123
    %v6205 = vpack.c.b16 %v6126, %v6125
    %v6206 = vpack.c.b16 %v6128, %v6127
    %v6207 = vpack.c.b16 %v6130, %v6129
    %v6208 = vpack.c.b16 %v6132, %v6131
    %v6209 = vpack.c.b16 %v6134, %v6133
    %v6210 = vpack.c.b16 %v6136, %v6135
    %v6211 = vpack.c.b16 %v6138, %v6137
    %v6212 = vpack.c.b16 %v6140, %v6139
    %v6213 = vpack.c.b16 %v6142, %v6141
    %v6214 = vpack.c.b16 %v6144, %v6143
    %v6215 = vpack.c.b16 %v6146, %v6145
    %v6216 = vpack.c.b16 %v6148, %v6147
    %v6217 = vpack.c.b16 %v6150, %v6149
    %v6218 = vpack.c.b16 %v6152, %v6151
    %v6219 = vpack.c.b16 %v6154, %v6153
    %v6220 = vpack.c.b16 %v6156, %v6155
    %6285 = vmatprep.subr.bf16.mxu0 0
    %6286 = vmatpush1.bf16.msra.mxu0 %v6157
    %6287 = vmatprep.subr.bf16.mxu0 0
    %6288 = vmatpush1.bf16.msra.mxu0 %v6158
    %6289 = vmatprep.subr.bf16.mxu0 0
    %6290 = vmatpush1.bf16.msra.mxu0 %v6159
    %6291 = vmatprep.subr.bf16.mxu0 0
    %6292 = vmatpush1.bf16.msra.mxu0 %v6160
    %6293 = vmatprep.subr.bf16.mxu0 0
    %6294 = vmatpush1.bf16.msra.mxu0 %v6161
    %6295 = vmatprep.subr.bf16.mxu0 0
    %6296 = vmatpush1.bf16.msra.mxu0 %v6162
    %6297 = vmatprep.subr.bf16.mxu0 0
    %6298 = vmatpush1.bf16.msra.mxu0 %v6163
    %6299 = vmatprep.subr.bf16.mxu0 0
    %6300 = vmatpush1.bf16.msra.mxu0 %v6164
    %6301 = vmatprep.subr.bf16.mxu0 0
    %6302 = vmatpush1.bf16.msra.mxu0 %v6165
    %6303 = vmatprep.subr.bf16.mxu0 0
    %6304 = vmatpush1.bf16.msra.mxu0 %v6166
    %6305 = vmatprep.subr.bf16.mxu0 0
    %6306 = vmatpush1.bf16.msra.mxu0 %v6167
    %6307 = vmatprep.subr.bf16.mxu0 0
    %6308 = vmatpush1.bf16.msra.mxu0 %v6168
    %6309 = vmatprep.subr.bf16.mxu0 0
    %6310 = vmatpush1.bf16.msra.mxu0 %v6169
    %6311 = vmatprep.subr.bf16.mxu0 0
    %6312 = vmatpush1.bf16.msra.mxu0 %v6170
    %6313 = vmatprep.subr.bf16.mxu0 0
    %6314 = vmatpush1.bf16.msra.mxu0 %v6171
    %6315 = vmatprep.subr.bf16.mxu0 0
    %6316 = vmatpush1.bf16.msra.mxu0 %v6172
    %6317 = vmatprep.mubr.bf16.mxu0 %v5759
    %6318 = vmatmul.mubr.bf16.gmra.mrb[0].mxu0 %v5758
    %v6319 = vpop.f32.mrb[0].mxu0
    %v6320 = vadd.f32 %v5899, %v6319
    %v6321 = vpop.f32.mrb[0].mxu0
    %v6322 = vpop.f32.mrb[0].mxu0
    %v6323 = vpop.f32.mrb[0].mxu0
    %6324 = vdwg.mxu0
    %6325 = vmatprep.subr.bf16.mxu0 0
    %6326 = vmatpush1.bf16.msra.mxu0 %v6173
    %6327 = vmatprep.subr.bf16.mxu0 0
    %6328 = vmatpush1.bf16.msra.mxu0 %v6174
    %6329 = vmatprep.subr.bf16.mxu0 0
    %6330 = vmatpush1.bf16.msra.mxu0 %v6175
    %6331 = vmatprep.subr.bf16.mxu0 0
    %6332 = vmatpush1.bf16.msra.mxu0 %v6176
    %6333 = vmatprep.subr.bf16.mxu0 0
    %6334 = vmatpush1.bf16.msra.mxu0 %v6177
    %6335 = vmatprep.subr.bf16.mxu0 0
    %6336 = vmatpush1.bf16.msra.mxu0 %v6178
    %6337 = vmatprep.subr.bf16.mxu0 0
    %6338 = vmatpush1.bf16.msra.mxu0 %v6179
    %6339 = vmatprep.subr.bf16.mxu0 0
    %6340 = vmatpush1.bf16.msra.mxu0 %v6180
    %6341 = vmatprep.subr.bf16.mxu0 0
    %6342 = vmatpush1.bf16.msra.mxu0 %v6181
    %6343 = vmatprep.subr.bf16.mxu0 0
    %6344 = vmatpush1.bf16.msra.mxu0 %v6182
    %6345 = vmatprep.subr.bf16.mxu0 0
    %6346 = vmatpush1.bf16.msra.mxu0 %v6183
    %6347 = vmatprep.subr.bf16.mxu0 0
    %6348 = vmatpush1.bf16.msra.mxu0 %v6184
    %6349 = vmatprep.subr.bf16.mxu0 0
    %6350 = vmatpush1.bf16.msra.mxu0 %v6185
    %6351 = vmatprep.subr.bf16.mxu0 0
    %6352 = vmatpush1.bf16.msra.mxu0 %v6186
    %6353 = vmatprep.subr.bf16.mxu0 0
    %6354 = vmatpush1.bf16.msra.mxu0 %v6187
    %6355 = vmatprep.subr.bf16.mxu0 0
    %6356 = vmatpush1.bf16.msra.mxu0 %v6188
    %6357 = vmatprep.mubr.bf16.mxu0 %v5761
    %6358 = vmatmul.mubr.bf16.gmra.mrb[0].mxu0 %v5760
    %v6359 = vpop.f32.mrb[0].mxu0
    %v6360 = vadd.f32 %v6320, %v6359
    %v6361 = vpop.f32.mrb[0].mxu0
    %v6362 = vpop.f32.mrb[0].mxu0
    %v6363 = vpop.f32.mrb[0].mxu0
    %6364 = vdwg.mxu0
    %6365 = vmatprep.subr.bf16.mxu0 0
    %6366 = vmatpush1.bf16.msra.mxu0 %v6189
    %6367 = vmatprep.subr.bf16.mxu0 0
    %6368 = vmatpush1.bf16.msra.mxu0 %v6190
    %6369 = vmatprep.subr.bf16.mxu0 0
    %6370 = vmatpush1.bf16.msra.mxu0 %v6191
    %6371 = vmatprep.subr.bf16.mxu0 0
    %6372 = vmatpush1.bf16.msra.mxu0 %v6192
    %6373 = vmatprep.subr.bf16.mxu0 0
    %6374 = vmatpush1.bf16.msra.mxu0 %v6193
    %6375 = vmatprep.subr.bf16.mxu0 0
    %6376 = vmatpush1.bf16.msra.mxu0 %v6194
    %6377 = vmatprep.subr.bf16.mxu0 0
    %6378 = vmatpush1.bf16.msra.mxu0 %v6195
    %6379 = vmatprep.subr.bf16.mxu0 0
    %6380 = vmatpush1.bf16.msra.mxu0 %v6196
    %6381 = vmatprep.subr.bf16.mxu0 0
    %6382 = vmatpush1.bf16.msra.mxu0 %v6197
    %6383 = vmatprep.subr.bf16.mxu0 0
    %6384 = vmatpush1.bf16.msra.mxu0 %v6198
    %6385 = vmatprep.subr.bf16.mxu0 0
    %6386 = vmatpush1.bf16.msra.mxu0 %v6199
    %6387 = vmatprep.subr.bf16.mxu0 0
    %6388 = vmatpush1.bf16.msra.mxu0 %v6200
    %6389 = vmatprep.subr.bf16.mxu0 0
    %6390 = vmatpush1.bf16.msra.mxu0 %v6201
    %6391 = vmatprep.subr.bf16.mxu0 0
    %6392 = vmatpush1.bf16.msra.mxu0 %v6202
    %6393 = vmatprep.subr.bf16.mxu0 0
    %6394 = vmatpush1.bf16.msra.mxu0 %v6203
    %6395 = vmatprep.subr.bf16.mxu0 0
    %6396 = vmatpush1.bf16.msra.mxu0 %v6204
    %6397 = vmatprep.mubr.bf16.mxu0 %v5763
    %6398 = vmatmul.mubr.bf16.gmra.mrb[0].mxu0 %v5762
    %v6399 = vpop.f32.mrb[0].mxu0
    %v6400 = vadd.f32 %v6360, %v6399
    %v6401 = vpop.f32.mrb[0].mxu0
    %v6402 = vpop.f32.mrb[0].mxu0
    %v6403 = vpop.f32.mrb[0].mxu0
    %6404 = vdwg.mxu0
    %6405 = vmatprep.subr.bf16.mxu0 0
    %6406 = vmatpush1.bf16.msra.mxu0 %v6205
    %6407 = vmatprep.subr.bf16.mxu0 0
    %6408 = vmatpush1.bf16.msra.mxu0 %v6206
    %6409 = vmatprep.subr.bf16.mxu0 0
    %6410 = vmatpush1.bf16.msra.mxu0 %v6207
    %6411 = vmatprep.subr.bf16.mxu0 0
    %6412 = vmatpush1.bf16.msra.mxu0 %v6208
    %6413 = vmatprep.subr.bf16.mxu0 0
    %6414 = vmatpush1.bf16.msra.mxu0 %v6209
    %6415 = vmatprep.subr.bf16.mxu0 0
    %6416 = vmatpush1.bf16.msra.mxu0 %v6210
    %6417 = vmatprep.subr.bf16.mxu0 0
    %6418 = vmatpush1.bf16.msra.mxu0 %v6211
    %6419 = vmatprep.subr.bf16.mxu0 0
    %6420 = vmatpush1.bf16.msra.mxu0 %v6212
    %6421 = vmatprep.subr.bf16.mxu0 0
    %6422 = vmatpush1.bf16.msra.mxu0 %v6213
    %6423 = vmatprep.subr.bf16.mxu0 0
    %6424 = vmatpush1.bf16.msra.mxu0 %v6214
    %6425 = vmatprep.subr.bf16.mxu0 0
    %6426 = vmatpush1.bf16.msra.mxu0 %v6215
    %6427 = vmatprep.subr.bf16.mxu0 0
    %6428 = vmatpush1.bf16.msra.mxu0 %v6216
    %6429 = vmatprep.subr.bf16.mxu0 0
    %6430 = vmatpush1.bf16.msra.mxu0 %v6217
    %6431 = vmatprep.subr.bf16.mxu0 0
    %6432 = vmatpush1.bf16.msra.mxu0 %v6218
    %6433 = vmatprep.subr.bf16.mxu0 0
    %6434 = vmatpush1.bf16.msra.mxu0 %v6219
    %6435 = vmatprep.subr.bf16.mxu0 0
    %6436 = vmatpush1.bf16.msra.mxu0 %v6220
    %6437 = vmatprep.mubr.bf16.mxu0 %v5765
    %6438 = vmatmul.mubr.bf16.gmra.mrb[0].mxu0 %v5764
    %v6439 = vpop.f32.mrb[0].mxu0
    %v6440 = vadd.f32 %v6400, %v6439
    %v6441 = vpop.f32.mrb[0].mxu0
    %v6442 = vpop.f32.mrb[0].mxu0
    %v6443 = vpop.f32.mrb[0].mxu0
    %6444 = vdwg.mxu0
    %6445 = vst [vmem:[#allocation2] sm:$0x3] %v6440
    // Predicated region
    $region30: #{model_forward.3} parent=1 // pred_check
      _
    $region31: #{model_forward.3} parent=1 // pred_check_branch
      %6447 = sbr.rel (0) target = $region33
    $region32: #{model_forward.3} parent=1 // pred_region
      %s6449 = ssub.s32 32, 32
      %6450 = vsyncadd [#allocation3], %s6449
      %s6452 = sshll.u32 [#allocation2], 4
      %s6453 = int_to_ptr.vmem [resolvable:$true] %s6452
      %6455 = dma.vmem_to_hbm [thread:$0]  %s6453, 32, %s7, [#allocation3]
    $region33: #{model_forward.3} parent=1 // pred_fallthru
      _
    // Predicated region
    $region34: #{model_forward.3} parent=1 // pred_check
      _
    $region35: #{model_forward.3} parent=1 // pred_check_branch
      %6457 = sbr.rel (0) target = $region37
    $region36: #{model_forward.3} parent=1 // pred_region
      %6458 = dma.done [#allocation3], 32
    $region37: #{model_forward.3} parent=1 // pred_fallthru
      _
    %6459 = vsyncpa [#allocation3], 1

</llo_original>
